<compile_context>
chip_gen: v6e
topology: v6e:2x2x1
jax: 0.10.0
libtpu: 0.0.40
codegen_flags: <defaults>
</compile_context>

<pallas_src>
import math

import jax
import jax.numpy as jnp
from jax import lax
from jax.experimental import pallas as pl
from jax.experimental.pallas import tpu as pltpu

EXPANSION = 4
SPHERE_EPS = 1e-6                    # reference: y / (||.|| + eps)
SPHERE_EPS2 = SPHERE_EPS * SPHERE_EPS  # kernel:    y * rsqrt(||.||^2 + eps^2)
BN_EPS = 1e-5
LANE = 128


def _round_up(x, m):
    return (x + m - 1) // m * m


def _vmem_limit_bytes():
    """~3/4 of physical VMEM (96 MiB v5e/v6e, 48 MiB v7x); safe default 48 MiB."""
    try:
        info = pltpu.get_tpu_info()
        cap = (getattr(info, "vmem_capacity_bytes", None)
               or getattr(info, "vmem_size_bytes", None))
        if cap:
            return int(min(cap * 3 // 4, 112 * 1024 * 1024))
    except Exception:
        pass
    return 48 * 1024 * 1024


def _bottleneck_kernel(x_ref, w1_ref, w2_ref, w3_ref, b1_ref, b2_ref, b3_ref,
                       out_ref, h1pad_ref):
    _, Hb, W, Cin = x_ref.shape          # Hb = band + 2 (1-row halo each side)
    band = out_ref.shape[1]
    Pp = w1_ref.shape[1]                 # padded planes
    Cout = w3_ref.shape[1]               # padded planes * expansion (== Cin)
    Mh = Hb * W                          # pixels incl. halo rows
    Mb = band * W                        # pixels written by this grid step

    r = pl.program_id(1)
    nb = pl.num_programs(1)

    # ---- conv1: 1x1 sphere conv (BN scale folded into w1) + bias + ReLU -----
    # Computed on the band *and* its halo rows; normalization is applied
    # post-matmul (dot(x, w) * inv_norm == dot(x * inv_norm, w)).
    xm = x_ref[0].reshape(Mh, Cin)                              # bf16
    c1 = jnp.dot(xm, w1_ref[...], preferred_element_type=jnp.float32)
    sq1 = jnp.sum(jnp.square(xm.astype(jnp.float32)), axis=-1, keepdims=True)
    inv1 = lax.rsqrt(sq1 + SPHERE_EPS2)
    h1 = jnp.maximum(c1 * inv1 + b1_ref[...], 0.0)              # (Mh, Pp) f32
    h1_img = h1.reshape(Hb, W, Pp)

    # Halo rows that lie outside the image must be exact zeros (conv2's zero
    # padding), not conv1(zero row) which would be relu(bias).
    rows = lax.broadcasted_iota(jnp.int32, (Hb, W, 1), 0)
    keep = jnp.logical_and(jnp.logical_or(rows > 0, r > 0),
                           jnp.logical_or(rows < Hb - 1, r < nb - 1))
    h1_img = jnp.where(keep, h1_img, 0.0)

    # ---- conv2: 3x3 sphere conv, stride 1, pad 1 -----------------------------
    # Column-padded bf16 scratch; 9 accumulating (Mb,Pp)x(Pp,Pp) MXU matmuls
    # straight from shifted views (no im2col buffer, no concatenate).
    h1pad_ref[:, 1:W + 1, :] = h1_img.astype(jnp.bfloat16)
    zcol = jnp.zeros((Hb, 1, Pp), jnp.bfloat16)
    h1pad_ref[:, 0:1, :] = zcol
    h1pad_ref[:, W + 1:W + 2, :] = zcol

    acc = None
    for dy in range(3):
        for dx in range(3):
            patch = h1pad_ref[dy:dy + band, dx:dx + W, :].reshape(Mb, Pp)
            part = jnp.dot(patch, w2_ref[dy * 3 + dx],
                           preferred_element_type=jnp.float32)
            acc = part if acc is None else acc + part           # (Mb, Pp) f32

    # 3x3-patch squared norm = separable 2-pass box sum of per-pixel |h1|^2,
    # done in registers (no scratch / masked stores).
    sqc = jnp.sum(jnp.square(h1_img), axis=-1, keepdims=True)   # (Hb, W, 1) f32
    vsum = sqc[0:band] + sqc[1:band + 1] + sqc[2:band + 2]      # (band, W, 1)
    zc1 = jnp.zeros((band, 1, 1), jnp.float32)
    hp = jnp.concatenate([zc1, vsum, zc1], axis=1)              # (band, W+2, 1)
    nrm2 = hp[:, 0:W, :] + hp[:, 1:W + 1, :] + hp[:, 2:W + 2, :]
    inv2 = lax.rsqrt(nrm2 + SPHERE_EPS2).reshape(Mb, 1)
    h2 = jnp.maximum(acc * inv2 + b2_ref[...], 0.0)             # (Mb, Pp) f32

    # ---- conv3: 1x1 sphere conv (BN scale folded into w3) + bias -------------
    sq3 = jnp.sum(jnp.square(h2), axis=-1, keepdims=True)
    inv3 = lax.rsqrt(sq3 + SPHERE_EPS2)
    h2n = (h2 * inv3).astype(jnp.bfloat16)                      # pre-scale: Pp < Cout
    h3 = jnp.dot(h2n, w3_ref[...], preferred_element_type=jnp.float32) + b3_ref[...]

    # ---- residual add (downsample is None) + ReLU ----------------------------
    # Re-read x from the resident block (no long-lived f32 copy of the input).
    xres = x_ref[0, 1:band + 1].reshape(Mb, Cin).astype(jnp.float32)
    out = jnp.maximum(h3 + xres, 0.0)
    out_ref[0] = out.reshape(band, W, Cout).astype(out_ref.dtype)


def sphere_bottleneck_nhwc(x_nhwc, params, *, row_band=8):
    """NHWC core.  x_nhwc: [N, H, W, Cin] (any float dtype; cast to bf16)."""
    w1, w2, w3 = params["w1"], params["w2"], params["w3"]
    b1, b2, b3 = params["b1"], params["b2"], params["b3"]
    cout = params["cout"]
    N, H, W, cin = x_nhwc.shape
    Cin_p, Pp = w1.shape
    Cout_p = w3.shape[1]
    assert cout == cin and Cin_p == Cout_p, \
        "downsample=None requires inplanes == planes * expansion"

    # bf16 activation I/O; pad channels to a lane multiple; pad H by one zero
    # row top+bottom (conv2's zero padding for the first/last row band).
    x = jnp.pad(x_nhwc.astype(jnp.bfloat16),
                ((0, 0), (1, 1), (0, 0), (0, Cin_p - cin)))

    vmem_limit = _vmem_limit_bytes()

    def run(band, halo_blocks, buffered_weights):
        n_bands = H // band
        Hb = band + 2

        if halo_blocks:
            # Overlapping (band + 1-row halo each side) input windows via
            # element-indexed block offsets into the H-padded input.
            x_spec = pl.BlockSpec((1, pl.Element(Hb), W, Cin_p),
                                  lambda n, r: (n, r * band, 0, 0))
        else:
            x_spec = pl.BlockSpec((1, Hb, W, Cin_p), lambda n, r: (n, 0, 0, 0))

        def wspec(shape, imap):
            if buffered_weights:
                # Constant index_map -> a single VMEM buffer is enough.
                return pl.BlockSpec(shape, imap, pipeline_mode=pl.Buffered(1))
            return pl.BlockSpec(shape, imap)

        grid_spec = pltpu.PrefetchScalarGridSpec(
            num_scalar_prefetch=0,
            grid=(N, n_bands),
            in_specs=[
                x_spec,
                wspec(w1.shape, lambda n, r: (0, 0)),
                wspec(w2.shape, lambda n, r: (0, 0, 0)),
                wspec(w3.shape, lambda n, r: (0, 0)),
                wspec(b1.shape, lambda n, r: (0, 0)),
                wspec(b2.shape, lambda n, r: (0, 0)),
                wspec(b3.shape, lambda n, r: (0, 0)),
            ],
            out_specs=pl.BlockSpec((1, band, W, Cout_p),
                                   lambda n, r: (n, r, 0, 0)),
            scratch_shapes=[pltpu.VMEM((Hb, W + 2, Pp), jnp.bfloat16)],
        )
        return pl.pallas_call(
            _bottleneck_kernel,
            out_shape=jax.ShapeDtypeStruct((N, H, W, Cout_p), jnp.bfloat16),
            grid_spec=grid_spec,
            compiler_params=pltpu.CompilerParams(
                dimension_semantics=("parallel", "parallel"),
                vmem_limit_bytes=vmem_limit,
            ),
        )(x, w1, w2, w3, b1, b2, b3)

    band = row_band if (row_band and H > row_band and H % row_band == 0) else H
    if band < H:
        try:
            out = run(band, True, True)
            jax.block_until_ready(out)
        except Exception:
            # Conservative fallback if element-indexed halo blocks or
            # pl.Buffered(1) are unsupported by this Pallas/Mosaic build.
            out = run(H, False, False)
    else:
        out = run(H, False, False)

    if Cout_p > cout:
        out = out[..., :cout]
    return out


def sphere_bottleneck(x_nchw, params, *, row_band=8):
    """PyTorch-layout (NCHW) entry point.  In a full network keep activations
    NHWC (and bf16) between blocks and call sphere_bottleneck_nhwc directly so
    these two layout transposes disappear."""
    x = jnp.transpose(x_nchw, (0, 2, 3, 1))
    y = sphere_bottleneck_nhwc(x, params, row_band=row_band)
    return jnp.transpose(y, (0, 3, 1, 2))


def prepare_params(raw_w1, raw_w2, raw_w3, bn1=None, bn2=None, bn3=None):
    """raw_w*: PyTorch-layout conv weights (out, in, kh, kw).
    bn* = (gamma, beta, running_mean, running_var) or None for a fresh BN.
    Per-output-filter L2 normalization (sphere conv), BN scale folded into the
    filters, channel dims zero-padded to lane multiples, weights cast to bf16.
    conv2 is stored as 9 per-tap (Pp, Pp) matrices."""
    planes = raw_w1.shape[0]
    inplanes = raw_w1.shape[1]
    cout = raw_w3.shape[0]
    assert cout == inplanes, "downsample=None requires inplanes == planes*expansion"
    Pp = _round_up(planes, LANE)
    Cin_p = _round_up(inplanes, LANE)
    Cout_p = _round_up(cout, LANE)

    def fold(w, bn):
        n_out = w.shape[0]
        flat = w.reshape(n_out, -1)
        norm = jnp.sqrt(jnp.sum(flat * flat, axis=1)).reshape(-1, 1, 1, 1)
        wn = w / (norm + SPHERE_EPS)
        if bn is None:
            gamma = jnp.ones((n_out,), jnp.float32)
            beta = jnp.zeros((n_out,), jnp.float32)
            mean = jnp.zeros((n_out,), jnp.float32)
            var = jnp.ones((n_out,), jnp.float32)
        else:
            gamma, beta, mean, var = bn
        scale = gamma / jnp.sqrt(var + BN_EPS)
        bias = beta - mean * scale
        return wn * scale.reshape(-1, 1, 1, 1), bias

    w1f, b1 = fold(raw_w1, bn1)
    w2f, b2 = fold(raw_w2, bn2)
    w3f, b3 = fold(raw_w3, bn3)

    # conv1: (planes, inplanes, 1, 1) -> (Cin_p, Pp)
    w1k = jnp.pad(jnp.transpose(w1f[:, :, 0, 0], (1, 0)),
                  ((0, Cin_p - inplanes), (0, Pp - planes))).astype(jnp.bfloat16)
    # conv2: (planes, planes, 3, 3) -> (kh, kw, in, out) -> (9, Pp, Pp)
    w2k = jnp.pad(jnp.transpose(w2f, (2, 3, 1, 0)),
                  ((0, 0), (0, 0), (0, Pp - planes), (0, Pp - planes)))
    w2k = w2k.reshape(9, Pp, Pp).astype(jnp.bfloat16)
    # conv3: (cout, planes, 1, 1) -> (Pp, Cout_p)
    w3k = jnp.pad(jnp.transpose(w3f[:, :, 0, 0], (1, 0)),
                  ((0, Pp - planes), (0, Cout_p - cout))).astype(jnp.bfloat16)

    b1k = jnp.pad(b1, (0, Pp - planes)).reshape(1, Pp).astype(jnp.float32)
    b2k = jnp.pad(b2, (0, Pp - planes)).reshape(1, Pp).astype(jnp.float32)
    b3k = jnp.pad(b3, (0, Cout_p - cout)).reshape(1, Cout_p).astype(jnp.float32)
    return dict(w1=w1k, w2=w2k, w3=w3k, b1=b1k, b2=b2k, b3=b3k, cout=cout)


def reference_forward(x_nchw, raw_w1, raw_w2, raw_w3):
    """Pure-JAX f32 reference (inference BN, stride=1, no downsample), NCHW."""
    bn = 1.0 / math.sqrt(1.0 + BN_EPS)
    dn = ("NCHW", "OIHW", "NCHW")

    def sphere_conv(h, w, pad):
        n_out = w.shape[0]
        norm = jnp.sqrt(jnp.sum(w.reshape(n_out, -1) ** 2, axis=1)).reshape(-1, 1, 1, 1)
        wn = w / (norm + SPHERE_EPS)
        y = lax.conv_general_dilated(h, wn, (1, 1), [(pad, pad), (pad, pad)],
                                     dimension_numbers=dn)
        ones = jnp.ones((1,) + w.shape[1:], h.dtype)
        n2 = lax.conv_general_dilated(h * h, ones, (1, 1), [(pad, pad), (pad, pad)],
                                      dimension_numbers=dn)
        return y / (jnp.sqrt(n2) + SPHERE_EPS)

    h = jnp.maximum(sphere_conv(x_nchw, raw_w1, 0) * bn, 0.0)
    h = jnp.maximum(sphere_conv(h, raw_w2, 1) * bn, 0.0)
    h = sphere_conv(h, raw_w3, 0) * bn
    return jnp.maximum(h + x_nchw, 0.0)


if __name__ == "__main__":
    # Small shapes consistent with the module: inplanes == planes * expansion.
    N, planes, H, W = 2, 4, 16, 16
    inplanes = planes * EXPANSION   # 16

    key = jax.random.PRNGKey(0)
    kx, k1, k2, k3 = jax.random.split(key, 4)
    x = jax.random.normal(kx, (N, inplanes, H, W), jnp.float32)   # NCHW (PyTorch)

    def conv_init(k, out_c, in_c, ks):
        # sphereresnet msra-style init: std = sqrt(2 / (k*k*out_channels))
        n = ks * ks * out_c
        return jax.random.normal(k, (out_c, in_c, ks, ks), jnp.float32) * math.sqrt(2.0 / n)

    raw_w1 = conv_init(k1, planes, inplanes, 1)
    raw_w2 = conv_init(k2, planes, planes, 3)
    raw_w3 = conv_init(k3, planes * EXPANSION, planes, 1)

    params = prepare_params(raw_w1, raw_w2, raw_w3)

    out = jax.block_until_ready(sphere_bottleneck(x, params))
    assert out.shape == (N, inplanes, H, W)

    ref = reference_forward(x, raw_w1, raw_w2, raw_w3)
    err = float(jnp.max(jnp.abs(out.astype(jnp.float32) - ref)))
    assert err < 1e-1, f"max |kernel - reference| = {err}"
    print("KERNEL_OK")
</pallas_src>

<mosaic_0001>
module attributes {stable_mosaic.version = 11 : i64} {
  func.func @_bottleneck_kernel(%arg0: i32, %arg1: i32, %arg2: memref<1x18x16x128xbf16, #tpu.memory_space<vmem>>, %arg3: memref<128x128xbf16, #tpu.memory_space<vmem>>, %arg4: memref<9x128x128xbf16, #tpu.memory_space<vmem>>, %arg5: memref<128x128xbf16, #tpu.memory_space<vmem>>, %arg6: memref<1x128xf32, #tpu.memory_space<vmem>>, %arg7: memref<1x128xf32, #tpu.memory_space<vmem>>, %arg8: memref<1x128xf32, #tpu.memory_space<vmem>>, %arg9: memref<1x16x16x128xbf16, #tpu.memory_space<vmem>>, %arg10: memref<18x18x128xbf16, #tpu.memory_space<vmem>>) attributes {dimension_semantics = [#tpu.dimension_semantics<parallel>, #tpu.dimension_semantics<parallel>], iteration_bounds = array<i64: 2, 1>, scalar_prefetch = 0 : i64, scratch_operands = 1 : i64, tpu.core_type = #tpu.core_type<tc>, window_params = [{transform_indices = @transform_0, window_bounds = array<i64: 1, 18, 16, 128>}, {pipeline_mode = #tpu.pipeline_mode<synchronous>, transform_indices = @transform_1, window_bounds = array<i64: 128, 128>}, {pipeline_mode = #tpu.pipeline_mode<synchronous>, transform_indices = @transform_2, window_bounds = array<i64: 9, 128, 128>}, {pipeline_mode = #tpu.pipeline_mode<synchronous>, transform_indices = @transform_3, window_bounds = array<i64: 128, 128>}, {pipeline_mode = #tpu.pipeline_mode<synchronous>, transform_indices = @transform_4, window_bounds = array<i64: 1, 128>}, {pipeline_mode = #tpu.pipeline_mode<synchronous>, transform_indices = @transform_5, window_bounds = array<i64: 1, 128>}, {pipeline_mode = #tpu.pipeline_mode<synchronous>, transform_indices = @transform_6, window_bounds = array<i64: 1, 128>}, {transform_indices = @transform_7, window_bounds = array<i64: 1, 16, 16, 128>}]} {
    %c0 = arith.constant 0 : index
    %c0_0 = arith.constant 0 : index
    %c0_1 = arith.constant 0 : index
    %c0_2 = arith.constant 0 : index
    %0 = vector.load %arg2[%c0, %c0_0, %c0_1, %c0_2] : memref<1x18x16x128xbf16, #tpu.memory_space<vmem>>, vector<1x18x16x128xbf16>
    %1 = vector.shape_cast %0 : vector<1x18x16x128xbf16> to vector<18x16x128xbf16>
    %2 = vector.shape_cast %1 : vector<18x16x128xbf16> to vector<288x128xbf16>
    %c0_3 = arith.constant 0 : index
    %c0_4 = arith.constant 0 : index
    %3 = vector.load %arg3[%c0_3, %c0_4] : memref<128x128xbf16, #tpu.memory_space<vmem>>, vector<128x128xbf16>
    %cst = arith.constant dense<0.000000e+00> : vector<288x128xf32>
    %4 = tpu.matmul %2, %3, %cst {dimension_numbers = #tpu.dot_dimension_numbers<[1], [0], [0], [1], [0, 0, 1, 1], [], []>} : vector<288x128xbf16>, vector<128x128xbf16>, vector<288x128xf32> -> vector<288x128xf32>
    %5 = arith.extf %2 : vector<288x128xbf16> to vector<288x128xf32>
    %6 = arith.mulf %5, %5 : vector<288x128xf32>
    %cst_5 = arith.constant dense<0.000000e+00> : vector<288xf32>
    %7 = vector.multi_reduction <add>, %6, %cst_5 [1] : vector<288x128xf32> to vector<288xf32>
    %8 = vector.shape_cast %7 : vector<288xf32> to vector<288x1xf32>
    %cst_6 = arith.constant 9.99999996E-13 : f32
    %9 = vector.broadcast %cst_6 : f32 to vector<288x1xf32>
    %10 = arith.addf %8, %9 : vector<288x1xf32>
    %11 = math.rsqrt %10 : vector<288x1xf32>
    %12 = vector.broadcast %11 : vector<288x1xf32> to vector<288x128xf32>
    %13 = arith.mulf %4, %12 : vector<288x128xf32>
    %c0_7 = arith.constant 0 : index
    %c0_8 = arith.constant 0 : index
    %14 = vector.load %arg6[%c0_7, %c0_8] : memref<1x128xf32, #tpu.memory_space<vmem>>, vector<1x128xf32>
    %15 = vector.broadcast %14 : vector<1x128xf32> to vector<288x128xf32>
    %16 = arith.addf %13, %15 : vector<288x128xf32>
    %cst_9 = arith.constant 0.000000e+00 : f32
    %17 = vector.broadcast %cst_9 : f32 to vector<288x128xf32>
    %18 = arith.maximumf %16, %17 : vector<288x128xf32>
    %19 = vector.shape_cast %18 : vector<288x128xf32> to vector<18x16x128xf32>
    %20 = tpu.iota {dimensions = array<i32: 0>} : vector<18x16x1xi32>
    %c0_i32 = arith.constant 0 : i32
    %21 = vector.broadcast %c0_i32 : i32 to vector<18x16x1xi32>
    %22 = arith.cmpi sgt, %20, %21 : vector<18x16x1xi32>
    %c0_i32_10 = arith.constant 0 : i32
    %23 = arith.cmpi sgt, %arg1, %c0_i32_10 : i32
    %24 = vector.broadcast %23 : i1 to vector<18x16x1xi1>
    %25 = arith.ori %22, %24 : vector<18x16x1xi1>
    %c17_i32 = arith.constant 17 : i32
    %26 = vector.broadcast %c17_i32 : i32 to vector<18x16x1xi32>
    %27 = arith.cmpi slt, %20, %26 : vector<18x16x1xi32>
    %c0_i32_11 = arith.constant 0 : i32
    %28 = arith.cmpi slt, %arg1, %c0_i32_11 : i32
    %29 = vector.broadcast %28 : i1 to vector<18x16x1xi1>
    %30 = arith.ori %27, %29 : vector<18x16x1xi1>
    %31 = arith.andi %25, %30 : vector<18x16x1xi1>
    %cst_12 = arith.constant 0.000000e+00 : f32
    %32 = vector.shape_cast %31 : vector<18x16x1xi1> to vector<18x16x1xi1>
    %33 = vector.broadcast %32 : vector<18x16x1xi1> to vector<18x16x128xi1>
    %34 = vector.broadcast %cst_12 : f32 to vector<18x16x128xf32>
    %35 = arith.select %33, %19, %34 : vector<18x16x128xi1>, vector<18x16x128xf32>
    %36 = arith.truncf %35 : vector<18x16x128xf32> to vector<18x16x128xbf16>
    %c0_13 = arith.constant 0 : index
    %c1 = arith.constant 1 : index
    %c0_14 = arith.constant 0 : index
    %37 = vector.load %arg10[%c0_13, %c1, %c0_14] : memref<18x18x128xbf16, #tpu.memory_space<vmem>>, vector<18x16x128xbf16>
    tpu.vector_store %arg10[%c0_13, %c1, %c0_14], %36 {strides = array<i32>} : memref<18x18x128xbf16, #tpu.memory_space<vmem>>, vector<18x16x128xbf16>,
    %cst_15 = arith.constant 0.000000e+00 : bf16
    %38 = vector.broadcast %cst_15 : bf16 to vector<18x1x128xbf16>
    %c0_16 = arith.constant 0 : index
    %c0_17 = arith.constant 0 : index
    %c0_18 = arith.constant 0 : index
    %39 = vector.load %arg10[%c0_16, %c0_17, %c0_18] : memref<18x18x128xbf16, #tpu.memory_space<vmem>>, vector<18x1x128xbf16>
    tpu.vector_store %arg10[%c0_16, %c0_17, %c0_18], %38 {strides = array<i32>} : memref<18x18x128xbf16, #tpu.memory_space<vmem>>, vector<18x1x128xbf16>,
    %c0_19 = arith.constant 0 : index
    %c17 = arith.constant 17 : index
    %c0_20 = arith.constant 0 : index
    %40 = vector.load %arg10[%c0_19, %c17, %c0_20] : memref<18x18x128xbf16, #tpu.memory_space<vmem>>, vector<18x1x128xbf16>
    tpu.vector_store %arg10[%c0_19, %c17, %c0_20], %38 {strides = array<i32>} : memref<18x18x128xbf16, #tpu.memory_space<vmem>>, vector<18x1x128xbf16>,
    %c0_21 = arith.constant 0 : index
    %c0_22 = arith.constant 0 : index
    %c0_23 = arith.constant 0 : index
    %41 = vector.load %arg10[%c0_21, %c0_22, %c0_23] : memref<18x18x128xbf16, #tpu.memory_space<vmem>>, vector<16x16x128xbf16>
    %42 = vector.shape_cast %41 : vector<16x16x128xbf16> to vector<256x128xbf16>
    %c0_24 = arith.constant 0 : index
    %c0_25 = arith.constant 0 : index
    %c0_26 = arith.constant 0 : index
    %43 = vector.load %arg4[%c0_24, %c0_25, %c0_26] : memref<9x128x128xbf16, #tpu.memory_space<vmem>>, vector<1x128x128xbf16>
    %44 = vector.shape_cast %43 : vector<1x128x128xbf16> to vector<128x128xbf16>
    %cst_27 = arith.constant dense<0.000000e+00> : vector<256x128xf32>
    %45 = tpu.matmul %42, %44, %cst_27 {dimension_numbers = #tpu.dot_dimension_numbers<[1], [0], [0], [1], [0, 0, 1, 1], [], []>} : vector<256x128xbf16>, vector<128x128xbf16>, vector<256x128xf32> -> vector<256x128xf32>
    %c0_28 = arith.constant 0 : index
    %c1_29 = arith.constant 1 : index
    %c0_30 = arith.constant 0 : index
    %46 = vector.load %arg10[%c0_28, %c1_29, %c0_30] : memref<18x18x128xbf16, #tpu.memory_space<vmem>>, vector<16x16x128xbf16>
    %47 = vector.shape_cast %46 : vector<16x16x128xbf16> to vector<256x128xbf16>
    %c1_31 = arith.constant 1 : index
    %c0_32 = arith.constant 0 : index
    %c0_33 = arith.constant 0 : index
    %48 = vector.load %arg4[%c1_31, %c0_32, %c0_33] : memref<9x128x128xbf16, #tpu.memory_space<vmem>>, vector<1x128x128xbf16>
    %49 = vector.shape_cast %48 : vector<1x128x128xbf16> to vector<128x128xbf16>
    %cst_34 = arith.constant dense<0.000000e+00> : vector<256x128xf32>
    %50 = tpu.matmul %47, %49, %cst_34 {dimension_numbers = #tpu.dot_dimension_numbers<[1], [0], [0], [1], [0, 0, 1, 1], [], []>} : vector<256x128xbf16>, vector<128x128xbf16>, vector<256x128xf32> -> vector<256x128xf32>
    %51 = arith.addf %45, %50 : vector<256x128xf32>
    %c0_35 = arith.constant 0 : index
    %c2 = arith.constant 2 : index
    %c0_36 = arith.constant 0 : index
    %52 = vector.load %arg10[%c0_35, %c2, %c0_36] : memref<18x18x128xbf16, #tpu.memory_space<vmem>>, vector<16x16x128xbf16>
    %53 = vector.shape_cast %52 : vector<16x16x128xbf16> to vector<256x128xbf16>
    %c2_37 = arith.constant 2 : index
    %c0_38 = arith.constant 0 : index
    %c0_39 = arith.constant 0 : index
    %54 = vector.load %arg4[%c2_37, %c0_38, %c0_39] : memref<9x128x128xbf16, #tpu.memory_space<vmem>>, vector<1x128x128xbf16>
    %55 = vector.shape_cast %54 : vector<1x128x128xbf16> to vector<128x128xbf16>
    %cst_40 = arith.constant dense<0.000000e+00> : vector<256x128xf32>
    %56 = tpu.matmul %53, %55, %cst_40 {dimension_numbers = #tpu.dot_dimension_numbers<[1], [0], [0], [1], [0, 0, 1, 1], [], []>} : vector<256x128xbf16>, vector<128x128xbf16>, vector<256x128xf32> -> vector<256x128xf32>
    %57 = arith.addf %51, %56 : vector<256x128xf32>
    %c1_41 = arith.constant 1 : index
    %c0_42 = arith.constant 0 : index
    %c0_43 = arith.constant 0 : index
    %58 = vector.load %arg10[%c1_41, %c0_42, %c0_43] : memref<18x18x128xbf16, #tpu.memory_space<vmem>>, vector<16x16x128xbf16>
    %59 = vector.shape_cast %58 : vector<16x16x128xbf16> to vector<256x128xbf16>
    %c3 = arith.constant 3 : index
    %c0_44 = arith.constant 0 : index
    %c0_45 = arith.constant 0 : index
    %60 = vector.load %arg4[%c3, %c0_44, %c0_45] : memref<9x128x128xbf16, #tpu.memory_space<vmem>>, vector<1x128x128xbf16>
    %61 = vector.shape_cast %60 : vector<1x128x128xbf16> to vector<128x128xbf16>
    %cst_46 = arith.constant dense<0.000000e+00> : vector<256x128xf32>
    %62 = tpu.matmul %59, %61, %cst_46 {dimension_numbers = #tpu.dot_dimension_numbers<[1], [0], [0], [1], [0, 0, 1, 1], [], []>} : vector<256x128xbf16>, vector<128x128xbf16>, vector<256x128xf32> -> vector<256x128xf32>
    %63 = arith.addf %57, %62 : vector<256x128xf32>
    %c1_47 = arith.constant 1 : index
    %c1_48 = arith.constant 1 : index
    %c0_49 = arith.constant 0 : index
    %64 = vector.load %arg10[%c1_47, %c1_48, %c0_49] : memref<18x18x128xbf16, #tpu.memory_space<vmem>>, vector<16x16x128xbf16>
    %65 = vector.shape_cast %64 : vector<16x16x128xbf16> to vector<256x128xbf16>
    %c4 = arith.constant 4 : index
    %c0_50 = arith.constant 0 : index
    %c0_51 = arith.constant 0 : index
    %66 = vector.load %arg4[%c4, %c0_50, %c0_51] : memref<9x128x128xbf16, #tpu.memory_space<vmem>>, vector<1x128x128xbf16>
    %67 = vector.shape_cast %66 : vector<1x128x128xbf16> to vector<128x128xbf16>
    %cst_52 = arith.constant dense<0.000000e+00> : vector<256x128xf32>
    %68 = tpu.matmul %65, %67, %cst_52 {dimension_numbers = #tpu.dot_dimension_numbers<[1], [0], [0], [1], [0, 0, 1, 1], [], []>} : vector<256x128xbf16>, vector<128x128xbf16>, vector<256x128xf32> -> vector<256x128xf32>
    %69 = arith.addf %63, %68 : vector<256x128xf32>
    %c1_53 = arith.constant 1 : index
    %c2_54 = arith.constant 2 : index
    %c0_55 = arith.constant 0 : index
    %70 = vector.load %arg10[%c1_53, %c2_54, %c0_55] : memref<18x18x128xbf16, #tpu.memory_space<vmem>>, vector<16x16x128xbf16>
    %71 = vector.shape_cast %70 : vector<16x16x128xbf16> to vector<256x128xbf16>
    %c5 = arith.constant 5 : index
    %c0_56 = arith.constant 0 : index
    %c0_57 = arith.constant 0 : index
    %72 = vector.load %arg4[%c5, %c0_56, %c0_57] : memref<9x128x128xbf16, #tpu.memory_space<vmem>>, vector<1x128x128xbf16>
    %73 = vector.shape_cast %72 : vector<1x128x128xbf16> to vector<128x128xbf16>
    %cst_58 = arith.constant dense<0.000000e+00> : vector<256x128xf32>
    %74 = tpu.matmul %71, %73, %cst_58 {dimension_numbers = #tpu.dot_dimension_numbers<[1], [0], [0], [1], [0, 0, 1, 1], [], []>} : vector<256x128xbf16>, vector<128x128xbf16>, vector<256x128xf32> -> vector<256x128xf32>
    %75 = arith.addf %69, %74 : vector<256x128xf32>
    %c2_59 = arith.constant 2 : index
    %c0_60 = arith.constant 0 : index
    %c0_61 = arith.constant 0 : index
    %76 = vector.load %arg10[%c2_59, %c0_60, %c0_61] : memref<18x18x128xbf16, #tpu.memory_space<vmem>>, vector<16x16x128xbf16>
    %77 = vector.shape_cast %76 : vector<16x16x128xbf16> to vector<256x128xbf16>
    %c6 = arith.constant 6 : index
    %c0_62 = arith.constant 0 : index
    %c0_63 = arith.constant 0 : index
    %78 = vector.load %arg4[%c6, %c0_62, %c0_63] : memref<9x128x128xbf16, #tpu.memory_space<vmem>>, vector<1x128x128xbf16>
    %79 = vector.shape_cast %78 : vector<1x128x128xbf16> to vector<128x128xbf16>
    %cst_64 = arith.constant dense<0.000000e+00> : vector<256x128xf32>
    %80 = tpu.matmul %77, %79, %cst_64 {dimension_numbers = #tpu.dot_dimension_numbers<[1], [0], [0], [1], [0, 0, 1, 1], [], []>} : vector<256x128xbf16>, vector<128x128xbf16>, vector<256x128xf32> -> vector<256x128xf32>
    %81 = arith.addf %75, %80 : vector<256x128xf32>
    %c2_65 = arith.constant 2 : index
    %c1_66 = arith.constant 1 : index
    %c0_67 = arith.constant 0 : index
    %82 = vector.load %arg10[%c2_65, %c1_66, %c0_67] : memref<18x18x128xbf16, #tpu.memory_space<vmem>>, vector<16x16x128xbf16>
    %83 = vector.shape_cast %82 : vector<16x16x128xbf16> to vector<256x128xbf16>
    %c7 = arith.constant 7 : index
    %c0_68 = arith.constant 0 : index
    %c0_69 = arith.constant 0 : index
    %84 = vector.load %arg4[%c7, %c0_68, %c0_69] : memref<9x128x128xbf16, #tpu.memory_space<vmem>>, vector<1x128x128xbf16>
    %85 = vector.shape_cast %84 : vector<1x128x128xbf16> to vector<128x128xbf16>
    %cst_70 = arith.constant dense<0.000000e+00> : vector<256x128xf32>
    %86 = tpu.matmul %83, %85, %cst_70 {dimension_numbers = #tpu.dot_dimension_numbers<[1], [0], [0], [1], [0, 0, 1, 1], [], []>} : vector<256x128xbf16>, vector<128x128xbf16>, vector<256x128xf32> -> vector<256x128xf32>
    %87 = arith.addf %81, %86 : vector<256x128xf32>
    %c2_71 = arith.constant 2 : index
    %c2_72 = arith.constant 2 : index
    %c0_73 = arith.constant 0 : index
    %88 = vector.load %arg10[%c2_71, %c2_72, %c0_73] : memref<18x18x128xbf16, #tpu.memory_space<vmem>>, vector<16x16x128xbf16>
    %89 = vector.shape_cast %88 : vector<16x16x128xbf16> to vector<256x128xbf16>
    %c8 = arith.constant 8 : index
    %c0_74 = arith.constant 0 : index
    %c0_75 = arith.constant 0 : index
    %90 = vector.load %arg4[%c8, %c0_74, %c0_75] : memref<9x128x128xbf16, #tpu.memory_space<vmem>>, vector<1x128x128xbf16>
    %91 = vector.shape_cast %90 : vector<1x128x128xbf16> to vector<128x128xbf16>
    %cst_76 = arith.constant dense<0.000000e+00> : vector<256x128xf32>
    %92 = tpu.matmul %89, %91, %cst_76 {dimension_numbers = #tpu.dot_dimension_numbers<[1], [0], [0], [1], [0, 0, 1, 1], [], []>} : vector<256x128xbf16>, vector<128x128xbf16>, vector<256x128xf32> -> vector<256x128xf32>
    %93 = arith.addf %87, %92 : vector<256x128xf32>
    %94 = arith.mulf %35, %35 : vector<18x16x128xf32>
    %cst_77 = arith.constant dense<0.000000e+00> : vector<18x16xf32>
    %95 = vector.multi_reduction <add>, %94, %cst_77 [2] : vector<18x16x128xf32> to vector<18x16xf32>
    %96 = vector.shape_cast %95 : vector<18x16xf32> to vector<18x16x1xf32>
    %97 = vector.extract_strided_slice %96 {offsets = [0, 0, 0], sizes = [16, 16, 1], strides = [1, 1, 1]} : vector<18x16x1xf32> to vector<16x16x1xf32>
    %98 = vector.extract_strided_slice %96 {offsets = [1, 0, 0], sizes = [16, 16, 1], strides = [1, 1, 1]} : vector<18x16x1xf32> to vector<16x16x1xf32>
    %99 = arith.addf %97, %98 : vector<16x16x1xf32>
    %100 = vector.extract_strided_slice %96 {offsets = [2, 0, 0], sizes = [16, 16, 1], strides = [1, 1, 1]} : vector<18x16x1xf32> to vector<16x16x1xf32>
    %101 = arith.addf %99, %100 : vector<16x16x1xf32>
    %cst_78 = arith.constant 0.000000e+00 : f32
    %102 = vector.broadcast %cst_78 : f32 to vector<16x1x1xf32>
    %103 = tpu.concatenate %102, %101, %102 in 1 : vector<16x1x1xf32>, vector<16x16x1xf32>, vector<16x1x1xf32> -> vector<16x18x1xf32>
    %104 = vector.extract_strided_slice %103 {offsets = [0, 0, 0], sizes = [16, 16, 1], strides = [1, 1, 1]} : vector<16x18x1xf32> to vector<16x16x1xf32>
    %105 = vector.extract_strided_slice %103 {offsets = [0, 1, 0], sizes = [16, 16, 1], strides = [1, 1, 1]} : vector<16x18x1xf32> to vector<16x16x1xf32>
    %106 = arith.addf %104, %105 : vector<16x16x1xf32>
    %107 = vector.extract_strided_slice %103 {offsets = [0, 2, 0], sizes = [16, 16, 1], strides = [1, 1, 1]} : vector<16x18x1xf32> to vector<16x16x1xf32>
    %108 = arith.addf %106, %107 : vector<16x16x1xf32>
    %cst_79 = arith.constant 9.99999996E-13 : f32
    %109 = vector.broadcast %cst_79 : f32 to vector<16x16x1xf32>
    %110 = arith.addf %108, %109 : vector<16x16x1xf32>
    %111 = math.rsqrt %110 : vector<16x16x1xf32>
    %112 = vector.shape_cast %111 : vector<16x16x1xf32> to vector<256x1xf32>
    %113 = vector.broadcast %112 : vector<256x1xf32> to vector<256x128xf32>
    %114 = arith.mulf %93, %113 : vector<256x128xf32>
    %c0_80 = arith.constant 0 : index
    %c0_81 = arith.constant 0 : index
    %115 = vector.load %arg7[%c0_80, %c0_81] : memref<1x128xf32, #tpu.memory_space<vmem>>, vector<1x128xf32>
    %116 = vector.broadcast %115 : vector<1x128xf32> to vector<256x128xf32>
    %117 = arith.addf %114, %116 : vector<256x128xf32>
    %cst_82 = arith.constant 0.000000e+00 : f32
    %118 = vector.broadcast %cst_82 : f32 to vector<256x128xf32>
    %119 = arith.maximumf %117, %118 : vector<256x128xf32>
    %120 = arith.mulf %119, %119 : vector<256x128xf32>
    %cst_83 = arith.constant dense<0.000000e+00> : vector<256xf32>
    %121 = vector.multi_reduction <add>, %120, %cst_83 [1] : vector<256x128xf32> to vector<256xf32>
    %122 = vector.shape_cast %121 : vector<256xf32> to vector<256x1xf32>
    %cst_84 = arith.constant 9.99999996E-13 : f32
    %123 = vector.broadcast %cst_84 : f32 to vector<256x1xf32>
    %124 = arith.addf %122, %123 : vector<256x1xf32>
    %125 = math.rsqrt %124 : vector<256x1xf32>
    %126 = vector.broadcast %125 : vector<256x1xf32> to vector<256x128xf32>
    %127 = arith.mulf %119, %126 : vector<256x128xf32>
    %128 = arith.truncf %127 : vector<256x128xf32> to vector<256x128xbf16>
    %c0_85 = arith.constant 0 : index
    %c0_86 = arith.constant 0 : index
    %129 = vector.load %arg5[%c0_85, %c0_86] : memref<128x128xbf16, #tpu.memory_space<vmem>>, vector<128x128xbf16>
    %cst_87 = arith.constant dense<0.000000e+00> : vector<256x128xf32>
    %130 = tpu.matmul %128, %129, %cst_87 {dimension_numbers = #tpu.dot_dimension_numbers<[1], [0], [0], [1], [0, 0, 1, 1], [], []>} : vector<256x128xbf16>, vector<128x128xbf16>, vector<256x128xf32> -> vector<256x128xf32>
    %c0_88 = arith.constant 0 : index
    %c0_89 = arith.constant 0 : index
    %131 = vector.load %arg8[%c0_88, %c0_89] : memref<1x128xf32, #tpu.memory_space<vmem>>, vector<1x128xf32>
    %132 = vector.broadcast %131 : vector<1x128xf32> to vector<256x128xf32>
    %133 = arith.addf %130, %132 : vector<256x128xf32>
    %c0_90 = arith.constant 0 : index
    %c1_91 = arith.constant 1 : index
    %c0_92 = arith.constant 0 : index
    %c0_93 = arith.constant 0 : index
    %134 = vector.load %arg2[%c0_90, %c1_91, %c0_92, %c0_93] : memref<1x18x16x128xbf16, #tpu.memory_space<vmem>>, vector<1x16x16x128xbf16>
    %135 = vector.shape_cast %134 : vector<1x16x16x128xbf16> to vector<16x16x128xbf16>
    %136 = vector.shape_cast %135 : vector<16x16x128xbf16> to vector<256x128xbf16>
    %137 = arith.extf %136 : vector<256x128xbf16> to vector<256x128xf32>
    %138 = arith.addf %133, %137 : vector<256x128xf32>
    %cst_94 = arith.constant 0.000000e+00 : f32
    %139 = vector.broadcast %cst_94 : f32 to vector<256x128xf32>
    %140 = arith.maximumf %138, %139 : vector<256x128xf32>
    %141 = vector.shape_cast %140 : vector<256x128xf32> to vector<16x16x128xf32>
    %142 = arith.truncf %141 : vector<16x16x128xf32> to vector<16x16x128xbf16>
    %c0_95 = arith.constant 0 : index
    %c0_96 = arith.constant 0 : index
    %c0_97 = arith.constant 0 : index
    %c0_98 = arith.constant 0 : index
    %143 = vector.load %arg9[%c0_95, %c0_96, %c0_97, %c0_98] : memref<1x16x16x128xbf16, #tpu.memory_space<vmem>>, vector<1x16x16x128xbf16>
    %144 = vector.shape_cast %143 : vector<1x16x16x128xbf16> to vector<16x16x128xbf16>
    %145 = vector.shape_cast %142 : vector<16x16x128xbf16> to vector<1x16x16x128xbf16>
    tpu.vector_store %arg9[%c0_95, %c0_96, %c0_97, %c0_98], %145 {strides = array<i32>} : memref<1x16x16x128xbf16, #tpu.memory_space<vmem>>, vector<1x16x16x128xbf16>,
    return
  }
  func.func @transform_0(%arg0: i32, %arg1: i32) -> (i32, i32, i32, i32) {
    %c0_i32 = arith.constant 0 : i32
    %c0_i32_0 = arith.constant 0 : i32
    %c0_i32_1 = arith.constant 0 : i32
    %c0_i32_2 = arith.constant 0 : i32
    return %arg0, %c0_i32, %c0_i32_0, %c0_i32_1 : i32, i32, i32, i32
  }
  func.func @transform_1(%arg0: i32, %arg1: i32) -> (i32, i32) {
    %c0_i32 = arith.constant 0 : i32
    %c0_i32_0 = arith.constant 0 : i32
    %c0_i32_1 = arith.constant 0 : i32
    return %c0_i32, %c0_i32_0 : i32, i32
  }
  func.func @transform_2(%arg0: i32, %arg1: i32) -> (i32, i32, i32) {
    %c0_i32 = arith.constant 0 : i32
    %c0_i32_0 = arith.constant 0 : i32
    %c0_i32_1 = arith.constant 0 : i32
    %c0_i32_2 = arith.constant 0 : i32
    return %c0_i32, %c0_i32_0, %c0_i32_1 : i32, i32, i32
  }
  func.func @transform_3(%arg0: i32, %arg1: i32) -> (i32, i32) {
    %c0_i32 = arith.constant 0 : i32
    %c0_i32_0 = arith.constant 0 : i32
    %c0_i32_1 = arith.constant 0 : i32
    return %c0_i32, %c0_i32_0 : i32, i32
  }
  func.func @transform_4(%arg0: i32, %arg1: i32) -> (i32, i32) {
    %c0_i32 = arith.constant 0 : i32
    %c0_i32_0 = arith.constant 0 : i32
    %c0_i32_1 = arith.constant 0 : i32
    return %c0_i32, %c0_i32_0 : i32, i32
  }
  func.func @transform_5(%arg0: i32, %arg1: i32) -> (i32, i32) {
    %c0_i32 = arith.constant 0 : i32
    %c0_i32_0 = arith.constant 0 : i32
    %c0_i32_1 = arith.constant 0 : i32
    return %c0_i32, %c0_i32_0 : i32, i32
  }
  func.func @transform_6(%arg0: i32, %arg1: i32) -> (i32, i32) {
    %c0_i32 = arith.constant 0 : i32
    %c0_i32_0 = arith.constant 0 : i32
    %c0_i32_1 = arith.constant 0 : i32
    return %c0_i32, %c0_i32_0 : i32, i32
  }
  func.func @transform_7(%arg0: i32, %arg1: i32) -> (i32, i32, i32, i32) {
    %c0_i32 = arith.constant 0 : i32
    %c0_i32_0 = arith.constant 0 : i32
    %c0_i32_1 = arith.constant 0 : i32
    return %arg0, %arg1, %c0_i32, %c0_i32_0 : i32, i32, i32, i32
  }
}

</mosaic_0001>

<llo_original>
// kernel: tpu_custom_call.1
$region0: #{tpu_custom_call.1}
  #allocation0 [shape = 'u32[]', space=smem, size = 0x4, offset = 0x4, fixed_abs, tag = 'smem constant byte address 0x4 - core index']
  #allocation1 [shape = 'u32[144,128]{1,0:T(1,128)}', space=vmem, size = 0x12000, scoped, tag = 'internal scratch']
  #allocation2 [shape = 'bf16[18,18,128]{2,1,0:T(8,128)(2,1)}', space=vmem, size = 0x1b000, scoped, tag = 'scratch operand']
  %s0 = inlined_call_operand.hbm [shape: bf16[2,18,16,128], index: 0, kind: input, shape index: {}]
  %s1 = inlined_call_operand.hbm [shape: bf16[128,128], index: 1, kind: input, shape index: {}]
  %s2 = inlined_call_operand.hbm [shape: bf16[9,128,128], index: 2, kind: input, shape index: {}]
  %s3 = inlined_call_operand.hbm [shape: bf16[128,128], index: 3, kind: input, shape index: {}]
  %s4 = inlined_call_operand.vmem [shape: f32[1,128], index: 4, kind: input, shape index: {}]
  %s5 = inlined_call_operand.vmem [shape: f32[1,128], index: 5, kind: input, shape index: {}]
  %s6 = inlined_call_operand.vmem [shape: f32[1,128], index: 6, kind: input, shape index: {}]
  %s7 = inlined_call_operand.hbm [shape: bf16[2,16,16,128], index: 7, kind: output, shape index: {}]
  %s8 = sld [smem:[#allocation0]]
  $region77: #{tpu_custom_call.1} parent=0
    _
  %s10 = ssub.s32 1, %s8
  %s11 = scalar_select 0, %s10, %s8
  $region1: #{tpu_custom_call.1} parent=0
    #allocation3 [shape = 'u8[147456]{0}', space=vmem, size = 0x24000, scoped, tag = 'input window, operand 0']
    #allocation4 [shape = 's32[2]{0}', space=sflag, size = 0x8, scoped, tag = 'scoped memory for tpu_custom_call.1']
    #allocation5 [shape = 's32[2]{0}', space=sflag, size = 0x8, scoped, tag = 'scoped memory for tpu_custom_call.1']
    #allocation6 [shape = 'u8[32768]{0}', space=vmem, size = 0x8000, scoped, tag = 'input window, operand 1, single buffered']
    #allocation7 [shape = 's32[1]{0}', space=sflag, size = 0x4, scoped, tag = 'scoped memory for tpu_custom_call.1']
    #allocation8 [shape = 'u8[294912]{0}', space=vmem, size = 0x48000, scoped, tag = 'input window, operand 2, single buffered']
    #allocation9 [shape = 'u8[32768]{0}', space=vmem, size = 0x8000, scoped, tag = 'input window, operand 3, single buffered']
    #allocation10 [shape = 's32[1]{0}', space=sflag, size = 0x4, scoped, tag = 'scoped memory for tpu_custom_call.1']
    #allocation11 [shape = 'u8[131072]{0}', space=vmem, size = 0x20000, scoped, tag = 'output window, operand 0']
    %12 = vsyncpa [#allocation4], 0
    %s13 = scalar_lea.sflag [#allocation4], 1
    %14 = vsyncpa %s13, 0
    %15 = vsyncpa [#allocation7], 0
    %16 = vsyncpa [#allocation10], 0
    %17 = vsyncpa [#allocation5], 0
    %s18 = scalar_lea.sflag [#allocation5], 1
    %19 = vsyncpa %s18, 0
    loop: start=0, step=1, limit=4
    $region2: #{tpu_custom_call.1} parent=1 // loop_pre_header
      _
    $region3: #{tpu_custom_call.1} parent=1 // loop_header
      %s21 = sphi 0, %s25
      %p22 = scmp.ge.s32.totalorder %s21, 4
      %s28 = sphi 0, %s40
      %s29 = sphi 0, %s36
      %s30 = sphi 0, %s28
      %s31 = sphi 0, %s29
      %s32 = sphi 0, %s30
      %s33 = sphi 0, %s31
      %s43 = sphi 0, %s45
      %s46 = sphi 0, %s43
      %s47 = sphi 0, %s46
      %s63 = sphi 0, %s47
      %s67 = sphi 0, %s67
      %s69 = sphi 0, %s67
      %s70 = sphi 0, %s69
      %s84 = sphi 0, %s70
      %s88 = sphi 0, %s88
      %s90 = sphi 0, %s88
      %s91 = sphi 0, %s90
      %s105 = sphi 0, %s91
      %s109 = sphi 0, %s109
      %s111 = sphi 0, %s109
      %s112 = sphi 0, %s111
      %s126 = sphi 0, %s112
      %s130 = sphi 0, %s130
      %s132 = sphi 0, %s130
      %s133 = sphi 0, %s132
      %s147 = sphi 0, %s133
      %s151 = sphi 0, %s151
      %s153 = sphi 0, %s151
      %s154 = sphi 0, %s153
      %s168 = sphi 0, %s154
      %s172 = sphi 0, %s172
      %s174 = sphi 0, %s172
      %s175 = sphi 0, %s174
      %s189 = sphi 0, %s175
      %s197 = sphi 0, %s199
      %s200 = sphi 0, %s197
      %s201 = sphi 0, %s200
      %s217 = sphi 0, %s201
    $region4: #{tpu_custom_call.1} parent=1 // loop_header_branch
      %24 = sbr.rel (%p22) target = $region8
    $region5: #{tpu_custom_call.1} parent=1 // loop_body
      %s26 = ssub.s32 %s21, 1
      %s27 = ssub.s32 %s21, 2
      %s34 = sadd.s32 1, %s29
      %p35 = scmp.ge.s32.totalorder %s34, 1
      %s36 = scalar_select %p35, 0, %s34
      %s37 = sadd.s32 1, %s28
      %s38 = scalar_select %p35, %s37, %s28
      %p39 = scmp.ge.s32.totalorder %s38, 2
      %s40 = scalar_select %p39, 0, %s38
      %s41 = ssub.s32 %s28, %s40
      %p42 = scmp.eq.s32.totalorder %s41, 0
      %s44 = sadd.s32 %s43, 1
      %s45 = scalar_select %p42, %s43, %s44
      %p48 = pneg %p42
      %p49 = scmp.eq.s32.totalorder %s21, 1
      %p50 = por %p48, %p49
      %p51 = scmp.ne.s32.totalorder %s43, %s46
      %p52 = scmp.eq.s32.totalorder %s21, 0
      %p53 = por %p51, %p52
      %p54 = scmp.ne.s32.totalorder %s43, %s46
      %p55 = scmp.eq.s32.totalorder %s26, 1
      %p56 = por %p54, %p55
      %p57 = scmp.ne.s32.totalorder %s46, %s47
      %p58 = scmp.eq.s32.totalorder %s26, 0
      %p59 = por %p57, %p58
      %p60 = scmp.ne.s32.totalorder %s46, %s47
      %p61 = scmp.eq.s32.totalorder %s27, 1
      %p62 = por %p60, %p61
      %p64 = scmp.ne.s32.totalorder %s47, %s63
      %p65 = scmp.eq.s32.totalorder %s27, 0
      %p66 = por %p64, %p65
      %s68 = sadd.s32 %s67, 1
      %p71 = scmp.eq.s32.totalorder %s21, 1
      %p72 = scmp.ne.s32.totalorder %s67, %s69
      %p73 = scmp.eq.s32.totalorder %s21, 0
      %p74 = por %p72, %p73
      %p75 = scmp.ne.s32.totalorder %s67, %s69
      %p76 = scmp.eq.s32.totalorder %s26, 1
      %p77 = por %p75, %p76
      %p78 = scmp.ne.s32.totalorder %s69, %s70
      %p79 = scmp.eq.s32.totalorder %s26, 0
      %p80 = por %p78, %p79
      %p81 = scmp.ne.s32.totalorder %s69, %s70
      %p82 = scmp.eq.s32.totalorder %s27, 1
      %p83 = por %p81, %p82
      %p85 = scmp.ne.s32.totalorder %s70, %s84
      %p86 = scmp.eq.s32.totalorder %s27, 0
      %p87 = por %p85, %p86
      %s89 = sadd.s32 %s88, 1
      %p92 = scmp.eq.s32.totalorder %s21, 1
      %p93 = scmp.ne.s32.totalorder %s88, %s90
      %p94 = scmp.eq.s32.totalorder %s21, 0
      %p95 = por %p93, %p94
      %p96 = scmp.ne.s32.totalorder %s88, %s90
      %p97 = scmp.eq.s32.totalorder %s26, 1
      %p98 = por %p96, %p97
      %p99 = scmp.ne.s32.totalorder %s90, %s91
      %p100 = scmp.eq.s32.totalorder %s26, 0
      %p101 = por %p99, %p100
      %p102 = scmp.ne.s32.totalorder %s90, %s91
      %p103 = scmp.eq.s32.totalorder %s27, 1
      %p104 = por %p102, %p103
      %p106 = scmp.ne.s32.totalorder %s91, %s105
      %p107 = scmp.eq.s32.totalorder %s27, 0
      %p108 = por %p106, %p107
      %s110 = sadd.s32 %s109, 1
      %p113 = scmp.eq.s32.totalorder %s21, 1
      %p114 = scmp.ne.s32.totalorder %s109, %s111
      %p115 = scmp.eq.s32.totalorder %s21, 0
      %p116 = por %p114, %p115
      %p117 = scmp.ne.s32.totalorder %s109, %s111
      %p118 = scmp.eq.s32.totalorder %s26, 1
      %p119 = por %p117, %p118
      %p120 = scmp.ne.s32.totalorder %s111, %s112
      %p121 = scmp.eq.s32.totalorder %s26, 0
      %p122 = por %p120, %p121
      %p123 = scmp.ne.s32.totalorder %s111, %s112
      %p124 = scmp.eq.s32.totalorder %s27, 1
      %p125 = por %p123, %p124
      %p127 = scmp.ne.s32.totalorder %s112, %s126
      %p128 = scmp.eq.s32.totalorder %s27, 0
      %p129 = por %p127, %p128
      %s131 = sadd.s32 %s130, 1
      %p134 = scmp.eq.s32.totalorder %s21, 1
      %p135 = scmp.ne.s32.totalorder %s130, %s132
      %p136 = scmp.eq.s32.totalorder %s21, 0
      %p137 = por %p135, %p136
      %p138 = scmp.ne.s32.totalorder %s130, %s132
      %p139 = scmp.eq.s32.totalorder %s26, 1
      %p140 = por %p138, %p139
      %p141 = scmp.ne.s32.totalorder %s132, %s133
      %p142 = scmp.eq.s32.totalorder %s26, 0
      %p143 = por %p141, %p142
      %p144 = scmp.ne.s32.totalorder %s132, %s133
      %p145 = scmp.eq.s32.totalorder %s27, 1
      %p146 = por %p144, %p145
      %p148 = scmp.ne.s32.totalorder %s133, %s147
      %p149 = scmp.eq.s32.totalorder %s27, 0
      %p150 = por %p148, %p149
      %s152 = sadd.s32 %s151, 1
      %p155 = scmp.eq.s32.totalorder %s21, 1
      %p156 = scmp.ne.s32.totalorder %s151, %s153
      %p157 = scmp.eq.s32.totalorder %s21, 0
      %p158 = por %p156, %p157
      %p159 = scmp.ne.s32.totalorder %s151, %s153
      %p160 = scmp.eq.s32.totalorder %s26, 1
      %p161 = por %p159, %p160
      %p162 = scmp.ne.s32.totalorder %s153, %s154
      %p163 = scmp.eq.s32.totalorder %s26, 0
      %p164 = por %p162, %p163
      %p165 = scmp.ne.s32.totalorder %s153, %s154
      %p166 = scmp.eq.s32.totalorder %s27, 1
      %p167 = por %p165, %p166
      %p169 = scmp.ne.s32.totalorder %s154, %s168
      %p170 = scmp.eq.s32.totalorder %s27, 0
      %p171 = por %p169, %p170
      %s173 = sadd.s32 %s172, 1
      %p176 = scmp.eq.s32.totalorder %s21, 1
      %p177 = scmp.ne.s32.totalorder %s172, %s174
      %p178 = scmp.eq.s32.totalorder %s21, 0
      %p179 = por %p177, %p178
      %p180 = scmp.ne.s32.totalorder %s172, %s174
      %p181 = scmp.eq.s32.totalorder %s26, 1
      %p182 = por %p180, %p181
      %p183 = scmp.ne.s32.totalorder %s174, %s175
      %p184 = scmp.eq.s32.totalorder %s26, 0
      %p185 = por %p183, %p184
      %p186 = scmp.ne.s32.totalorder %s174, %s175
      %p187 = scmp.eq.s32.totalorder %s27, 1
      %p188 = por %p186, %p187
      %p190 = scmp.ne.s32.totalorder %s175, %s189
      %p191 = scmp.eq.s32.totalorder %s27, 0
      %p192 = por %p190, %p191
      %s193 = ssub.s32 %s28, %s40
      %s194 = ssub.s32 %s29, %s36
      %s195 = sor.u32 %s193, %s194
      %p196 = scmp.eq.s32.totalorder %s195, 0
      %s198 = sadd.s32 %s197, 1
      %s199 = scalar_select %p196, %s197, %s198
      %p202 = pneg %p196
      %p203 = scmp.eq.s32.totalorder %s21, 1
      %p204 = por %p202, %p203
      %p205 = scmp.ne.s32.totalorder %s197, %s200
      %p206 = scmp.eq.s32.totalorder %s21, 0
      %p207 = por %p205, %p206
      %p208 = scmp.ne.s32.totalorder %s197, %s200
      %p209 = scmp.eq.s32.totalorder %s26, 1
      %p210 = por %p208, %p209
      %p211 = scmp.ne.s32.totalorder %s200, %s201
      %p212 = scmp.eq.s32.totalorder %s26, 0
      %p213 = por %p211, %p212
      %p214 = scmp.ne.s32.totalorder %s200, %s201
      %p215 = scmp.eq.s32.totalorder %s27, 1
      %p216 = por %p214, %p215
      %p218 = scmp.ne.s32.totalorder %s201, %s217
      %p219 = scmp.eq.s32.totalorder %s27, 0
      %p220 = por %p218, %p219
      %p221 = scmp.le.s32.totalorder 1, %s21
      %p222 = scmp.lt.s32.totalorder %s21, 3
      %p223 = pnand %p221, %p222
      %p224 = pneg %p223
      // Predicated region
      $region9: #{tpu_custom_call.1} parent=5 // pred_check
        _
      $region10: #{tpu_custom_call.1} parent=5 // pred_check_branch
        %226 = sbr.rel (%p223) target = $region12
      $region11: #{tpu_custom_call.1} parent=5 // pred_region
        %s227 = ssub.s32 %s21, 1
        // Predicated region
        $region13: #{tpu_custom_call.1} parent=11 // pred_check
          %p228 = pneg %p80
        $region14: #{tpu_custom_call.1} parent=11 // pred_check_branch
          %230 = sbr.rel (%p228) target = $region16
        $region15: #{tpu_custom_call.1} parent=11 // pred_region
          %s232 = ssub.s32 1024, 1024
          %233 = vsyncadd [#allocation7], %s232
          %s234 = sshll.u32 [#allocation6], 4
          %s235 = int_to_ptr.vmem [resolvable:$true] %s234
          %240 = dma.hbm_to_vmem [thread:$0]  %s1, 1024, %s235, [#allocation7], 64, 64, 4
        $region16: #{tpu_custom_call.1} parent=11 // pred_fallthru
          _
        // Predicated region
        $region17: #{tpu_custom_call.1} parent=11 // pred_check
          %p241 = pneg %p101
        $region18: #{tpu_custom_call.1} parent=11 // pred_check_branch
          %243 = sbr.rel (%p241) target = $region20
        $region19: #{tpu_custom_call.1} parent=11 // pred_region
          %s245 = ssub.s32 9216, 9216
          %246 = vsyncadd [#allocation7], %s245
          %s247 = sshll.u32 [#allocation8], 4
          %s248 = int_to_ptr.vmem [resolvable:$true] %s247
          %253 = dma.hbm_to_vmem [thread:$0]  %s2, 9216, %s248, [#allocation7], 64, 64, 4
        $region20: #{tpu_custom_call.1} parent=11 // pred_fallthru
          _
        // Predicated region
        $region21: #{tpu_custom_call.1} parent=11 // pred_check
          %p254 = pneg %p122
        $region22: #{tpu_custom_call.1} parent=11 // pred_check_branch
          %256 = sbr.rel (%p254) target = $region24
        $region23: #{tpu_custom_call.1} parent=11 // pred_region
          %s258 = ssub.s32 1024, 1024
          %259 = vsyncadd [#allocation10], %s258
          %s260 = sshll.u32 [#allocation9], 4
          %s261 = int_to_ptr.vmem [resolvable:$true] %s260
          %266 = dma.hbm_to_vmem [thread:$0]  %s3, 1024, %s261, [#allocation10], 64, 64, 4
        $region24: #{tpu_custom_call.1} parent=11 // pred_fallthru
          _
        // Predicated region
        $region25: #{tpu_custom_call.1} parent=11 // pred_check
          %p267 = pneg %p143
        $region26: #{tpu_custom_call.1} parent=11 // pred_check_branch
          %269 = sbr.rel (%p267) target = $region28
        $region27: #{tpu_custom_call.1} parent=11 // pred_region
          _
        $region28: #{tpu_custom_call.1} parent=11 // pred_fallthru
          _
        // Predicated region
        $region29: #{tpu_custom_call.1} parent=11 // pred_check
          %p270 = pneg %p164
        $region30: #{tpu_custom_call.1} parent=11 // pred_check_branch
          %272 = sbr.rel (%p270) target = $region32
        $region31: #{tpu_custom_call.1} parent=11 // pred_region
          _
        $region32: #{tpu_custom_call.1} parent=11 // pred_fallthru
          _
        // Predicated region
        $region33: #{tpu_custom_call.1} parent=11 // pred_check
          %p273 = pneg %p185
        $region34: #{tpu_custom_call.1} parent=11 // pred_check_branch
          %275 = sbr.rel (%p273) target = $region36
        $region35: #{tpu_custom_call.1} parent=11 // pred_region
          _
        $region36: #{tpu_custom_call.1} parent=11 // pred_fallthru
          _
      $region12: #{tpu_custom_call.1} parent=5 // pred_fallthru
        _
      %p276 = scmp.lt.s32.totalorder %s21, 2
      // Predicated region
      $region37: #{tpu_custom_call.1} parent=5 // pred_check
        %p277 = pneg %p276
      $region38: #{tpu_custom_call.1} parent=5 // pred_check_branch
        %279 = sbr.rel (%p277) target = $region40
      $region39: #{tpu_custom_call.1} parent=5 // pred_region
        // Predicated region
        $region41: #{tpu_custom_call.1} parent=39 // pred_check
          %p280 = pneg %p53
        $region42: #{tpu_custom_call.1} parent=39 // pred_check_branch
          %282 = sbr.rel (%p280) target = $region44
        $region43: #{tpu_custom_call.1} parent=39 // pred_region
          %s283 = sand.u32 %s43, 1
          %s284 = scalar_lea.sflag [#allocation4], %s283
          %s285 = sand.u32 %s43, 1
          %s286 = smul.addr %s285, 144
          %s287 = scalar_lea.vmem [#allocation3], %s286
          %s289 = ssub.s32 2304, 2304
          %290 = vsyncadd %s284, %s289
          %s291 = smul.addr %s28, 36
          %s292 = smul.addr %s291, 64
          %s293 = scalar_lea.hbm %s0, %s292
          %s294 = sshll.u32 %s287, 4
          %s295 = int_to_ptr.vmem [resolvable:$true] %s294
          %300 = dma.hbm_to_vmem [thread:$0]  %s293, 2304, %s295, %s284, 64, 64, 4
        $region44: #{tpu_custom_call.1} parent=39 // pred_fallthru
          _
      $region40: #{tpu_custom_call.1} parent=5 // pred_fallthru
        _
      %p301 = scmp.le.s32.totalorder 1, %s21
      %p302 = scmp.lt.s32.totalorder %s21, 3
      %p303 = pnand %p301, %p302
      %p304 = pneg %p303
      // Predicated region
      $region45: #{tpu_custom_call.1} parent=5 // pred_check
        _
      $region46: #{tpu_custom_call.1} parent=5 // pred_check_branch
        %306 = sbr.rel (%p303) target = $region48
      $region47: #{tpu_custom_call.1} parent=5 // pred_region
        %s307 = ssub.s32 %s21, 1
        %s308 = sand.u32 %s46, 1
        %s309 = scalar_lea.sflag [#allocation4], %s308
        %s310 = sand.u32 %s46, 1
        %s311 = smul.addr %s310, 144
        %s312 = scalar_lea.vmem [#allocation3], %s311
        // Predicated region
        $region49: #{tpu_custom_call.1} parent=47 // pred_check
          %p313 = pneg %p59
        $region50: #{tpu_custom_call.1} parent=47 // pred_check_branch
          %315 = sbr.rel (%p313) target = $region52
        $region51: #{tpu_custom_call.1} parent=47 // pred_region
          %316 = dma.done %s309, 2304
        $region52: #{tpu_custom_call.1} parent=47 // pred_fallthru
          _
        // Predicated region
        $region53: #{tpu_custom_call.1} parent=47 // pred_check
          %p317 = pneg %p80
        $region54: #{tpu_custom_call.1} parent=47 // pred_check_branch
          %319 = sbr.rel (%p317) target = $region56
        $region55: #{tpu_custom_call.1} parent=47 // pred_region
          %320 = dma.done [#allocation7], 1024
        $region56: #{tpu_custom_call.1} parent=47 // pred_fallthru
          _
        // Predicated region
        $region57: #{tpu_custom_call.1} parent=47 // pred_check
          %p321 = pneg %p101
        $region58: #{tpu_custom_call.1} parent=47 // pred_check_branch
          %323 = sbr.rel (%p321) target = $region60
        $region59: #{tpu_custom_call.1} parent=47 // pred_region
          %324 = dma.done [#allocation7], 9216
        $region60: #{tpu_custom_call.1} parent=47 // pred_fallthru
          _
        // Predicated region
        $region61: #{tpu_custom_call.1} parent=47 // pred_check
          %p325 = pneg %p122
        $region62: #{tpu_custom_call.1} parent=47 // pred_check_branch
          %327 = sbr.rel (%p325) target = $region64
        $region63: #{tpu_custom_call.1} parent=47 // pred_region
          %328 = dma.done [#allocation10], 1024
        $region64: #{tpu_custom_call.1} parent=47 // pred_fallthru
          _
        %s329 = sand.u32 %s46, 1
        %s330 = scalar_lea.sflag [#allocation4], %s329
        %s331 = sand.u32 %s46, 1
        %s332 = smul.addr %s331, 144
        %s333 = scalar_lea.vmem [#allocation3], %s332
        %p334 = pneg %p59
        %p335 = pneg %p56
        %p336 = pneg %p80
        %p337 = pneg %p77
        %p338 = pneg %p101
        %p339 = pneg %p98
        %p340 = pneg %p122
        %p341 = pneg %p119
        %p342 = pneg %p143
        %p343 = pneg %p140
        %p344 = pneg %p164
        %p345 = pneg %p161
        %p346 = pneg %p185
        %p347 = pneg %p182
        %p348 = pneg %p213
        %p349 = pneg %p210
        %s350 = sand.u32 %s200, 1
        %s351 = scalar_lea.sflag [#allocation5], %s350
        %s352 = sand.u32 %s200, 1
        %s353 = smul.addr %s352, 128
        %s354 = scalar_lea.vmem [#allocation11], %s353
        %s355 = smul.u32 16, %s31
        %v357 = vld [vmem:[%s312] sm:$0xf]
        %v358 = vld [vmem:[%s312 + $0x4] sm:$0xf]
        %v359 = vld [vmem:[%s312 + $0x8] sm:$0xf]
        %v360 = vld [vmem:[%s312 + $0xc] sm:$0xf]
        %v361 = vld [vmem:[%s312 + $0x10] sm:$0xf]
        %v362 = vld [vmem:[%s312 + $0x14] sm:$0xf]
        %v363 = vld [vmem:[%s312 + $0x18] sm:$0xf]
        %v364 = vld [vmem:[%s312 + $0x1c] sm:$0xf]
        %v365 = vld [vmem:[%s312 + $0x20] sm:$0xf]
        %v366 = vld [vmem:[%s312 + $0x24] sm:$0xf]
        %v367 = vld [vmem:[%s312 + $0x28] sm:$0xf]
        %v368 = vld [vmem:[%s312 + $0x2c] sm:$0xf]
        %v369 = vld [vmem:[%s312 + $0x30] sm:$0xf]
        %v370 = vld [vmem:[%s312 + $0x34] sm:$0xf]
        %v371 = vld [vmem:[%s312 + $0x38] sm:$0xf]
        %v372 = vld [vmem:[%s312 + $0x3c] sm:$0xf]
        %v373 = vld [vmem:[%s312 + $0x40] sm:$0xf]
        %v374 = vld [vmem:[%s312 + $0x44] sm:$0xf]
        %v375 = vld [vmem:[%s312 + $0x48] sm:$0xf]
        %v376 = vld [vmem:[%s312 + $0x4c] sm:$0xf]
        %v377 = vld [vmem:[%s312 + $0x50] sm:$0xf]
        %v378 = vld [vmem:[%s312 + $0x54] sm:$0xf]
        %v379 = vld [vmem:[%s312 + $0x58] sm:$0xf]
        %v380 = vld [vmem:[%s312 + $0x5c] sm:$0xf]
        %v381 = vld [vmem:[%s312 + $0x60] sm:$0xf]
        %v382 = vld [vmem:[%s312 + $0x64] sm:$0xf]
        %v383 = vld [vmem:[%s312 + $0x68] sm:$0xf]
        %v384 = vld [vmem:[%s312 + $0x6c] sm:$0xf]
        %v385 = vld [vmem:[%s312 + $0x70] sm:$0xf]
        %v386 = vld [vmem:[%s312 + $0x74] sm:$0xf]
        %v387 = vld [vmem:[%s312 + $0x78] sm:$0xf]
        %v388 = vld [vmem:[%s312 + $0x7c] sm:$0xf]
        %v389 = vld [vmem:[%s312 + $0x80] sm:$0xf]
        %v390 = vld [vmem:[%s312 + $0x84] sm:$0xf]
        %v391 = vld [vmem:[%s312 + $0x88] sm:$0xf]
        %v392 = vld [vmem:[%s312 + $0x8c] sm:$0xf]
        %v393 = vld [vmem:[#allocation6] sm:$0xf]
        %v394 = vld [vmem:[#allocation6 + $0x4] sm:$0xf]
        %v395 = vld [vmem:[#allocation6 + $0x8] sm:$0xf]
        %v396 = vld [vmem:[#allocation6 + $0xc] sm:$0xf]
        %v397 = vld [vmem:[#allocation6 + $0x10] sm:$0xf]
        %v398 = vld [vmem:[#allocation6 + $0x14] sm:$0xf]
        %v399 = vld [vmem:[#allocation6 + $0x18] sm:$0xf]
        %v400 = vld [vmem:[#allocation6 + $0x1c] sm:$0xf]
        %v401 = vld [vmem:[#allocation6 + $0x20] sm:$0xf]
        %v402 = vld [vmem:[#allocation6 + $0x24] sm:$0xf]
        %v403 = vld [vmem:[#allocation6 + $0x28] sm:$0xf]
        %v404 = vld [vmem:[#allocation6 + $0x2c] sm:$0xf]
        %v405 = vld [vmem:[#allocation6 + $0x30] sm:$0xf]
        %v406 = vld [vmem:[#allocation6 + $0x34] sm:$0xf]
        %v407 = vld [vmem:[#allocation6 + $0x38] sm:$0xf]
        %v408 = vld [vmem:[#allocation6 + $0x3c] sm:$0xf]
        %v445 = vunpack.c.l.b16 %v357
        %v446 = vunpack.c.l.b16 %v358
        %v447 = vunpack.c.l.b16 %v359
        %v448 = vunpack.c.l.b16 %v360
        %v449 = vunpack.c.l.b16 %v361
        %v450 = vunpack.c.l.b16 %v362
        %v451 = vunpack.c.l.b16 %v363
        %v452 = vunpack.c.l.b16 %v364
        %v453 = vunpack.c.l.b16 %v365
        %v454 = vunpack.c.l.b16 %v366
        %v455 = vunpack.c.l.b16 %v367
        %v456 = vunpack.c.l.b16 %v368
        %v457 = vunpack.c.l.b16 %v369
        %v458 = vunpack.c.l.b16 %v370
        %v459 = vunpack.c.l.b16 %v371
        %v460 = vunpack.c.l.b16 %v372
        %v461 = vunpack.c.l.b16 %v373
        %v462 = vunpack.c.l.b16 %v374
        %v463 = vunpack.c.l.b16 %v375
        %v464 = vunpack.c.l.b16 %v376
        %v465 = vunpack.c.l.b16 %v377
        %v466 = vunpack.c.l.b16 %v378
        %v467 = vunpack.c.l.b16 %v379
        %v468 = vunpack.c.l.b16 %v380
        %v469 = vunpack.c.l.b16 %v381
        %v470 = vunpack.c.l.b16 %v382
        %v471 = vunpack.c.l.b16 %v383
        %v472 = vunpack.c.l.b16 %v384
        %v473 = vunpack.c.l.b16 %v385
        %v474 = vunpack.c.l.b16 %v386
        %v475 = vunpack.c.l.b16 %v387
        %v476 = vunpack.c.l.b16 %v388
        %v477 = vunpack.c.l.b16 %v389
        %v478 = vunpack.c.l.b16 %v390
        %v479 = vunpack.c.l.b16 %v391
        %v480 = vunpack.c.l.b16 %v392
        %v481 = vpack.c.b16 %v446, %v445
        %v482 = vpack.c.b16 %v448, %v447
        %v483 = vpack.c.b16 %v450, %v449
        %v484 = vpack.c.b16 %v452, %v451
        %v485 = vpack.c.b16 %v454, %v453
        %v486 = vpack.c.b16 %v456, %v455
        %v487 = vpack.c.b16 %v458, %v457
        %v488 = vpack.c.b16 %v460, %v459
        %v489 = vpack.c.b16 %v462, %v461
        %v490 = vpack.c.b16 %v464, %v463
        %v491 = vpack.c.b16 %v466, %v465
        %v492 = vpack.c.b16 %v468, %v467
        %v493 = vpack.c.b16 %v470, %v469
        %v494 = vpack.c.b16 %v472, %v471
        %v495 = vpack.c.b16 %v474, %v473
        %v496 = vpack.c.b16 %v476, %v475
        %v497 = vpack.c.b16 %v478, %v477
        %v498 = vpack.c.b16 %v480, %v479
        %v533 = vunpack.c.l.b16 %v393
        %v534 = vunpack.c.l.b16 %v394
        %v535 = vunpack.c.l.b16 %v395
        %v536 = vunpack.c.l.b16 %v396
        %v537 = vunpack.c.l.b16 %v397
        %v538 = vunpack.c.l.b16 %v398
        %v539 = vunpack.c.l.b16 %v399
        %v540 = vunpack.c.l.b16 %v400
        %v541 = vunpack.c.l.b16 %v401
        %v542 = vunpack.c.l.b16 %v402
        %v543 = vunpack.c.l.b16 %v403
        %v544 = vunpack.c.l.b16 %v404
        %v545 = vunpack.c.l.b16 %v405
        %v546 = vunpack.c.l.b16 %v406
        %v547 = vunpack.c.l.b16 %v407
        %v548 = vunpack.c.l.b16 %v408
        %v549 = vpack.c.b16 %v534, %v533
        %v550 = vpack.c.b16 %v536, %v535
        %v551 = vpack.c.b16 %v538, %v537
        %v552 = vpack.c.b16 %v540, %v539
        %v553 = vpack.c.b16 %v542, %v541
        %v554 = vpack.c.b16 %v544, %v543
        %v555 = vpack.c.b16 %v546, %v545
        %v556 = vpack.c.b16 %v548, %v547
        %565 = vmatprep.subr.bf16.mxu0 0
        %566 = vmatpush1.bf16.msra.mxu0 %v556
        %567 = vmatprep.subr.bf16.mxu0 0
        %568 = vmatpush1.bf16.msra.mxu0 %v555
        %569 = vmatprep.subr.bf16.mxu0 0
        %570 = vmatpush1.bf16.msra.mxu0 %v554
        %571 = vmatprep.subr.bf16.mxu0 0
        %572 = vmatpush1.bf16.msra.mxu0 %v553
        %573 = vmatprep.subr.bf16.mxu0 0
        %574 = vmatpush1.bf16.msra.mxu0 %v552
        %575 = vmatprep.subr.bf16.mxu0 0
        %576 = vmatpush1.bf16.msra.mxu0 %v551
        %577 = vmatprep.subr.bf16.mxu0 0
        %578 = vmatpush1.bf16.msra.mxu0 %v550
        %579 = vmatprep.subr.bf16.mxu0 0
        %580 = vmatpush1.bf16.msra.mxu0 %v549
        %581 = vmatprep.subr.bf16.mxu0 0
        %582 = vmatpush2.bf16.msra.mxu0 0
        %583 = vmatprep.subr.bf16.mxu0 0
        %584 = vmatpush2.bf16.msra.mxu0 0
        %585 = vmatprep.subr.bf16.mxu0 0
        %586 = vmatpush2.bf16.msra.mxu0 0
        %587 = vmatprep.subr.bf16.mxu0 0
        %588 = vmatpush2.bf16.msra.mxu0 0
        %589 = vmatprep.subr.bf16.mxu0 0
        %590 = vmatpush2.bf16.msra.mxu0 0
        %591 = vmatprep.subr.bf16.mxu0 0
        %592 = vmatpush2.bf16.msra.mxu0 0
        %593 = vmatprep.subr.bf16.mxu0 0
        %594 = vmatpush2.bf16.msra.mxu0 0
        %595 = vmatprep.subr.bf16.mxu0 0
        %596 = vmatpush2.bf16.msra.mxu0 0
        %597 = vmatprep.mubr.bf16.mxu0 0
        %598 = vmatmul.mubr.bf16.gmra.mxu0 %v481
        %v599 = vpop.f32.mrf.mxu0
        %v600 = vadd.f32 0.0, %v599
        %v601 = vpop.f32.mrf.mxu0
        %v602 = vpop.f32.mrf.mxu0
        %v603 = vadd.f32 0.0, %v602
        %v604 = vpop.f32.mrf.mxu0
        %605 = vmatprep.mubr.bf16.mxu0 0
        %606 = vmatmul.mubr.bf16.gmra.mxu0 %v482
        %v607 = vpop.f32.mrf.mxu0
        %v608 = vadd.f32 0.0, %v607
        %v609 = vpop.f32.mrf.mxu0
        %v610 = vpop.f32.mrf.mxu0
        %v611 = vadd.f32 0.0, %v610
        %v612 = vpop.f32.mrf.mxu0
        %613 = vmatprep.mubr.bf16.mxu0 0
        %614 = vmatmul.mubr.bf16.gmra.mxu0 %v483
        %v615 = vpop.f32.mrf.mxu0
        %v616 = vadd.f32 0.0, %v615
        %v617 = vpop.f32.mrf.mxu0
        %v618 = vpop.f32.mrf.mxu0
        %v619 = vadd.f32 0.0, %v618
        %v620 = vpop.f32.mrf.mxu0
        %621 = vmatprep.mubr.bf16.mxu0 0
        %622 = vmatmul.mubr.bf16.gmra.mxu0 %v484
        %v623 = vpop.f32.mrf.mxu0
        %v624 = vadd.f32 0.0, %v623
        %v625 = vpop.f32.mrf.mxu0
        %v626 = vpop.f32.mrf.mxu0
        %v627 = vadd.f32 0.0, %v626
        %v628 = vpop.f32.mrf.mxu0
        %629 = vmatprep.mubr.bf16.mxu0 0
        %630 = vmatmul.mubr.bf16.gmra.mxu0 %v485
        %v631 = vpop.f32.mrf.mxu0
        %v632 = vadd.f32 0.0, %v631
        %v633 = vpop.f32.mrf.mxu0
        %v634 = vpop.f32.mrf.mxu0
        %v635 = vadd.f32 0.0, %v634
        %v636 = vpop.f32.mrf.mxu0
        %637 = vmatprep.mubr.bf16.mxu0 0
        %638 = vmatmul.mubr.bf16.gmra.mxu0 %v486
        %v639 = vpop.f32.mrf.mxu0
        %v640 = vadd.f32 0.0, %v639
        %v641 = vpop.f32.mrf.mxu0
        %v642 = vpop.f32.mrf.mxu0
        %v643 = vadd.f32 0.0, %v642
        %v644 = vpop.f32.mrf.mxu0
        %645 = vmatprep.mubr.bf16.mxu0 0
        %646 = vmatmul.mubr.bf16.gmra.mxu0 %v487
        %v647 = vpop.f32.mrf.mxu0
        %v648 = vadd.f32 0.0, %v647
        %v649 = vpop.f32.mrf.mxu0
        %v650 = vpop.f32.mrf.mxu0
        %v651 = vadd.f32 0.0, %v650
        %v652 = vpop.f32.mrf.mxu0
        %653 = vmatprep.mubr.bf16.mxu0 0
        %654 = vmatmul.mubr.bf16.gmra.mxu0 %v488
        %v655 = vpop.f32.mrf.mxu0
        %v656 = vadd.f32 0.0, %v655
        %v657 = vpop.f32.mrf.mxu0
        %v658 = vpop.f32.mrf.mxu0
        %v659 = vadd.f32 0.0, %v658
        %v660 = vpop.f32.mrf.mxu0
        %661 = vmatprep.mubr.bf16.mxu0 0
        %662 = vmatmul.mubr.bf16.gmra.mxu0 %v489
        %v663 = vpop.f32.mrf.mxu0
        %v664 = vadd.f32 0.0, %v663
        %v665 = vpop.f32.mrf.mxu0
        %v666 = vpop.f32.mrf.mxu0
        %v667 = vadd.f32 0.0, %v666
        %v668 = vpop.f32.mrf.mxu0
        %669 = vmatprep.mubr.bf16.mxu0 0
        %670 = vmatmul.mubr.bf16.gmra.mxu0 %v490
        %v671 = vpop.f32.mrf.mxu0
        %v672 = vadd.f32 0.0, %v671
        %v673 = vpop.f32.mrf.mxu0
        %v674 = vpop.f32.mrf.mxu0
        %v675 = vadd.f32 0.0, %v674
        %v676 = vpop.f32.mrf.mxu0
        %677 = vmatprep.mubr.bf16.mxu0 0
        %678 = vmatmul.mubr.bf16.gmra.mxu0 %v491
        %v679 = vpop.f32.mrf.mxu0
        %v680 = vadd.f32 0.0, %v679
        %v681 = vpop.f32.mrf.mxu0
        %v682 = vpop.f32.mrf.mxu0
        %v683 = vadd.f32 0.0, %v682
        %v684 = vpop.f32.mrf.mxu0
        %685 = vmatprep.mubr.bf16.mxu0 0
        %686 = vmatmul.mubr.bf16.gmra.mxu0 %v492
        %v687 = vpop.f32.mrf.mxu0
        %v688 = vadd.f32 0.0, %v687
        %v689 = vpop.f32.mrf.mxu0
        %v690 = vpop.f32.mrf.mxu0
        %v691 = vadd.f32 0.0, %v690
        %v692 = vpop.f32.mrf.mxu0
        %693 = vmatprep.mubr.bf16.mxu0 0
        %694 = vmatmul.mubr.bf16.gmra.mxu0 %v493
        %v695 = vpop.f32.mrf.mxu0
        %v696 = vadd.f32 0.0, %v695
        %v697 = vpop.f32.mrf.mxu0
        %v698 = vpop.f32.mrf.mxu0
        %v699 = vadd.f32 0.0, %v698
        %v700 = vpop.f32.mrf.mxu0
        %701 = vmatprep.mubr.bf16.mxu0 0
        %702 = vmatmul.mubr.bf16.gmra.mxu0 %v494
        %v703 = vpop.f32.mrf.mxu0
        %v704 = vadd.f32 0.0, %v703
        %v705 = vpop.f32.mrf.mxu0
        %v706 = vpop.f32.mrf.mxu0
        %v707 = vadd.f32 0.0, %v706
        %v708 = vpop.f32.mrf.mxu0
        %709 = vmatprep.mubr.bf16.mxu0 0
        %710 = vmatmul.mubr.bf16.gmra.mxu0 %v495
        %v711 = vpop.f32.mrf.mxu0
        %v712 = vadd.f32 0.0, %v711
        %v713 = vpop.f32.mrf.mxu0
        %v714 = vpop.f32.mrf.mxu0
        %v715 = vadd.f32 0.0, %v714
        %v716 = vpop.f32.mrf.mxu0
        %717 = vmatprep.mubr.bf16.mxu0 0
        %718 = vmatmul.mubr.bf16.gmra.mxu0 %v496
        %v719 = vpop.f32.mrf.mxu0
        %v720 = vadd.f32 0.0, %v719
        %v721 = vpop.f32.mrf.mxu0
        %v722 = vpop.f32.mrf.mxu0
        %v723 = vadd.f32 0.0, %v722
        %v724 = vpop.f32.mrf.mxu0
        %725 = vmatprep.mubr.bf16.mxu0 0
        %726 = vmatmul.mubr.bf16.gmra.mxu0 %v497
        %v727 = vpop.f32.mrf.mxu0
        %v728 = vadd.f32 0.0, %v727
        %v729 = vpop.f32.mrf.mxu0
        %v730 = vpop.f32.mrf.mxu0
        %v731 = vadd.f32 0.0, %v730
        %v732 = vpop.f32.mrf.mxu0
        %733 = vmatprep.mubr.bf16.mxu0 0
        %734 = vmatmul.mubr.bf16.gmra.mxu0 %v498
        %v735 = vpop.f32.mrf.mxu0
        %v736 = vadd.f32 0.0, %v735
        %v737 = vpop.f32.mrf.mxu0
        %v738 = vpop.f32.mrf.mxu0
        %v739 = vadd.f32 0.0, %v738
        %v740 = vpop.f32.mrf.mxu0
        %741 = vdwg.mxu0
        %v742 = vunpack.c.l.bf16 %v357
        %v743 = vunpack.c.l.bf16 %v358
        %v744 = vunpack.c.l.bf16 %v359
        %v745 = vunpack.c.l.bf16 %v360
        %v746 = vunpack.c.l.bf16 %v361
        %v747 = vunpack.c.l.bf16 %v362
        %v748 = vunpack.c.l.bf16 %v363
        %v749 = vunpack.c.l.bf16 %v364
        %v750 = vunpack.c.l.bf16 %v365
        %v751 = vunpack.c.l.bf16 %v366
        %v752 = vunpack.c.l.bf16 %v367
        %v753 = vunpack.c.l.bf16 %v368
        %v754 = vunpack.c.l.bf16 %v369
        %v755 = vunpack.c.l.bf16 %v370
        %v756 = vunpack.c.l.bf16 %v371
        %v757 = vunpack.c.l.bf16 %v372
        %v758 = vunpack.c.l.bf16 %v373
        %v759 = vunpack.c.l.bf16 %v374
        %v760 = vunpack.c.l.bf16 %v375
        %v761 = vunpack.c.l.bf16 %v376
        %v762 = vunpack.c.l.bf16 %v377
        %v763 = vunpack.c.l.bf16 %v378
        %v764 = vunpack.c.l.bf16 %v379
        %v765 = vunpack.c.l.bf16 %v380
        %v766 = vunpack.c.l.bf16 %v381
        %v767 = vunpack.c.l.bf16 %v382
        %v768 = vunpack.c.l.bf16 %v383
        %v769 = vunpack.c.l.bf16 %v384
        %v770 = vunpack.c.l.bf16 %v385
        %v771 = vunpack.c.l.bf16 %v386
        %v772 = vunpack.c.l.bf16 %v387
        %v773 = vunpack.c.l.bf16 %v388
        %v774 = vunpack.c.l.bf16 %v389
        %v775 = vunpack.c.l.bf16 %v390
        %v776 = vunpack.c.l.bf16 %v391
        %v777 = vunpack.c.l.bf16 %v392
        %v778 = vmul.f32 %v742, %v742
        %v779 = vmul.f32 %v743, %v743
        %v780 = vmul.f32 %v744, %v744
        %v781 = vmul.f32 %v745, %v745
        %v782 = vmul.f32 %v746, %v746
        %v783 = vmul.f32 %v747, %v747
        %v784 = vmul.f32 %v748, %v748
        %v785 = vmul.f32 %v749, %v749
        %v786 = vmul.f32 %v750, %v750
        %v787 = vmul.f32 %v751, %v751
        %v788 = vmul.f32 %v752, %v752
        %v789 = vmul.f32 %v753, %v753
        %v790 = vmul.f32 %v754, %v754
        %v791 = vmul.f32 %v755, %v755
        %v792 = vmul.f32 %v756, %v756
        %v793 = vmul.f32 %v757, %v757
        %v794 = vmul.f32 %v758, %v758
        %v795 = vmul.f32 %v759, %v759
        %v796 = vmul.f32 %v760, %v760
        %v797 = vmul.f32 %v761, %v761
        %v798 = vmul.f32 %v762, %v762
        %v799 = vmul.f32 %v763, %v763
        %v800 = vmul.f32 %v764, %v764
        %v801 = vmul.f32 %v765, %v765
        %v802 = vmul.f32 %v766, %v766
        %v803 = vmul.f32 %v767, %v767
        %v804 = vmul.f32 %v768, %v768
        %v805 = vmul.f32 %v769, %v769
        %v806 = vmul.f32 %v770, %v770
        %v807 = vmul.f32 %v771, %v771
        %v808 = vmul.f32 %v772, %v772
        %v809 = vmul.f32 %v773, %v773
        %v810 = vmul.f32 %v774, %v774
        %v811 = vmul.f32 %v775, %v775
        %v812 = vmul.f32 %v776, %v776
        %v813 = vmul.f32 %v777, %v777
        %814 = vadd.xlane.f32.xlu0 %v778
        %v815 = vpop.xlane.xlu0 %814
        %816 = vadd.xlane.f32.xlu0 %v779
        %v817 = vpop.xlane.xlu0 %816
        %818 = vadd.xlane.f32.xlu0 %v780
        %v819 = vpop.xlane.xlu0 %818
        %820 = vadd.xlane.f32.xlu0 %v781
        %v821 = vpop.xlane.xlu0 %820
        %822 = vadd.xlane.f32.xlu0 %v782
        %v823 = vpop.xlane.xlu0 %822
        %824 = vadd.xlane.f32.xlu0 %v783
        %v825 = vpop.xlane.xlu0 %824
        %826 = vadd.xlane.f32.xlu0 %v784
        %v827 = vpop.xlane.xlu0 %826
        %828 = vadd.xlane.f32.xlu0 %v785
        %v829 = vpop.xlane.xlu0 %828
        %830 = vadd.xlane.f32.xlu0 %v786
        %v831 = vpop.xlane.xlu0 %830
        %832 = vadd.xlane.f32.xlu0 %v787
        %v833 = vpop.xlane.xlu0 %832
        %834 = vadd.xlane.f32.xlu0 %v788
        %v835 = vpop.xlane.xlu0 %834
        %836 = vadd.xlane.f32.xlu0 %v789
        %v837 = vpop.xlane.xlu0 %836
        %838 = vadd.xlane.f32.xlu0 %v790
        %v839 = vpop.xlane.xlu0 %838
        %840 = vadd.xlane.f32.xlu0 %v791
        %v841 = vpop.xlane.xlu0 %840
        %842 = vadd.xlane.f32.xlu0 %v792
        %v843 = vpop.xlane.xlu0 %842
        %844 = vadd.xlane.f32.xlu0 %v793
        %v845 = vpop.xlane.xlu0 %844
        %846 = vadd.xlane.f32.xlu0 %v794
        %v847 = vpop.xlane.xlu0 %846
        %848 = vadd.xlane.f32.xlu0 %v795
        %v849 = vpop.xlane.xlu0 %848
        %850 = vadd.xlane.f32.xlu0 %v796
        %v851 = vpop.xlane.xlu0 %850
        %852 = vadd.xlane.f32.xlu0 %v797
        %v853 = vpop.xlane.xlu0 %852
        %854 = vadd.xlane.f32.xlu0 %v798
        %v855 = vpop.xlane.xlu0 %854
        %856 = vadd.xlane.f32.xlu0 %v799
        %v857 = vpop.xlane.xlu0 %856
        %858 = vadd.xlane.f32.xlu0 %v800
        %v859 = vpop.xlane.xlu0 %858
        %860 = vadd.xlane.f32.xlu0 %v801
        %v861 = vpop.xlane.xlu0 %860
        %862 = vadd.xlane.f32.xlu0 %v802
        %v863 = vpop.xlane.xlu0 %862
        %864 = vadd.xlane.f32.xlu0 %v803
        %v865 = vpop.xlane.xlu0 %864
        %866 = vadd.xlane.f32.xlu0 %v804
        %v867 = vpop.xlane.xlu0 %866
        %868 = vadd.xlane.f32.xlu0 %v805
        %v869 = vpop.xlane.xlu0 %868
        %870 = vadd.xlane.f32.xlu0 %v806
        %v871 = vpop.xlane.xlu0 %870
        %872 = vadd.xlane.f32.xlu0 %v807
        %v873 = vpop.xlane.xlu0 %872
        %874 = vadd.xlane.f32.xlu0 %v808
        %v875 = vpop.xlane.xlu0 %874
        %876 = vadd.xlane.f32.xlu0 %v809
        %v877 = vpop.xlane.xlu0 %876
        %878 = vadd.xlane.f32.xlu0 %v810
        %v879 = vpop.xlane.xlu0 %878
        %880 = vadd.xlane.f32.xlu0 %v811
        %v881 = vpop.xlane.xlu0 %880
        %882 = vadd.xlane.f32.xlu0 %v812
        %v883 = vpop.xlane.xlu0 %882
        %884 = vadd.xlane.f32.xlu0 %v813
        %v885 = vpop.xlane.xlu0 %884
        %v886 = vadd.f32 %v815, 1e-12
        %v887 = vadd.f32 %v817, 1e-12
        %v888 = vadd.f32 %v819, 1e-12
        %v889 = vadd.f32 %v821, 1e-12
        %v890 = vadd.f32 %v823, 1e-12
        %v891 = vadd.f32 %v825, 1e-12
        %v892 = vadd.f32 %v827, 1e-12
        %v893 = vadd.f32 %v829, 1e-12
        %v894 = vadd.f32 %v831, 1e-12
        %v895 = vadd.f32 %v833, 1e-12
        %v896 = vadd.f32 %v835, 1e-12
        %v897 = vadd.f32 %v837, 1e-12
        %v898 = vadd.f32 %v839, 1e-12
        %v899 = vadd.f32 %v841, 1e-12
        %v900 = vadd.f32 %v843, 1e-12
        %v901 = vadd.f32 %v845, 1e-12
        %v902 = vadd.f32 %v847, 1e-12
        %v903 = vadd.f32 %v849, 1e-12
        %v904 = vadd.f32 %v851, 1e-12
        %v905 = vadd.f32 %v853, 1e-12
        %v906 = vadd.f32 %v855, 1e-12
        %v907 = vadd.f32 %v857, 1e-12
        %v908 = vadd.f32 %v859, 1e-12
        %v909 = vadd.f32 %v861, 1e-12
        %v910 = vadd.f32 %v863, 1e-12
        %v911 = vadd.f32 %v865, 1e-12
        %v912 = vadd.f32 %v867, 1e-12
        %v913 = vadd.f32 %v869, 1e-12
        %v914 = vadd.f32 %v871, 1e-12
        %v915 = vadd.f32 %v873, 1e-12
        %v916 = vadd.f32 %v875, 1e-12
        %v917 = vadd.f32 %v877, 1e-12
        %v918 = vadd.f32 %v879, 1e-12
        %v919 = vadd.f32 %v881, 1e-12
        %v920 = vadd.f32 %v883, 1e-12
        %v921 = vadd.f32 %v885, 1e-12
        %v922 = vrsqrt.pop %v886
        %v923 = vrsqrt.pop %v887
        %v924 = vrsqrt.pop %v888
        %v925 = vrsqrt.pop %v889
        %v926 = vrsqrt.pop %v890
        %v927 = vrsqrt.pop %v891
        %v928 = vrsqrt.pop %v892
        %v929 = vrsqrt.pop %v893
        %v930 = vrsqrt.pop %v894
        %v931 = vrsqrt.pop %v895
        %v932 = vrsqrt.pop %v896
        %v933 = vrsqrt.pop %v897
        %v934 = vrsqrt.pop %v898
        %v935 = vrsqrt.pop %v899
        %v936 = vrsqrt.pop %v900
        %v937 = vrsqrt.pop %v901
        %v938 = vrsqrt.pop %v902
        %v939 = vrsqrt.pop %v903
        %v940 = vrsqrt.pop %v904
        %v941 = vrsqrt.pop %v905
        %v942 = vrsqrt.pop %v906
        %v943 = vrsqrt.pop %v907
        %v944 = vrsqrt.pop %v908
        %v945 = vrsqrt.pop %v909
        %v946 = vrsqrt.pop %v910
        %v947 = vrsqrt.pop %v911
        %v948 = vrsqrt.pop %v912
        %v949 = vrsqrt.pop %v913
        %v950 = vrsqrt.pop %v914
        %v951 = vrsqrt.pop %v915
        %v952 = vrsqrt.pop %v916
        %v953 = vrsqrt.pop %v917
        %v954 = vrsqrt.pop %v918
        %v955 = vrsqrt.pop %v919
        %v956 = vrsqrt.pop %v920
        %v957 = vrsqrt.pop %v921
        %v958 = vmul.f32 %v600, %v922
        %v959 = vmul.f32 %v603, %v923
        %v960 = vmul.f32 %v608, %v924
        %v961 = vmul.f32 %v611, %v925
        %v962 = vmul.f32 %v616, %v926
        %v963 = vmul.f32 %v619, %v927
        %v964 = vmul.f32 %v624, %v928
        %v965 = vmul.f32 %v627, %v929
        %v966 = vmul.f32 %v632, %v930
        %v967 = vmul.f32 %v635, %v931
        %v968 = vmul.f32 %v640, %v932
        %v969 = vmul.f32 %v643, %v933
        %v970 = vmul.f32 %v648, %v934
        %v971 = vmul.f32 %v651, %v935
        %v972 = vmul.f32 %v656, %v936
        %v973 = vmul.f32 %v659, %v937
        %v974 = vmul.f32 %v664, %v938
        %v975 = vmul.f32 %v667, %v939
        %v976 = vmul.f32 %v672, %v940
        %v977 = vmul.f32 %v675, %v941
        %v978 = vmul.f32 %v680, %v942
        %v979 = vmul.f32 %v683, %v943
        %v980 = vmul.f32 %v688, %v944
        %v981 = vmul.f32 %v691, %v945
        %v982 = vmul.f32 %v696, %v946
        %v983 = vmul.f32 %v699, %v947
        %v984 = vmul.f32 %v704, %v948
        %v985 = vmul.f32 %v707, %v949
        %v986 = vmul.f32 %v712, %v950
        %v987 = vmul.f32 %v715, %v951
        %v988 = vmul.f32 %v720, %v952
        %v989 = vmul.f32 %v723, %v953
        %v990 = vmul.f32 %v728, %v954
        %v991 = vmul.f32 %v731, %v955
        %v992 = vmul.f32 %v736, %v956
        %v993 = vmul.f32 %v739, %v957
        %v994 = vld [vmem:[%s4] sm:$0x1]
        %v996 = vlaneseq
        %v997 = vshrl.u32 %v996, 7
        %v998 = vsub.s32 0, %v997
        %v999 = vrot.slane %v994, %v998
        %v1001 = vadd.f32 %v958, %v999
        %v1002 = vadd.f32 %v959, %v999
        %v1003 = vadd.f32 %v960, %v999
        %v1004 = vadd.f32 %v961, %v999
        %v1005 = vadd.f32 %v962, %v999
        %v1006 = vadd.f32 %v963, %v999
        %v1007 = vadd.f32 %v964, %v999
        %v1008 = vadd.f32 %v965, %v999
        %v1009 = vadd.f32 %v966, %v999
        %v1010 = vadd.f32 %v967, %v999
        %v1011 = vadd.f32 %v968, %v999
        %v1012 = vadd.f32 %v969, %v999
        %v1013 = vadd.f32 %v970, %v999
        %v1014 = vadd.f32 %v971, %v999
        %v1015 = vadd.f32 %v972, %v999
        %v1016 = vadd.f32 %v973, %v999
        %v1017 = vadd.f32 %v974, %v999
        %v1018 = vadd.f32 %v975, %v999
        %v1019 = vadd.f32 %v976, %v999
        %v1020 = vadd.f32 %v977, %v999
        %v1021 = vadd.f32 %v978, %v999
        %v1022 = vadd.f32 %v979, %v999
        %v1023 = vadd.f32 %v980, %v999
        %v1024 = vadd.f32 %v981, %v999
        %v1025 = vadd.f32 %v982, %v999
        %v1026 = vadd.f32 %v983, %v999
        %v1027 = vadd.f32 %v984, %v999
        %v1028 = vadd.f32 %v985, %v999
        %v1029 = vadd.f32 %v986, %v999
        %v1030 = vadd.f32 %v987, %v999
        %v1031 = vadd.f32 %v988, %v999
        %v1032 = vadd.f32 %v989, %v999
        %v1033 = vadd.f32 %v990, %v999
        %v1034 = vadd.f32 %v991, %v999
        %v1035 = vadd.f32 %v992, %v999
        %v1036 = vadd.f32 %v993, %v999
        %v1037 = vmax.f32 %v1001, 0.0
        %v1038 = vmax.f32 %v1002, 0.0
        %v1039 = vmax.f32 %v1003, 0.0
        %v1040 = vmax.f32 %v1004, 0.0
        %v1041 = vmax.f32 %v1005, 0.0
        %v1042 = vmax.f32 %v1006, 0.0
        %v1043 = vmax.f32 %v1007, 0.0
        %v1044 = vmax.f32 %v1008, 0.0
        %v1045 = vmax.f32 %v1009, 0.0
        %v1046 = vmax.f32 %v1010, 0.0
        %v1047 = vmax.f32 %v1011, 0.0
        %v1048 = vmax.f32 %v1012, 0.0
        %v1049 = vmax.f32 %v1013, 0.0
        %v1050 = vmax.f32 %v1014, 0.0
        %v1051 = vmax.f32 %v1015, 0.0
        %v1052 = vmax.f32 %v1016, 0.0
        %v1053 = vmax.f32 %v1017, 0.0
        %v1054 = vmax.f32 %v1018, 0.0
        %v1055 = vmax.f32 %v1019, 0.0
        %v1056 = vmax.f32 %v1020, 0.0
        %v1057 = vmax.f32 %v1021, 0.0
        %v1058 = vmax.f32 %v1022, 0.0
        %v1059 = vmax.f32 %v1023, 0.0
        %v1060 = vmax.f32 %v1024, 0.0
        %v1061 = vmax.f32 %v1025, 0.0
        %v1062 = vmax.f32 %v1026, 0.0
        %v1063 = vmax.f32 %v1027, 0.0
        %v1064 = vmax.f32 %v1028, 0.0
        %v1065 = vmax.f32 %v1029, 0.0
        %v1066 = vmax.f32 %v1030, 0.0
        %v1067 = vmax.f32 %v1031, 0.0
        %v1068 = vmax.f32 %v1032, 0.0
        %v1069 = vmax.f32 %v1033, 0.0
        %v1070 = vmax.f32 %v1034, 0.0
        %v1071 = vmax.f32 %v1035, 0.0
        %v1072 = vmax.f32 %v1036, 0.0
        %p1073 = scmp.gt.s32.totalorder %s31, 0
        %s1074 = scalar_select %p1073, 1, 0
        %v1075 = vstv %s1074
        %vm1076 = vcmp.eq.s32.totalorder %v1075, 1
        %p1077 = scmp.lt.s32.totalorder %s31, 0
        %s1078 = scalar_select %p1077, 1, 0
        %v1079 = vstv %s1078
        %vm1080 = vcmp.eq.s32.totalorder %v1079, 1
        %v1081 = vsel %vm1076, 1, 0
        %v1082 = vsel %vm1080, 1, 0
        %vm1083 = vcmp.eq.s32.totalorder %v1081, 1
        %vm1084 = vcmp.eq.s32.totalorder %v1082, 1
        %v1085 = vsel %vm1083, %v1037, 0.0
        %v1086 = vsel %vm1083, %v1038, 0.0
        %v1087 = vsel 1, %v1039, 0.0
        %v1088 = vsel 1, %v1040, 0.0
        %v1089 = vsel 1, %v1041, 0.0
        %v1090 = vsel 1, %v1042, 0.0
        %v1091 = vsel 1, %v1043, 0.0
        %v1092 = vsel 1, %v1044, 0.0
        %v1093 = vsel 1, %v1045, 0.0
        %v1094 = vsel 1, %v1046, 0.0
        %v1095 = vsel 1, %v1047, 0.0
        %v1096 = vsel 1, %v1048, 0.0
        %v1097 = vsel 1, %v1049, 0.0
        %v1098 = vsel 1, %v1050, 0.0
        %v1099 = vsel 1, %v1051, 0.0
        %v1100 = vsel 1, %v1052, 0.0
        %v1101 = vsel 1, %v1053, 0.0
        %v1102 = vsel 1, %v1054, 0.0
        %v1103 = vsel 1, %v1055, 0.0
        %v1104 = vsel 1, %v1056, 0.0
        %v1105 = vsel 1, %v1057, 0.0
        %v1106 = vsel 1, %v1058, 0.0
        %v1107 = vsel 1, %v1059, 0.0
        %v1108 = vsel 1, %v1060, 0.0
        %v1109 = vsel 1, %v1061, 0.0
        %v1110 = vsel 1, %v1062, 0.0
        %v1111 = vsel 1, %v1063, 0.0
        %v1112 = vsel 1, %v1064, 0.0
        %v1113 = vsel 1, %v1065, 0.0
        %v1114 = vsel 1, %v1066, 0.0
        %v1115 = vsel 1, %v1067, 0.0
        %v1116 = vsel 1, %v1068, 0.0
        %v1117 = vsel 1, %v1069, 0.0
        %v1118 = vsel 1, %v1070, 0.0
        %v1119 = vsel %vm1084, %v1071, 0.0
        %v1120 = vsel %vm1084, %v1072, 0.0
        %v1121 = vpack.c.bf16 %v1086, %v1085
        %v1122 = vpack.c.bf16 %v1088, %v1087
        %v1123 = vpack.c.bf16 %v1090, %v1089
        %v1124 = vpack.c.bf16 %v1092, %v1091
        %v1125 = vpack.c.bf16 %v1094, %v1093
        %v1126 = vpack.c.bf16 %v1096, %v1095
        %v1127 = vpack.c.bf16 %v1098, %v1097
        %v1128 = vpack.c.bf16 %v1100, %v1099
        %v1129 = vpack.c.bf16 %v1102, %v1101
        %v1130 = vpack.c.bf16 %v1104, %v1103
        %v1131 = vpack.c.bf16 %v1106, %v1105
        %v1132 = vpack.c.bf16 %v1108, %v1107
        %v1133 = vpack.c.bf16 %v1110, %v1109
        %v1134 = vpack.c.bf16 %v1112, %v1111
        %v1135 = vpack.c.bf16 %v1114, %v1113
        %v1136 = vpack.c.bf16 %v1116, %v1115
        %v1137 = vpack.c.bf16 %v1118, %v1117
        %v1138 = vpack.c.bf16 %v1120, %v1119
        %v1157 = vunpack.c.l.b16 %v1121
        %v1158 = vunpack.c.h.b16 %v1121
        %v1159 = vunpack.c.l.b16 %v1122
        %v1160 = vunpack.c.h.b16 %v1122
        %v1161 = vunpack.c.l.b16 %v1123
        %v1162 = vunpack.c.h.b16 %v1123
        %v1163 = vunpack.c.l.b16 %v1124
        %v1164 = vunpack.c.h.b16 %v1124
        %v1165 = vunpack.c.l.b16 %v1125
        %v1166 = vunpack.c.h.b16 %v1125
        %v1167 = vunpack.c.l.b16 %v1126
        %v1168 = vunpack.c.h.b16 %v1126
        %v1169 = vunpack.c.l.b16 %v1127
        %v1170 = vunpack.c.h.b16 %v1127
        %v1171 = vunpack.c.l.b16 %v1128
        %v1172 = vunpack.c.h.b16 %v1128
        %v1173 = vunpack.c.l.b16 %v1129
        %v1174 = vunpack.c.h.b16 %v1129
        %v1175 = vunpack.c.l.b16 %v1130
        %v1176 = vunpack.c.h.b16 %v1130
        %v1177 = vunpack.c.l.b16 %v1131
        %v1178 = vunpack.c.h.b16 %v1131
        %v1179 = vunpack.c.l.b16 %v1132
        %v1180 = vunpack.c.h.b16 %v1132
        %v1181 = vunpack.c.l.b16 %v1133
        %v1182 = vunpack.c.h.b16 %v1133
        %v1183 = vunpack.c.l.b16 %v1134
        %v1184 = vunpack.c.h.b16 %v1134
        %v1185 = vunpack.c.l.b16 %v1135
        %v1186 = vunpack.c.h.b16 %v1135
        %v1187 = vunpack.c.l.b16 %v1136
        %v1188 = vunpack.c.h.b16 %v1136
        %v1189 = vunpack.c.l.b16 %v1137
        %v1190 = vunpack.c.h.b16 %v1137
        %v1191 = vunpack.c.l.b16 %v1138
        %v1192 = vunpack.c.h.b16 %v1138
        %v1193 = vpack.c.b16 %v1157, %v1157
        %v1194 = vpack.c.b16 %v1158, %v1158
        %v1195 = vpack.c.b16 %v1159, %v1159
        %v1196 = vpack.c.b16 %v1160, %v1160
        %v1197 = vpack.c.b16 %v1161, %v1161
        %v1198 = vpack.c.b16 %v1162, %v1162
        %v1199 = vpack.c.b16 %v1163, %v1163
        %v1200 = vpack.c.b16 %v1164, %v1164
        %v1201 = vpack.c.b16 %v1165, %v1165
        %v1202 = vpack.c.b16 %v1166, %v1166
        %v1203 = vpack.c.b16 %v1167, %v1167
        %v1204 = vpack.c.b16 %v1168, %v1168
        %v1205 = vpack.c.b16 %v1169, %v1169
        %v1206 = vpack.c.b16 %v1170, %v1170
        %v1207 = vpack.c.b16 %v1171, %v1171
        %v1208 = vpack.c.b16 %v1172, %v1172
        %v1209 = vpack.c.b16 %v1173, %v1173
        %v1210 = vpack.c.b16 %v1174, %v1174
        %v1211 = vpack.c.b16 %v1175, %v1175
        %v1212 = vpack.c.b16 %v1176, %v1176
        %v1213 = vpack.c.b16 %v1177, %v1177
        %v1214 = vpack.c.b16 %v1178, %v1178
        %v1215 = vpack.c.b16 %v1179, %v1179
        %v1216 = vpack.c.b16 %v1180, %v1180
        %v1217 = vpack.c.b16 %v1181, %v1181
        %v1218 = vpack.c.b16 %v1182, %v1182
        %v1219 = vpack.c.b16 %v1183, %v1183
        %v1220 = vpack.c.b16 %v1184, %v1184
        %v1221 = vpack.c.b16 %v1185, %v1185
        %v1222 = vpack.c.b16 %v1186, %v1186
        %v1223 = vpack.c.b16 %v1187, %v1187
        %v1224 = vpack.c.b16 %v1188, %v1188
        %v1225 = vpack.c.b16 %v1189, %v1189
        %v1226 = vpack.c.b16 %v1190, %v1190
        %v1227 = vpack.c.b16 %v1191, %v1191
        %v1228 = vpack.c.b16 %v1192, %v1192
        %vm1229 = vsmask.f32 256
        %vm1230 = vsmask.f32 4368
        %vm1231 = vmor %vm1229, %vm1230
        %v1233 = vshrl.u32 %v1193, 16
        %v1235 = vrot.slane %v1233, 7
        %v1236 = vshll.u32 %v1193, 16
        %v1238 = vor.u32 %v1235, %v1236
        %v1239 = vrot.slane %v1235, 4
        %v1241 = vshrl.u32 %v1194, 16
        %v1243 = vrot.slane %v1241, 7
        %v1244 = vshll.u32 %v1194, 16
        %v1246 = vor.u32 %v1243, %v1244
        %v1247 = vsel %vm1231, %v1239, %v1246
        %v1248 = vrot.slane %v1243, 4
        %v1250 = vshrl.u32 %v1195, 16
        %v1252 = vrot.slane %v1250, 7
        %v1253 = vshll.u32 %v1195, 16
        %v1255 = vor.u32 %v1252, %v1253
        %v1256 = vrot.slane %v1252, 4
        %v1258 = vshrl.u32 %v1196, 16
        %v1260 = vrot.slane %v1258, 7
        %v1261 = vshll.u32 %v1196, 16
        %v1263 = vor.u32 %v1260, %v1261
        %v1264 = vsel %vm1231, %v1256, %v1263
        %v1265 = vrot.slane %v1260, 4
        %v1267 = vshrl.u32 %v1197, 16
        %v1269 = vrot.slane %v1267, 7
        %v1270 = vshll.u32 %v1197, 16
        %v1272 = vor.u32 %v1269, %v1270
        %v1273 = vrot.slane %v1269, 4
        %v1275 = vshrl.u32 %v1198, 16
        %v1277 = vrot.slane %v1275, 7
        %v1278 = vshll.u32 %v1198, 16
        %v1280 = vor.u32 %v1277, %v1278
        %v1281 = vsel %vm1231, %v1273, %v1280
        %v1282 = vrot.slane %v1277, 4
        %v1284 = vshrl.u32 %v1199, 16
        %v1286 = vrot.slane %v1284, 7
        %v1287 = vshll.u32 %v1199, 16
        %v1289 = vor.u32 %v1286, %v1287
        %v1290 = vrot.slane %v1286, 4
        %v1292 = vshrl.u32 %v1200, 16
        %v1294 = vrot.slane %v1292, 7
        %v1295 = vshll.u32 %v1200, 16
        %v1297 = vor.u32 %v1294, %v1295
        %v1298 = vsel %vm1231, %v1290, %v1297
        %v1299 = vrot.slane %v1294, 4
        %v1301 = vshrl.u32 %v1201, 16
        %v1303 = vrot.slane %v1301, 7
        %v1304 = vshll.u32 %v1201, 16
        %v1306 = vor.u32 %v1303, %v1304
        %v1307 = vrot.slane %v1303, 4
        %v1309 = vshrl.u32 %v1202, 16
        %v1311 = vrot.slane %v1309, 7
        %v1312 = vshll.u32 %v1202, 16
        %v1314 = vor.u32 %v1311, %v1312
        %v1315 = vsel %vm1231, %v1307, %v1314
        %v1316 = vrot.slane %v1311, 4
        %v1318 = vshrl.u32 %v1203, 16
        %v1320 = vrot.slane %v1318, 7
        %v1321 = vshll.u32 %v1203, 16
        %v1323 = vor.u32 %v1320, %v1321
        %v1324 = vrot.slane %v1320, 4
        %v1326 = vshrl.u32 %v1204, 16
        %v1328 = vrot.slane %v1326, 7
        %v1329 = vshll.u32 %v1204, 16
        %v1331 = vor.u32 %v1328, %v1329
        %v1332 = vsel %vm1231, %v1324, %v1331
        %v1333 = vrot.slane %v1328, 4
        %v1335 = vshrl.u32 %v1205, 16
        %v1337 = vrot.slane %v1335, 7
        %v1338 = vshll.u32 %v1205, 16
        %v1340 = vor.u32 %v1337, %v1338
        %v1341 = vrot.slane %v1337, 4
        %v1343 = vshrl.u32 %v1206, 16
        %v1345 = vrot.slane %v1343, 7
        %v1346 = vshll.u32 %v1206, 16
        %v1348 = vor.u32 %v1345, %v1346
        %v1349 = vsel %vm1231, %v1341, %v1348
        %v1350 = vrot.slane %v1345, 4
        %v1352 = vshrl.u32 %v1207, 16
        %v1354 = vrot.slane %v1352, 7
        %v1355 = vshll.u32 %v1207, 16
        %v1357 = vor.u32 %v1354, %v1355
        %v1358 = vrot.slane %v1354, 4
        %v1360 = vshrl.u32 %v1208, 16
        %v1362 = vrot.slane %v1360, 7
        %v1363 = vshll.u32 %v1208, 16
        %v1365 = vor.u32 %v1362, %v1363
        %v1366 = vsel %vm1231, %v1358, %v1365
        %v1367 = vrot.slane %v1362, 4
        %v1369 = vshrl.u32 %v1209, 16
        %v1371 = vrot.slane %v1369, 7
        %v1372 = vshll.u32 %v1209, 16
        %v1374 = vor.u32 %v1371, %v1372
        %v1375 = vrot.slane %v1371, 4
        %v1377 = vshrl.u32 %v1210, 16
        %v1379 = vrot.slane %v1377, 7
        %v1380 = vshll.u32 %v1210, 16
        %v1382 = vor.u32 %v1379, %v1380
        %v1383 = vsel %vm1231, %v1375, %v1382
        %v1384 = vrot.slane %v1379, 4
        %v1386 = vshrl.u32 %v1211, 16
        %v1388 = vrot.slane %v1386, 7
        %v1389 = vshll.u32 %v1211, 16
        %v1391 = vor.u32 %v1388, %v1389
        %v1392 = vrot.slane %v1388, 4
        %v1394 = vshrl.u32 %v1212, 16
        %v1396 = vrot.slane %v1394, 7
        %v1397 = vshll.u32 %v1212, 16
        %v1399 = vor.u32 %v1396, %v1397
        %v1400 = vsel %vm1231, %v1392, %v1399
        %v1401 = vrot.slane %v1396, 4
        %v1403 = vshrl.u32 %v1213, 16
        %v1405 = vrot.slane %v1403, 7
        %v1406 = vshll.u32 %v1213, 16
        %v1408 = vor.u32 %v1405, %v1406
        %v1409 = vrot.slane %v1405, 4
        %v1411 = vshrl.u32 %v1214, 16
        %v1413 = vrot.slane %v1411, 7
        %v1414 = vshll.u32 %v1214, 16
        %v1416 = vor.u32 %v1413, %v1414
        %v1417 = vsel %vm1231, %v1409, %v1416
        %v1418 = vrot.slane %v1413, 4
        %v1420 = vshrl.u32 %v1215, 16
        %v1422 = vrot.slane %v1420, 7
        %v1423 = vshll.u32 %v1215, 16
        %v1425 = vor.u32 %v1422, %v1423
        %v1426 = vrot.slane %v1422, 4
        %v1428 = vshrl.u32 %v1216, 16
        %v1430 = vrot.slane %v1428, 7
        %v1431 = vshll.u32 %v1216, 16
        %v1433 = vor.u32 %v1430, %v1431
        %v1434 = vsel %vm1231, %v1426, %v1433
        %v1435 = vrot.slane %v1430, 4
        %v1437 = vshrl.u32 %v1217, 16
        %v1439 = vrot.slane %v1437, 7
        %v1440 = vshll.u32 %v1217, 16
        %v1442 = vor.u32 %v1439, %v1440
        %v1443 = vrot.slane %v1439, 4
        %v1445 = vshrl.u32 %v1218, 16
        %v1447 = vrot.slane %v1445, 7
        %v1448 = vshll.u32 %v1218, 16
        %v1450 = vor.u32 %v1447, %v1448
        %v1451 = vsel %vm1231, %v1443, %v1450
        %v1452 = vrot.slane %v1447, 4
        %v1454 = vshrl.u32 %v1219, 16
        %v1456 = vrot.slane %v1454, 7
        %v1457 = vshll.u32 %v1219, 16
        %v1459 = vor.u32 %v1456, %v1457
        %v1460 = vrot.slane %v1456, 4
        %v1462 = vshrl.u32 %v1220, 16
        %v1464 = vrot.slane %v1462, 7
        %v1465 = vshll.u32 %v1220, 16
        %v1467 = vor.u32 %v1464, %v1465
        %v1468 = vsel %vm1231, %v1460, %v1467
        %v1469 = vrot.slane %v1464, 4
        %v1471 = vshrl.u32 %v1221, 16
        %v1473 = vrot.slane %v1471, 7
        %v1474 = vshll.u32 %v1221, 16
        %v1476 = vor.u32 %v1473, %v1474
        %v1477 = vrot.slane %v1473, 4
        %v1479 = vshrl.u32 %v1222, 16
        %v1481 = vrot.slane %v1479, 7
        %v1482 = vshll.u32 %v1222, 16
        %v1484 = vor.u32 %v1481, %v1482
        %v1485 = vsel %vm1231, %v1477, %v1484
        %v1486 = vrot.slane %v1481, 4
        %v1488 = vshrl.u32 %v1223, 16
        %v1490 = vrot.slane %v1488, 7
        %v1491 = vshll.u32 %v1223, 16
        %v1493 = vor.u32 %v1490, %v1491
        %v1494 = vrot.slane %v1490, 4
        %v1496 = vshrl.u32 %v1224, 16
        %v1498 = vrot.slane %v1496, 7
        %v1499 = vshll.u32 %v1224, 16
        %v1501 = vor.u32 %v1498, %v1499
        %v1502 = vsel %vm1231, %v1494, %v1501
        %v1503 = vrot.slane %v1498, 4
        %v1505 = vshrl.u32 %v1225, 16
        %v1507 = vrot.slane %v1505, 7
        %v1508 = vshll.u32 %v1225, 16
        %v1510 = vor.u32 %v1507, %v1508
        %v1511 = vrot.slane %v1507, 4
        %v1513 = vshrl.u32 %v1226, 16
        %v1515 = vrot.slane %v1513, 7
        %v1516 = vshll.u32 %v1226, 16
        %v1518 = vor.u32 %v1515, %v1516
        %v1519 = vsel %vm1231, %v1511, %v1518
        %v1520 = vrot.slane %v1515, 4
        %v1522 = vshrl.u32 %v1227, 16
        %v1524 = vrot.slane %v1522, 7
        %v1525 = vshll.u32 %v1227, 16
        %v1527 = vor.u32 %v1524, %v1525
        %v1528 = vrot.slane %v1524, 4
        %v1530 = vshrl.u32 %v1228, 16
        %v1532 = vrot.slane %v1530, 7
        %v1533 = vshll.u32 %v1228, 16
        %v1535 = vor.u32 %v1532, %v1533
        %v1536 = vsel %vm1231, %v1528, %v1535
        %v1537 = vrot.slane %v1532, 4
        %vm1592 = vcmask 1043456
        %vm1593 = vsmask.f32 7938
        %vm1594 = vmand %vm1592, %vm1593
        %v1595 = vld [vmem:[#allocation2] sm:$0xf]
        %v1596 = vsel %vm1594, %v1238, %v1595
        %1597 = vst [vmem:[#allocation2] sm:$0xf] %v1596
        %1598 = vst [vmem:[#allocation2 + $0x4] sm:$0xf] %v1247
        %vm1599 = vcmask 1040384
        %vm1600 = vmand %vm1599, %vm1229
        %v1601 = vld [vmem:[#allocation2 + $0x8] sm:$0x1]
        %v1602 = vsel %vm1600, %v1248, %v1601
        %1603 = vst [vmem:[#allocation2 + $0x8] sm:$0x1] %v1602
        %v1604 = vld [vmem:[#allocation2 + $0xc] sm:$0xf]
        %v1605 = vsel %vm1594, %v1255, %v1604
        %1606 = vst [vmem:[#allocation2 + $0xc] sm:$0xf] %v1605
        %1607 = vst [vmem:[#allocation2 + $0x10] sm:$0xf] %v1264
        %v1608 = vld [vmem:[#allocation2 + $0x14] sm:$0x1]
        %v1609 = vsel %vm1600, %v1265, %v1608
        %1610 = vst [vmem:[#allocation2 + $0x14] sm:$0x1] %v1609
        %v1611 = vld [vmem:[#allocation2 + $0x18] sm:$0xf]
        %v1612 = vsel %vm1594, %v1272, %v1611
        %1613 = vst [vmem:[#allocation2 + $0x18] sm:$0xf] %v1612
        %1614 = vst [vmem:[#allocation2 + $0x1c] sm:$0xf] %v1281
        %v1615 = vld [vmem:[#allocation2 + $0x20] sm:$0x1]
        %v1616 = vsel %vm1600, %v1282, %v1615
        %1617 = vst [vmem:[#allocation2 + $0x20] sm:$0x1] %v1616
        %v1618 = vld [vmem:[#allocation2 + $0x24] sm:$0xf]
        %v1619 = vsel %vm1594, %v1289, %v1618
        %1620 = vst [vmem:[#allocation2 + $0x24] sm:$0xf] %v1619
        %1621 = vst [vmem:[#allocation2 + $0x28] sm:$0xf] %v1298
        %v1622 = vld [vmem:[#allocation2 + $0x2c] sm:$0x1]
        %v1623 = vsel %vm1600, %v1299, %v1622
        %1624 = vst [vmem:[#allocation2 + $0x2c] sm:$0x1] %v1623
        %v1625 = vld [vmem:[#allocation2 + $0x30] sm:$0xf]
        %v1626 = vsel %vm1594, %v1306, %v1625
        %1627 = vst [vmem:[#allocation2 + $0x30] sm:$0xf] %v1626
        %1628 = vst [vmem:[#allocation2 + $0x34] sm:$0xf] %v1315
        %v1629 = vld [vmem:[#allocation2 + $0x38] sm:$0x1]
        %v1630 = vsel %vm1600, %v1316, %v1629
        %1631 = vst [vmem:[#allocation2 + $0x38] sm:$0x1] %v1630
        %v1632 = vld [vmem:[#allocation2 + $0x3c] sm:$0xf]
        %v1633 = vsel %vm1594, %v1323, %v1632
        %1634 = vst [vmem:[#allocation2 + $0x3c] sm:$0xf] %v1633
        %1635 = vst [vmem:[#allocation2 + $0x40] sm:$0xf] %v1332
        %v1636 = vld [vmem:[#allocation2 + $0x44] sm:$0x1]
        %v1637 = vsel %vm1600, %v1333, %v1636
        %1638 = vst [vmem:[#allocation2 + $0x44] sm:$0x1] %v1637
        %v1639 = vld [vmem:[#allocation2 + $0x48] sm:$0xf]
        %v1640 = vsel %vm1594, %v1340, %v1639
        %1641 = vst [vmem:[#allocation2 + $0x48] sm:$0xf] %v1640
        %1642 = vst [vmem:[#allocation2 + $0x4c] sm:$0xf] %v1349
        %v1643 = vld [vmem:[#allocation2 + $0x50] sm:$0x1]
        %v1644 = vsel %vm1600, %v1350, %v1643
        %1645 = vst [vmem:[#allocation2 + $0x50] sm:$0x1] %v1644
        %v1646 = vld [vmem:[#allocation2 + $0x54] sm:$0xf]
        %v1647 = vsel %vm1594, %v1357, %v1646
        %1648 = vst [vmem:[#allocation2 + $0x54] sm:$0xf] %v1647
        %1649 = vst [vmem:[#allocation2 + $0x58] sm:$0xf] %v1366
        %v1650 = vld [vmem:[#allocation2 + $0x5c] sm:$0x1]
        %v1651 = vsel %vm1600, %v1367, %v1650
        %1652 = vst [vmem:[#allocation2 + $0x5c] sm:$0x1] %v1651
        %v1653 = vld [vmem:[#allocation2 + $0x60] sm:$0xf]
        %v1654 = vsel %vm1594, %v1374, %v1653
        %1655 = vst [vmem:[#allocation2 + $0x60] sm:$0xf] %v1654
        %1656 = vst [vmem:[#allocation2 + $0x64] sm:$0xf] %v1383
        %v1657 = vld [vmem:[#allocation2 + $0x68] sm:$0x1]
        %v1658 = vsel %vm1600, %v1384, %v1657
        %1659 = vst [vmem:[#allocation2 + $0x68] sm:$0x1] %v1658
        %v1660 = vld [vmem:[#allocation2 + $0x6c] sm:$0xf]
        %v1661 = vsel %vm1594, %v1391, %v1660
        %1662 = vst [vmem:[#allocation2 + $0x6c] sm:$0xf] %v1661
        %1663 = vst [vmem:[#allocation2 + $0x70] sm:$0xf] %v1400
        %v1664 = vld [vmem:[#allocation2 + $0x74] sm:$0x1]
        %v1665 = vsel %vm1600, %v1401, %v1664
        %1666 = vst [vmem:[#allocation2 + $0x74] sm:$0x1] %v1665
        %v1667 = vld [vmem:[#allocation2 + $0x78] sm:$0xf]
        %v1668 = vsel %vm1594, %v1408, %v1667
        %1669 = vst [vmem:[#allocation2 + $0x78] sm:$0xf] %v1668
        %1670 = vst [vmem:[#allocation2 + $0x7c] sm:$0xf] %v1417
        %v1671 = vld [vmem:[#allocation2 + $0x80] sm:$0x1]
        %v1672 = vsel %vm1600, %v1418, %v1671
        %1673 = vst [vmem:[#allocation2 + $0x80] sm:$0x1] %v1672
        %v1674 = vld [vmem:[#allocation2 + $0x84] sm:$0xf]
        %v1675 = vsel %vm1594, %v1425, %v1674
        %1676 = vst [vmem:[#allocation2 + $0x84] sm:$0xf] %v1675
        %1677 = vst [vmem:[#allocation2 + $0x88] sm:$0xf] %v1434
        %v1678 = vld [vmem:[#allocation2 + $0x8c] sm:$0x1]
        %v1679 = vsel %vm1600, %v1435, %v1678
        %1680 = vst [vmem:[#allocation2 + $0x8c] sm:$0x1] %v1679
        %v1681 = vld [vmem:[#allocation2 + $0x90] sm:$0xf]
        %v1682 = vsel %vm1594, %v1442, %v1681
        %1683 = vst [vmem:[#allocation2 + $0x90] sm:$0xf] %v1682
        %1684 = vst [vmem:[#allocation2 + $0x94] sm:$0xf] %v1451
        %v1685 = vld [vmem:[#allocation2 + $0x98] sm:$0x1]
        %v1686 = vsel %vm1600, %v1452, %v1685
        %1687 = vst [vmem:[#allocation2 + $0x98] sm:$0x1] %v1686
        %v1688 = vld [vmem:[#allocation2 + $0x9c] sm:$0xf]
        %v1689 = vsel %vm1594, %v1459, %v1688
        %1690 = vst [vmem:[#allocation2 + $0x9c] sm:$0xf] %v1689
        %1691 = vst [vmem:[#allocation2 + $0xa0] sm:$0xf] %v1468
        %v1692 = vld [vmem:[#allocation2 + $0xa4] sm:$0x1]
        %v1693 = vsel %vm1600, %v1469, %v1692
        %1694 = vst [vmem:[#allocation2 + $0xa4] sm:$0x1] %v1693
        %v1695 = vld [vmem:[#allocation2 + $0xa8] sm:$0xf]
        %v1696 = vsel %vm1594, %v1476, %v1695
        %1697 = vst [vmem:[#allocation2 + $0xa8] sm:$0xf] %v1696
        %1698 = vst [vmem:[#allocation2 + $0xac] sm:$0xf] %v1485
        %v1699 = vld [vmem:[#allocation2 + $0xb0] sm:$0x1]
        %v1700 = vsel %vm1600, %v1486, %v1699
        %1701 = vst [vmem:[#allocation2 + $0xb0] sm:$0x1] %v1700
        %v1702 = vld [vmem:[#allocation2 + $0xb4] sm:$0xf]
        %v1703 = vsel %vm1594, %v1493, %v1702
        %1704 = vst [vmem:[#allocation2 + $0xb4] sm:$0xf] %v1703
        %1705 = vst [vmem:[#allocation2 + $0xb8] sm:$0xf] %v1502
        %v1706 = vld [vmem:[#allocation2 + $0xbc] sm:$0x1]
        %v1707 = vsel %vm1600, %v1503, %v1706
        %1708 = vst [vmem:[#allocation2 + $0xbc] sm:$0x1] %v1707
        %v1709 = vld [vmem:[#allocation2 + $0xc0] sm:$0xf]
        %v1710 = vsel %vm1594, %v1510, %v1709
        %1711 = vst [vmem:[#allocation2 + $0xc0] sm:$0xf] %v1710
        %1712 = vst [vmem:[#allocation2 + $0xc4] sm:$0xf] %v1519
        %v1713 = vld [vmem:[#allocation2 + $0xc8] sm:$0x1]
        %v1714 = vsel %vm1600, %v1520, %v1713
        %1715 = vst [vmem:[#allocation2 + $0xc8] sm:$0x1] %v1714
        %v1716 = vld [vmem:[#allocation2 + $0xcc] sm:$0xf]
        %v1717 = vsel %vm1594, %v1527, %v1716
        %1718 = vst [vmem:[#allocation2 + $0xcc] sm:$0xf] %v1717
        %1719 = vst [vmem:[#allocation2 + $0xd0] sm:$0xf] %v1536
        %v1720 = vld [vmem:[#allocation2 + $0xd4] sm:$0x1]
        %v1721 = vsel %vm1600, %v1537, %v1720
        %1722 = vst [vmem:[#allocation2 + $0xd4] sm:$0x1] %v1721
        %v1723 = vld [vmem:[#allocation2] sm:$0x1]
        %v1724 = vsel %vm1600, 0, %v1723
        %1725 = vst [vmem:[#allocation2] sm:$0x1] %v1724
        %v1726 = vld [vmem:[#allocation2 + $0xc] sm:$0x1]
        %v1727 = vsel %vm1600, 0, %v1726
        %1728 = vst [vmem:[#allocation2 + $0xc] sm:$0x1] %v1727
        %v1729 = vld [vmem:[#allocation2 + $0x18] sm:$0x1]
        %v1730 = vsel %vm1600, 0, %v1729
        %1731 = vst [vmem:[#allocation2 + $0x18] sm:$0x1] %v1730
        %v1732 = vld [vmem:[#allocation2 + $0x24] sm:$0x1]
        %v1733 = vsel %vm1600, 0, %v1732
        %1734 = vst [vmem:[#allocation2 + $0x24] sm:$0x1] %v1733
        %v1735 = vld [vmem:[#allocation2 + $0x30] sm:$0x1]
        %v1736 = vsel %vm1600, 0, %v1735
        %1737 = vst [vmem:[#allocation2 + $0x30] sm:$0x1] %v1736
        %v1738 = vld [vmem:[#allocation2 + $0x3c] sm:$0x1]
        %v1739 = vsel %vm1600, 0, %v1738
        %1740 = vst [vmem:[#allocation2 + $0x3c] sm:$0x1] %v1739
        %v1741 = vld [vmem:[#allocation2 + $0x48] sm:$0x1]
        %v1742 = vsel %vm1600, 0, %v1741
        %1743 = vst [vmem:[#allocation2 + $0x48] sm:$0x1] %v1742
        %v1744 = vld [vmem:[#allocation2 + $0x54] sm:$0x1]
        %v1745 = vsel %vm1600, 0, %v1744
        %1746 = vst [vmem:[#allocation2 + $0x54] sm:$0x1] %v1745
        %v1747 = vld [vmem:[#allocation2 + $0x60] sm:$0x1]
        %v1748 = vsel %vm1600, 0, %v1747
        %1749 = vst [vmem:[#allocation2 + $0x60] sm:$0x1] %v1748
        %v1750 = vld [vmem:[#allocation2 + $0x6c] sm:$0x1]
        %v1751 = vsel %vm1600, 0, %v1750
        %1752 = vst [vmem:[#allocation2 + $0x6c] sm:$0x1] %v1751
        %v1753 = vld [vmem:[#allocation2 + $0x78] sm:$0x1]
        %v1754 = vsel %vm1600, 0, %v1753
        %1755 = vst [vmem:[#allocation2 + $0x78] sm:$0x1] %v1754
        %v1756 = vld [vmem:[#allocation2 + $0x84] sm:$0x1]
        %v1757 = vsel %vm1600, 0, %v1756
        %1758 = vst [vmem:[#allocation2 + $0x84] sm:$0x1] %v1757
        %v1759 = vld [vmem:[#allocation2 + $0x90] sm:$0x1]
        %v1760 = vsel %vm1600, 0, %v1759
        %1761 = vst [vmem:[#allocation2 + $0x90] sm:$0x1] %v1760
        %v1762 = vld [vmem:[#allocation2 + $0x9c] sm:$0x1]
        %v1763 = vsel %vm1600, 0, %v1762
        %1764 = vst [vmem:[#allocation2 + $0x9c] sm:$0x1] %v1763
        %v1765 = vld [vmem:[#allocation2 + $0xa8] sm:$0x1]
        %v1766 = vsel %vm1600, 0, %v1765
        %1767 = vst [vmem:[#allocation2 + $0xa8] sm:$0x1] %v1766
        %v1768 = vld [vmem:[#allocation2 + $0xb4] sm:$0x1]
        %v1769 = vsel %vm1600, 0, %v1768
        %1770 = vst [vmem:[#allocation2 + $0xb4] sm:$0x1] %v1769
        %v1771 = vld [vmem:[#allocation2 + $0xc0] sm:$0x1]
        %v1772 = vsel %vm1600, 0, %v1771
        %1773 = vst [vmem:[#allocation2 + $0xc0] sm:$0x1] %v1772
        %v1774 = vld [vmem:[#allocation2 + $0xcc] sm:$0x1]
        %v1775 = vsel %vm1600, 0, %v1774
        %1776 = vst [vmem:[#allocation2 + $0xcc] sm:$0x1] %v1775
        %vm1777 = vmand %vm1599, %vm1593
        %v1778 = vld [vmem:[#allocation2 + $0x8] sm:$0x1]
        %v1779 = vsel %vm1777, 0, %v1778
        %1780 = vst [vmem:[#allocation2 + $0x8] sm:$0x1] %v1779
        %v1781 = vld [vmem:[#allocation2 + $0x14] sm:$0x1]
        %v1782 = vsel %vm1777, 0, %v1781
        %1783 = vst [vmem:[#allocation2 + $0x14] sm:$0x1] %v1782
        %v1784 = vld [vmem:[#allocation2 + $0x20] sm:$0x1]
        %v1785 = vsel %vm1777, 0, %v1784
        %1786 = vst [vmem:[#allocation2 + $0x20] sm:$0x1] %v1785
        %v1787 = vld [vmem:[#allocation2 + $0x2c] sm:$0x1]
        %v1788 = vsel %vm1777, 0, %v1787
        %1789 = vst [vmem:[#allocation2 + $0x2c] sm:$0x1] %v1788
        %v1790 = vld [vmem:[#allocation2 + $0x38] sm:$0x1]
        %v1791 = vsel %vm1777, 0, %v1790
        %1792 = vst [vmem:[#allocation2 + $0x38] sm:$0x1] %v1791
        %v1793 = vld [vmem:[#allocation2 + $0x44] sm:$0x1]
        %v1794 = vsel %vm1777, 0, %v1793
        %1795 = vst [vmem:[#allocation2 + $0x44] sm:$0x1] %v1794
        %v1796 = vld [vmem:[#allocation2 + $0x50] sm:$0x1]
        %v1797 = vsel %vm1777, 0, %v1796
        %1798 = vst [vmem:[#allocation2 + $0x50] sm:$0x1] %v1797
        %v1799 = vld [vmem:[#allocation2 + $0x5c] sm:$0x1]
        %v1800 = vsel %vm1777, 0, %v1799
        %1801 = vst [vmem:[#allocation2 + $0x5c] sm:$0x1] %v1800
        %v1802 = vld [vmem:[#allocation2 + $0x68] sm:$0x1]
        %v1803 = vsel %vm1777, 0, %v1802
        %1804 = vst [vmem:[#allocation2 + $0x68] sm:$0x1] %v1803
        %v1805 = vld [vmem:[#allocation2 + $0x74] sm:$0x1]
        %v1806 = vsel %vm1777, 0, %v1805
        %1807 = vst [vmem:[#allocation2 + $0x74] sm:$0x1] %v1806
        %v1808 = vld [vmem:[#allocation2 + $0x80] sm:$0x1]
        %v1809 = vsel %vm1777, 0, %v1808
        %1810 = vst [vmem:[#allocation2 + $0x80] sm:$0x1] %v1809
        %v1811 = vld [vmem:[#allocation2 + $0x8c] sm:$0x1]
        %v1812 = vsel %vm1777, 0, %v1811
        %1813 = vst [vmem:[#allocation2 + $0x8c] sm:$0x1] %v1812
        %v1814 = vld [vmem:[#allocation2 + $0x98] sm:$0x1]
        %v1815 = vsel %vm1777, 0, %v1814
        %1816 = vst [vmem:[#allocation2 + $0x98] sm:$0x1] %v1815
        %v1817 = vld [vmem:[#allocation2 + $0xa4] sm:$0x1]
        %v1818 = vsel %vm1777, 0, %v1817
        %1819 = vst [vmem:[#allocation2 + $0xa4] sm:$0x1] %v1818
        %v1820 = vld [vmem:[#allocation2 + $0xb0] sm:$0x1]
        %v1821 = vsel %vm1777, 0, %v1820
        %1822 = vst [vmem:[#allocation2 + $0xb0] sm:$0x1] %v1821
        %v1823 = vld [vmem:[#allocation2 + $0xbc] sm:$0x1]
        %v1824 = vsel %vm1777, 0, %v1823
        %1825 = vst [vmem:[#allocation2 + $0xbc] sm:$0x1] %v1824
        %v1826 = vld [vmem:[#allocation2 + $0xc8] sm:$0x1]
        %v1827 = vsel %vm1777, 0, %v1826
        %1828 = vst [vmem:[#allocation2 + $0xc8] sm:$0x1] %v1827
        %v1829 = vld [vmem:[#allocation2 + $0xd4] sm:$0x1]
        %v1830 = vsel %vm1777, 0, %v1829
        %1831 = vst [vmem:[#allocation2 + $0xd4] sm:$0x1] %v1830
        %v1832 = vld [vmem:[#allocation2] sm:$0xf]
        %v1833 = vld [vmem:[#allocation2 + $0x4] sm:$0xf]
        %v1834 = vld [vmem:[#allocation2 + $0xc] sm:$0xf]
        %v1835 = vld [vmem:[#allocation2 + $0x10] sm:$0xf]
        %v1836 = vld [vmem:[#allocation2 + $0x18] sm:$0xf]
        %v1837 = vld [vmem:[#allocation2 + $0x1c] sm:$0xf]
        %v1838 = vld [vmem:[#allocation2 + $0x24] sm:$0xf]
        %v1839 = vld [vmem:[#allocation2 + $0x28] sm:$0xf]
        %v1840 = vld [vmem:[#allocation2 + $0x30] sm:$0xf]
        %v1841 = vld [vmem:[#allocation2 + $0x34] sm:$0xf]
        %v1842 = vld [vmem:[#allocation2 + $0x3c] sm:$0xf]
        %v1843 = vld [vmem:[#allocation2 + $0x40] sm:$0xf]
        %v1844 = vld [vmem:[#allocation2 + $0x48] sm:$0xf]
        %v1845 = vld [vmem:[#allocation2 + $0x4c] sm:$0xf]
        %v1846 = vld [vmem:[#allocation2 + $0x54] sm:$0xf]
        %v1847 = vld [vmem:[#allocation2 + $0x58] sm:$0xf]
        %v1848 = vld [vmem:[#allocation2 + $0x60] sm:$0xf]
        %v1849 = vld [vmem:[#allocation2 + $0x64] sm:$0xf]
        %v1850 = vld [vmem:[#allocation2 + $0x6c] sm:$0xf]
        %v1851 = vld [vmem:[#allocation2 + $0x70] sm:$0xf]
        %v1852 = vld [vmem:[#allocation2 + $0x78] sm:$0xf]
        %v1853 = vld [vmem:[#allocation2 + $0x7c] sm:$0xf]
        %v1854 = vld [vmem:[#allocation2 + $0x84] sm:$0xf]
        %v1855 = vld [vmem:[#allocation2 + $0x88] sm:$0xf]
        %v1856 = vld [vmem:[#allocation2 + $0x90] sm:$0xf]
        %v1857 = vld [vmem:[#allocation2 + $0x94] sm:$0xf]
        %v1858 = vld [vmem:[#allocation2 + $0x9c] sm:$0xf]
        %v1859 = vld [vmem:[#allocation2 + $0xa0] sm:$0xf]
        %v1860 = vld [vmem:[#allocation2 + $0xa8] sm:$0xf]
        %v1861 = vld [vmem:[#allocation2 + $0xac] sm:$0xf]
        %v1862 = vld [vmem:[#allocation2 + $0xb4] sm:$0xf]
        %v1863 = vld [vmem:[#allocation2 + $0xb8] sm:$0xf]
        %v1864 = vld [vmem:[#allocation8] sm:$0xf]
        %v1865 = vld [vmem:[#allocation8 + $0x4] sm:$0xf]
        %v1866 = vld [vmem:[#allocation8 + $0x8] sm:$0xf]
        %v1867 = vld [vmem:[#allocation8 + $0xc] sm:$0xf]
        %v1868 = vld [vmem:[#allocation8 + $0x10] sm:$0xf]
        %v1869 = vld [vmem:[#allocation8 + $0x14] sm:$0xf]
        %v1870 = vld [vmem:[#allocation8 + $0x18] sm:$0xf]
        %v1871 = vld [vmem:[#allocation8 + $0x1c] sm:$0xf]
        %v1872 = vld [vmem:[#allocation8 + $0x20] sm:$0xf]
        %v1873 = vld [vmem:[#allocation8 + $0x24] sm:$0xf]
        %v1874 = vld [vmem:[#allocation8 + $0x28] sm:$0xf]
        %v1875 = vld [vmem:[#allocation8 + $0x2c] sm:$0xf]
        %v1876 = vld [vmem:[#allocation8 + $0x30] sm:$0xf]
        %v1877 = vld [vmem:[#allocation8 + $0x34] sm:$0xf]
        %v1878 = vld [vmem:[#allocation8 + $0x38] sm:$0xf]
        %v1879 = vld [vmem:[#allocation8 + $0x3c] sm:$0xf]
        %v1880 = vld [vmem:[#allocation2 + $0x8] sm:$0x1]
        %v1881 = vld [vmem:[#allocation2 + $0x14] sm:$0x1]
        %v1882 = vld [vmem:[#allocation2 + $0x20] sm:$0x1]
        %v1883 = vld [vmem:[#allocation2 + $0x2c] sm:$0x1]
        %v1884 = vld [vmem:[#allocation2 + $0x38] sm:$0x1]
        %v1885 = vld [vmem:[#allocation2 + $0x44] sm:$0x1]
        %v1886 = vld [vmem:[#allocation2 + $0x50] sm:$0x1]
        %v1887 = vld [vmem:[#allocation2 + $0x5c] sm:$0x1]
        %v1888 = vld [vmem:[#allocation2 + $0x68] sm:$0x1]
        %v1889 = vld [vmem:[#allocation2 + $0x74] sm:$0x1]
        %v1890 = vld [vmem:[#allocation2 + $0x80] sm:$0x1]
        %v1891 = vld [vmem:[#allocation2 + $0x8c] sm:$0x1]
        %v1892 = vld [vmem:[#allocation2 + $0x98] sm:$0x1]
        %v1893 = vld [vmem:[#allocation2 + $0xa4] sm:$0x1]
        %v1894 = vld [vmem:[#allocation2 + $0xb0] sm:$0x1]
        %v1895 = vld [vmem:[#allocation2 + $0xbc] sm:$0x1]
        %vm1896 = vsmask.f32 3328
        %vm1897 = vsmask.f32 7440
        %vm1898 = vmor %vm1896, %vm1897
        %v1900 = vshrl.u32 %v1832, 16
        %v1902 = vrot.slane %v1900, 4
        %v1903 = vshll.u32 %v1832, 16
        %v1905 = vrot.slane %v1903, 5
        %v1906 = vor.u32 %v1902, %v1905
        %v1907 = vrot.slane %v1906, 4
        %v1909 = vshll.u32 %v1833, 16
        %v1911 = vrot.slane %v1909, 5
        %v1912 = vsel %vm1898, %v1907, %v1911
        %v1913 = vshrl.u32 %v1833, 16
        %v1915 = vrot.slane %v1913, 4
        %v1916 = vor.u32 %v1915, %v1911
        %v1917 = vrot.slane %v1916, 4
        %v1919 = vshll.u32 %v1880, 16
        %v1921 = vrot.slane %v1919, 5
        %v1922 = vsel %vm1898, %v1917, %v1921
        %v1924 = vshrl.u32 %v1834, 16
        %v1926 = vrot.slane %v1924, 4
        %v1927 = vshll.u32 %v1834, 16
        %v1929 = vrot.slane %v1927, 5
        %v1930 = vor.u32 %v1926, %v1929
        %v1931 = vrot.slane %v1930, 4
        %v1933 = vshll.u32 %v1835, 16
        %v1935 = vrot.slane %v1933, 5
        %v1936 = vsel %vm1898, %v1931, %v1935
        %v1937 = vshrl.u32 %v1835, 16
        %v1939 = vrot.slane %v1937, 4
        %v1940 = vor.u32 %v1939, %v1935
        %v1941 = vrot.slane %v1940, 4
        %v1943 = vshll.u32 %v1881, 16
        %v1945 = vrot.slane %v1943, 5
        %v1946 = vsel %vm1898, %v1941, %v1945
        %v1948 = vshrl.u32 %v1836, 16
        %v1950 = vrot.slane %v1948, 4
        %v1951 = vshll.u32 %v1836, 16
        %v1953 = vrot.slane %v1951, 5
        %v1954 = vor.u32 %v1950, %v1953
        %v1955 = vrot.slane %v1954, 4
        %v1957 = vshll.u32 %v1837, 16
        %v1959 = vrot.slane %v1957, 5
        %v1960 = vsel %vm1898, %v1955, %v1959
        %v1961 = vshrl.u32 %v1837, 16
        %v1963 = vrot.slane %v1961, 4
        %v1964 = vor.u32 %v1963, %v1959
        %v1965 = vrot.slane %v1964, 4
        %v1967 = vshll.u32 %v1882, 16
        %v1969 = vrot.slane %v1967, 5
        %v1970 = vsel %vm1898, %v1965, %v1969
        %v1972 = vshrl.u32 %v1838, 16
        %v1974 = vrot.slane %v1972, 4
        %v1975 = vshll.u32 %v1838, 16
        %v1977 = vrot.slane %v1975, 5
        %v1978 = vor.u32 %v1974, %v1977
        %v1979 = vrot.slane %v1978, 4
        %v1981 = vshll.u32 %v1839, 16
        %v1983 = vrot.slane %v1981, 5
        %v1984 = vsel %vm1898, %v1979, %v1983
        %v1985 = vshrl.u32 %v1839, 16
        %v1987 = vrot.slane %v1985, 4
        %v1988 = vor.u32 %v1987, %v1983
        %v1989 = vrot.slane %v1988, 4
        %v1991 = vshll.u32 %v1883, 16
        %v1993 = vrot.slane %v1991, 5
        %v1994 = vsel %vm1898, %v1989, %v1993
        %v1996 = vshrl.u32 %v1840, 16
        %v1998 = vrot.slane %v1996, 4
        %v1999 = vshll.u32 %v1840, 16
        %v2001 = vrot.slane %v1999, 5
        %v2002 = vor.u32 %v1998, %v2001
        %v2003 = vrot.slane %v2002, 4
        %v2005 = vshll.u32 %v1841, 16
        %v2007 = vrot.slane %v2005, 5
        %v2008 = vsel %vm1898, %v2003, %v2007
        %v2009 = vshrl.u32 %v1841, 16
        %v2011 = vrot.slane %v2009, 4
        %v2012 = vor.u32 %v2011, %v2007
        %v2013 = vrot.slane %v2012, 4
        %v2015 = vshll.u32 %v1884, 16
        %v2017 = vrot.slane %v2015, 5
        %v2018 = vsel %vm1898, %v2013, %v2017
        %v2020 = vshrl.u32 %v1842, 16
        %v2022 = vrot.slane %v2020, 4
        %v2023 = vshll.u32 %v1842, 16
        %v2025 = vrot.slane %v2023, 5
        %v2026 = vor.u32 %v2022, %v2025
        %v2027 = vrot.slane %v2026, 4
        %v2029 = vshll.u32 %v1843, 16
        %v2031 = vrot.slane %v2029, 5
        %v2032 = vsel %vm1898, %v2027, %v2031
        %v2033 = vshrl.u32 %v1843, 16
        %v2035 = vrot.slane %v2033, 4
        %v2036 = vor.u32 %v2035, %v2031
        %v2037 = vrot.slane %v2036, 4
        %v2039 = vshll.u32 %v1885, 16
        %v2041 = vrot.slane %v2039, 5
        %v2042 = vsel %vm1898, %v2037, %v2041
        %v2044 = vshrl.u32 %v1844, 16
        %v2046 = vrot.slane %v2044, 4
        %v2047 = vshll.u32 %v1844, 16
        %v2049 = vrot.slane %v2047, 5
        %v2050 = vor.u32 %v2046, %v2049
        %v2051 = vrot.slane %v2050, 4
        %v2053 = vshll.u32 %v1845, 16
        %v2055 = vrot.slane %v2053, 5
        %v2056 = vsel %vm1898, %v2051, %v2055
        %v2057 = vshrl.u32 %v1845, 16
        %v2059 = vrot.slane %v2057, 4
        %v2060 = vor.u32 %v2059, %v2055
        %v2061 = vrot.slane %v2060, 4
        %v2063 = vshll.u32 %v1886, 16
        %v2065 = vrot.slane %v2063, 5
        %v2066 = vsel %vm1898, %v2061, %v2065
        %v2068 = vshrl.u32 %v1846, 16
        %v2070 = vrot.slane %v2068, 4
        %v2071 = vshll.u32 %v1846, 16
        %v2073 = vrot.slane %v2071, 5
        %v2074 = vor.u32 %v2070, %v2073
        %v2075 = vrot.slane %v2074, 4
        %v2077 = vshll.u32 %v1847, 16
        %v2079 = vrot.slane %v2077, 5
        %v2080 = vsel %vm1898, %v2075, %v2079
        %v2081 = vshrl.u32 %v1847, 16
        %v2083 = vrot.slane %v2081, 4
        %v2084 = vor.u32 %v2083, %v2079
        %v2085 = vrot.slane %v2084, 4
        %v2087 = vshll.u32 %v1887, 16
        %v2089 = vrot.slane %v2087, 5
        %v2090 = vsel %vm1898, %v2085, %v2089
        %v2092 = vshrl.u32 %v1848, 16
        %v2094 = vrot.slane %v2092, 4
        %v2095 = vshll.u32 %v1848, 16
        %v2097 = vrot.slane %v2095, 5
        %v2098 = vor.u32 %v2094, %v2097
        %v2099 = vrot.slane %v2098, 4
        %v2101 = vshll.u32 %v1849, 16
        %v2103 = vrot.slane %v2101, 5
        %v2104 = vsel %vm1898, %v2099, %v2103
        %v2105 = vshrl.u32 %v1849, 16
        %v2107 = vrot.slane %v2105, 4
        %v2108 = vor.u32 %v2107, %v2103
        %v2109 = vrot.slane %v2108, 4
        %v2111 = vshll.u32 %v1888, 16
        %v2113 = vrot.slane %v2111, 5
        %v2114 = vsel %vm1898, %v2109, %v2113
        %v2116 = vshrl.u32 %v1850, 16
        %v2118 = vrot.slane %v2116, 4
        %v2119 = vshll.u32 %v1850, 16
        %v2121 = vrot.slane %v2119, 5
        %v2122 = vor.u32 %v2118, %v2121
        %v2123 = vrot.slane %v2122, 4
        %v2125 = vshll.u32 %v1851, 16
        %v2127 = vrot.slane %v2125, 5
        %v2128 = vsel %vm1898, %v2123, %v2127
        %v2129 = vshrl.u32 %v1851, 16
        %v2131 = vrot.slane %v2129, 4
        %v2132 = vor.u32 %v2131, %v2127
        %v2133 = vrot.slane %v2132, 4
        %v2135 = vshll.u32 %v1889, 16
        %v2137 = vrot.slane %v2135, 5
        %v2138 = vsel %vm1898, %v2133, %v2137
        %v2140 = vshrl.u32 %v1852, 16
        %v2142 = vrot.slane %v2140, 4
        %v2143 = vshll.u32 %v1852, 16
        %v2145 = vrot.slane %v2143, 5
        %v2146 = vor.u32 %v2142, %v2145
        %v2147 = vrot.slane %v2146, 4
        %v2149 = vshll.u32 %v1853, 16
        %v2151 = vrot.slane %v2149, 5
        %v2152 = vsel %vm1898, %v2147, %v2151
        %v2153 = vshrl.u32 %v1853, 16
        %v2155 = vrot.slane %v2153, 4
        %v2156 = vor.u32 %v2155, %v2151
        %v2157 = vrot.slane %v2156, 4
        %v2159 = vshll.u32 %v1890, 16
        %v2161 = vrot.slane %v2159, 5
        %v2162 = vsel %vm1898, %v2157, %v2161
        %v2164 = vshrl.u32 %v1854, 16
        %v2166 = vrot.slane %v2164, 4
        %v2167 = vshll.u32 %v1854, 16
        %v2169 = vrot.slane %v2167, 5
        %v2170 = vor.u32 %v2166, %v2169
        %v2171 = vrot.slane %v2170, 4
        %v2173 = vshll.u32 %v1855, 16
        %v2175 = vrot.slane %v2173, 5
        %v2176 = vsel %vm1898, %v2171, %v2175
        %v2177 = vshrl.u32 %v1855, 16
        %v2179 = vrot.slane %v2177, 4
        %v2180 = vor.u32 %v2179, %v2175
        %v2181 = vrot.slane %v2180, 4
        %v2183 = vshll.u32 %v1891, 16
        %v2185 = vrot.slane %v2183, 5
        %v2186 = vsel %vm1898, %v2181, %v2185
        %v2188 = vshrl.u32 %v1856, 16
        %v2190 = vrot.slane %v2188, 4
        %v2191 = vshll.u32 %v1856, 16
        %v2193 = vrot.slane %v2191, 5
        %v2194 = vor.u32 %v2190, %v2193
        %v2195 = vrot.slane %v2194, 4
        %v2197 = vshll.u32 %v1857, 16
        %v2199 = vrot.slane %v2197, 5
        %v2200 = vsel %vm1898, %v2195, %v2199
        %v2201 = vshrl.u32 %v1857, 16
        %v2203 = vrot.slane %v2201, 4
        %v2204 = vor.u32 %v2203, %v2199
        %v2205 = vrot.slane %v2204, 4
        %v2207 = vshll.u32 %v1892, 16
        %v2209 = vrot.slane %v2207, 5
        %v2210 = vsel %vm1898, %v2205, %v2209
        %v2212 = vshrl.u32 %v1858, 16
        %v2214 = vrot.slane %v2212, 4
        %v2215 = vshll.u32 %v1858, 16
        %v2217 = vrot.slane %v2215, 5
        %v2218 = vor.u32 %v2214, %v2217
        %v2219 = vrot.slane %v2218, 4
        %v2221 = vshll.u32 %v1859, 16
        %v2223 = vrot.slane %v2221, 5
        %v2224 = vsel %vm1898, %v2219, %v2223
        %v2225 = vshrl.u32 %v1859, 16
        %v2227 = vrot.slane %v2225, 4
        %v2228 = vor.u32 %v2227, %v2223
        %v2229 = vrot.slane %v2228, 4
        %v2231 = vshll.u32 %v1893, 16
        %v2233 = vrot.slane %v2231, 5
        %v2234 = vsel %vm1898, %v2229, %v2233
        %v2236 = vshrl.u32 %v1860, 16
        %v2238 = vrot.slane %v2236, 4
        %v2239 = vshll.u32 %v1860, 16
        %v2241 = vrot.slane %v2239, 5
        %v2242 = vor.u32 %v2238, %v2241
        %v2243 = vrot.slane %v2242, 4
        %v2245 = vshll.u32 %v1861, 16
        %v2247 = vrot.slane %v2245, 5
        %v2248 = vsel %vm1898, %v2243, %v2247
        %v2249 = vshrl.u32 %v1861, 16
        %v2251 = vrot.slane %v2249, 4
        %v2252 = vor.u32 %v2251, %v2247
        %v2253 = vrot.slane %v2252, 4
        %v2255 = vshll.u32 %v1894, 16
        %v2257 = vrot.slane %v2255, 5
        %v2258 = vsel %vm1898, %v2253, %v2257
        %v2260 = vshrl.u32 %v1862, 16
        %v2262 = vrot.slane %v2260, 4
        %v2263 = vshll.u32 %v1862, 16
        %v2265 = vrot.slane %v2263, 5
        %v2266 = vor.u32 %v2262, %v2265
        %v2267 = vrot.slane %v2266, 4
        %v2269 = vshll.u32 %v1863, 16
        %v2271 = vrot.slane %v2269, 5
        %v2272 = vsel %vm1898, %v2267, %v2271
        %v2273 = vshrl.u32 %v1863, 16
        %v2275 = vrot.slane %v2273, 4
        %v2276 = vor.u32 %v2275, %v2271
        %v2277 = vrot.slane %v2276, 4
        %v2279 = vshll.u32 %v1895, 16
        %v2281 = vrot.slane %v2279, 5
        %v2282 = vsel %vm1898, %v2277, %v2281
        %s2283 = scalar_lea.vmem [#allocation8], 64
        %v2284 = vld [vmem:[%s2283] sm:$0xf]
        %v2285 = vld [vmem:[%s2283 + $0x4] sm:$0xf]
        %v2286 = vld [vmem:[%s2283 + $0x8] sm:$0xf]
        %v2287 = vld [vmem:[%s2283 + $0xc] sm:$0xf]
        %v2288 = vld [vmem:[%s2283 + $0x10] sm:$0xf]
        %v2289 = vld [vmem:[%s2283 + $0x14] sm:$0xf]
        %v2290 = vld [vmem:[%s2283 + $0x18] sm:$0xf]
        %v2291 = vld [vmem:[%s2283 + $0x1c] sm:$0xf]
        %v2292 = vld [vmem:[%s2283 + $0x20] sm:$0xf]
        %v2293 = vld [vmem:[%s2283 + $0x24] sm:$0xf]
        %v2294 = vld [vmem:[%s2283 + $0x28] sm:$0xf]
        %v2295 = vld [vmem:[%s2283 + $0x2c] sm:$0xf]
        %v2296 = vld [vmem:[%s2283 + $0x30] sm:$0xf]
        %v2297 = vld [vmem:[%s2283 + $0x34] sm:$0xf]
        %v2298 = vld [vmem:[%s2283 + $0x38] sm:$0xf]
        %v2299 = vld [vmem:[%s2283 + $0x3c] sm:$0xf]
        %v2300 = vunpack.c.l.b16 %v1912
        %v2301 = vunpack.c.l.b16 %v1922
        %v2302 = vunpack.c.l.b16 %v1936
        %v2303 = vunpack.c.l.b16 %v1946
        %v2304 = vunpack.c.l.b16 %v1960
        %v2305 = vunpack.c.l.b16 %v1970
        %v2306 = vunpack.c.l.b16 %v1984
        %v2307 = vunpack.c.l.b16 %v1994
        %v2308 = vunpack.c.l.b16 %v2008
        %v2309 = vunpack.c.l.b16 %v2018
        %v2310 = vunpack.c.l.b16 %v2032
        %v2311 = vunpack.c.l.b16 %v2042
        %v2312 = vunpack.c.l.b16 %v2056
        %v2313 = vunpack.c.l.b16 %v2066
        %v2314 = vunpack.c.l.b16 %v2080
        %v2315 = vunpack.c.l.b16 %v2090
        %v2316 = vunpack.c.l.b16 %v2104
        %v2317 = vunpack.c.l.b16 %v2114
        %v2318 = vunpack.c.l.b16 %v2128
        %v2319 = vunpack.c.l.b16 %v2138
        %v2320 = vunpack.c.l.b16 %v2152
        %v2321 = vunpack.c.l.b16 %v2162
        %v2322 = vunpack.c.l.b16 %v2176
        %v2323 = vunpack.c.l.b16 %v2186
        %v2324 = vunpack.c.l.b16 %v2200
        %v2325 = vunpack.c.l.b16 %v2210
        %v2326 = vunpack.c.l.b16 %v2224
        %v2327 = vunpack.c.l.b16 %v2234
        %v2328 = vunpack.c.l.b16 %v2248
        %v2329 = vunpack.c.l.b16 %v2258
        %v2330 = vunpack.c.l.b16 %v2272
        %v2331 = vunpack.c.l.b16 %v2282
        %v2332 = vpack.c.b16 %v2301, %v2300
        %v2333 = vpack.c.b16 %v2303, %v2302
        %v2334 = vpack.c.b16 %v2305, %v2304
        %v2335 = vpack.c.b16 %v2307, %v2306
        %v2336 = vpack.c.b16 %v2309, %v2308
        %v2337 = vpack.c.b16 %v2311, %v2310
        %v2338 = vpack.c.b16 %v2313, %v2312
        %v2339 = vpack.c.b16 %v2315, %v2314
        %v2340 = vpack.c.b16 %v2317, %v2316
        %v2341 = vpack.c.b16 %v2319, %v2318
        %v2342 = vpack.c.b16 %v2321, %v2320
        %v2343 = vpack.c.b16 %v2323, %v2322
        %v2344 = vpack.c.b16 %v2325, %v2324
        %v2345 = vpack.c.b16 %v2327, %v2326
        %v2346 = vpack.c.b16 %v2329, %v2328
        %v2347 = vpack.c.b16 %v2331, %v2330
        %v2380 = vunpack.c.l.b16 %v2284
        %v2381 = vunpack.c.l.b16 %v2285
        %v2382 = vunpack.c.l.b16 %v2286
        %v2383 = vunpack.c.l.b16 %v2287
        %v2384 = vunpack.c.l.b16 %v2288
        %v2385 = vunpack.c.l.b16 %v2289
        %v2386 = vunpack.c.l.b16 %v2290
        %v2387 = vunpack.c.l.b16 %v2291
        %v2388 = vunpack.c.l.b16 %v2292
        %v2389 = vunpack.c.l.b16 %v2293
        %v2390 = vunpack.c.l.b16 %v2294
        %v2391 = vunpack.c.l.b16 %v2295
        %v2392 = vunpack.c.l.b16 %v2296
        %v2393 = vunpack.c.l.b16 %v2297
        %v2394 = vunpack.c.l.b16 %v2298
        %v2395 = vunpack.c.l.b16 %v2299
        %v2396 = vpack.c.b16 %v2381, %v2380
        %v2397 = vpack.c.b16 %v2383, %v2382
        %v2398 = vpack.c.b16 %v2385, %v2384
        %v2399 = vpack.c.b16 %v2387, %v2386
        %v2400 = vpack.c.b16 %v2389, %v2388
        %v2401 = vpack.c.b16 %v2391, %v2390
        %v2402 = vpack.c.b16 %v2393, %v2392
        %v2403 = vpack.c.b16 %v2395, %v2394
        %2412 = vmatprep.subr.bf16.mxu0 0
        %2413 = vmatpush1.bf16.msra.mxu0 %v2403
        %2414 = vmatprep.subr.bf16.mxu0 0
        %2415 = vmatpush1.bf16.msra.mxu0 %v2402
        %2416 = vmatprep.subr.bf16.mxu0 0
        %2417 = vmatpush1.bf16.msra.mxu0 %v2401
        %2418 = vmatprep.subr.bf16.mxu0 0
        %2419 = vmatpush1.bf16.msra.mxu0 %v2400
        %2420 = vmatprep.subr.bf16.mxu0 0
        %2421 = vmatpush1.bf16.msra.mxu0 %v2399
        %2422 = vmatprep.subr.bf16.mxu0 0
        %2423 = vmatpush1.bf16.msra.mxu0 %v2398
        %2424 = vmatprep.subr.bf16.mxu0 0
        %2425 = vmatpush1.bf16.msra.mxu0 %v2397
        %2426 = vmatprep.subr.bf16.mxu0 0
        %2427 = vmatpush1.bf16.msra.mxu0 %v2396
        %2428 = vmatprep.subr.bf16.mxu0 0
        %2429 = vmatpush2.bf16.msra.mxu0 0
        %2430 = vmatprep.subr.bf16.mxu0 0
        %2431 = vmatpush2.bf16.msra.mxu0 0
        %2432 = vmatprep.subr.bf16.mxu0 0
        %2433 = vmatpush2.bf16.msra.mxu0 0
        %2434 = vmatprep.subr.bf16.mxu0 0
        %2435 = vmatpush2.bf16.msra.mxu0 0
        %2436 = vmatprep.subr.bf16.mxu0 0
        %2437 = vmatpush2.bf16.msra.mxu0 0
        %2438 = vmatprep.subr.bf16.mxu0 0
        %2439 = vmatpush2.bf16.msra.mxu0 0
        %2440 = vmatprep.subr.bf16.mxu0 0
        %2441 = vmatpush2.bf16.msra.mxu0 0
        %2442 = vmatprep.subr.bf16.mxu0 0
        %2443 = vmatpush2.bf16.msra.mxu0 0
        %2444 = vmatprep.mubr.bf16.mxu0 0
        %2445 = vmatmul.mubr.bf16.gmra.mxu0 %v2332
        %v2446 = vpop.f32.mrf.mxu0
        %v2447 = vadd.f32 0.0, %v2446
        %v2448 = vpop.f32.mrf.mxu0
        %v2449 = vpop.f32.mrf.mxu0
        %v2450 = vadd.f32 0.0, %v2449
        %v2451 = vpop.f32.mrf.mxu0
        %2452 = vmatprep.mubr.bf16.mxu0 0
        %2453 = vmatmul.mubr.bf16.gmra.mxu0 %v2333
        %v2454 = vpop.f32.mrf.mxu0
        %v2455 = vadd.f32 0.0, %v2454
        %v2456 = vpop.f32.mrf.mxu0
        %v2457 = vpop.f32.mrf.mxu0
        %v2458 = vadd.f32 0.0, %v2457
        %v2459 = vpop.f32.mrf.mxu0
        %2460 = vmatprep.mubr.bf16.mxu0 0
        %2461 = vmatmul.mubr.bf16.gmra.mxu0 %v2334
        %v2462 = vpop.f32.mrf.mxu0
        %v2463 = vadd.f32 0.0, %v2462
        %v2464 = vpop.f32.mrf.mxu0
        %v2465 = vpop.f32.mrf.mxu0
        %v2466 = vadd.f32 0.0, %v2465
        %v2467 = vpop.f32.mrf.mxu0
        %2468 = vmatprep.mubr.bf16.mxu0 0
        %2469 = vmatmul.mubr.bf16.gmra.mxu0 %v2335
        %v2470 = vpop.f32.mrf.mxu0
        %v2471 = vadd.f32 0.0, %v2470
        %v2472 = vpop.f32.mrf.mxu0
        %v2473 = vpop.f32.mrf.mxu0
        %v2474 = vadd.f32 0.0, %v2473
        %v2475 = vpop.f32.mrf.mxu0
        %2476 = vmatprep.mubr.bf16.mxu0 0
        %2477 = vmatmul.mubr.bf16.gmra.mxu0 %v2336
        %v2478 = vpop.f32.mrf.mxu0
        %v2479 = vadd.f32 0.0, %v2478
        %v2480 = vpop.f32.mrf.mxu0
        %v2481 = vpop.f32.mrf.mxu0
        %v2482 = vadd.f32 0.0, %v2481
        %v2483 = vpop.f32.mrf.mxu0
        %2484 = vmatprep.mubr.bf16.mxu0 0
        %2485 = vmatmul.mubr.bf16.gmra.mxu0 %v2337
        %v2486 = vpop.f32.mrf.mxu0
        %v2487 = vadd.f32 0.0, %v2486
        %v2488 = vpop.f32.mrf.mxu0
        %v2489 = vpop.f32.mrf.mxu0
        %v2490 = vadd.f32 0.0, %v2489
        %v2491 = vpop.f32.mrf.mxu0
        %2492 = vmatprep.mubr.bf16.mxu0 0
        %2493 = vmatmul.mubr.bf16.gmra.mxu0 %v2338
        %v2494 = vpop.f32.mrf.mxu0
        %v2495 = vadd.f32 0.0, %v2494
        %v2496 = vpop.f32.mrf.mxu0
        %v2497 = vpop.f32.mrf.mxu0
        %v2498 = vadd.f32 0.0, %v2497
        %v2499 = vpop.f32.mrf.mxu0
        %2500 = vmatprep.mubr.bf16.mxu0 0
        %2501 = vmatmul.mubr.bf16.gmra.mxu0 %v2339
        %v2502 = vpop.f32.mrf.mxu0
        %v2503 = vadd.f32 0.0, %v2502
        %v2504 = vpop.f32.mrf.mxu0
        %v2505 = vpop.f32.mrf.mxu0
        %v2506 = vadd.f32 0.0, %v2505
        %v2507 = vpop.f32.mrf.mxu0
        %2508 = vmatprep.mubr.bf16.mxu0 0
        %2509 = vmatmul.mubr.bf16.gmra.mxu0 %v2340
        %v2510 = vpop.f32.mrf.mxu0
        %v2511 = vadd.f32 0.0, %v2510
        %v2512 = vpop.f32.mrf.mxu0
        %v2513 = vpop.f32.mrf.mxu0
        %v2514 = vadd.f32 0.0, %v2513
        %v2515 = vpop.f32.mrf.mxu0
        %2516 = vmatprep.mubr.bf16.mxu0 0
        %2517 = vmatmul.mubr.bf16.gmra.mxu0 %v2341
        %v2518 = vpop.f32.mrf.mxu0
        %v2519 = vadd.f32 0.0, %v2518
        %v2520 = vpop.f32.mrf.mxu0
        %v2521 = vpop.f32.mrf.mxu0
        %v2522 = vadd.f32 0.0, %v2521
        %v2523 = vpop.f32.mrf.mxu0
        %2524 = vmatprep.mubr.bf16.mxu0 0
        %2525 = vmatmul.mubr.bf16.gmra.mxu0 %v2342
        %v2526 = vpop.f32.mrf.mxu0
        %v2527 = vadd.f32 0.0, %v2526
        %v2528 = vpop.f32.mrf.mxu0
        %v2529 = vpop.f32.mrf.mxu0
        %v2530 = vadd.f32 0.0, %v2529
        %v2531 = vpop.f32.mrf.mxu0
        %2532 = vmatprep.mubr.bf16.mxu0 0
        %2533 = vmatmul.mubr.bf16.gmra.mxu0 %v2343
        %v2534 = vpop.f32.mrf.mxu0
        %v2535 = vadd.f32 0.0, %v2534
        %v2536 = vpop.f32.mrf.mxu0
        %v2537 = vpop.f32.mrf.mxu0
        %v2538 = vadd.f32 0.0, %v2537
        %v2539 = vpop.f32.mrf.mxu0
        %2540 = vmatprep.mubr.bf16.mxu0 0
        %2541 = vmatmul.mubr.bf16.gmra.mxu0 %v2344
        %v2542 = vpop.f32.mrf.mxu0
        %v2543 = vadd.f32 0.0, %v2542
        %v2544 = vpop.f32.mrf.mxu0
        %v2545 = vpop.f32.mrf.mxu0
        %v2546 = vadd.f32 0.0, %v2545
        %v2547 = vpop.f32.mrf.mxu0
        %2548 = vmatprep.mubr.bf16.mxu0 0
        %2549 = vmatmul.mubr.bf16.gmra.mxu0 %v2345
        %v2550 = vpop.f32.mrf.mxu0
        %v2551 = vadd.f32 0.0, %v2550
        %v2552 = vpop.f32.mrf.mxu0
        %v2553 = vpop.f32.mrf.mxu0
        %v2554 = vadd.f32 0.0, %v2553
        %v2555 = vpop.f32.mrf.mxu0
        %2556 = vmatprep.mubr.bf16.mxu0 0
        %2557 = vmatmul.mubr.bf16.gmra.mxu0 %v2346
        %v2558 = vpop.f32.mrf.mxu0
        %v2559 = vadd.f32 0.0, %v2558
        %v2560 = vpop.f32.mrf.mxu0
        %v2561 = vpop.f32.mrf.mxu0
        %v2562 = vadd.f32 0.0, %v2561
        %v2563 = vpop.f32.mrf.mxu0
        %2564 = vmatprep.mubr.bf16.mxu0 0
        %2565 = vmatmul.mubr.bf16.gmra.mxu0 %v2347
        %v2566 = vpop.f32.mrf.mxu0
        %v2567 = vadd.f32 0.0, %v2566
        %v2568 = vpop.f32.mrf.mxu0
        %v2569 = vpop.f32.mrf.mxu0
        %v2570 = vadd.f32 0.0, %v2569
        %v2571 = vpop.f32.mrf.mxu0
        %2572 = vdwg.mxu0
        %v2605 = vunpack.c.l.b16 %v1832
        %v2606 = vunpack.c.l.b16 %v1833
        %v2607 = vunpack.c.l.b16 %v1834
        %v2608 = vunpack.c.l.b16 %v1835
        %v2609 = vunpack.c.l.b16 %v1836
        %v2610 = vunpack.c.l.b16 %v1837
        %v2611 = vunpack.c.l.b16 %v1838
        %v2612 = vunpack.c.l.b16 %v1839
        %v2613 = vunpack.c.l.b16 %v1840
        %v2614 = vunpack.c.l.b16 %v1841
        %v2615 = vunpack.c.l.b16 %v1842
        %v2616 = vunpack.c.l.b16 %v1843
        %v2617 = vunpack.c.l.b16 %v1844
        %v2618 = vunpack.c.l.b16 %v1845
        %v2619 = vunpack.c.l.b16 %v1846
        %v2620 = vunpack.c.l.b16 %v1847
        %v2621 = vunpack.c.l.b16 %v1848
        %v2622 = vunpack.c.l.b16 %v1849
        %v2623 = vunpack.c.l.b16 %v1850
        %v2624 = vunpack.c.l.b16 %v1851
        %v2625 = vunpack.c.l.b16 %v1852
        %v2626 = vunpack.c.l.b16 %v1853
        %v2627 = vunpack.c.l.b16 %v1854
        %v2628 = vunpack.c.l.b16 %v1855
        %v2629 = vunpack.c.l.b16 %v1856
        %v2630 = vunpack.c.l.b16 %v1857
        %v2631 = vunpack.c.l.b16 %v1858
        %v2632 = vunpack.c.l.b16 %v1859
        %v2633 = vunpack.c.l.b16 %v1860
        %v2634 = vunpack.c.l.b16 %v1861
        %v2635 = vunpack.c.l.b16 %v1862
        %v2636 = vunpack.c.l.b16 %v1863
        %v2637 = vpack.c.b16 %v2606, %v2605
        %v2638 = vpack.c.b16 %v2608, %v2607
        %v2639 = vpack.c.b16 %v2610, %v2609
        %v2640 = vpack.c.b16 %v2612, %v2611
        %v2641 = vpack.c.b16 %v2614, %v2613
        %v2642 = vpack.c.b16 %v2616, %v2615
        %v2643 = vpack.c.b16 %v2618, %v2617
        %v2644 = vpack.c.b16 %v2620, %v2619
        %v2645 = vpack.c.b16 %v2622, %v2621
        %v2646 = vpack.c.b16 %v2624, %v2623
        %v2647 = vpack.c.b16 %v2626, %v2625
        %v2648 = vpack.c.b16 %v2628, %v2627
        %v2649 = vpack.c.b16 %v2630, %v2629
        %v2650 = vpack.c.b16 %v2632, %v2631
        %v2651 = vpack.c.b16 %v2634, %v2633
        %v2652 = vpack.c.b16 %v2636, %v2635
        %v2685 = vunpack.c.l.b16 %v1864
        %v2686 = vunpack.c.l.b16 %v1865
        %v2687 = vunpack.c.l.b16 %v1866
        %v2688 = vunpack.c.l.b16 %v1867
        %v2689 = vunpack.c.l.b16 %v1868
        %v2690 = vunpack.c.l.b16 %v1869
        %v2691 = vunpack.c.l.b16 %v1870
        %v2692 = vunpack.c.l.b16 %v1871
        %v2693 = vunpack.c.l.b16 %v1872
        %v2694 = vunpack.c.l.b16 %v1873
        %v2695 = vunpack.c.l.b16 %v1874
        %v2696 = vunpack.c.l.b16 %v1875
        %v2697 = vunpack.c.l.b16 %v1876
        %v2698 = vunpack.c.l.b16 %v1877
        %v2699 = vunpack.c.l.b16 %v1878
        %v2700 = vunpack.c.l.b16 %v1879
        %v2701 = vpack.c.b16 %v2686, %v2685
        %v2702 = vpack.c.b16 %v2688, %v2687
        %v2703 = vpack.c.b16 %v2690, %v2689
        %v2704 = vpack.c.b16 %v2692, %v2691
        %v2705 = vpack.c.b16 %v2694, %v2693
        %v2706 = vpack.c.b16 %v2696, %v2695
        %v2707 = vpack.c.b16 %v2698, %v2697
        %v2708 = vpack.c.b16 %v2700, %v2699
        %2717 = vmatprep.subr.bf16.mxu0 0
        %2718 = vmatpush1.bf16.msra.mxu0 %v2708
        %2719 = vmatprep.subr.bf16.mxu0 0
        %2720 = vmatpush1.bf16.msra.mxu0 %v2707
        %2721 = vmatprep.subr.bf16.mxu0 0
        %2722 = vmatpush1.bf16.msra.mxu0 %v2706
        %2723 = vmatprep.subr.bf16.mxu0 0
        %2724 = vmatpush1.bf16.msra.mxu0 %v2705
        %2725 = vmatprep.subr.bf16.mxu0 0
        %2726 = vmatpush1.bf16.msra.mxu0 %v2704
        %2727 = vmatprep.subr.bf16.mxu0 0
        %2728 = vmatpush1.bf16.msra.mxu0 %v2703
        %2729 = vmatprep.subr.bf16.mxu0 0
        %2730 = vmatpush1.bf16.msra.mxu0 %v2702
        %2731 = vmatprep.subr.bf16.mxu0 0
        %2732 = vmatpush1.bf16.msra.mxu0 %v2701
        %2733 = vmatprep.subr.bf16.mxu0 0
        %2734 = vmatpush2.bf16.msra.mxu0 0
        %2735 = vmatprep.subr.bf16.mxu0 0
        %2736 = vmatpush2.bf16.msra.mxu0 0
        %2737 = vmatprep.subr.bf16.mxu0 0
        %2738 = vmatpush2.bf16.msra.mxu0 0
        %2739 = vmatprep.subr.bf16.mxu0 0
        %2740 = vmatpush2.bf16.msra.mxu0 0
        %2741 = vmatprep.subr.bf16.mxu0 0
        %2742 = vmatpush2.bf16.msra.mxu0 0
        %2743 = vmatprep.subr.bf16.mxu0 0
        %2744 = vmatpush2.bf16.msra.mxu0 0
        %2745 = vmatprep.subr.bf16.mxu0 0
        %2746 = vmatpush2.bf16.msra.mxu0 0
        %2747 = vmatprep.subr.bf16.mxu0 0
        %2748 = vmatpush2.bf16.msra.mxu0 0
        %2749 = vmatprep.mubr.bf16.mxu0 0
        %2750 = vmatmul.mubr.bf16.gmra.mxu0 %v2637
        %v2751 = vpop.f32.mrf.mxu0
        %v2752 = vadd.f32 %v2447, %v2751
        %v2753 = vpop.f32.mrf.mxu0
        %v2754 = vpop.f32.mrf.mxu0
        %v2755 = vadd.f32 %v2450, %v2754
        %v2756 = vpop.f32.mrf.mxu0
        %2757 = vmatprep.mubr.bf16.mxu0 0
        %2758 = vmatmul.mubr.bf16.gmra.mxu0 %v2638
        %v2759 = vpop.f32.mrf.mxu0
        %v2760 = vadd.f32 %v2455, %v2759
        %v2761 = vpop.f32.mrf.mxu0
        %v2762 = vpop.f32.mrf.mxu0
        %v2763 = vadd.f32 %v2458, %v2762
        %v2764 = vpop.f32.mrf.mxu0
        %2765 = vmatprep.mubr.bf16.mxu0 0
        %2766 = vmatmul.mubr.bf16.gmra.mxu0 %v2639
        %v2767 = vpop.f32.mrf.mxu0
        %v2768 = vadd.f32 %v2463, %v2767
        %v2769 = vpop.f32.mrf.mxu0
        %v2770 = vpop.f32.mrf.mxu0
        %v2771 = vadd.f32 %v2466, %v2770
        %v2772 = vpop.f32.mrf.mxu0
        %2773 = vmatprep.mubr.bf16.mxu0 0
        %2774 = vmatmul.mubr.bf16.gmra.mxu0 %v2640
        %v2775 = vpop.f32.mrf.mxu0
        %v2776 = vadd.f32 %v2471, %v2775
        %v2777 = vpop.f32.mrf.mxu0
        %v2778 = vpop.f32.mrf.mxu0
        %v2779 = vadd.f32 %v2474, %v2778
        %v2780 = vpop.f32.mrf.mxu0
        %2781 = vmatprep.mubr.bf16.mxu0 0
        %2782 = vmatmul.mubr.bf16.gmra.mxu0 %v2641
        %v2783 = vpop.f32.mrf.mxu0
        %v2784 = vadd.f32 %v2479, %v2783
        %v2785 = vpop.f32.mrf.mxu0
        %v2786 = vpop.f32.mrf.mxu0
        %v2787 = vadd.f32 %v2482, %v2786
        %v2788 = vpop.f32.mrf.mxu0
        %2789 = vmatprep.mubr.bf16.mxu0 0
        %2790 = vmatmul.mubr.bf16.gmra.mxu0 %v2642
        %v2791 = vpop.f32.mrf.mxu0
        %v2792 = vadd.f32 %v2487, %v2791
        %v2793 = vpop.f32.mrf.mxu0
        %v2794 = vpop.f32.mrf.mxu0
        %v2795 = vadd.f32 %v2490, %v2794
        %v2796 = vpop.f32.mrf.mxu0
        %2797 = vmatprep.mubr.bf16.mxu0 0
        %2798 = vmatmul.mubr.bf16.gmra.mxu0 %v2643
        %v2799 = vpop.f32.mrf.mxu0
        %v2800 = vadd.f32 %v2495, %v2799
        %v2801 = vpop.f32.mrf.mxu0
        %v2802 = vpop.f32.mrf.mxu0
        %v2803 = vadd.f32 %v2498, %v2802
        %v2804 = vpop.f32.mrf.mxu0
        %2805 = vmatprep.mubr.bf16.mxu0 0
        %2806 = vmatmul.mubr.bf16.gmra.mxu0 %v2644
        %v2807 = vpop.f32.mrf.mxu0
        %v2808 = vadd.f32 %v2503, %v2807
        %v2809 = vpop.f32.mrf.mxu0
        %v2810 = vpop.f32.mrf.mxu0
        %v2811 = vadd.f32 %v2506, %v2810
        %v2812 = vpop.f32.mrf.mxu0
        %2813 = vmatprep.mubr.bf16.mxu0 0
        %2814 = vmatmul.mubr.bf16.gmra.mxu0 %v2645
        %v2815 = vpop.f32.mrf.mxu0
        %v2816 = vadd.f32 %v2511, %v2815
        %v2817 = vpop.f32.mrf.mxu0
        %v2818 = vpop.f32.mrf.mxu0
        %v2819 = vadd.f32 %v2514, %v2818
        %v2820 = vpop.f32.mrf.mxu0
        %2821 = vmatprep.mubr.bf16.mxu0 0
        %2822 = vmatmul.mubr.bf16.gmra.mxu0 %v2646
        %v2823 = vpop.f32.mrf.mxu0
        %v2824 = vadd.f32 %v2519, %v2823
        %v2825 = vpop.f32.mrf.mxu0
        %v2826 = vpop.f32.mrf.mxu0
        %v2827 = vadd.f32 %v2522, %v2826
        %v2828 = vpop.f32.mrf.mxu0
        %2829 = vmatprep.mubr.bf16.mxu0 0
        %2830 = vmatmul.mubr.bf16.gmra.mxu0 %v2647
        %v2831 = vpop.f32.mrf.mxu0
        %v2832 = vadd.f32 %v2527, %v2831
        %v2833 = vpop.f32.mrf.mxu0
        %v2834 = vpop.f32.mrf.mxu0
        %v2835 = vadd.f32 %v2530, %v2834
        %v2836 = vpop.f32.mrf.mxu0
        %2837 = vmatprep.mubr.bf16.mxu0 0
        %2838 = vmatmul.mubr.bf16.gmra.mxu0 %v2648
        %v2839 = vpop.f32.mrf.mxu0
        %v2840 = vadd.f32 %v2535, %v2839
        %v2841 = vpop.f32.mrf.mxu0
        %v2842 = vpop.f32.mrf.mxu0
        %v2843 = vadd.f32 %v2538, %v2842
        %v2844 = vpop.f32.mrf.mxu0
        %2845 = vmatprep.mubr.bf16.mxu0 0
        %2846 = vmatmul.mubr.bf16.gmra.mxu0 %v2649
        %v2847 = vpop.f32.mrf.mxu0
        %v2848 = vadd.f32 %v2543, %v2847
        %v2849 = vpop.f32.mrf.mxu0
        %v2850 = vpop.f32.mrf.mxu0
        %v2851 = vadd.f32 %v2546, %v2850
        %v2852 = vpop.f32.mrf.mxu0
        %2853 = vmatprep.mubr.bf16.mxu0 0
        %2854 = vmatmul.mubr.bf16.gmra.mxu0 %v2650
        %v2855 = vpop.f32.mrf.mxu0
        %v2856 = vadd.f32 %v2551, %v2855
        %v2857 = vpop.f32.mrf.mxu0
        %v2858 = vpop.f32.mrf.mxu0
        %v2859 = vadd.f32 %v2554, %v2858
        %v2860 = vpop.f32.mrf.mxu0
        %2861 = vmatprep.mubr.bf16.mxu0 0
        %2862 = vmatmul.mubr.bf16.gmra.mxu0 %v2651
        %v2863 = vpop.f32.mrf.mxu0
        %v2864 = vadd.f32 %v2559, %v2863
        %v2865 = vpop.f32.mrf.mxu0
        %v2866 = vpop.f32.mrf.mxu0
        %v2867 = vadd.f32 %v2562, %v2866
        %v2868 = vpop.f32.mrf.mxu0
        %2869 = vmatprep.mubr.bf16.mxu0 0
        %2870 = vmatmul.mubr.bf16.gmra.mxu0 %v2652
        %v2871 = vpop.f32.mrf.mxu0
        %v2872 = vadd.f32 %v2567, %v2871
        %v2873 = vpop.f32.mrf.mxu0
        %v2874 = vpop.f32.mrf.mxu0
        %v2875 = vadd.f32 %v2570, %v2874
        %v2876 = vpop.f32.mrf.mxu0
        %2877 = vdwg.mxu0
        %v2878 = vld [vmem:[#allocation2] sm:$0xe]
        %v2879 = vld [vmem:[#allocation2 + $0xc] sm:$0xe]
        %v2880 = vld [vmem:[#allocation2 + $0x18] sm:$0xe]
        %v2881 = vld [vmem:[#allocation2 + $0x24] sm:$0xe]
        %v2882 = vld [vmem:[#allocation2 + $0x30] sm:$0xe]
        %v2883 = vld [vmem:[#allocation2 + $0x3c] sm:$0xe]
        %v2884 = vld [vmem:[#allocation2 + $0x48] sm:$0xe]
        %v2885 = vld [vmem:[#allocation2 + $0x54] sm:$0xe]
        %v2886 = vld [vmem:[#allocation2 + $0x60] sm:$0xe]
        %v2887 = vld [vmem:[#allocation2 + $0x6c] sm:$0xe]
        %v2888 = vld [vmem:[#allocation2 + $0x78] sm:$0xe]
        %v2889 = vld [vmem:[#allocation2 + $0x84] sm:$0xe]
        %v2890 = vld [vmem:[#allocation2 + $0x90] sm:$0xe]
        %v2891 = vld [vmem:[#allocation2 + $0x9c] sm:$0xe]
        %v2892 = vld [vmem:[#allocation2 + $0xa8] sm:$0xe]
        %v2893 = vld [vmem:[#allocation2 + $0xb4] sm:$0xe]
        %vm2926 = vcmask 1042432
        %vm2927 = vcmask 1046532
        %vm2928 = vmor %vm2926, %vm2927
        %v2929 = vrot.slane %v2878, 5
        %v2930 = vrot.slane %v2929, 4
        %v2931 = vrot.slane %v1833, 5
        %v2932 = vsel %vm2928, %v2930, %v2931
        %v2933 = vrot.slane %v2931, 4
        %v2934 = vrot.slane %v1880, 5
        %v2935 = vsel %vm2928, %v2933, %v2934
        %v2936 = vrot.slane %v2879, 5
        %v2937 = vrot.slane %v2936, 4
        %v2938 = vrot.slane %v1835, 5
        %v2939 = vsel %vm2928, %v2937, %v2938
        %v2940 = vrot.slane %v2938, 4
        %v2941 = vrot.slane %v1881, 5
        %v2942 = vsel %vm2928, %v2940, %v2941
        %v2943 = vrot.slane %v2880, 5
        %v2944 = vrot.slane %v2943, 4
        %v2945 = vrot.slane %v1837, 5
        %v2946 = vsel %vm2928, %v2944, %v2945
        %v2947 = vrot.slane %v2945, 4
        %v2948 = vrot.slane %v1882, 5
        %v2949 = vsel %vm2928, %v2947, %v2948
        %v2950 = vrot.slane %v2881, 5
        %v2951 = vrot.slane %v2950, 4
        %v2952 = vrot.slane %v1839, 5
        %v2953 = vsel %vm2928, %v2951, %v2952
        %v2954 = vrot.slane %v2952, 4
        %v2955 = vrot.slane %v1883, 5
        %v2956 = vsel %vm2928, %v2954, %v2955
        %v2957 = vrot.slane %v2882, 5
        %v2958 = vrot.slane %v2957, 4
        %v2959 = vrot.slane %v1841, 5
        %v2960 = vsel %vm2928, %v2958, %v2959
        %v2961 = vrot.slane %v2959, 4
        %v2962 = vrot.slane %v1884, 5
        %v2963 = vsel %vm2928, %v2961, %v2962
        %v2964 = vrot.slane %v2883, 5
        %v2965 = vrot.slane %v2964, 4
        %v2966 = vrot.slane %v1843, 5
        %v2967 = vsel %vm2928, %v2965, %v2966
        %v2968 = vrot.slane %v2966, 4
        %v2969 = vrot.slane %v1885, 5
        %v2970 = vsel %vm2928, %v2968, %v2969
        %v2971 = vrot.slane %v2884, 5
        %v2972 = vrot.slane %v2971, 4
        %v2973 = vrot.slane %v1845, 5
        %v2974 = vsel %vm2928, %v2972, %v2973
        %v2975 = vrot.slane %v2973, 4
        %v2976 = vrot.slane %v1886, 5
        %v2977 = vsel %vm2928, %v2975, %v2976
        %v2978 = vrot.slane %v2885, 5
        %v2979 = vrot.slane %v2978, 4
        %v2980 = vrot.slane %v1847, 5
        %v2981 = vsel %vm2928, %v2979, %v2980
        %v2982 = vrot.slane %v2980, 4
        %v2983 = vrot.slane %v1887, 5
        %v2984 = vsel %vm2928, %v2982, %v2983
        %v2985 = vrot.slane %v2886, 5
        %v2986 = vrot.slane %v2985, 4
        %v2987 = vrot.slane %v1849, 5
        %v2988 = vsel %vm2928, %v2986, %v2987
        %v2989 = vrot.slane %v2987, 4
        %v2990 = vrot.slane %v1888, 5
        %v2991 = vsel %vm2928, %v2989, %v2990
        %v2992 = vrot.slane %v2887, 5
        %v2993 = vrot.slane %v2992, 4
        %v2994 = vrot.slane %v1851, 5
        %v2995 = vsel %vm2928, %v2993, %v2994
        %v2996 = vrot.slane %v2994, 4
        %v2997 = vrot.slane %v1889, 5
        %v2998 = vsel %vm2928, %v2996, %v2997
        %v2999 = vrot.slane %v2888, 5
        %v3000 = vrot.slane %v2999, 4
        %v3001 = vrot.slane %v1853, 5
        %v3002 = vsel %vm2928, %v3000, %v3001
        %v3003 = vrot.slane %v3001, 4
        %v3004 = vrot.slane %v1890, 5
        %v3005 = vsel %vm2928, %v3003, %v3004
        %v3006 = vrot.slane %v2889, 5
        %v3007 = vrot.slane %v3006, 4
        %v3008 = vrot.slane %v1855, 5
        %v3009 = vsel %vm2928, %v3007, %v3008
        %v3010 = vrot.slane %v3008, 4
        %v3011 = vrot.slane %v1891, 5
        %v3012 = vsel %vm2928, %v3010, %v3011
        %v3013 = vrot.slane %v2890, 5
        %v3014 = vrot.slane %v3013, 4
        %v3015 = vrot.slane %v1857, 5
        %v3016 = vsel %vm2928, %v3014, %v3015
        %v3017 = vrot.slane %v3015, 4
        %v3018 = vrot.slane %v1892, 5
        %v3019 = vsel %vm2928, %v3017, %v3018
        %v3020 = vrot.slane %v2891, 5
        %v3021 = vrot.slane %v3020, 4
        %v3022 = vrot.slane %v1859, 5
        %v3023 = vsel %vm2928, %v3021, %v3022
        %v3024 = vrot.slane %v3022, 4
        %v3025 = vrot.slane %v1893, 5
        %v3026 = vsel %vm2928, %v3024, %v3025
        %v3027 = vrot.slane %v2892, 5
        %v3028 = vrot.slane %v3027, 4
        %v3029 = vrot.slane %v1861, 5
        %v3030 = vsel %vm2928, %v3028, %v3029
        %v3031 = vrot.slane %v3029, 4
        %v3032 = vrot.slane %v1894, 5
        %v3033 = vsel %vm2928, %v3031, %v3032
        %v3034 = vrot.slane %v2893, 5
        %v3035 = vrot.slane %v3034, 4
        %v3036 = vrot.slane %v1863, 5
        %v3037 = vsel %vm2928, %v3035, %v3036
        %v3038 = vrot.slane %v3036, 4
        %v3039 = vrot.slane %v1895, 5
        %v3040 = vsel %vm2928, %v3038, %v3039
        %s3041 = scalar_lea.vmem [#allocation8], 128
        %v3042 = vld [vmem:[%s3041] sm:$0xf]
        %v3043 = vld [vmem:[%s3041 + $0x4] sm:$0xf]
        %v3044 = vld [vmem:[%s3041 + $0x8] sm:$0xf]
        %v3045 = vld [vmem:[%s3041 + $0xc] sm:$0xf]
        %v3046 = vld [vmem:[%s3041 + $0x10] sm:$0xf]
        %v3047 = vld [vmem:[%s3041 + $0x14] sm:$0xf]
        %v3048 = vld [vmem:[%s3041 + $0x18] sm:$0xf]
        %v3049 = vld [vmem:[%s3041 + $0x1c] sm:$0xf]
        %v3050 = vld [vmem:[%s3041 + $0x20] sm:$0xf]
        %v3051 = vld [vmem:[%s3041 + $0x24] sm:$0xf]
        %v3052 = vld [vmem:[%s3041 + $0x28] sm:$0xf]
        %v3053 = vld [vmem:[%s3041 + $0x2c] sm:$0xf]
        %v3054 = vld [vmem:[%s3041 + $0x30] sm:$0xf]
        %v3055 = vld [vmem:[%s3041 + $0x34] sm:$0xf]
        %v3056 = vld [vmem:[%s3041 + $0x38] sm:$0xf]
        %v3057 = vld [vmem:[%s3041 + $0x3c] sm:$0xf]
        %v3058 = vunpack.c.l.b16 %v2932
        %v3059 = vunpack.c.l.b16 %v2935
        %v3060 = vunpack.c.l.b16 %v2939
        %v3061 = vunpack.c.l.b16 %v2942
        %v3062 = vunpack.c.l.b16 %v2946
        %v3063 = vunpack.c.l.b16 %v2949
        %v3064 = vunpack.c.l.b16 %v2953
        %v3065 = vunpack.c.l.b16 %v2956
        %v3066 = vunpack.c.l.b16 %v2960
        %v3067 = vunpack.c.l.b16 %v2963
        %v3068 = vunpack.c.l.b16 %v2967
        %v3069 = vunpack.c.l.b16 %v2970
        %v3070 = vunpack.c.l.b16 %v2974
        %v3071 = vunpack.c.l.b16 %v2977
        %v3072 = vunpack.c.l.b16 %v2981
        %v3073 = vunpack.c.l.b16 %v2984
        %v3074 = vunpack.c.l.b16 %v2988
        %v3075 = vunpack.c.l.b16 %v2991
        %v3076 = vunpack.c.l.b16 %v2995
        %v3077 = vunpack.c.l.b16 %v2998
        %v3078 = vunpack.c.l.b16 %v3002
        %v3079 = vunpack.c.l.b16 %v3005
        %v3080 = vunpack.c.l.b16 %v3009
        %v3081 = vunpack.c.l.b16 %v3012
        %v3082 = vunpack.c.l.b16 %v3016
        %v3083 = vunpack.c.l.b16 %v3019
        %v3084 = vunpack.c.l.b16 %v3023
        %v3085 = vunpack.c.l.b16 %v3026
        %v3086 = vunpack.c.l.b16 %v3030
        %v3087 = vunpack.c.l.b16 %v3033
        %v3088 = vunpack.c.l.b16 %v3037
        %v3089 = vunpack.c.l.b16 %v3040
        %v3090 = vpack.c.b16 %v3059, %v3058
        %v3091 = vpack.c.b16 %v3061, %v3060
        %v3092 = vpack.c.b16 %v3063, %v3062
        %v3093 = vpack.c.b16 %v3065, %v3064
        %v3094 = vpack.c.b16 %v3067, %v3066
        %v3095 = vpack.c.b16 %v3069, %v3068
        %v3096 = vpack.c.b16 %v3071, %v3070
        %v3097 = vpack.c.b16 %v3073, %v3072
        %v3098 = vpack.c.b16 %v3075, %v3074
        %v3099 = vpack.c.b16 %v3077, %v3076
        %v3100 = vpack.c.b16 %v3079, %v3078
        %v3101 = vpack.c.b16 %v3081, %v3080
        %v3102 = vpack.c.b16 %v3083, %v3082
        %v3103 = vpack.c.b16 %v3085, %v3084
        %v3104 = vpack.c.b16 %v3087, %v3086
        %v3105 = vpack.c.b16 %v3089, %v3088
        %v3138 = vunpack.c.l.b16 %v3042
        %v3139 = vunpack.c.l.b16 %v3043
        %v3140 = vunpack.c.l.b16 %v3044
        %v3141 = vunpack.c.l.b16 %v3045
        %v3142 = vunpack.c.l.b16 %v3046
        %v3143 = vunpack.c.l.b16 %v3047
        %v3144 = vunpack.c.l.b16 %v3048
        %v3145 = vunpack.c.l.b16 %v3049
        %v3146 = vunpack.c.l.b16 %v3050
        %v3147 = vunpack.c.l.b16 %v3051
        %v3148 = vunpack.c.l.b16 %v3052
        %v3149 = vunpack.c.l.b16 %v3053
        %v3150 = vunpack.c.l.b16 %v3054
        %v3151 = vunpack.c.l.b16 %v3055
        %v3152 = vunpack.c.l.b16 %v3056
        %v3153 = vunpack.c.l.b16 %v3057
        %v3154 = vpack.c.b16 %v3139, %v3138
        %v3155 = vpack.c.b16 %v3141, %v3140
        %v3156 = vpack.c.b16 %v3143, %v3142
        %v3157 = vpack.c.b16 %v3145, %v3144
        %v3158 = vpack.c.b16 %v3147, %v3146
        %v3159 = vpack.c.b16 %v3149, %v3148
        %v3160 = vpack.c.b16 %v3151, %v3150
        %v3161 = vpack.c.b16 %v3153, %v3152
        %3170 = vmatprep.subr.bf16.mxu0 0
        %3171 = vmatpush1.bf16.msra.mxu0 %v3161
        %3172 = vmatprep.subr.bf16.mxu0 0
        %3173 = vmatpush1.bf16.msra.mxu0 %v3160
        %3174 = vmatprep.subr.bf16.mxu0 0
        %3175 = vmatpush1.bf16.msra.mxu0 %v3159
        %3176 = vmatprep.subr.bf16.mxu0 0
        %3177 = vmatpush1.bf16.msra.mxu0 %v3158
        %3178 = vmatprep.subr.bf16.mxu0 0
        %3179 = vmatpush1.bf16.msra.mxu0 %v3157
        %3180 = vmatprep.subr.bf16.mxu0 0
        %3181 = vmatpush1.bf16.msra.mxu0 %v3156
        %3182 = vmatprep.subr.bf16.mxu0 0
        %3183 = vmatpush1.bf16.msra.mxu0 %v3155
        %3184 = vmatprep.subr.bf16.mxu0 0
        %3185 = vmatpush1.bf16.msra.mxu0 %v3154
        %3186 = vmatprep.subr.bf16.mxu0 0
        %3187 = vmatpush2.bf16.msra.mxu0 0
        %3188 = vmatprep.subr.bf16.mxu0 0
        %3189 = vmatpush2.bf16.msra.mxu0 0
        %3190 = vmatprep.subr.bf16.mxu0 0
        %3191 = vmatpush2.bf16.msra.mxu0 0
        %3192 = vmatprep.subr.bf16.mxu0 0
        %3193 = vmatpush2.bf16.msra.mxu0 0
        %3194 = vmatprep.subr.bf16.mxu0 0
        %3195 = vmatpush2.bf16.msra.mxu0 0
        %3196 = vmatprep.subr.bf16.mxu0 0
        %3197 = vmatpush2.bf16.msra.mxu0 0
        %3198 = vmatprep.subr.bf16.mxu0 0
        %3199 = vmatpush2.bf16.msra.mxu0 0
        %3200 = vmatprep.subr.bf16.mxu0 0
        %3201 = vmatpush2.bf16.msra.mxu0 0
        %3202 = vmatprep.mubr.bf16.mxu0 0
        %3203 = vmatmul.mubr.bf16.gmra.mxu0 %v3090
        %v3204 = vpop.f32.mrf.mxu0
        %v3205 = vadd.f32 0.0, %v3204
        %v3206 = vpop.f32.mrf.mxu0
        %v3207 = vpop.f32.mrf.mxu0
        %v3208 = vadd.f32 0.0, %v3207
        %v3209 = vpop.f32.mrf.mxu0
        %3210 = vmatprep.mubr.bf16.mxu0 0
        %3211 = vmatmul.mubr.bf16.gmra.mxu0 %v3091
        %v3212 = vpop.f32.mrf.mxu0
        %v3213 = vadd.f32 0.0, %v3212
        %v3214 = vpop.f32.mrf.mxu0
        %v3215 = vpop.f32.mrf.mxu0
        %v3216 = vadd.f32 0.0, %v3215
        %v3217 = vpop.f32.mrf.mxu0
        %3218 = vmatprep.mubr.bf16.mxu0 0
        %3219 = vmatmul.mubr.bf16.gmra.mxu0 %v3092
        %v3220 = vpop.f32.mrf.mxu0
        %v3221 = vadd.f32 0.0, %v3220
        %v3222 = vpop.f32.mrf.mxu0
        %v3223 = vpop.f32.mrf.mxu0
        %v3224 = vadd.f32 0.0, %v3223
        %v3225 = vpop.f32.mrf.mxu0
        %3226 = vmatprep.mubr.bf16.mxu0 0
        %3227 = vmatmul.mubr.bf16.gmra.mxu0 %v3093
        %v3228 = vpop.f32.mrf.mxu0
        %v3229 = vadd.f32 0.0, %v3228
        %v3230 = vpop.f32.mrf.mxu0
        %v3231 = vpop.f32.mrf.mxu0
        %v3232 = vadd.f32 0.0, %v3231
        %v3233 = vpop.f32.mrf.mxu0
        %3234 = vmatprep.mubr.bf16.mxu0 0
        %3235 = vmatmul.mubr.bf16.gmra.mxu0 %v3094
        %v3236 = vpop.f32.mrf.mxu0
        %v3237 = vadd.f32 0.0, %v3236
        %v3238 = vpop.f32.mrf.mxu0
        %v3239 = vpop.f32.mrf.mxu0
        %v3240 = vadd.f32 0.0, %v3239
        %v3241 = vpop.f32.mrf.mxu0
        %3242 = vmatprep.mubr.bf16.mxu0 0
        %3243 = vmatmul.mubr.bf16.gmra.mxu0 %v3095
        %v3244 = vpop.f32.mrf.mxu0
        %v3245 = vadd.f32 0.0, %v3244
        %v3246 = vpop.f32.mrf.mxu0
        %v3247 = vpop.f32.mrf.mxu0
        %v3248 = vadd.f32 0.0, %v3247
        %v3249 = vpop.f32.mrf.mxu0
        %3250 = vmatprep.mubr.bf16.mxu0 0
        %3251 = vmatmul.mubr.bf16.gmra.mxu0 %v3096
        %v3252 = vpop.f32.mrf.mxu0
        %v3253 = vadd.f32 0.0, %v3252
        %v3254 = vpop.f32.mrf.mxu0
        %v3255 = vpop.f32.mrf.mxu0
        %v3256 = vadd.f32 0.0, %v3255
        %v3257 = vpop.f32.mrf.mxu0
        %3258 = vmatprep.mubr.bf16.mxu0 0
        %3259 = vmatmul.mubr.bf16.gmra.mxu0 %v3097
        %v3260 = vpop.f32.mrf.mxu0
        %v3261 = vadd.f32 0.0, %v3260
        %v3262 = vpop.f32.mrf.mxu0
        %v3263 = vpop.f32.mrf.mxu0
        %v3264 = vadd.f32 0.0, %v3263
        %v3265 = vpop.f32.mrf.mxu0
        %3266 = vmatprep.mubr.bf16.mxu0 0
        %3267 = vmatmul.mubr.bf16.gmra.mxu0 %v3098
        %v3268 = vpop.f32.mrf.mxu0
        %v3269 = vadd.f32 0.0, %v3268
        %v3270 = vpop.f32.mrf.mxu0
        %v3271 = vpop.f32.mrf.mxu0
        %v3272 = vadd.f32 0.0, %v3271
        %v3273 = vpop.f32.mrf.mxu0
        %3274 = vmatprep.mubr.bf16.mxu0 0
        %3275 = vmatmul.mubr.bf16.gmra.mxu0 %v3099
        %v3276 = vpop.f32.mrf.mxu0
        %v3277 = vadd.f32 0.0, %v3276
        %v3278 = vpop.f32.mrf.mxu0
        %v3279 = vpop.f32.mrf.mxu0
        %v3280 = vadd.f32 0.0, %v3279
        %v3281 = vpop.f32.mrf.mxu0
        %3282 = vmatprep.mubr.bf16.mxu0 0
        %3283 = vmatmul.mubr.bf16.gmra.mxu0 %v3100
        %v3284 = vpop.f32.mrf.mxu0
        %v3285 = vadd.f32 0.0, %v3284
        %v3286 = vpop.f32.mrf.mxu0
        %v3287 = vpop.f32.mrf.mxu0
        %v3288 = vadd.f32 0.0, %v3287
        %v3289 = vpop.f32.mrf.mxu0
        %3290 = vmatprep.mubr.bf16.mxu0 0
        %3291 = vmatmul.mubr.bf16.gmra.mxu0 %v3101
        %v3292 = vpop.f32.mrf.mxu0
        %v3293 = vadd.f32 0.0, %v3292
        %v3294 = vpop.f32.mrf.mxu0
        %v3295 = vpop.f32.mrf.mxu0
        %v3296 = vadd.f32 0.0, %v3295
        %v3297 = vpop.f32.mrf.mxu0
        %3298 = vmatprep.mubr.bf16.mxu0 0
        %3299 = vmatmul.mubr.bf16.gmra.mxu0 %v3102
        %v3300 = vpop.f32.mrf.mxu0
        %v3301 = vadd.f32 0.0, %v3300
        %v3302 = vpop.f32.mrf.mxu0
        %v3303 = vpop.f32.mrf.mxu0
        %v3304 = vadd.f32 0.0, %v3303
        %v3305 = vpop.f32.mrf.mxu0
        %3306 = vmatprep.mubr.bf16.mxu0 0
        %3307 = vmatmul.mubr.bf16.gmra.mxu0 %v3103
        %v3308 = vpop.f32.mrf.mxu0
        %v3309 = vadd.f32 0.0, %v3308
        %v3310 = vpop.f32.mrf.mxu0
        %v3311 = vpop.f32.mrf.mxu0
        %v3312 = vadd.f32 0.0, %v3311
        %v3313 = vpop.f32.mrf.mxu0
        %3314 = vmatprep.mubr.bf16.mxu0 0
        %3315 = vmatmul.mubr.bf16.gmra.mxu0 %v3104
        %v3316 = vpop.f32.mrf.mxu0
        %v3317 = vadd.f32 0.0, %v3316
        %v3318 = vpop.f32.mrf.mxu0
        %v3319 = vpop.f32.mrf.mxu0
        %v3320 = vadd.f32 0.0, %v3319
        %v3321 = vpop.f32.mrf.mxu0
        %3322 = vmatprep.mubr.bf16.mxu0 0
        %3323 = vmatmul.mubr.bf16.gmra.mxu0 %v3105
        %v3324 = vpop.f32.mrf.mxu0
        %v3325 = vadd.f32 0.0, %v3324
        %v3326 = vpop.f32.mrf.mxu0
        %v3327 = vpop.f32.mrf.mxu0
        %v3328 = vadd.f32 0.0, %v3327
        %v3329 = vpop.f32.mrf.mxu0
        %3330 = vdwg.mxu0
        %v3331 = vadd.f32 %v2752, %v3205
        %v3332 = vadd.f32 %v2755, %v3208
        %v3333 = vadd.f32 %v2760, %v3213
        %v3334 = vadd.f32 %v2763, %v3216
        %v3335 = vadd.f32 %v2768, %v3221
        %v3336 = vadd.f32 %v2771, %v3224
        %v3337 = vadd.f32 %v2776, %v3229
        %v3338 = vadd.f32 %v2779, %v3232
        %v3339 = vadd.f32 %v2784, %v3237
        %v3340 = vadd.f32 %v2787, %v3240
        %v3341 = vadd.f32 %v2792, %v3245
        %v3342 = vadd.f32 %v2795, %v3248
        %v3343 = vadd.f32 %v2800, %v3253
        %v3344 = vadd.f32 %v2803, %v3256
        %v3345 = vadd.f32 %v2808, %v3261
        %v3346 = vadd.f32 %v2811, %v3264
        %v3347 = vadd.f32 %v2816, %v3269
        %v3348 = vadd.f32 %v2819, %v3272
        %v3349 = vadd.f32 %v2824, %v3277
        %v3350 = vadd.f32 %v2827, %v3280
        %v3351 = vadd.f32 %v2832, %v3285
        %v3352 = vadd.f32 %v2835, %v3288
        %v3353 = vadd.f32 %v2840, %v3293
        %v3354 = vadd.f32 %v2843, %v3296
        %v3355 = vadd.f32 %v2848, %v3301
        %v3356 = vadd.f32 %v2851, %v3304
        %v3357 = vadd.f32 %v2856, %v3309
        %v3358 = vadd.f32 %v2859, %v3312
        %v3359 = vadd.f32 %v2864, %v3317
        %v3360 = vadd.f32 %v2867, %v3320
        %v3361 = vadd.f32 %v2872, %v3325
        %v3362 = vadd.f32 %v2875, %v3328
        %s3363 = scalar_lea.vmem [#allocation2], 12
        %v3364 = vld [vmem:[%s3363] sm:$0xf]
        %v3365 = vld [vmem:[%s3363 + $0x4] sm:$0xf]
        %v3366 = vld [vmem:[%s3363 + $0xc] sm:$0xf]
        %v3367 = vld [vmem:[%s3363 + $0x10] sm:$0xf]
        %v3368 = vld [vmem:[%s3363 + $0x18] sm:$0xf]
        %v3369 = vld [vmem:[%s3363 + $0x1c] sm:$0xf]
        %v3370 = vld [vmem:[%s3363 + $0x24] sm:$0xf]
        %v3371 = vld [vmem:[%s3363 + $0x28] sm:$0xf]
        %v3372 = vld [vmem:[%s3363 + $0x30] sm:$0xf]
        %v3373 = vld [vmem:[%s3363 + $0x34] sm:$0xf]
        %v3374 = vld [vmem:[%s3363 + $0x3c] sm:$0xf]
        %v3375 = vld [vmem:[%s3363 + $0x40] sm:$0xf]
        %v3376 = vld [vmem:[%s3363 + $0x48] sm:$0xf]
        %v3377 = vld [vmem:[%s3363 + $0x4c] sm:$0xf]
        %v3378 = vld [vmem:[%s3363 + $0x54] sm:$0xf]
        %v3379 = vld [vmem:[%s3363 + $0x58] sm:$0xf]
        %v3380 = vld [vmem:[%s3363 + $0x60] sm:$0xf]
        %v3381 = vld [vmem:[%s3363 + $0x64] sm:$0xf]
        %v3382 = vld [vmem:[%s3363 + $0x6c] sm:$0xf]
        %v3383 = vld [vmem:[%s3363 + $0x70] sm:$0xf]
        %v3384 = vld [vmem:[%s3363 + $0x78] sm:$0xf]
        %v3385 = vld [vmem:[%s3363 + $0x7c] sm:$0xf]
        %v3386 = vld [vmem:[%s3363 + $0x84] sm:$0xf]
        %v3387 = vld [vmem:[%s3363 + $0x88] sm:$0xf]
        %v3388 = vld [vmem:[%s3363 + $0x90] sm:$0xf]
        %v3389 = vld [vmem:[%s3363 + $0x94] sm:$0xf]
        %v3390 = vld [vmem:[%s3363 + $0x9c] sm:$0xf]
        %v3391 = vld [vmem:[%s3363 + $0xa0] sm:$0xf]
        %v3392 = vld [vmem:[%s3363 + $0xa8] sm:$0xf]
        %v3393 = vld [vmem:[%s3363 + $0xac] sm:$0xf]
        %v3394 = vld [vmem:[%s3363 + $0xb4] sm:$0xf]
        %v3395 = vld [vmem:[%s3363 + $0xb8] sm:$0xf]
        %s3396 = scalar_lea.vmem [#allocation8], 192
        %v3397 = vld [vmem:[%s3396] sm:$0xf]
        %v3398 = vld [vmem:[%s3396 + $0x4] sm:$0xf]
        %v3399 = vld [vmem:[%s3396 + $0x8] sm:$0xf]
        %v3400 = vld [vmem:[%s3396 + $0xc] sm:$0xf]
        %v3401 = vld [vmem:[%s3396 + $0x10] sm:$0xf]
        %v3402 = vld [vmem:[%s3396 + $0x14] sm:$0xf]
        %v3403 = vld [vmem:[%s3396 + $0x18] sm:$0xf]
        %v3404 = vld [vmem:[%s3396 + $0x1c] sm:$0xf]
        %v3405 = vld [vmem:[%s3396 + $0x20] sm:$0xf]
        %v3406 = vld [vmem:[%s3396 + $0x24] sm:$0xf]
        %v3407 = vld [vmem:[%s3396 + $0x28] sm:$0xf]
        %v3408 = vld [vmem:[%s3396 + $0x2c] sm:$0xf]
        %v3409 = vld [vmem:[%s3396 + $0x30] sm:$0xf]
        %v3410 = vld [vmem:[%s3396 + $0x34] sm:$0xf]
        %v3411 = vld [vmem:[%s3396 + $0x38] sm:$0xf]
        %v3412 = vld [vmem:[%s3396 + $0x3c] sm:$0xf]
        %v3445 = vunpack.c.l.b16 %v3364
        %v3446 = vunpack.c.l.b16 %v3365
        %v3447 = vunpack.c.l.b16 %v3366
        %v3448 = vunpack.c.l.b16 %v3367
        %v3449 = vunpack.c.l.b16 %v3368
        %v3450 = vunpack.c.l.b16 %v3369
        %v3451 = vunpack.c.l.b16 %v3370
        %v3452 = vunpack.c.l.b16 %v3371
        %v3453 = vunpack.c.l.b16 %v3372
        %v3454 = vunpack.c.l.b16 %v3373
        %v3455 = vunpack.c.l.b16 %v3374
        %v3456 = vunpack.c.l.b16 %v3375
        %v3457 = vunpack.c.l.b16 %v3376
        %v3458 = vunpack.c.l.b16 %v3377
        %v3459 = vunpack.c.l.b16 %v3378
        %v3460 = vunpack.c.l.b16 %v3379
        %v3461 = vunpack.c.l.b16 %v3380
        %v3462 = vunpack.c.l.b16 %v3381
        %v3463 = vunpack.c.l.b16 %v3382
        %v3464 = vunpack.c.l.b16 %v3383
        %v3465 = vunpack.c.l.b16 %v3384
        %v3466 = vunpack.c.l.b16 %v3385
        %v3467 = vunpack.c.l.b16 %v3386
        %v3468 = vunpack.c.l.b16 %v3387
        %v3469 = vunpack.c.l.b16 %v3388
        %v3470 = vunpack.c.l.b16 %v3389
        %v3471 = vunpack.c.l.b16 %v3390
        %v3472 = vunpack.c.l.b16 %v3391
        %v3473 = vunpack.c.l.b16 %v3392
        %v3474 = vunpack.c.l.b16 %v3393
        %v3475 = vunpack.c.l.b16 %v3394
        %v3476 = vunpack.c.l.b16 %v3395
        %v3477 = vpack.c.b16 %v3446, %v3445
        %v3478 = vpack.c.b16 %v3448, %v3447
        %v3479 = vpack.c.b16 %v3450, %v3449
        %v3480 = vpack.c.b16 %v3452, %v3451
        %v3481 = vpack.c.b16 %v3454, %v3453
        %v3482 = vpack.c.b16 %v3456, %v3455
        %v3483 = vpack.c.b16 %v3458, %v3457
        %v3484 = vpack.c.b16 %v3460, %v3459
        %v3485 = vpack.c.b16 %v3462, %v3461
        %v3486 = vpack.c.b16 %v3464, %v3463
        %v3487 = vpack.c.b16 %v3466, %v3465
        %v3488 = vpack.c.b16 %v3468, %v3467
        %v3489 = vpack.c.b16 %v3470, %v3469
        %v3490 = vpack.c.b16 %v3472, %v3471
        %v3491 = vpack.c.b16 %v3474, %v3473
        %v3492 = vpack.c.b16 %v3476, %v3475
        %v3525 = vunpack.c.l.b16 %v3397
        %v3526 = vunpack.c.l.b16 %v3398
        %v3527 = vunpack.c.l.b16 %v3399
        %v3528 = vunpack.c.l.b16 %v3400
        %v3529 = vunpack.c.l.b16 %v3401
        %v3530 = vunpack.c.l.b16 %v3402
        %v3531 = vunpack.c.l.b16 %v3403
        %v3532 = vunpack.c.l.b16 %v3404
        %v3533 = vunpack.c.l.b16 %v3405
        %v3534 = vunpack.c.l.b16 %v3406
        %v3535 = vunpack.c.l.b16 %v3407
        %v3536 = vunpack.c.l.b16 %v3408
        %v3537 = vunpack.c.l.b16 %v3409
        %v3538 = vunpack.c.l.b16 %v3410
        %v3539 = vunpack.c.l.b16 %v3411
        %v3540 = vunpack.c.l.b16 %v3412
        %v3541 = vpack.c.b16 %v3526, %v3525
        %v3542 = vpack.c.b16 %v3528, %v3527
        %v3543 = vpack.c.b16 %v3530, %v3529
        %v3544 = vpack.c.b16 %v3532, %v3531
        %v3545 = vpack.c.b16 %v3534, %v3533
        %v3546 = vpack.c.b16 %v3536, %v3535
        %v3547 = vpack.c.b16 %v3538, %v3537
        %v3548 = vpack.c.b16 %v3540, %v3539
        %3557 = vmatprep.subr.bf16.mxu0 0
        %3558 = vmatpush1.bf16.msra.mxu0 %v3548
        %3559 = vmatprep.subr.bf16.mxu0 0
        %3560 = vmatpush1.bf16.msra.mxu0 %v3547
        %3561 = vmatprep.subr.bf16.mxu0 0
        %3562 = vmatpush1.bf16.msra.mxu0 %v3546
        %3563 = vmatprep.subr.bf16.mxu0 0
        %3564 = vmatpush1.bf16.msra.mxu0 %v3545
        %3565 = vmatprep.subr.bf16.mxu0 0
        %3566 = vmatpush1.bf16.msra.mxu0 %v3544
        %3567 = vmatprep.subr.bf16.mxu0 0
        %3568 = vmatpush1.bf16.msra.mxu0 %v3543
        %3569 = vmatprep.subr.bf16.mxu0 0
        %3570 = vmatpush1.bf16.msra.mxu0 %v3542
        %3571 = vmatprep.subr.bf16.mxu0 0
        %3572 = vmatpush1.bf16.msra.mxu0 %v3541
        %3573 = vmatprep.subr.bf16.mxu0 0
        %3574 = vmatpush2.bf16.msra.mxu0 0
        %3575 = vmatprep.subr.bf16.mxu0 0
        %3576 = vmatpush2.bf16.msra.mxu0 0
        %3577 = vmatprep.subr.bf16.mxu0 0
        %3578 = vmatpush2.bf16.msra.mxu0 0
        %3579 = vmatprep.subr.bf16.mxu0 0
        %3580 = vmatpush2.bf16.msra.mxu0 0
        %3581 = vmatprep.subr.bf16.mxu0 0
        %3582 = vmatpush2.bf16.msra.mxu0 0
        %3583 = vmatprep.subr.bf16.mxu0 0
        %3584 = vmatpush2.bf16.msra.mxu0 0
        %3585 = vmatprep.subr.bf16.mxu0 0
        %3586 = vmatpush2.bf16.msra.mxu0 0
        %3587 = vmatprep.subr.bf16.mxu0 0
        %3588 = vmatpush2.bf16.msra.mxu0 0
        %3589 = vmatprep.mubr.bf16.mxu0 0
        %3590 = vmatmul.mubr.bf16.gmra.mxu0 %v3477
        %v3591 = vpop.f32.mrf.mxu0
        %v3592 = vadd.f32 0.0, %v3591
        %v3593 = vpop.f32.mrf.mxu0
        %v3594 = vpop.f32.mrf.mxu0
        %v3595 = vadd.f32 0.0, %v3594
        %v3596 = vpop.f32.mrf.mxu0
        %3597 = vmatprep.mubr.bf16.mxu0 0
        %3598 = vmatmul.mubr.bf16.gmra.mxu0 %v3478
        %v3599 = vpop.f32.mrf.mxu0
        %v3600 = vadd.f32 0.0, %v3599
        %v3601 = vpop.f32.mrf.mxu0
        %v3602 = vpop.f32.mrf.mxu0
        %v3603 = vadd.f32 0.0, %v3602
        %v3604 = vpop.f32.mrf.mxu0
        %3605 = vmatprep.mubr.bf16.mxu0 0
        %3606 = vmatmul.mubr.bf16.gmra.mxu0 %v3479
        %v3607 = vpop.f32.mrf.mxu0
        %v3608 = vadd.f32 0.0, %v3607
        %v3609 = vpop.f32.mrf.mxu0
        %v3610 = vpop.f32.mrf.mxu0
        %v3611 = vadd.f32 0.0, %v3610
        %v3612 = vpop.f32.mrf.mxu0
        %3613 = vmatprep.mubr.bf16.mxu0 0
        %3614 = vmatmul.mubr.bf16.gmra.mxu0 %v3480
        %v3615 = vpop.f32.mrf.mxu0
        %v3616 = vadd.f32 0.0, %v3615
        %v3617 = vpop.f32.mrf.mxu0
        %v3618 = vpop.f32.mrf.mxu0
        %v3619 = vadd.f32 0.0, %v3618
        %v3620 = vpop.f32.mrf.mxu0
        %3621 = vmatprep.mubr.bf16.mxu0 0
        %3622 = vmatmul.mubr.bf16.gmra.mxu0 %v3481
        %v3623 = vpop.f32.mrf.mxu0
        %v3624 = vadd.f32 0.0, %v3623
        %v3625 = vpop.f32.mrf.mxu0
        %v3626 = vpop.f32.mrf.mxu0
        %v3627 = vadd.f32 0.0, %v3626
        %v3628 = vpop.f32.mrf.mxu0
        %3629 = vmatprep.mubr.bf16.mxu0 0
        %3630 = vmatmul.mubr.bf16.gmra.mxu0 %v3482
        %v3631 = vpop.f32.mrf.mxu0
        %v3632 = vadd.f32 0.0, %v3631
        %v3633 = vpop.f32.mrf.mxu0
        %v3634 = vpop.f32.mrf.mxu0
        %v3635 = vadd.f32 0.0, %v3634
        %v3636 = vpop.f32.mrf.mxu0
        %3637 = vmatprep.mubr.bf16.mxu0 0
        %3638 = vmatmul.mubr.bf16.gmra.mxu0 %v3483
        %v3639 = vpop.f32.mrf.mxu0
        %v3640 = vadd.f32 0.0, %v3639
        %v3641 = vpop.f32.mrf.mxu0
        %v3642 = vpop.f32.mrf.mxu0
        %v3643 = vadd.f32 0.0, %v3642
        %v3644 = vpop.f32.mrf.mxu0
        %3645 = vmatprep.mubr.bf16.mxu0 0
        %3646 = vmatmul.mubr.bf16.gmra.mxu0 %v3484
        %v3647 = vpop.f32.mrf.mxu0
        %v3648 = vadd.f32 0.0, %v3647
        %v3649 = vpop.f32.mrf.mxu0
        %v3650 = vpop.f32.mrf.mxu0
        %v3651 = vadd.f32 0.0, %v3650
        %v3652 = vpop.f32.mrf.mxu0
        %3653 = vmatprep.mubr.bf16.mxu0 0
        %3654 = vmatmul.mubr.bf16.gmra.mxu0 %v3485
        %v3655 = vpop.f32.mrf.mxu0
        %v3656 = vadd.f32 0.0, %v3655
        %v3657 = vpop.f32.mrf.mxu0
        %v3658 = vpop.f32.mrf.mxu0
        %v3659 = vadd.f32 0.0, %v3658
        %v3660 = vpop.f32.mrf.mxu0
        %3661 = vmatprep.mubr.bf16.mxu0 0
        %3662 = vmatmul.mubr.bf16.gmra.mxu0 %v3486
        %v3663 = vpop.f32.mrf.mxu0
        %v3664 = vadd.f32 0.0, %v3663
        %v3665 = vpop.f32.mrf.mxu0
        %v3666 = vpop.f32.mrf.mxu0
        %v3667 = vadd.f32 0.0, %v3666
        %v3668 = vpop.f32.mrf.mxu0
        %3669 = vmatprep.mubr.bf16.mxu0 0
        %3670 = vmatmul.mubr.bf16.gmra.mxu0 %v3487
        %v3671 = vpop.f32.mrf.mxu0
        %v3672 = vadd.f32 0.0, %v3671
        %v3673 = vpop.f32.mrf.mxu0
        %v3674 = vpop.f32.mrf.mxu0
        %v3675 = vadd.f32 0.0, %v3674
        %v3676 = vpop.f32.mrf.mxu0
        %3677 = vmatprep.mubr.bf16.mxu0 0
        %3678 = vmatmul.mubr.bf16.gmra.mxu0 %v3488
        %v3679 = vpop.f32.mrf.mxu0
        %v3680 = vadd.f32 0.0, %v3679
        %v3681 = vpop.f32.mrf.mxu0
        %v3682 = vpop.f32.mrf.mxu0
        %v3683 = vadd.f32 0.0, %v3682
        %v3684 = vpop.f32.mrf.mxu0
        %3685 = vmatprep.mubr.bf16.mxu0 0
        %3686 = vmatmul.mubr.bf16.gmra.mxu0 %v3489
        %v3687 = vpop.f32.mrf.mxu0
        %v3688 = vadd.f32 0.0, %v3687
        %v3689 = vpop.f32.mrf.mxu0
        %v3690 = vpop.f32.mrf.mxu0
        %v3691 = vadd.f32 0.0, %v3690
        %v3692 = vpop.f32.mrf.mxu0
        %3693 = vmatprep.mubr.bf16.mxu0 0
        %3694 = vmatmul.mubr.bf16.gmra.mxu0 %v3490
        %v3695 = vpop.f32.mrf.mxu0
        %v3696 = vadd.f32 0.0, %v3695
        %v3697 = vpop.f32.mrf.mxu0
        %v3698 = vpop.f32.mrf.mxu0
        %v3699 = vadd.f32 0.0, %v3698
        %v3700 = vpop.f32.mrf.mxu0
        %3701 = vmatprep.mubr.bf16.mxu0 0
        %3702 = vmatmul.mubr.bf16.gmra.mxu0 %v3491
        %v3703 = vpop.f32.mrf.mxu0
        %v3704 = vadd.f32 0.0, %v3703
        %v3705 = vpop.f32.mrf.mxu0
        %v3706 = vpop.f32.mrf.mxu0
        %v3707 = vadd.f32 0.0, %v3706
        %v3708 = vpop.f32.mrf.mxu0
        %3709 = vmatprep.mubr.bf16.mxu0 0
        %3710 = vmatmul.mubr.bf16.gmra.mxu0 %v3492
        %v3711 = vpop.f32.mrf.mxu0
        %v3712 = vadd.f32 0.0, %v3711
        %v3713 = vpop.f32.mrf.mxu0
        %v3714 = vpop.f32.mrf.mxu0
        %v3715 = vadd.f32 0.0, %v3714
        %v3716 = vpop.f32.mrf.mxu0
        %3717 = vdwg.mxu0
        %v3718 = vadd.f32 %v3331, %v3592
        %v3719 = vadd.f32 %v3332, %v3595
        %v3720 = vadd.f32 %v3333, %v3600
        %v3721 = vadd.f32 %v3334, %v3603
        %v3722 = vadd.f32 %v3335, %v3608
        %v3723 = vadd.f32 %v3336, %v3611
        %v3724 = vadd.f32 %v3337, %v3616
        %v3725 = vadd.f32 %v3338, %v3619
        %v3726 = vadd.f32 %v3339, %v3624
        %v3727 = vadd.f32 %v3340, %v3627
        %v3728 = vadd.f32 %v3341, %v3632
        %v3729 = vadd.f32 %v3342, %v3635
        %v3730 = vadd.f32 %v3343, %v3640
        %v3731 = vadd.f32 %v3344, %v3643
        %v3732 = vadd.f32 %v3345, %v3648
        %v3733 = vadd.f32 %v3346, %v3651
        %v3734 = vadd.f32 %v3347, %v3656
        %v3735 = vadd.f32 %v3348, %v3659
        %v3736 = vadd.f32 %v3349, %v3664
        %v3737 = vadd.f32 %v3350, %v3667
        %v3738 = vadd.f32 %v3351, %v3672
        %v3739 = vadd.f32 %v3352, %v3675
        %v3740 = vadd.f32 %v3353, %v3680
        %v3741 = vadd.f32 %v3354, %v3683
        %v3742 = vadd.f32 %v3355, %v3688
        %v3743 = vadd.f32 %v3356, %v3691
        %v3744 = vadd.f32 %v3357, %v3696
        %v3745 = vadd.f32 %v3358, %v3699
        %v3746 = vadd.f32 %v3359, %v3704
        %v3747 = vadd.f32 %v3360, %v3707
        %v3748 = vadd.f32 %v3361, %v3712
        %v3749 = vadd.f32 %v3362, %v3715
        %v3750 = vld [vmem:[%s3363] sm:$0xf]
        %v3751 = vld [vmem:[%s3363 + $0x4] sm:$0xf]
        %v3752 = vld [vmem:[%s3363 + $0x8] sm:$0x1]
        %v3753 = vld [vmem:[%s3363 + $0xc] sm:$0xf]
        %v3754 = vld [vmem:[%s3363 + $0x10] sm:$0xf]
        %v3755 = vld [vmem:[%s3363 + $0x14] sm:$0x1]
        %v3756 = vld [vmem:[%s3363 + $0x18] sm:$0xf]
        %v3757 = vld [vmem:[%s3363 + $0x1c] sm:$0xf]
        %v3758 = vld [vmem:[%s3363 + $0x20] sm:$0x1]
        %v3759 = vld [vmem:[%s3363 + $0x24] sm:$0xf]
        %v3760 = vld [vmem:[%s3363 + $0x28] sm:$0xf]
        %v3761 = vld [vmem:[%s3363 + $0x2c] sm:$0x1]
        %v3762 = vld [vmem:[%s3363 + $0x30] sm:$0xf]
        %v3763 = vld [vmem:[%s3363 + $0x34] sm:$0xf]
        %v3764 = vld [vmem:[%s3363 + $0x38] sm:$0x1]
        %v3765 = vld [vmem:[%s3363 + $0x3c] sm:$0xf]
        %v3766 = vld [vmem:[%s3363 + $0x40] sm:$0xf]
        %v3767 = vld [vmem:[%s3363 + $0x44] sm:$0x1]
        %v3768 = vld [vmem:[%s3363 + $0x48] sm:$0xf]
        %v3769 = vld [vmem:[%s3363 + $0x4c] sm:$0xf]
        %v3770 = vld [vmem:[%s3363 + $0x50] sm:$0x1]
        %v3771 = vld [vmem:[%s3363 + $0x54] sm:$0xf]
        %v3772 = vld [vmem:[%s3363 + $0x58] sm:$0xf]
        %v3773 = vld [vmem:[%s3363 + $0x5c] sm:$0x1]
        %v3774 = vld [vmem:[%s3363 + $0x60] sm:$0xf]
        %v3775 = vld [vmem:[%s3363 + $0x64] sm:$0xf]
        %v3776 = vld [vmem:[%s3363 + $0x68] sm:$0x1]
        %v3777 = vld [vmem:[%s3363 + $0x6c] sm:$0xf]
        %v3778 = vld [vmem:[%s3363 + $0x70] sm:$0xf]
        %v3779 = vld [vmem:[%s3363 + $0x74] sm:$0x1]
        %v3780 = vld [vmem:[%s3363 + $0x78] sm:$0xf]
        %v3781 = vld [vmem:[%s3363 + $0x7c] sm:$0xf]
        %v3782 = vld [vmem:[%s3363 + $0x80] sm:$0x1]
        %v3783 = vld [vmem:[%s3363 + $0x84] sm:$0xf]
        %v3784 = vld [vmem:[%s3363 + $0x88] sm:$0xf]
        %v3785 = vld [vmem:[%s3363 + $0x8c] sm:$0x1]
        %v3786 = vld [vmem:[%s3363 + $0x90] sm:$0xf]
        %v3787 = vld [vmem:[%s3363 + $0x94] sm:$0xf]
        %v3788 = vld [vmem:[%s3363 + $0x98] sm:$0x1]
        %v3789 = vld [vmem:[%s3363 + $0x9c] sm:$0xf]
        %v3790 = vld [vmem:[%s3363 + $0xa0] sm:$0xf]
        %v3791 = vld [vmem:[%s3363 + $0xa4] sm:$0x1]
        %v3792 = vld [vmem:[%s3363 + $0xa8] sm:$0xf]
        %v3793 = vld [vmem:[%s3363 + $0xac] sm:$0xf]
        %v3794 = vld [vmem:[%s3363 + $0xb0] sm:$0x1]
        %v3795 = vld [vmem:[%s3363 + $0xb4] sm:$0xf]
        %v3796 = vld [vmem:[%s3363 + $0xb8] sm:$0xf]
        %v3797 = vld [vmem:[%s3363 + $0xbc] sm:$0x1]
        %v3799 = vshrl.u32 %v3750, 16
        %v3801 = vrot.slane %v3799, 4
        %v3802 = vshll.u32 %v3750, 16
        %v3804 = vrot.slane %v3802, 5
        %v3805 = vor.u32 %v3801, %v3804
        %v3806 = vrot.slane %v3805, 4
        %v3808 = vshll.u32 %v3751, 16
        %v3810 = vrot.slane %v3808, 5
        %v3811 = vsel %vm1898, %v3806, %v3810
        %v3812 = vshrl.u32 %v3751, 16
        %v3814 = vrot.slane %v3812, 4
        %v3815 = vor.u32 %v3814, %v3810
        %v3816 = vrot.slane %v3815, 4
        %v3818 = vshll.u32 %v3752, 16
        %v3820 = vrot.slane %v3818, 5
        %v3821 = vsel %vm1898, %v3816, %v3820
        %v3823 = vshrl.u32 %v3753, 16
        %v3825 = vrot.slane %v3823, 4
        %v3826 = vshll.u32 %v3753, 16
        %v3828 = vrot.slane %v3826, 5
        %v3829 = vor.u32 %v3825, %v3828
        %v3830 = vrot.slane %v3829, 4
        %v3832 = vshll.u32 %v3754, 16
        %v3834 = vrot.slane %v3832, 5
        %v3835 = vsel %vm1898, %v3830, %v3834
        %v3836 = vshrl.u32 %v3754, 16
        %v3838 = vrot.slane %v3836, 4
        %v3839 = vor.u32 %v3838, %v3834
        %v3840 = vrot.slane %v3839, 4
        %v3842 = vshll.u32 %v3755, 16
        %v3844 = vrot.slane %v3842, 5
        %v3845 = vsel %vm1898, %v3840, %v3844
        %v3847 = vshrl.u32 %v3756, 16
        %v3849 = vrot.slane %v3847, 4
        %v3850 = vshll.u32 %v3756, 16
        %v3852 = vrot.slane %v3850, 5
        %v3853 = vor.u32 %v3849, %v3852
        %v3854 = vrot.slane %v3853, 4
        %v3856 = vshll.u32 %v3757, 16
        %v3858 = vrot.slane %v3856, 5
        %v3859 = vsel %vm1898, %v3854, %v3858
        %v3860 = vshrl.u32 %v3757, 16
        %v3862 = vrot.slane %v3860, 4
        %v3863 = vor.u32 %v3862, %v3858
        %v3864 = vrot.slane %v3863, 4
        %v3866 = vshll.u32 %v3758, 16
        %v3868 = vrot.slane %v3866, 5
        %v3869 = vsel %vm1898, %v3864, %v3868
        %v3871 = vshrl.u32 %v3759, 16
        %v3873 = vrot.slane %v3871, 4
        %v3874 = vshll.u32 %v3759, 16
        %v3876 = vrot.slane %v3874, 5
        %v3877 = vor.u32 %v3873, %v3876
        %v3878 = vrot.slane %v3877, 4
        %v3880 = vshll.u32 %v3760, 16
        %v3882 = vrot.slane %v3880, 5
        %v3883 = vsel %vm1898, %v3878, %v3882
        %v3884 = vshrl.u32 %v3760, 16
        %v3886 = vrot.slane %v3884, 4
        %v3887 = vor.u32 %v3886, %v3882
        %v3888 = vrot.slane %v3887, 4
        %v3890 = vshll.u32 %v3761, 16
        %v3892 = vrot.slane %v3890, 5
        %v3893 = vsel %vm1898, %v3888, %v3892
        %v3895 = vshrl.u32 %v3762, 16
        %v3897 = vrot.slane %v3895, 4
        %v3898 = vshll.u32 %v3762, 16
        %v3900 = vrot.slane %v3898, 5
        %v3901 = vor.u32 %v3897, %v3900
        %v3902 = vrot.slane %v3901, 4
        %v3904 = vshll.u32 %v3763, 16
        %v3906 = vrot.slane %v3904, 5
        %v3907 = vsel %vm1898, %v3902, %v3906
        %v3908 = vshrl.u32 %v3763, 16
        %v3910 = vrot.slane %v3908, 4
        %v3911 = vor.u32 %v3910, %v3906
        %v3912 = vrot.slane %v3911, 4
        %v3914 = vshll.u32 %v3764, 16
        %v3916 = vrot.slane %v3914, 5
        %v3917 = vsel %vm1898, %v3912, %v3916
        %v3919 = vshrl.u32 %v3765, 16
        %v3921 = vrot.slane %v3919, 4
        %v3922 = vshll.u32 %v3765, 16
        %v3924 = vrot.slane %v3922, 5
        %v3925 = vor.u32 %v3921, %v3924
        %v3926 = vrot.slane %v3925, 4
        %v3928 = vshll.u32 %v3766, 16
        %v3930 = vrot.slane %v3928, 5
        %v3931 = vsel %vm1898, %v3926, %v3930
        %v3932 = vshrl.u32 %v3766, 16
        %v3934 = vrot.slane %v3932, 4
        %v3935 = vor.u32 %v3934, %v3930
        %v3936 = vrot.slane %v3935, 4
        %v3938 = vshll.u32 %v3767, 16
        %v3940 = vrot.slane %v3938, 5
        %v3941 = vsel %vm1898, %v3936, %v3940
        %v3943 = vshrl.u32 %v3768, 16
        %v3945 = vrot.slane %v3943, 4
        %v3946 = vshll.u32 %v3768, 16
        %v3948 = vrot.slane %v3946, 5
        %v3949 = vor.u32 %v3945, %v3948
        %v3950 = vrot.slane %v3949, 4
        %v3952 = vshll.u32 %v3769, 16
        %v3954 = vrot.slane %v3952, 5
        %v3955 = vsel %vm1898, %v3950, %v3954
        %v3956 = vshrl.u32 %v3769, 16
        %v3958 = vrot.slane %v3956, 4
        %v3959 = vor.u32 %v3958, %v3954
        %v3960 = vrot.slane %v3959, 4
        %v3962 = vshll.u32 %v3770, 16
        %v3964 = vrot.slane %v3962, 5
        %v3965 = vsel %vm1898, %v3960, %v3964
        %v3967 = vshrl.u32 %v3771, 16
        %v3969 = vrot.slane %v3967, 4
        %v3970 = vshll.u32 %v3771, 16
        %v3972 = vrot.slane %v3970, 5
        %v3973 = vor.u32 %v3969, %v3972
        %v3974 = vrot.slane %v3973, 4
        %v3976 = vshll.u32 %v3772, 16
        %v3978 = vrot.slane %v3976, 5
        %v3979 = vsel %vm1898, %v3974, %v3978
        %v3980 = vshrl.u32 %v3772, 16
        %v3982 = vrot.slane %v3980, 4
        %v3983 = vor.u32 %v3982, %v3978
        %v3984 = vrot.slane %v3983, 4
        %v3986 = vshll.u32 %v3773, 16
        %v3988 = vrot.slane %v3986, 5
        %v3989 = vsel %vm1898, %v3984, %v3988
        %v3991 = vshrl.u32 %v3774, 16
        %v3993 = vrot.slane %v3991, 4
        %v3994 = vshll.u32 %v3774, 16
        %v3996 = vrot.slane %v3994, 5
        %v3997 = vor.u32 %v3993, %v3996
        %v3998 = vrot.slane %v3997, 4
        %v4000 = vshll.u32 %v3775, 16
        %v4002 = vrot.slane %v4000, 5
        %v4003 = vsel %vm1898, %v3998, %v4002
        %v4004 = vshrl.u32 %v3775, 16
        %v4006 = vrot.slane %v4004, 4
        %v4007 = vor.u32 %v4006, %v4002
        %v4008 = vrot.slane %v4007, 4
        %v4010 = vshll.u32 %v3776, 16
        %v4012 = vrot.slane %v4010, 5
        %v4013 = vsel %vm1898, %v4008, %v4012
        %v4015 = vshrl.u32 %v3777, 16
        %v4017 = vrot.slane %v4015, 4
        %v4018 = vshll.u32 %v3777, 16
        %v4020 = vrot.slane %v4018, 5
        %v4021 = vor.u32 %v4017, %v4020
        %v4022 = vrot.slane %v4021, 4
        %v4024 = vshll.u32 %v3778, 16
        %v4026 = vrot.slane %v4024, 5
        %v4027 = vsel %vm1898, %v4022, %v4026
        %v4028 = vshrl.u32 %v3778, 16
        %v4030 = vrot.slane %v4028, 4
        %v4031 = vor.u32 %v4030, %v4026
        %v4032 = vrot.slane %v4031, 4
        %v4034 = vshll.u32 %v3779, 16
        %v4036 = vrot.slane %v4034, 5
        %v4037 = vsel %vm1898, %v4032, %v4036
        %v4039 = vshrl.u32 %v3780, 16
        %v4041 = vrot.slane %v4039, 4
        %v4042 = vshll.u32 %v3780, 16
        %v4044 = vrot.slane %v4042, 5
        %v4045 = vor.u32 %v4041, %v4044
        %v4046 = vrot.slane %v4045, 4
        %v4048 = vshll.u32 %v3781, 16
        %v4050 = vrot.slane %v4048, 5
        %v4051 = vsel %vm1898, %v4046, %v4050
        %v4052 = vshrl.u32 %v3781, 16
        %v4054 = vrot.slane %v4052, 4
        %v4055 = vor.u32 %v4054, %v4050
        %v4056 = vrot.slane %v4055, 4
        %v4058 = vshll.u32 %v3782, 16
        %v4060 = vrot.slane %v4058, 5
        %v4061 = vsel %vm1898, %v4056, %v4060
        %v4063 = vshrl.u32 %v3783, 16
        %v4065 = vrot.slane %v4063, 4
        %v4066 = vshll.u32 %v3783, 16
        %v4068 = vrot.slane %v4066, 5
        %v4069 = vor.u32 %v4065, %v4068
        %v4070 = vrot.slane %v4069, 4
        %v4072 = vshll.u32 %v3784, 16
        %v4074 = vrot.slane %v4072, 5
        %v4075 = vsel %vm1898, %v4070, %v4074
        %v4076 = vshrl.u32 %v3784, 16
        %v4078 = vrot.slane %v4076, 4
        %v4079 = vor.u32 %v4078, %v4074
        %v4080 = vrot.slane %v4079, 4
        %v4082 = vshll.u32 %v3785, 16
        %v4084 = vrot.slane %v4082, 5
        %v4085 = vsel %vm1898, %v4080, %v4084
        %v4087 = vshrl.u32 %v3786, 16
        %v4089 = vrot.slane %v4087, 4
        %v4090 = vshll.u32 %v3786, 16
        %v4092 = vrot.slane %v4090, 5
        %v4093 = vor.u32 %v4089, %v4092
        %v4094 = vrot.slane %v4093, 4
        %v4096 = vshll.u32 %v3787, 16
        %v4098 = vrot.slane %v4096, 5
        %v4099 = vsel %vm1898, %v4094, %v4098
        %v4100 = vshrl.u32 %v3787, 16
        %v4102 = vrot.slane %v4100, 4
        %v4103 = vor.u32 %v4102, %v4098
        %v4104 = vrot.slane %v4103, 4
        %v4106 = vshll.u32 %v3788, 16
        %v4108 = vrot.slane %v4106, 5
        %v4109 = vsel %vm1898, %v4104, %v4108
        %v4111 = vshrl.u32 %v3789, 16
        %v4113 = vrot.slane %v4111, 4
        %v4114 = vshll.u32 %v3789, 16
        %v4116 = vrot.slane %v4114, 5
        %v4117 = vor.u32 %v4113, %v4116
        %v4118 = vrot.slane %v4117, 4
        %v4120 = vshll.u32 %v3790, 16
        %v4122 = vrot.slane %v4120, 5
        %v4123 = vsel %vm1898, %v4118, %v4122
        %v4124 = vshrl.u32 %v3790, 16
        %v4126 = vrot.slane %v4124, 4
        %v4127 = vor.u32 %v4126, %v4122
        %v4128 = vrot.slane %v4127, 4
        %v4130 = vshll.u32 %v3791, 16
        %v4132 = vrot.slane %v4130, 5
        %v4133 = vsel %vm1898, %v4128, %v4132
        %v4135 = vshrl.u32 %v3792, 16
        %v4137 = vrot.slane %v4135, 4
        %v4138 = vshll.u32 %v3792, 16
        %v4140 = vrot.slane %v4138, 5
        %v4141 = vor.u32 %v4137, %v4140
        %v4142 = vrot.slane %v4141, 4
        %v4144 = vshll.u32 %v3793, 16
        %v4146 = vrot.slane %v4144, 5
        %v4147 = vsel %vm1898, %v4142, %v4146
        %v4148 = vshrl.u32 %v3793, 16
        %v4150 = vrot.slane %v4148, 4
        %v4151 = vor.u32 %v4150, %v4146
        %v4152 = vrot.slane %v4151, 4
        %v4154 = vshll.u32 %v3794, 16
        %v4156 = vrot.slane %v4154, 5
        %v4157 = vsel %vm1898, %v4152, %v4156
        %v4159 = vshrl.u32 %v3795, 16
        %v4161 = vrot.slane %v4159, 4
        %v4162 = vshll.u32 %v3795, 16
        %v4164 = vrot.slane %v4162, 5
        %v4165 = vor.u32 %v4161, %v4164
        %v4166 = vrot.slane %v4165, 4
        %v4168 = vshll.u32 %v3796, 16
        %v4170 = vrot.slane %v4168, 5
        %v4171 = vsel %vm1898, %v4166, %v4170
        %v4172 = vshrl.u32 %v3796, 16
        %v4174 = vrot.slane %v4172, 4
        %v4175 = vor.u32 %v4174, %v4170
        %v4176 = vrot.slane %v4175, 4
        %v4178 = vshll.u32 %v3797, 16
        %v4180 = vrot.slane %v4178, 5
        %v4181 = vsel %vm1898, %v4176, %v4180
        %s4182 = scalar_lea.vmem [#allocation8], 256
        %v4183 = vld [vmem:[%s4182] sm:$0xf]
        %v4184 = vld [vmem:[%s4182 + $0x4] sm:$0xf]
        %v4185 = vld [vmem:[%s4182 + $0x8] sm:$0xf]
        %v4186 = vld [vmem:[%s4182 + $0xc] sm:$0xf]
        %v4187 = vld [vmem:[%s4182 + $0x10] sm:$0xf]
        %v4188 = vld [vmem:[%s4182 + $0x14] sm:$0xf]
        %v4189 = vld [vmem:[%s4182 + $0x18] sm:$0xf]
        %v4190 = vld [vmem:[%s4182 + $0x1c] sm:$0xf]
        %v4191 = vld [vmem:[%s4182 + $0x20] sm:$0xf]
        %v4192 = vld [vmem:[%s4182 + $0x24] sm:$0xf]
        %v4193 = vld [vmem:[%s4182 + $0x28] sm:$0xf]
        %v4194 = vld [vmem:[%s4182 + $0x2c] sm:$0xf]
        %v4195 = vld [vmem:[%s4182 + $0x30] sm:$0xf]
        %v4196 = vld [vmem:[%s4182 + $0x34] sm:$0xf]
        %v4197 = vld [vmem:[%s4182 + $0x38] sm:$0xf]
        %v4198 = vld [vmem:[%s4182 + $0x3c] sm:$0xf]
        %v4199 = vunpack.c.l.b16 %v3811
        %v4200 = vunpack.c.l.b16 %v3821
        %v4201 = vunpack.c.l.b16 %v3835
        %v4202 = vunpack.c.l.b16 %v3845
        %v4203 = vunpack.c.l.b16 %v3859
        %v4204 = vunpack.c.l.b16 %v3869
        %v4205 = vunpack.c.l.b16 %v3883
        %v4206 = vunpack.c.l.b16 %v3893
        %v4207 = vunpack.c.l.b16 %v3907
        %v4208 = vunpack.c.l.b16 %v3917
        %v4209 = vunpack.c.l.b16 %v3931
        %v4210 = vunpack.c.l.b16 %v3941
        %v4211 = vunpack.c.l.b16 %v3955
        %v4212 = vunpack.c.l.b16 %v3965
        %v4213 = vunpack.c.l.b16 %v3979
        %v4214 = vunpack.c.l.b16 %v3989
        %v4215 = vunpack.c.l.b16 %v4003
        %v4216 = vunpack.c.l.b16 %v4013
        %v4217 = vunpack.c.l.b16 %v4027
        %v4218 = vunpack.c.l.b16 %v4037
        %v4219 = vunpack.c.l.b16 %v4051
        %v4220 = vunpack.c.l.b16 %v4061
        %v4221 = vunpack.c.l.b16 %v4075
        %v4222 = vunpack.c.l.b16 %v4085
        %v4223 = vunpack.c.l.b16 %v4099
        %v4224 = vunpack.c.l.b16 %v4109
        %v4225 = vunpack.c.l.b16 %v4123
        %v4226 = vunpack.c.l.b16 %v4133
        %v4227 = vunpack.c.l.b16 %v4147
        %v4228 = vunpack.c.l.b16 %v4157
        %v4229 = vunpack.c.l.b16 %v4171
        %v4230 = vunpack.c.l.b16 %v4181
        %v4231 = vpack.c.b16 %v4200, %v4199
        %v4232 = vpack.c.b16 %v4202, %v4201
        %v4233 = vpack.c.b16 %v4204, %v4203
        %v4234 = vpack.c.b16 %v4206, %v4205
        %v4235 = vpack.c.b16 %v4208, %v4207
        %v4236 = vpack.c.b16 %v4210, %v4209
        %v4237 = vpack.c.b16 %v4212, %v4211
        %v4238 = vpack.c.b16 %v4214, %v4213
        %v4239 = vpack.c.b16 %v4216, %v4215
        %v4240 = vpack.c.b16 %v4218, %v4217
        %v4241 = vpack.c.b16 %v4220, %v4219
        %v4242 = vpack.c.b16 %v4222, %v4221
        %v4243 = vpack.c.b16 %v4224, %v4223
        %v4244 = vpack.c.b16 %v4226, %v4225
        %v4245 = vpack.c.b16 %v4228, %v4227
        %v4246 = vpack.c.b16 %v4230, %v4229
        %v4279 = vunpack.c.l.b16 %v4183
        %v4280 = vunpack.c.l.b16 %v4184
        %v4281 = vunpack.c.l.b16 %v4185
        %v4282 = vunpack.c.l.b16 %v4186
        %v4283 = vunpack.c.l.b16 %v4187
        %v4284 = vunpack.c.l.b16 %v4188
        %v4285 = vunpack.c.l.b16 %v4189
        %v4286 = vunpack.c.l.b16 %v4190
        %v4287 = vunpack.c.l.b16 %v4191
        %v4288 = vunpack.c.l.b16 %v4192
        %v4289 = vunpack.c.l.b16 %v4193
        %v4290 = vunpack.c.l.b16 %v4194
        %v4291 = vunpack.c.l.b16 %v4195
        %v4292 = vunpack.c.l.b16 %v4196
        %v4293 = vunpack.c.l.b16 %v4197
        %v4294 = vunpack.c.l.b16 %v4198
        %v4295 = vpack.c.b16 %v4280, %v4279
        %v4296 = vpack.c.b16 %v4282, %v4281
        %v4297 = vpack.c.b16 %v4284, %v4283
        %v4298 = vpack.c.b16 %v4286, %v4285
        %v4299 = vpack.c.b16 %v4288, %v4287
        %v4300 = vpack.c.b16 %v4290, %v4289
        %v4301 = vpack.c.b16 %v4292, %v4291
        %v4302 = vpack.c.b16 %v4294, %v4293
        %4311 = vmatprep.subr.bf16.mxu0 0
        %4312 = vmatpush1.bf16.msra.mxu0 %v4302
        %4313 = vmatprep.subr.bf16.mxu0 0
        %4314 = vmatpush1.bf16.msra.mxu0 %v4301
        %4315 = vmatprep.subr.bf16.mxu0 0
        %4316 = vmatpush1.bf16.msra.mxu0 %v4300
        %4317 = vmatprep.subr.bf16.mxu0 0
        %4318 = vmatpush1.bf16.msra.mxu0 %v4299
        %4319 = vmatprep.subr.bf16.mxu0 0
        %4320 = vmatpush1.bf16.msra.mxu0 %v4298
        %4321 = vmatprep.subr.bf16.mxu0 0
        %4322 = vmatpush1.bf16.msra.mxu0 %v4297
        %4323 = vmatprep.subr.bf16.mxu0 0
        %4324 = vmatpush1.bf16.msra.mxu0 %v4296
        %4325 = vmatprep.subr.bf16.mxu0 0
        %4326 = vmatpush1.bf16.msra.mxu0 %v4295
        %4327 = vmatprep.subr.bf16.mxu0 0
        %4328 = vmatpush2.bf16.msra.mxu0 0
        %4329 = vmatprep.subr.bf16.mxu0 0
        %4330 = vmatpush2.bf16.msra.mxu0 0
        %4331 = vmatprep.subr.bf16.mxu0 0
        %4332 = vmatpush2.bf16.msra.mxu0 0
        %4333 = vmatprep.subr.bf16.mxu0 0
        %4334 = vmatpush2.bf16.msra.mxu0 0
        %4335 = vmatprep.subr.bf16.mxu0 0
        %4336 = vmatpush2.bf16.msra.mxu0 0
        %4337 = vmatprep.subr.bf16.mxu0 0
        %4338 = vmatpush2.bf16.msra.mxu0 0
        %4339 = vmatprep.subr.bf16.mxu0 0
        %4340 = vmatpush2.bf16.msra.mxu0 0
        %4341 = vmatprep.subr.bf16.mxu0 0
        %4342 = vmatpush2.bf16.msra.mxu0 0
        %4343 = vmatprep.mubr.bf16.mxu0 0
        %4344 = vmatmul.mubr.bf16.gmra.mxu0 %v4231
        %v4345 = vpop.f32.mrf.mxu0
        %v4346 = vadd.f32 0.0, %v4345
        %v4347 = vpop.f32.mrf.mxu0
        %v4348 = vpop.f32.mrf.mxu0
        %v4349 = vadd.f32 0.0, %v4348
        %v4350 = vpop.f32.mrf.mxu0
        %4351 = vmatprep.mubr.bf16.mxu0 0
        %4352 = vmatmul.mubr.bf16.gmra.mxu0 %v4232
        %v4353 = vpop.f32.mrf.mxu0
        %v4354 = vadd.f32 0.0, %v4353
        %v4355 = vpop.f32.mrf.mxu0
        %v4356 = vpop.f32.mrf.mxu0
        %v4357 = vadd.f32 0.0, %v4356
        %v4358 = vpop.f32.mrf.mxu0
        %4359 = vmatprep.mubr.bf16.mxu0 0
        %4360 = vmatmul.mubr.bf16.gmra.mxu0 %v4233
        %v4361 = vpop.f32.mrf.mxu0
        %v4362 = vadd.f32 0.0, %v4361
        %v4363 = vpop.f32.mrf.mxu0
        %v4364 = vpop.f32.mrf.mxu0
        %v4365 = vadd.f32 0.0, %v4364
        %v4366 = vpop.f32.mrf.mxu0
        %4367 = vmatprep.mubr.bf16.mxu0 0
        %4368 = vmatmul.mubr.bf16.gmra.mxu0 %v4234
        %v4369 = vpop.f32.mrf.mxu0
        %v4370 = vadd.f32 0.0, %v4369
        %v4371 = vpop.f32.mrf.mxu0
        %v4372 = vpop.f32.mrf.mxu0
        %v4373 = vadd.f32 0.0, %v4372
        %v4374 = vpop.f32.mrf.mxu0
        %4375 = vmatprep.mubr.bf16.mxu0 0
        %4376 = vmatmul.mubr.bf16.gmra.mxu0 %v4235
        %v4377 = vpop.f32.mrf.mxu0
        %v4378 = vadd.f32 0.0, %v4377
        %v4379 = vpop.f32.mrf.mxu0
        %v4380 = vpop.f32.mrf.mxu0
        %v4381 = vadd.f32 0.0, %v4380
        %v4382 = vpop.f32.mrf.mxu0
        %4383 = vmatprep.mubr.bf16.mxu0 0
        %4384 = vmatmul.mubr.bf16.gmra.mxu0 %v4236
        %v4385 = vpop.f32.mrf.mxu0
        %v4386 = vadd.f32 0.0, %v4385
        %v4387 = vpop.f32.mrf.mxu0
        %v4388 = vpop.f32.mrf.mxu0
        %v4389 = vadd.f32 0.0, %v4388
        %v4390 = vpop.f32.mrf.mxu0
        %4391 = vmatprep.mubr.bf16.mxu0 0
        %4392 = vmatmul.mubr.bf16.gmra.mxu0 %v4237
        %v4393 = vpop.f32.mrf.mxu0
        %v4394 = vadd.f32 0.0, %v4393
        %v4395 = vpop.f32.mrf.mxu0
        %v4396 = vpop.f32.mrf.mxu0
        %v4397 = vadd.f32 0.0, %v4396
        %v4398 = vpop.f32.mrf.mxu0
        %4399 = vmatprep.mubr.bf16.mxu0 0
        %4400 = vmatmul.mubr.bf16.gmra.mxu0 %v4238
        %v4401 = vpop.f32.mrf.mxu0
        %v4402 = vadd.f32 0.0, %v4401
        %v4403 = vpop.f32.mrf.mxu0
        %v4404 = vpop.f32.mrf.mxu0
        %v4405 = vadd.f32 0.0, %v4404
        %v4406 = vpop.f32.mrf.mxu0
        %4407 = vmatprep.mubr.bf16.mxu0 0
        %4408 = vmatmul.mubr.bf16.gmra.mxu0 %v4239
        %v4409 = vpop.f32.mrf.mxu0
        %v4410 = vadd.f32 0.0, %v4409
        %v4411 = vpop.f32.mrf.mxu0
        %v4412 = vpop.f32.mrf.mxu0
        %v4413 = vadd.f32 0.0, %v4412
        %v4414 = vpop.f32.mrf.mxu0
        %4415 = vmatprep.mubr.bf16.mxu0 0
        %4416 = vmatmul.mubr.bf16.gmra.mxu0 %v4240
        %v4417 = vpop.f32.mrf.mxu0
        %v4418 = vadd.f32 0.0, %v4417
        %v4419 = vpop.f32.mrf.mxu0
        %v4420 = vpop.f32.mrf.mxu0
        %v4421 = vadd.f32 0.0, %v4420
        %v4422 = vpop.f32.mrf.mxu0
        %4423 = vmatprep.mubr.bf16.mxu0 0
        %4424 = vmatmul.mubr.bf16.gmra.mxu0 %v4241
        %v4425 = vpop.f32.mrf.mxu0
        %v4426 = vadd.f32 0.0, %v4425
        %v4427 = vpop.f32.mrf.mxu0
        %v4428 = vpop.f32.mrf.mxu0
        %v4429 = vadd.f32 0.0, %v4428
        %v4430 = vpop.f32.mrf.mxu0
        %4431 = vmatprep.mubr.bf16.mxu0 0
        %4432 = vmatmul.mubr.bf16.gmra.mxu0 %v4242
        %v4433 = vpop.f32.mrf.mxu0
        %v4434 = vadd.f32 0.0, %v4433
        %v4435 = vpop.f32.mrf.mxu0
        %v4436 = vpop.f32.mrf.mxu0
        %v4437 = vadd.f32 0.0, %v4436
        %v4438 = vpop.f32.mrf.mxu0
        %4439 = vmatprep.mubr.bf16.mxu0 0
        %4440 = vmatmul.mubr.bf16.gmra.mxu0 %v4243
        %v4441 = vpop.f32.mrf.mxu0
        %v4442 = vadd.f32 0.0, %v4441
        %v4443 = vpop.f32.mrf.mxu0
        %v4444 = vpop.f32.mrf.mxu0
        %v4445 = vadd.f32 0.0, %v4444
        %v4446 = vpop.f32.mrf.mxu0
        %4447 = vmatprep.mubr.bf16.mxu0 0
        %4448 = vmatmul.mubr.bf16.gmra.mxu0 %v4244
        %v4449 = vpop.f32.mrf.mxu0
        %v4450 = vadd.f32 0.0, %v4449
        %v4451 = vpop.f32.mrf.mxu0
        %v4452 = vpop.f32.mrf.mxu0
        %v4453 = vadd.f32 0.0, %v4452
        %v4454 = vpop.f32.mrf.mxu0
        %4455 = vmatprep.mubr.bf16.mxu0 0
        %4456 = vmatmul.mubr.bf16.gmra.mxu0 %v4245
        %v4457 = vpop.f32.mrf.mxu0
        %v4458 = vadd.f32 0.0, %v4457
        %v4459 = vpop.f32.mrf.mxu0
        %v4460 = vpop.f32.mrf.mxu0
        %v4461 = vadd.f32 0.0, %v4460
        %v4462 = vpop.f32.mrf.mxu0
        %4463 = vmatprep.mubr.bf16.mxu0 0
        %4464 = vmatmul.mubr.bf16.gmra.mxu0 %v4246
        %v4465 = vpop.f32.mrf.mxu0
        %v4466 = vadd.f32 0.0, %v4465
        %v4467 = vpop.f32.mrf.mxu0
        %v4468 = vpop.f32.mrf.mxu0
        %v4469 = vadd.f32 0.0, %v4468
        %v4470 = vpop.f32.mrf.mxu0
        %4471 = vdwg.mxu0
        %v4472 = vadd.f32 %v3718, %v4346
        %v4473 = vadd.f32 %v3719, %v4349
        %v4474 = vadd.f32 %v3720, %v4354
        %v4475 = vadd.f32 %v3721, %v4357
        %v4476 = vadd.f32 %v3722, %v4362
        %v4477 = vadd.f32 %v3723, %v4365
        %v4478 = vadd.f32 %v3724, %v4370
        %v4479 = vadd.f32 %v3725, %v4373
        %v4480 = vadd.f32 %v3726, %v4378
        %v4481 = vadd.f32 %v3727, %v4381
        %v4482 = vadd.f32 %v3728, %v4386
        %v4483 = vadd.f32 %v3729, %v4389
        %v4484 = vadd.f32 %v3730, %v4394
        %v4485 = vadd.f32 %v3731, %v4397
        %v4486 = vadd.f32 %v3732, %v4402
        %v4487 = vadd.f32 %v3733, %v4405
        %v4488 = vadd.f32 %v3734, %v4410
        %v4489 = vadd.f32 %v3735, %v4413
        %v4490 = vadd.f32 %v3736, %v4418
        %v4491 = vadd.f32 %v3737, %v4421
        %v4492 = vadd.f32 %v3738, %v4426
        %v4493 = vadd.f32 %v3739, %v4429
        %v4494 = vadd.f32 %v3740, %v4434
        %v4495 = vadd.f32 %v3741, %v4437
        %v4496 = vadd.f32 %v3742, %v4442
        %v4497 = vadd.f32 %v3743, %v4445
        %v4498 = vadd.f32 %v3744, %v4450
        %v4499 = vadd.f32 %v3745, %v4453
        %v4500 = vadd.f32 %v3746, %v4458
        %v4501 = vadd.f32 %v3747, %v4461
        %v4502 = vadd.f32 %v3748, %v4466
        %v4503 = vadd.f32 %v3749, %v4469
        %v4504 = vld [vmem:[%s3363] sm:$0xe]
        %v4505 = vld [vmem:[%s3363 + $0xc] sm:$0xe]
        %v4506 = vld [vmem:[%s3363 + $0x18] sm:$0xe]
        %v4507 = vld [vmem:[%s3363 + $0x24] sm:$0xe]
        %v4508 = vld [vmem:[%s3363 + $0x30] sm:$0xe]
        %v4509 = vld [vmem:[%s3363 + $0x3c] sm:$0xe]
        %v4510 = vld [vmem:[%s3363 + $0x48] sm:$0xe]
        %v4511 = vld [vmem:[%s3363 + $0x54] sm:$0xe]
        %v4512 = vld [vmem:[%s3363 + $0x60] sm:$0xe]
        %v4513 = vld [vmem:[%s3363 + $0x6c] sm:$0xe]
        %v4514 = vld [vmem:[%s3363 + $0x78] sm:$0xe]
        %v4515 = vld [vmem:[%s3363 + $0x84] sm:$0xe]
        %v4516 = vld [vmem:[%s3363 + $0x90] sm:$0xe]
        %v4517 = vld [vmem:[%s3363 + $0x9c] sm:$0xe]
        %v4518 = vld [vmem:[%s3363 + $0xa8] sm:$0xe]
        %v4519 = vld [vmem:[%s3363 + $0xb4] sm:$0xe]
        %v4568 = vrot.slane %v4504, 5
        %v4569 = vrot.slane %v4568, 4
        %v4570 = vrot.slane %v3751, 5
        %v4571 = vsel %vm2928, %v4569, %v4570
        %v4572 = vrot.slane %v4570, 4
        %v4573 = vrot.slane %v3752, 5
        %v4574 = vsel %vm2928, %v4572, %v4573
        %v4575 = vrot.slane %v4505, 5
        %v4576 = vrot.slane %v4575, 4
        %v4577 = vrot.slane %v3754, 5
        %v4578 = vsel %vm2928, %v4576, %v4577
        %v4579 = vrot.slane %v4577, 4
        %v4580 = vrot.slane %v3755, 5
        %v4581 = vsel %vm2928, %v4579, %v4580
        %v4582 = vrot.slane %v4506, 5
        %v4583 = vrot.slane %v4582, 4
        %v4584 = vrot.slane %v3757, 5
        %v4585 = vsel %vm2928, %v4583, %v4584
        %v4586 = vrot.slane %v4584, 4
        %v4587 = vrot.slane %v3758, 5
        %v4588 = vsel %vm2928, %v4586, %v4587
        %v4589 = vrot.slane %v4507, 5
        %v4590 = vrot.slane %v4589, 4
        %v4591 = vrot.slane %v3760, 5
        %v4592 = vsel %vm2928, %v4590, %v4591
        %v4593 = vrot.slane %v4591, 4
        %v4594 = vrot.slane %v3761, 5
        %v4595 = vsel %vm2928, %v4593, %v4594
        %v4596 = vrot.slane %v4508, 5
        %v4597 = vrot.slane %v4596, 4
        %v4598 = vrot.slane %v3763, 5
        %v4599 = vsel %vm2928, %v4597, %v4598
        %v4600 = vrot.slane %v4598, 4
        %v4601 = vrot.slane %v3764, 5
        %v4602 = vsel %vm2928, %v4600, %v4601
        %v4603 = vrot.slane %v4509, 5
        %v4604 = vrot.slane %v4603, 4
        %v4605 = vrot.slane %v3766, 5
        %v4606 = vsel %vm2928, %v4604, %v4605
        %v4607 = vrot.slane %v4605, 4
        %v4608 = vrot.slane %v3767, 5
        %v4609 = vsel %vm2928, %v4607, %v4608
        %v4610 = vrot.slane %v4510, 5
        %v4611 = vrot.slane %v4610, 4
        %v4612 = vrot.slane %v3769, 5
        %v4613 = vsel %vm2928, %v4611, %v4612
        %v4614 = vrot.slane %v4612, 4
        %v4615 = vrot.slane %v3770, 5
        %v4616 = vsel %vm2928, %v4614, %v4615
        %v4617 = vrot.slane %v4511, 5
        %v4618 = vrot.slane %v4617, 4
        %v4619 = vrot.slane %v3772, 5
        %v4620 = vsel %vm2928, %v4618, %v4619
        %v4621 = vrot.slane %v4619, 4
        %v4622 = vrot.slane %v3773, 5
        %v4623 = vsel %vm2928, %v4621, %v4622
        %v4624 = vrot.slane %v4512, 5
        %v4625 = vrot.slane %v4624, 4
        %v4626 = vrot.slane %v3775, 5
        %v4627 = vsel %vm2928, %v4625, %v4626
        %v4628 = vrot.slane %v4626, 4
        %v4629 = vrot.slane %v3776, 5
        %v4630 = vsel %vm2928, %v4628, %v4629
        %v4631 = vrot.slane %v4513, 5
        %v4632 = vrot.slane %v4631, 4
        %v4633 = vrot.slane %v3778, 5
        %v4634 = vsel %vm2928, %v4632, %v4633
        %v4635 = vrot.slane %v4633, 4
        %v4636 = vrot.slane %v3779, 5
        %v4637 = vsel %vm2928, %v4635, %v4636
        %v4638 = vrot.slane %v4514, 5
        %v4639 = vrot.slane %v4638, 4
        %v4640 = vrot.slane %v3781, 5
        %v4641 = vsel %vm2928, %v4639, %v4640
        %v4642 = vrot.slane %v4640, 4
        %v4643 = vrot.slane %v3782, 5
        %v4644 = vsel %vm2928, %v4642, %v4643
        %v4645 = vrot.slane %v4515, 5
        %v4646 = vrot.slane %v4645, 4
        %v4647 = vrot.slane %v3784, 5
        %v4648 = vsel %vm2928, %v4646, %v4647
        %v4649 = vrot.slane %v4647, 4
        %v4650 = vrot.slane %v3785, 5
        %v4651 = vsel %vm2928, %v4649, %v4650
        %v4652 = vrot.slane %v4516, 5
        %v4653 = vrot.slane %v4652, 4
        %v4654 = vrot.slane %v3787, 5
        %v4655 = vsel %vm2928, %v4653, %v4654
        %v4656 = vrot.slane %v4654, 4
        %v4657 = vrot.slane %v3788, 5
        %v4658 = vsel %vm2928, %v4656, %v4657
        %v4659 = vrot.slane %v4517, 5
        %v4660 = vrot.slane %v4659, 4
        %v4661 = vrot.slane %v3790, 5
        %v4662 = vsel %vm2928, %v4660, %v4661
        %v4663 = vrot.slane %v4661, 4
        %v4664 = vrot.slane %v3791, 5
        %v4665 = vsel %vm2928, %v4663, %v4664
        %v4666 = vrot.slane %v4518, 5
        %v4667 = vrot.slane %v4666, 4
        %v4668 = vrot.slane %v3793, 5
        %v4669 = vsel %vm2928, %v4667, %v4668
        %v4670 = vrot.slane %v4668, 4
        %v4671 = vrot.slane %v3794, 5
        %v4672 = vsel %vm2928, %v4670, %v4671
        %v4673 = vrot.slane %v4519, 5
        %v4674 = vrot.slane %v4673, 4
        %v4675 = vrot.slane %v3796, 5
        %v4676 = vsel %vm2928, %v4674, %v4675
        %v4677 = vrot.slane %v4675, 4
        %v4678 = vrot.slane %v3797, 5
        %v4679 = vsel %vm2928, %v4677, %v4678
        %s4680 = scalar_lea.vmem [#allocation8], 320
        %v4681 = vld [vmem:[%s4680] sm:$0xf]
        %v4682 = vld [vmem:[%s4680 + $0x4] sm:$0xf]
        %v4683 = vld [vmem:[%s4680 + $0x8] sm:$0xf]
        %v4684 = vld [vmem:[%s4680 + $0xc] sm:$0xf]
        %v4685 = vld [vmem:[%s4680 + $0x10] sm:$0xf]
        %v4686 = vld [vmem:[%s4680 + $0x14] sm:$0xf]
        %v4687 = vld [vmem:[%s4680 + $0x18] sm:$0xf]
        %v4688 = vld [vmem:[%s4680 + $0x1c] sm:$0xf]
        %v4689 = vld [vmem:[%s4680 + $0x20] sm:$0xf]
        %v4690 = vld [vmem:[%s4680 + $0x24] sm:$0xf]
        %v4691 = vld [vmem:[%s4680 + $0x28] sm:$0xf]
        %v4692 = vld [vmem:[%s4680 + $0x2c] sm:$0xf]
        %v4693 = vld [vmem:[%s4680 + $0x30] sm:$0xf]
        %v4694 = vld [vmem:[%s4680 + $0x34] sm:$0xf]
        %v4695 = vld [vmem:[%s4680 + $0x38] sm:$0xf]
        %v4696 = vld [vmem:[%s4680 + $0x3c] sm:$0xf]
        %v4697 = vunpack.c.l.b16 %v4571
        %v4698 = vunpack.c.l.b16 %v4574
        %v4699 = vunpack.c.l.b16 %v4578
        %v4700 = vunpack.c.l.b16 %v4581
        %v4701 = vunpack.c.l.b16 %v4585
        %v4702 = vunpack.c.l.b16 %v4588
        %v4703 = vunpack.c.l.b16 %v4592
        %v4704 = vunpack.c.l.b16 %v4595
        %v4705 = vunpack.c.l.b16 %v4599
        %v4706 = vunpack.c.l.b16 %v4602
        %v4707 = vunpack.c.l.b16 %v4606
        %v4708 = vunpack.c.l.b16 %v4609
        %v4709 = vunpack.c.l.b16 %v4613
        %v4710 = vunpack.c.l.b16 %v4616
        %v4711 = vunpack.c.l.b16 %v4620
        %v4712 = vunpack.c.l.b16 %v4623
        %v4713 = vunpack.c.l.b16 %v4627
        %v4714 = vunpack.c.l.b16 %v4630
        %v4715 = vunpack.c.l.b16 %v4634
        %v4716 = vunpack.c.l.b16 %v4637
        %v4717 = vunpack.c.l.b16 %v4641
        %v4718 = vunpack.c.l.b16 %v4644
        %v4719 = vunpack.c.l.b16 %v4648
        %v4720 = vunpack.c.l.b16 %v4651
        %v4721 = vunpack.c.l.b16 %v4655
        %v4722 = vunpack.c.l.b16 %v4658
        %v4723 = vunpack.c.l.b16 %v4662
        %v4724 = vunpack.c.l.b16 %v4665
        %v4725 = vunpack.c.l.b16 %v4669
        %v4726 = vunpack.c.l.b16 %v4672
        %v4727 = vunpack.c.l.b16 %v4676
        %v4728 = vunpack.c.l.b16 %v4679
        %v4729 = vpack.c.b16 %v4698, %v4697
        %v4730 = vpack.c.b16 %v4700, %v4699
        %v4731 = vpack.c.b16 %v4702, %v4701
        %v4732 = vpack.c.b16 %v4704, %v4703
        %v4733 = vpack.c.b16 %v4706, %v4705
        %v4734 = vpack.c.b16 %v4708, %v4707
        %v4735 = vpack.c.b16 %v4710, %v4709
        %v4736 = vpack.c.b16 %v4712, %v4711
        %v4737 = vpack.c.b16 %v4714, %v4713
        %v4738 = vpack.c.b16 %v4716, %v4715
        %v4739 = vpack.c.b16 %v4718, %v4717
        %v4740 = vpack.c.b16 %v4720, %v4719
        %v4741 = vpack.c.b16 %v4722, %v4721
        %v4742 = vpack.c.b16 %v4724, %v4723
        %v4743 = vpack.c.b16 %v4726, %v4725
        %v4744 = vpack.c.b16 %v4728, %v4727
        %v4777 = vunpack.c.l.b16 %v4681
        %v4778 = vunpack.c.l.b16 %v4682
        %v4779 = vunpack.c.l.b16 %v4683
        %v4780 = vunpack.c.l.b16 %v4684
        %v4781 = vunpack.c.l.b16 %v4685
        %v4782 = vunpack.c.l.b16 %v4686
        %v4783 = vunpack.c.l.b16 %v4687
        %v4784 = vunpack.c.l.b16 %v4688
        %v4785 = vunpack.c.l.b16 %v4689
        %v4786 = vunpack.c.l.b16 %v4690
        %v4787 = vunpack.c.l.b16 %v4691
        %v4788 = vunpack.c.l.b16 %v4692
        %v4789 = vunpack.c.l.b16 %v4693
        %v4790 = vunpack.c.l.b16 %v4694
        %v4791 = vunpack.c.l.b16 %v4695
        %v4792 = vunpack.c.l.b16 %v4696
        %v4793 = vpack.c.b16 %v4778, %v4777
        %v4794 = vpack.c.b16 %v4780, %v4779
        %v4795 = vpack.c.b16 %v4782, %v4781
        %v4796 = vpack.c.b16 %v4784, %v4783
        %v4797 = vpack.c.b16 %v4786, %v4785
        %v4798 = vpack.c.b16 %v4788, %v4787
        %v4799 = vpack.c.b16 %v4790, %v4789
        %v4800 = vpack.c.b16 %v4792, %v4791
        %4809 = vmatprep.subr.bf16.mxu0 0
        %4810 = vmatpush1.bf16.msra.mxu0 %v4800
        %4811 = vmatprep.subr.bf16.mxu0 0
        %4812 = vmatpush1.bf16.msra.mxu0 %v4799
        %4813 = vmatprep.subr.bf16.mxu0 0
        %4814 = vmatpush1.bf16.msra.mxu0 %v4798
        %4815 = vmatprep.subr.bf16.mxu0 0
        %4816 = vmatpush1.bf16.msra.mxu0 %v4797
        %4817 = vmatprep.subr.bf16.mxu0 0
        %4818 = vmatpush1.bf16.msra.mxu0 %v4796
        %4819 = vmatprep.subr.bf16.mxu0 0
        %4820 = vmatpush1.bf16.msra.mxu0 %v4795
        %4821 = vmatprep.subr.bf16.mxu0 0
        %4822 = vmatpush1.bf16.msra.mxu0 %v4794
        %4823 = vmatprep.subr.bf16.mxu0 0
        %4824 = vmatpush1.bf16.msra.mxu0 %v4793
        %4825 = vmatprep.subr.bf16.mxu0 0
        %4826 = vmatpush2.bf16.msra.mxu0 0
        %4827 = vmatprep.subr.bf16.mxu0 0
        %4828 = vmatpush2.bf16.msra.mxu0 0
        %4829 = vmatprep.subr.bf16.mxu0 0
        %4830 = vmatpush2.bf16.msra.mxu0 0
        %4831 = vmatprep.subr.bf16.mxu0 0
        %4832 = vmatpush2.bf16.msra.mxu0 0
        %4833 = vmatprep.subr.bf16.mxu0 0
        %4834 = vmatpush2.bf16.msra.mxu0 0
        %4835 = vmatprep.subr.bf16.mxu0 0
        %4836 = vmatpush2.bf16.msra.mxu0 0
        %4837 = vmatprep.subr.bf16.mxu0 0
        %4838 = vmatpush2.bf16.msra.mxu0 0
        %4839 = vmatprep.subr.bf16.mxu0 0
        %4840 = vmatpush2.bf16.msra.mxu0 0
        %4841 = vmatprep.mubr.bf16.mxu0 0
        %4842 = vmatmul.mubr.bf16.gmra.mxu0 %v4729
        %v4843 = vpop.f32.mrf.mxu0
        %v4844 = vadd.f32 0.0, %v4843
        %v4845 = vpop.f32.mrf.mxu0
        %v4846 = vpop.f32.mrf.mxu0
        %v4847 = vadd.f32 0.0, %v4846
        %v4848 = vpop.f32.mrf.mxu0
        %4849 = vmatprep.mubr.bf16.mxu0 0
        %4850 = vmatmul.mubr.bf16.gmra.mxu0 %v4730
        %v4851 = vpop.f32.mrf.mxu0
        %v4852 = vadd.f32 0.0, %v4851
        %v4853 = vpop.f32.mrf.mxu0
        %v4854 = vpop.f32.mrf.mxu0
        %v4855 = vadd.f32 0.0, %v4854
        %v4856 = vpop.f32.mrf.mxu0
        %4857 = vmatprep.mubr.bf16.mxu0 0
        %4858 = vmatmul.mubr.bf16.gmra.mxu0 %v4731
        %v4859 = vpop.f32.mrf.mxu0
        %v4860 = vadd.f32 0.0, %v4859
        %v4861 = vpop.f32.mrf.mxu0
        %v4862 = vpop.f32.mrf.mxu0
        %v4863 = vadd.f32 0.0, %v4862
        %v4864 = vpop.f32.mrf.mxu0
        %4865 = vmatprep.mubr.bf16.mxu0 0
        %4866 = vmatmul.mubr.bf16.gmra.mxu0 %v4732
        %v4867 = vpop.f32.mrf.mxu0
        %v4868 = vadd.f32 0.0, %v4867
        %v4869 = vpop.f32.mrf.mxu0
        %v4870 = vpop.f32.mrf.mxu0
        %v4871 = vadd.f32 0.0, %v4870
        %v4872 = vpop.f32.mrf.mxu0
        %4873 = vmatprep.mubr.bf16.mxu0 0
        %4874 = vmatmul.mubr.bf16.gmra.mxu0 %v4733
        %v4875 = vpop.f32.mrf.mxu0
        %v4876 = vadd.f32 0.0, %v4875
        %v4877 = vpop.f32.mrf.mxu0
        %v4878 = vpop.f32.mrf.mxu0
        %v4879 = vadd.f32 0.0, %v4878
        %v4880 = vpop.f32.mrf.mxu0
        %4881 = vmatprep.mubr.bf16.mxu0 0
        %4882 = vmatmul.mubr.bf16.gmra.mxu0 %v4734
        %v4883 = vpop.f32.mrf.mxu0
        %v4884 = vadd.f32 0.0, %v4883
        %v4885 = vpop.f32.mrf.mxu0
        %v4886 = vpop.f32.mrf.mxu0
        %v4887 = vadd.f32 0.0, %v4886
        %v4888 = vpop.f32.mrf.mxu0
        %4889 = vmatprep.mubr.bf16.mxu0 0
        %4890 = vmatmul.mubr.bf16.gmra.mxu0 %v4735
        %v4891 = vpop.f32.mrf.mxu0
        %v4892 = vadd.f32 0.0, %v4891
        %v4893 = vpop.f32.mrf.mxu0
        %v4894 = vpop.f32.mrf.mxu0
        %v4895 = vadd.f32 0.0, %v4894
        %v4896 = vpop.f32.mrf.mxu0
        %4897 = vmatprep.mubr.bf16.mxu0 0
        %4898 = vmatmul.mubr.bf16.gmra.mxu0 %v4736
        %v4899 = vpop.f32.mrf.mxu0
        %v4900 = vadd.f32 0.0, %v4899
        %v4901 = vpop.f32.mrf.mxu0
        %v4902 = vpop.f32.mrf.mxu0
        %v4903 = vadd.f32 0.0, %v4902
        %v4904 = vpop.f32.mrf.mxu0
        %4905 = vmatprep.mubr.bf16.mxu0 0
        %4906 = vmatmul.mubr.bf16.gmra.mxu0 %v4737
        %v4907 = vpop.f32.mrf.mxu0
        %v4908 = vadd.f32 0.0, %v4907
        %v4909 = vpop.f32.mrf.mxu0
        %v4910 = vpop.f32.mrf.mxu0
        %v4911 = vadd.f32 0.0, %v4910
        %v4912 = vpop.f32.mrf.mxu0
        %4913 = vmatprep.mubr.bf16.mxu0 0
        %4914 = vmatmul.mubr.bf16.gmra.mxu0 %v4738
        %v4915 = vpop.f32.mrf.mxu0
        %v4916 = vadd.f32 0.0, %v4915
        %v4917 = vpop.f32.mrf.mxu0
        %v4918 = vpop.f32.mrf.mxu0
        %v4919 = vadd.f32 0.0, %v4918
        %v4920 = vpop.f32.mrf.mxu0
        %4921 = vmatprep.mubr.bf16.mxu0 0
        %4922 = vmatmul.mubr.bf16.gmra.mxu0 %v4739
        %v4923 = vpop.f32.mrf.mxu0
        %v4924 = vadd.f32 0.0, %v4923
        %v4925 = vpop.f32.mrf.mxu0
        %v4926 = vpop.f32.mrf.mxu0
        %v4927 = vadd.f32 0.0, %v4926
        %v4928 = vpop.f32.mrf.mxu0
        %4929 = vmatprep.mubr.bf16.mxu0 0
        %4930 = vmatmul.mubr.bf16.gmra.mxu0 %v4740
        %v4931 = vpop.f32.mrf.mxu0
        %v4932 = vadd.f32 0.0, %v4931
        %v4933 = vpop.f32.mrf.mxu0
        %v4934 = vpop.f32.mrf.mxu0
        %v4935 = vadd.f32 0.0, %v4934
        %v4936 = vpop.f32.mrf.mxu0
        %4937 = vmatprep.mubr.bf16.mxu0 0
        %4938 = vmatmul.mubr.bf16.gmra.mxu0 %v4741
        %v4939 = vpop.f32.mrf.mxu0
        %v4940 = vadd.f32 0.0, %v4939
        %v4941 = vpop.f32.mrf.mxu0
        %v4942 = vpop.f32.mrf.mxu0
        %v4943 = vadd.f32 0.0, %v4942
        %v4944 = vpop.f32.mrf.mxu0
        %4945 = vmatprep.mubr.bf16.mxu0 0
        %4946 = vmatmul.mubr.bf16.gmra.mxu0 %v4742
        %v4947 = vpop.f32.mrf.mxu0
        %v4948 = vadd.f32 0.0, %v4947
        %v4949 = vpop.f32.mrf.mxu0
        %v4950 = vpop.f32.mrf.mxu0
        %v4951 = vadd.f32 0.0, %v4950
        %v4952 = vpop.f32.mrf.mxu0
        %4953 = vmatprep.mubr.bf16.mxu0 0
        %4954 = vmatmul.mubr.bf16.gmra.mxu0 %v4743
        %v4955 = vpop.f32.mrf.mxu0
        %v4956 = vadd.f32 0.0, %v4955
        %v4957 = vpop.f32.mrf.mxu0
        %v4958 = vpop.f32.mrf.mxu0
        %v4959 = vadd.f32 0.0, %v4958
        %v4960 = vpop.f32.mrf.mxu0
        %4961 = vmatprep.mubr.bf16.mxu0 0
        %4962 = vmatmul.mubr.bf16.gmra.mxu0 %v4744
        %v4963 = vpop.f32.mrf.mxu0
        %v4964 = vadd.f32 0.0, %v4963
        %v4965 = vpop.f32.mrf.mxu0
        %v4966 = vpop.f32.mrf.mxu0
        %v4967 = vadd.f32 0.0, %v4966
        %v4968 = vpop.f32.mrf.mxu0
        %4969 = vdwg.mxu0
        %v4970 = vadd.f32 %v4472, %v4844
        %v4971 = vadd.f32 %v4473, %v4847
        %v4972 = vadd.f32 %v4474, %v4852
        %v4973 = vadd.f32 %v4475, %v4855
        %v4974 = vadd.f32 %v4476, %v4860
        %v4975 = vadd.f32 %v4477, %v4863
        %v4976 = vadd.f32 %v4478, %v4868
        %v4977 = vadd.f32 %v4479, %v4871
        %v4978 = vadd.f32 %v4480, %v4876
        %v4979 = vadd.f32 %v4481, %v4879
        %v4980 = vadd.f32 %v4482, %v4884
        %v4981 = vadd.f32 %v4483, %v4887
        %v4982 = vadd.f32 %v4484, %v4892
        %v4983 = vadd.f32 %v4485, %v4895
        %v4984 = vadd.f32 %v4486, %v4900
        %v4985 = vadd.f32 %v4487, %v4903
        %v4986 = vadd.f32 %v4488, %v4908
        %v4987 = vadd.f32 %v4489, %v4911
        %v4988 = vadd.f32 %v4490, %v4916
        %v4989 = vadd.f32 %v4491, %v4919
        %v4990 = vadd.f32 %v4492, %v4924
        %v4991 = vadd.f32 %v4493, %v4927
        %v4992 = vadd.f32 %v4494, %v4932
        %v4993 = vadd.f32 %v4495, %v4935
        %v4994 = vadd.f32 %v4496, %v4940
        %v4995 = vadd.f32 %v4497, %v4943
        %v4996 = vadd.f32 %v4498, %v4948
        %v4997 = vadd.f32 %v4499, %v4951
        %v4998 = vadd.f32 %v4500, %v4956
        %v4999 = vadd.f32 %v4501, %v4959
        %v5000 = vadd.f32 %v4502, %v4964
        %v5001 = vadd.f32 %v4503, %v4967
        %s5002 = scalar_lea.vmem [#allocation2], 24
        %v5003 = vld [vmem:[%s5002] sm:$0xf]
        %v5004 = vld [vmem:[%s5002 + $0x4] sm:$0xf]
        %v5005 = vld [vmem:[%s5002 + $0xc] sm:$0xf]
        %v5006 = vld [vmem:[%s5002 + $0x10] sm:$0xf]
        %v5007 = vld [vmem:[%s5002 + $0x18] sm:$0xf]
        %v5008 = vld [vmem:[%s5002 + $0x1c] sm:$0xf]
        %v5009 = vld [vmem:[%s5002 + $0x24] sm:$0xf]
        %v5010 = vld [vmem:[%s5002 + $0x28] sm:$0xf]
        %v5011 = vld [vmem:[%s5002 + $0x30] sm:$0xf]
        %v5012 = vld [vmem:[%s5002 + $0x34] sm:$0xf]
        %v5013 = vld [vmem:[%s5002 + $0x3c] sm:$0xf]
        %v5014 = vld [vmem:[%s5002 + $0x40] sm:$0xf]
        %v5015 = vld [vmem:[%s5002 + $0x48] sm:$0xf]
        %v5016 = vld [vmem:[%s5002 + $0x4c] sm:$0xf]
        %v5017 = vld [vmem:[%s5002 + $0x54] sm:$0xf]
        %v5018 = vld [vmem:[%s5002 + $0x58] sm:$0xf]
        %v5019 = vld [vmem:[%s5002 + $0x60] sm:$0xf]
        %v5020 = vld [vmem:[%s5002 + $0x64] sm:$0xf]
        %v5021 = vld [vmem:[%s5002 + $0x6c] sm:$0xf]
        %v5022 = vld [vmem:[%s5002 + $0x70] sm:$0xf]
        %v5023 = vld [vmem:[%s5002 + $0x78] sm:$0xf]
        %v5024 = vld [vmem:[%s5002 + $0x7c] sm:$0xf]
        %v5025 = vld [vmem:[%s5002 + $0x84] sm:$0xf]
        %v5026 = vld [vmem:[%s5002 + $0x88] sm:$0xf]
        %v5027 = vld [vmem:[%s5002 + $0x90] sm:$0xf]
        %v5028 = vld [vmem:[%s5002 + $0x94] sm:$0xf]
        %v5029 = vld [vmem:[%s5002 + $0x9c] sm:$0xf]
        %v5030 = vld [vmem:[%s5002 + $0xa0] sm:$0xf]
        %v5031 = vld [vmem:[%s5002 + $0xa8] sm:$0xf]
        %v5032 = vld [vmem:[%s5002 + $0xac] sm:$0xf]
        %v5033 = vld [vmem:[%s5002 + $0xb4] sm:$0xf]
        %v5034 = vld [vmem:[%s5002 + $0xb8] sm:$0xf]
        %s5035 = scalar_lea.vmem [#allocation8], 384
        %v5036 = vld [vmem:[%s5035] sm:$0xf]
        %v5037 = vld [vmem:[%s5035 + $0x4] sm:$0xf]
        %v5038 = vld [vmem:[%s5035 + $0x8] sm:$0xf]
        %v5039 = vld [vmem:[%s5035 + $0xc] sm:$0xf]
        %v5040 = vld [vmem:[%s5035 + $0x10] sm:$0xf]
        %v5041 = vld [vmem:[%s5035 + $0x14] sm:$0xf]
        %v5042 = vld [vmem:[%s5035 + $0x18] sm:$0xf]
        %v5043 = vld [vmem:[%s5035 + $0x1c] sm:$0xf]
        %v5044 = vld [vmem:[%s5035 + $0x20] sm:$0xf]
        %v5045 = vld [vmem:[%s5035 + $0x24] sm:$0xf]
        %v5046 = vld [vmem:[%s5035 + $0x28] sm:$0xf]
        %v5047 = vld [vmem:[%s5035 + $0x2c] sm:$0xf]
        %v5048 = vld [vmem:[%s5035 + $0x30] sm:$0xf]
        %v5049 = vld [vmem:[%s5035 + $0x34] sm:$0xf]
        %v5050 = vld [vmem:[%s5035 + $0x38] sm:$0xf]
        %v5051 = vld [vmem:[%s5035 + $0x3c] sm:$0xf]
        %v5084 = vunpack.c.l.b16 %v5003
        %v5085 = vunpack.c.l.b16 %v5004
        %v5086 = vunpack.c.l.b16 %v5005
        %v5087 = vunpack.c.l.b16 %v5006
        %v5088 = vunpack.c.l.b16 %v5007
        %v5089 = vunpack.c.l.b16 %v5008
        %v5090 = vunpack.c.l.b16 %v5009
        %v5091 = vunpack.c.l.b16 %v5010
        %v5092 = vunpack.c.l.b16 %v5011
        %v5093 = vunpack.c.l.b16 %v5012
        %v5094 = vunpack.c.l.b16 %v5013
        %v5095 = vunpack.c.l.b16 %v5014
        %v5096 = vunpack.c.l.b16 %v5015
        %v5097 = vunpack.c.l.b16 %v5016
        %v5098 = vunpack.c.l.b16 %v5017
        %v5099 = vunpack.c.l.b16 %v5018
        %v5100 = vunpack.c.l.b16 %v5019
        %v5101 = vunpack.c.l.b16 %v5020
        %v5102 = vunpack.c.l.b16 %v5021
        %v5103 = vunpack.c.l.b16 %v5022
        %v5104 = vunpack.c.l.b16 %v5023
        %v5105 = vunpack.c.l.b16 %v5024
        %v5106 = vunpack.c.l.b16 %v5025
        %v5107 = vunpack.c.l.b16 %v5026
        %v5108 = vunpack.c.l.b16 %v5027
        %v5109 = vunpack.c.l.b16 %v5028
        %v5110 = vunpack.c.l.b16 %v5029
        %v5111 = vunpack.c.l.b16 %v5030
        %v5112 = vunpack.c.l.b16 %v5031
        %v5113 = vunpack.c.l.b16 %v5032
        %v5114 = vunpack.c.l.b16 %v5033
        %v5115 = vunpack.c.l.b16 %v5034
        %v5116 = vpack.c.b16 %v5085, %v5084
        %v5117 = vpack.c.b16 %v5087, %v5086
        %v5118 = vpack.c.b16 %v5089, %v5088
        %v5119 = vpack.c.b16 %v5091, %v5090
        %v5120 = vpack.c.b16 %v5093, %v5092
        %v5121 = vpack.c.b16 %v5095, %v5094
        %v5122 = vpack.c.b16 %v5097, %v5096
        %v5123 = vpack.c.b16 %v5099, %v5098
        %v5124 = vpack.c.b16 %v5101, %v5100
        %v5125 = vpack.c.b16 %v5103, %v5102
        %v5126 = vpack.c.b16 %v5105, %v5104
        %v5127 = vpack.c.b16 %v5107, %v5106
        %v5128 = vpack.c.b16 %v5109, %v5108
        %v5129 = vpack.c.b16 %v5111, %v5110
        %v5130 = vpack.c.b16 %v5113, %v5112
        %v5131 = vpack.c.b16 %v5115, %v5114
        %v5164 = vunpack.c.l.b16 %v5036
        %v5165 = vunpack.c.l.b16 %v5037
        %v5166 = vunpack.c.l.b16 %v5038
        %v5167 = vunpack.c.l.b16 %v5039
        %v5168 = vunpack.c.l.b16 %v5040
        %v5169 = vunpack.c.l.b16 %v5041
        %v5170 = vunpack.c.l.b16 %v5042
        %v5171 = vunpack.c.l.b16 %v5043
        %v5172 = vunpack.c.l.b16 %v5044
        %v5173 = vunpack.c.l.b16 %v5045
        %v5174 = vunpack.c.l.b16 %v5046
        %v5175 = vunpack.c.l.b16 %v5047
        %v5176 = vunpack.c.l.b16 %v5048
        %v5177 = vunpack.c.l.b16 %v5049
        %v5178 = vunpack.c.l.b16 %v5050
        %v5179 = vunpack.c.l.b16 %v5051
        %v5180 = vpack.c.b16 %v5165, %v5164
        %v5181 = vpack.c.b16 %v5167, %v5166
        %v5182 = vpack.c.b16 %v5169, %v5168
        %v5183 = vpack.c.b16 %v5171, %v5170
        %v5184 = vpack.c.b16 %v5173, %v5172
        %v5185 = vpack.c.b16 %v5175, %v5174
        %v5186 = vpack.c.b16 %v5177, %v5176
        %v5187 = vpack.c.b16 %v5179, %v5178
        %5196 = vmatprep.subr.bf16.mxu0 0
        %5197 = vmatpush1.bf16.msra.mxu0 %v5187
        %5198 = vmatprep.subr.bf16.mxu0 0
        %5199 = vmatpush1.bf16.msra.mxu0 %v5186
        %5200 = vmatprep.subr.bf16.mxu0 0
        %5201 = vmatpush1.bf16.msra.mxu0 %v5185
        %5202 = vmatprep.subr.bf16.mxu0 0
        %5203 = vmatpush1.bf16.msra.mxu0 %v5184
        %5204 = vmatprep.subr.bf16.mxu0 0
        %5205 = vmatpush1.bf16.msra.mxu0 %v5183
        %5206 = vmatprep.subr.bf16.mxu0 0
        %5207 = vmatpush1.bf16.msra.mxu0 %v5182
        %5208 = vmatprep.subr.bf16.mxu0 0
        %5209 = vmatpush1.bf16.msra.mxu0 %v5181
        %5210 = vmatprep.subr.bf16.mxu0 0
        %5211 = vmatpush1.bf16.msra.mxu0 %v5180
        %5212 = vmatprep.subr.bf16.mxu0 0
        %5213 = vmatpush2.bf16.msra.mxu0 0
        %5214 = vmatprep.subr.bf16.mxu0 0
        %5215 = vmatpush2.bf16.msra.mxu0 0
        %5216 = vmatprep.subr.bf16.mxu0 0
        %5217 = vmatpush2.bf16.msra.mxu0 0
        %5218 = vmatprep.subr.bf16.mxu0 0
        %5219 = vmatpush2.bf16.msra.mxu0 0
        %5220 = vmatprep.subr.bf16.mxu0 0
        %5221 = vmatpush2.bf16.msra.mxu0 0
        %5222 = vmatprep.subr.bf16.mxu0 0
        %5223 = vmatpush2.bf16.msra.mxu0 0
        %5224 = vmatprep.subr.bf16.mxu0 0
        %5225 = vmatpush2.bf16.msra.mxu0 0
        %5226 = vmatprep.subr.bf16.mxu0 0
        %5227 = vmatpush2.bf16.msra.mxu0 0
        %5228 = vmatprep.mubr.bf16.mxu0 0
        %5229 = vmatmul.mubr.bf16.gmra.mxu0 %v5116
        %v5230 = vpop.f32.mrf.mxu0
        %v5231 = vadd.f32 0.0, %v5230
        %v5232 = vpop.f32.mrf.mxu0
        %v5233 = vpop.f32.mrf.mxu0
        %v5234 = vadd.f32 0.0, %v5233
        %v5235 = vpop.f32.mrf.mxu0
        %5236 = vmatprep.mubr.bf16.mxu0 0
        %5237 = vmatmul.mubr.bf16.gmra.mxu0 %v5117
        %v5238 = vpop.f32.mrf.mxu0
        %v5239 = vadd.f32 0.0, %v5238
        %v5240 = vpop.f32.mrf.mxu0
        %v5241 = vpop.f32.mrf.mxu0
        %v5242 = vadd.f32 0.0, %v5241
        %v5243 = vpop.f32.mrf.mxu0
        %5244 = vmatprep.mubr.bf16.mxu0 0
        %5245 = vmatmul.mubr.bf16.gmra.mxu0 %v5118
        %v5246 = vpop.f32.mrf.mxu0
        %v5247 = vadd.f32 0.0, %v5246
        %v5248 = vpop.f32.mrf.mxu0
        %v5249 = vpop.f32.mrf.mxu0
        %v5250 = vadd.f32 0.0, %v5249
        %v5251 = vpop.f32.mrf.mxu0
        %5252 = vmatprep.mubr.bf16.mxu0 0
        %5253 = vmatmul.mubr.bf16.gmra.mxu0 %v5119
        %v5254 = vpop.f32.mrf.mxu0
        %v5255 = vadd.f32 0.0, %v5254
        %v5256 = vpop.f32.mrf.mxu0
        %v5257 = vpop.f32.mrf.mxu0
        %v5258 = vadd.f32 0.0, %v5257
        %v5259 = vpop.f32.mrf.mxu0
        %5260 = vmatprep.mubr.bf16.mxu0 0
        %5261 = vmatmul.mubr.bf16.gmra.mxu0 %v5120
        %v5262 = vpop.f32.mrf.mxu0
        %v5263 = vadd.f32 0.0, %v5262
        %v5264 = vpop.f32.mrf.mxu0
        %v5265 = vpop.f32.mrf.mxu0
        %v5266 = vadd.f32 0.0, %v5265
        %v5267 = vpop.f32.mrf.mxu0
        %5268 = vmatprep.mubr.bf16.mxu0 0
        %5269 = vmatmul.mubr.bf16.gmra.mxu0 %v5121
        %v5270 = vpop.f32.mrf.mxu0
        %v5271 = vadd.f32 0.0, %v5270
        %v5272 = vpop.f32.mrf.mxu0
        %v5273 = vpop.f32.mrf.mxu0
        %v5274 = vadd.f32 0.0, %v5273
        %v5275 = vpop.f32.mrf.mxu0
        %5276 = vmatprep.mubr.bf16.mxu0 0
        %5277 = vmatmul.mubr.bf16.gmra.mxu0 %v5122
        %v5278 = vpop.f32.mrf.mxu0
        %v5279 = vadd.f32 0.0, %v5278
        %v5280 = vpop.f32.mrf.mxu0
        %v5281 = vpop.f32.mrf.mxu0
        %v5282 = vadd.f32 0.0, %v5281
        %v5283 = vpop.f32.mrf.mxu0
        %5284 = vmatprep.mubr.bf16.mxu0 0
        %5285 = vmatmul.mubr.bf16.gmra.mxu0 %v5123
        %v5286 = vpop.f32.mrf.mxu0
        %v5287 = vadd.f32 0.0, %v5286
        %v5288 = vpop.f32.mrf.mxu0
        %v5289 = vpop.f32.mrf.mxu0
        %v5290 = vadd.f32 0.0, %v5289
        %v5291 = vpop.f32.mrf.mxu0
        %5292 = vmatprep.mubr.bf16.mxu0 0
        %5293 = vmatmul.mubr.bf16.gmra.mxu0 %v5124
        %v5294 = vpop.f32.mrf.mxu0
        %v5295 = vadd.f32 0.0, %v5294
        %v5296 = vpop.f32.mrf.mxu0
        %v5297 = vpop.f32.mrf.mxu0
        %v5298 = vadd.f32 0.0, %v5297
        %v5299 = vpop.f32.mrf.mxu0
        %5300 = vmatprep.mubr.bf16.mxu0 0
        %5301 = vmatmul.mubr.bf16.gmra.mxu0 %v5125
        %v5302 = vpop.f32.mrf.mxu0
        %v5303 = vadd.f32 0.0, %v5302
        %v5304 = vpop.f32.mrf.mxu0
        %v5305 = vpop.f32.mrf.mxu0
        %v5306 = vadd.f32 0.0, %v5305
        %v5307 = vpop.f32.mrf.mxu0
        %5308 = vmatprep.mubr.bf16.mxu0 0
        %5309 = vmatmul.mubr.bf16.gmra.mxu0 %v5126
        %v5310 = vpop.f32.mrf.mxu0
        %v5311 = vadd.f32 0.0, %v5310
        %v5312 = vpop.f32.mrf.mxu0
        %v5313 = vpop.f32.mrf.mxu0
        %v5314 = vadd.f32 0.0, %v5313
        %v5315 = vpop.f32.mrf.mxu0
        %5316 = vmatprep.mubr.bf16.mxu0 0
        %5317 = vmatmul.mubr.bf16.gmra.mxu0 %v5127
        %v5318 = vpop.f32.mrf.mxu0
        %v5319 = vadd.f32 0.0, %v5318
        %v5320 = vpop.f32.mrf.mxu0
        %v5321 = vpop.f32.mrf.mxu0
        %v5322 = vadd.f32 0.0, %v5321
        %v5323 = vpop.f32.mrf.mxu0
        %5324 = vmatprep.mubr.bf16.mxu0 0
        %5325 = vmatmul.mubr.bf16.gmra.mxu0 %v5128
        %v5326 = vpop.f32.mrf.mxu0
        %v5327 = vadd.f32 0.0, %v5326
        %v5328 = vpop.f32.mrf.mxu0
        %v5329 = vpop.f32.mrf.mxu0
        %v5330 = vadd.f32 0.0, %v5329
        %v5331 = vpop.f32.mrf.mxu0
        %5332 = vmatprep.mubr.bf16.mxu0 0
        %5333 = vmatmul.mubr.bf16.gmra.mxu0 %v5129
        %v5334 = vpop.f32.mrf.mxu0
        %v5335 = vadd.f32 0.0, %v5334
        %v5336 = vpop.f32.mrf.mxu0
        %v5337 = vpop.f32.mrf.mxu0
        %v5338 = vadd.f32 0.0, %v5337
        %v5339 = vpop.f32.mrf.mxu0
        %5340 = vmatprep.mubr.bf16.mxu0 0
        %5341 = vmatmul.mubr.bf16.gmra.mxu0 %v5130
        %v5342 = vpop.f32.mrf.mxu0
        %v5343 = vadd.f32 0.0, %v5342
        %v5344 = vpop.f32.mrf.mxu0
        %v5345 = vpop.f32.mrf.mxu0
        %v5346 = vadd.f32 0.0, %v5345
        %v5347 = vpop.f32.mrf.mxu0
        %5348 = vmatprep.mubr.bf16.mxu0 0
        %5349 = vmatmul.mubr.bf16.gmra.mxu0 %v5131
        %v5350 = vpop.f32.mrf.mxu0
        %v5351 = vadd.f32 0.0, %v5350
        %v5352 = vpop.f32.mrf.mxu0
        %v5353 = vpop.f32.mrf.mxu0
        %v5354 = vadd.f32 0.0, %v5353
        %v5355 = vpop.f32.mrf.mxu0
        %5356 = vdwg.mxu0
        %v5357 = vadd.f32 %v4970, %v5231
        %v5358 = vadd.f32 %v4971, %v5234
        %v5359 = vadd.f32 %v4972, %v5239
        %v5360 = vadd.f32 %v4973, %v5242
        %v5361 = vadd.f32 %v4974, %v5247
        %v5362 = vadd.f32 %v4975, %v5250
        %v5363 = vadd.f32 %v4976, %v5255
        %v5364 = vadd.f32 %v4977, %v5258
        %v5365 = vadd.f32 %v4978, %v5263
        %v5366 = vadd.f32 %v4979, %v5266
        %v5367 = vadd.f32 %v4980, %v5271
        %v5368 = vadd.f32 %v4981, %v5274
        %v5369 = vadd.f32 %v4982, %v5279
        %v5370 = vadd.f32 %v4983, %v5282
        %v5371 = vadd.f32 %v4984, %v5287
        %v5372 = vadd.f32 %v4985, %v5290
        %v5373 = vadd.f32 %v4986, %v5295
        %v5374 = vadd.f32 %v4987, %v5298
        %v5375 = vadd.f32 %v4988, %v5303
        %v5376 = vadd.f32 %v4989, %v5306
        %v5377 = vadd.f32 %v4990, %v5311
        %v5378 = vadd.f32 %v4991, %v5314
        %v5379 = vadd.f32 %v4992, %v5319
        %v5380 = vadd.f32 %v4993, %v5322
        %v5381 = vadd.f32 %v4994, %v5327
        %v5382 = vadd.f32 %v4995, %v5330
        %v5383 = vadd.f32 %v4996, %v5335
        %v5384 = vadd.f32 %v4997, %v5338
        %v5385 = vadd.f32 %v4998, %v5343
        %v5386 = vadd.f32 %v4999, %v5346
        %v5387 = vadd.f32 %v5000, %v5351
        %v5388 = vadd.f32 %v5001, %v5354
        %v5389 = vld [vmem:[%s5002] sm:$0xf]
        %v5390 = vld [vmem:[%s5002 + $0x4] sm:$0xf]
        %v5391 = vld [vmem:[%s5002 + $0x8] sm:$0x1]
        %v5392 = vld [vmem:[%s5002 + $0xc] sm:$0xf]
        %v5393 = vld [vmem:[%s5002 + $0x10] sm:$0xf]
        %v5394 = vld [vmem:[%s5002 + $0x14] sm:$0x1]
        %v5395 = vld [vmem:[%s5002 + $0x18] sm:$0xf]
        %v5396 = vld [vmem:[%s5002 + $0x1c] sm:$0xf]
        %v5397 = vld [vmem:[%s5002 + $0x20] sm:$0x1]
        %v5398 = vld [vmem:[%s5002 + $0x24] sm:$0xf]
        %v5399 = vld [vmem:[%s5002 + $0x28] sm:$0xf]
        %v5400 = vld [vmem:[%s5002 + $0x2c] sm:$0x1]
        %v5401 = vld [vmem:[%s5002 + $0x30] sm:$0xf]
        %v5402 = vld [vmem:[%s5002 + $0x34] sm:$0xf]
        %v5403 = vld [vmem:[%s5002 + $0x38] sm:$0x1]
        %v5404 = vld [vmem:[%s5002 + $0x3c] sm:$0xf]
        %v5405 = vld [vmem:[%s5002 + $0x40] sm:$0xf]
        %v5406 = vld [vmem:[%s5002 + $0x44] sm:$0x1]
        %v5407 = vld [vmem:[%s5002 + $0x48] sm:$0xf]
        %v5408 = vld [vmem:[%s5002 + $0x4c] sm:$0xf]
        %v5409 = vld [vmem:[%s5002 + $0x50] sm:$0x1]
        %v5410 = vld [vmem:[%s5002 + $0x54] sm:$0xf]
        %v5411 = vld [vmem:[%s5002 + $0x58] sm:$0xf]
        %v5412 = vld [vmem:[%s5002 + $0x5c] sm:$0x1]
        %v5413 = vld [vmem:[%s5002 + $0x60] sm:$0xf]
        %v5414 = vld [vmem:[%s5002 + $0x64] sm:$0xf]
        %v5415 = vld [vmem:[%s5002 + $0x68] sm:$0x1]
        %v5416 = vld [vmem:[%s5002 + $0x6c] sm:$0xf]
        %v5417 = vld [vmem:[%s5002 + $0x70] sm:$0xf]
        %v5418 = vld [vmem:[%s5002 + $0x74] sm:$0x1]
        %v5419 = vld [vmem:[%s5002 + $0x78] sm:$0xf]
        %v5420 = vld [vmem:[%s5002 + $0x7c] sm:$0xf]
        %v5421 = vld [vmem:[%s5002 + $0x80] sm:$0x1]
        %v5422 = vld [vmem:[%s5002 + $0x84] sm:$0xf]
        %v5423 = vld [vmem:[%s5002 + $0x88] sm:$0xf]
        %v5424 = vld [vmem:[%s5002 + $0x8c] sm:$0x1]
        %v5425 = vld [vmem:[%s5002 + $0x90] sm:$0xf]
        %v5426 = vld [vmem:[%s5002 + $0x94] sm:$0xf]
        %v5427 = vld [vmem:[%s5002 + $0x98] sm:$0x1]
        %v5428 = vld [vmem:[%s5002 + $0x9c] sm:$0xf]
        %v5429 = vld [vmem:[%s5002 + $0xa0] sm:$0xf]
        %v5430 = vld [vmem:[%s5002 + $0xa4] sm:$0x1]
        %v5431 = vld [vmem:[%s5002 + $0xa8] sm:$0xf]
        %v5432 = vld [vmem:[%s5002 + $0xac] sm:$0xf]
        %v5433 = vld [vmem:[%s5002 + $0xb0] sm:$0x1]
        %v5434 = vld [vmem:[%s5002 + $0xb4] sm:$0xf]
        %v5435 = vld [vmem:[%s5002 + $0xb8] sm:$0xf]
        %v5436 = vld [vmem:[%s5002 + $0xbc] sm:$0x1]
        %v5438 = vshrl.u32 %v5389, 16
        %v5440 = vrot.slane %v5438, 4
        %v5441 = vshll.u32 %v5389, 16
        %v5443 = vrot.slane %v5441, 5
        %v5444 = vor.u32 %v5440, %v5443
        %v5445 = vrot.slane %v5444, 4
        %v5447 = vshll.u32 %v5390, 16
        %v5449 = vrot.slane %v5447, 5
        %v5450 = vsel %vm1898, %v5445, %v5449
        %v5451 = vshrl.u32 %v5390, 16
        %v5453 = vrot.slane %v5451, 4
        %v5454 = vor.u32 %v5453, %v5449
        %v5455 = vrot.slane %v5454, 4
        %v5457 = vshll.u32 %v5391, 16
        %v5459 = vrot.slane %v5457, 5
        %v5460 = vsel %vm1898, %v5455, %v5459
        %v5462 = vshrl.u32 %v5392, 16
        %v5464 = vrot.slane %v5462, 4
        %v5465 = vshll.u32 %v5392, 16
        %v5467 = vrot.slane %v5465, 5
        %v5468 = vor.u32 %v5464, %v5467
        %v5469 = vrot.slane %v5468, 4
        %v5471 = vshll.u32 %v5393, 16
        %v5473 = vrot.slane %v5471, 5
        %v5474 = vsel %vm1898, %v5469, %v5473
        %v5475 = vshrl.u32 %v5393, 16
        %v5477 = vrot.slane %v5475, 4
        %v5478 = vor.u32 %v5477, %v5473
        %v5479 = vrot.slane %v5478, 4
        %v5481 = vshll.u32 %v5394, 16
        %v5483 = vrot.slane %v5481, 5
        %v5484 = vsel %vm1898, %v5479, %v5483
        %v5486 = vshrl.u32 %v5395, 16
        %v5488 = vrot.slane %v5486, 4
        %v5489 = vshll.u32 %v5395, 16
        %v5491 = vrot.slane %v5489, 5
        %v5492 = vor.u32 %v5488, %v5491
        %v5493 = vrot.slane %v5492, 4
        %v5495 = vshll.u32 %v5396, 16
        %v5497 = vrot.slane %v5495, 5
        %v5498 = vsel %vm1898, %v5493, %v5497
        %v5499 = vshrl.u32 %v5396, 16
        %v5501 = vrot.slane %v5499, 4
        %v5502 = vor.u32 %v5501, %v5497
        %v5503 = vrot.slane %v5502, 4
        %v5505 = vshll.u32 %v5397, 16
        %v5507 = vrot.slane %v5505, 5
        %v5508 = vsel %vm1898, %v5503, %v5507
        %v5510 = vshrl.u32 %v5398, 16
        %v5512 = vrot.slane %v5510, 4
        %v5513 = vshll.u32 %v5398, 16
        %v5515 = vrot.slane %v5513, 5
        %v5516 = vor.u32 %v5512, %v5515
        %v5517 = vrot.slane %v5516, 4
        %v5519 = vshll.u32 %v5399, 16
        %v5521 = vrot.slane %v5519, 5
        %v5522 = vsel %vm1898, %v5517, %v5521
        %v5523 = vshrl.u32 %v5399, 16
        %v5525 = vrot.slane %v5523, 4
        %v5526 = vor.u32 %v5525, %v5521
        %v5527 = vrot.slane %v5526, 4
        %v5529 = vshll.u32 %v5400, 16
        %v5531 = vrot.slane %v5529, 5
        %v5532 = vsel %vm1898, %v5527, %v5531
        %v5534 = vshrl.u32 %v5401, 16
        %v5536 = vrot.slane %v5534, 4
        %v5537 = vshll.u32 %v5401, 16
        %v5539 = vrot.slane %v5537, 5
        %v5540 = vor.u32 %v5536, %v5539
        %v5541 = vrot.slane %v5540, 4
        %v5543 = vshll.u32 %v5402, 16
        %v5545 = vrot.slane %v5543, 5
        %v5546 = vsel %vm1898, %v5541, %v5545
        %v5547 = vshrl.u32 %v5402, 16
        %v5549 = vrot.slane %v5547, 4
        %v5550 = vor.u32 %v5549, %v5545
        %v5551 = vrot.slane %v5550, 4
        %v5553 = vshll.u32 %v5403, 16
        %v5555 = vrot.slane %v5553, 5
        %v5556 = vsel %vm1898, %v5551, %v5555
        %v5558 = vshrl.u32 %v5404, 16
        %v5560 = vrot.slane %v5558, 4
        %v5561 = vshll.u32 %v5404, 16
        %v5563 = vrot.slane %v5561, 5
        %v5564 = vor.u32 %v5560, %v5563
        %v5565 = vrot.slane %v5564, 4
        %v5567 = vshll.u32 %v5405, 16
        %v5569 = vrot.slane %v5567, 5
        %v5570 = vsel %vm1898, %v5565, %v5569
        %v5571 = vshrl.u32 %v5405, 16
        %v5573 = vrot.slane %v5571, 4
        %v5574 = vor.u32 %v5573, %v5569
        %v5575 = vrot.slane %v5574, 4
        %v5577 = vshll.u32 %v5406, 16
        %v5579 = vrot.slane %v5577, 5
        %v5580 = vsel %vm1898, %v5575, %v5579
        %v5582 = vshrl.u32 %v5407, 16
        %v5584 = vrot.slane %v5582, 4
        %v5585 = vshll.u32 %v5407, 16
        %v5587 = vrot.slane %v5585, 5
        %v5588 = vor.u32 %v5584, %v5587
        %v5589 = vrot.slane %v5588, 4
        %v5591 = vshll.u32 %v5408, 16
        %v5593 = vrot.slane %v5591, 5
        %v5594 = vsel %vm1898, %v5589, %v5593
        %v5595 = vshrl.u32 %v5408, 16
        %v5597 = vrot.slane %v5595, 4
        %v5598 = vor.u32 %v5597, %v5593
        %v5599 = vrot.slane %v5598, 4
        %v5601 = vshll.u32 %v5409, 16
        %v5603 = vrot.slane %v5601, 5
        %v5604 = vsel %vm1898, %v5599, %v5603
        %v5606 = vshrl.u32 %v5410, 16
        %v5608 = vrot.slane %v5606, 4
        %v5609 = vshll.u32 %v5410, 16
        %v5611 = vrot.slane %v5609, 5
        %v5612 = vor.u32 %v5608, %v5611
        %v5613 = vrot.slane %v5612, 4
        %v5615 = vshll.u32 %v5411, 16
        %v5617 = vrot.slane %v5615, 5
        %v5618 = vsel %vm1898, %v5613, %v5617
        %v5619 = vshrl.u32 %v5411, 16
        %v5621 = vrot.slane %v5619, 4
        %v5622 = vor.u32 %v5621, %v5617
        %v5623 = vrot.slane %v5622, 4
        %v5625 = vshll.u32 %v5412, 16
        %v5627 = vrot.slane %v5625, 5
        %v5628 = vsel %vm1898, %v5623, %v5627
        %v5630 = vshrl.u32 %v5413, 16
        %v5632 = vrot.slane %v5630, 4
        %v5633 = vshll.u32 %v5413, 16
        %v5635 = vrot.slane %v5633, 5
        %v5636 = vor.u32 %v5632, %v5635
        %v5637 = vrot.slane %v5636, 4
        %v5639 = vshll.u32 %v5414, 16
        %v5641 = vrot.slane %v5639, 5
        %v5642 = vsel %vm1898, %v5637, %v5641
        %v5643 = vshrl.u32 %v5414, 16
        %v5645 = vrot.slane %v5643, 4
        %v5646 = vor.u32 %v5645, %v5641
        %v5647 = vrot.slane %v5646, 4
        %v5649 = vshll.u32 %v5415, 16
        %v5651 = vrot.slane %v5649, 5
        %v5652 = vsel %vm1898, %v5647, %v5651
        %v5654 = vshrl.u32 %v5416, 16
        %v5656 = vrot.slane %v5654, 4
        %v5657 = vshll.u32 %v5416, 16
        %v5659 = vrot.slane %v5657, 5
        %v5660 = vor.u32 %v5656, %v5659
        %v5661 = vrot.slane %v5660, 4
        %v5663 = vshll.u32 %v5417, 16
        %v5665 = vrot.slane %v5663, 5
        %v5666 = vsel %vm1898, %v5661, %v5665
        %v5667 = vshrl.u32 %v5417, 16
        %v5669 = vrot.slane %v5667, 4
        %v5670 = vor.u32 %v5669, %v5665
        %v5671 = vrot.slane %v5670, 4
        %v5673 = vshll.u32 %v5418, 16
        %v5675 = vrot.slane %v5673, 5
        %v5676 = vsel %vm1898, %v5671, %v5675
        %v5678 = vshrl.u32 %v5419, 16
        %v5680 = vrot.slane %v5678, 4
        %v5681 = vshll.u32 %v5419, 16
        %v5683 = vrot.slane %v5681, 5
        %v5684 = vor.u32 %v5680, %v5683
        %v5685 = vrot.slane %v5684, 4
        %v5687 = vshll.u32 %v5420, 16
        %v5689 = vrot.slane %v5687, 5
        %v5690 = vsel %vm1898, %v5685, %v5689
        %v5691 = vshrl.u32 %v5420, 16
        %v5693 = vrot.slane %v5691, 4
        %v5694 = vor.u32 %v5693, %v5689
        %v5695 = vrot.slane %v5694, 4
        %v5697 = vshll.u32 %v5421, 16
        %v5699 = vrot.slane %v5697, 5
        %v5700 = vsel %vm1898, %v5695, %v5699
        %v5702 = vshrl.u32 %v5422, 16
        %v5704 = vrot.slane %v5702, 4
        %v5705 = vshll.u32 %v5422, 16
        %v5707 = vrot.slane %v5705, 5
        %v5708 = vor.u32 %v5704, %v5707
        %v5709 = vrot.slane %v5708, 4
        %v5711 = vshll.u32 %v5423, 16
        %v5713 = vrot.slane %v5711, 5
        %v5714 = vsel %vm1898, %v5709, %v5713
        %v5715 = vshrl.u32 %v5423, 16
        %v5717 = vrot.slane %v5715, 4
        %v5718 = vor.u32 %v5717, %v5713
        %v5719 = vrot.slane %v5718, 4
        %v5721 = vshll.u32 %v5424, 16
        %v5723 = vrot.slane %v5721, 5
        %v5724 = vsel %vm1898, %v5719, %v5723
        %v5726 = vshrl.u32 %v5425, 16
        %v5728 = vrot.slane %v5726, 4
        %v5729 = vshll.u32 %v5425, 16
        %v5731 = vrot.slane %v5729, 5
        %v5732 = vor.u32 %v5728, %v5731
        %v5733 = vrot.slane %v5732, 4
        %v5735 = vshll.u32 %v5426, 16
        %v5737 = vrot.slane %v5735, 5
        %v5738 = vsel %vm1898, %v5733, %v5737
        %v5739 = vshrl.u32 %v5426, 16
        %v5741 = vrot.slane %v5739, 4
        %v5742 = vor.u32 %v5741, %v5737
        %v5743 = vrot.slane %v5742, 4
        %v5745 = vshll.u32 %v5427, 16
        %v5747 = vrot.slane %v5745, 5
        %v5748 = vsel %vm1898, %v5743, %v5747
        %v5750 = vshrl.u32 %v5428, 16
        %v5752 = vrot.slane %v5750, 4
        %v5753 = vshll.u32 %v5428, 16
        %v5755 = vrot.slane %v5753, 5
        %v5756 = vor.u32 %v5752, %v5755
        %v5757 = vrot.slane %v5756, 4
        %v5759 = vshll.u32 %v5429, 16
        %v5761 = vrot.slane %v5759, 5
        %v5762 = vsel %vm1898, %v5757, %v5761
        %v5763 = vshrl.u32 %v5429, 16
        %v5765 = vrot.slane %v5763, 4
        %v5766 = vor.u32 %v5765, %v5761
        %v5767 = vrot.slane %v5766, 4
        %v5769 = vshll.u32 %v5430, 16
        %v5771 = vrot.slane %v5769, 5
        %v5772 = vsel %vm1898, %v5767, %v5771
        %v5774 = vshrl.u32 %v5431, 16
        %v5776 = vrot.slane %v5774, 4
        %v5777 = vshll.u32 %v5431, 16
        %v5779 = vrot.slane %v5777, 5
        %v5780 = vor.u32 %v5776, %v5779
        %v5781 = vrot.slane %v5780, 4
        %v5783 = vshll.u32 %v5432, 16
        %v5785 = vrot.slane %v5783, 5
        %v5786 = vsel %vm1898, %v5781, %v5785
        %v5787 = vshrl.u32 %v5432, 16
        %v5789 = vrot.slane %v5787, 4
        %v5790 = vor.u32 %v5789, %v5785
        %v5791 = vrot.slane %v5790, 4
        %v5793 = vshll.u32 %v5433, 16
        %v5795 = vrot.slane %v5793, 5
        %v5796 = vsel %vm1898, %v5791, %v5795
        %v5798 = vshrl.u32 %v5434, 16
        %v5800 = vrot.slane %v5798, 4
        %v5801 = vshll.u32 %v5434, 16
        %v5803 = vrot.slane %v5801, 5
        %v5804 = vor.u32 %v5800, %v5803
        %v5805 = vrot.slane %v5804, 4
        %v5807 = vshll.u32 %v5435, 16
        %v5809 = vrot.slane %v5807, 5
        %v5810 = vsel %vm1898, %v5805, %v5809
        %v5811 = vshrl.u32 %v5435, 16
        %v5813 = vrot.slane %v5811, 4
        %v5814 = vor.u32 %v5813, %v5809
        %v5815 = vrot.slane %v5814, 4
        %v5817 = vshll.u32 %v5436, 16
        %v5819 = vrot.slane %v5817, 5
        %v5820 = vsel %vm1898, %v5815, %v5819
        %s5821 = scalar_lea.vmem [#allocation8], 448
        %v5822 = vld [vmem:[%s5821] sm:$0xf]
        %v5823 = vld [vmem:[%s5821 + $0x4] sm:$0xf]
        %v5824 = vld [vmem:[%s5821 + $0x8] sm:$0xf]
        %v5825 = vld [vmem:[%s5821 + $0xc] sm:$0xf]
        %v5826 = vld [vmem:[%s5821 + $0x10] sm:$0xf]
        %v5827 = vld [vmem:[%s5821 + $0x14] sm:$0xf]
        %v5828 = vld [vmem:[%s5821 + $0x18] sm:$0xf]
        %v5829 = vld [vmem:[%s5821 + $0x1c] sm:$0xf]
        %v5830 = vld [vmem:[%s5821 + $0x20] sm:$0xf]
        %v5831 = vld [vmem:[%s5821 + $0x24] sm:$0xf]
        %v5832 = vld [vmem:[%s5821 + $0x28] sm:$0xf]
        %v5833 = vld [vmem:[%s5821 + $0x2c] sm:$0xf]
        %v5834 = vld [vmem:[%s5821 + $0x30] sm:$0xf]
        %v5835 = vld [vmem:[%s5821 + $0x34] sm:$0xf]
        %v5836 = vld [vmem:[%s5821 + $0x38] sm:$0xf]
        %v5837 = vld [vmem:[%s5821 + $0x3c] sm:$0xf]
        %v5838 = vunpack.c.l.b16 %v5450
        %v5839 = vunpack.c.l.b16 %v5460
        %v5840 = vunpack.c.l.b16 %v5474
        %v5841 = vunpack.c.l.b16 %v5484
        %v5842 = vunpack.c.l.b16 %v5498
        %v5843 = vunpack.c.l.b16 %v5508
        %v5844 = vunpack.c.l.b16 %v5522
        %v5845 = vunpack.c.l.b16 %v5532
        %v5846 = vunpack.c.l.b16 %v5546
        %v5847 = vunpack.c.l.b16 %v5556
        %v5848 = vunpack.c.l.b16 %v5570
        %v5849 = vunpack.c.l.b16 %v5580
        %v5850 = vunpack.c.l.b16 %v5594
        %v5851 = vunpack.c.l.b16 %v5604
        %v5852 = vunpack.c.l.b16 %v5618
        %v5853 = vunpack.c.l.b16 %v5628
        %v5854 = vunpack.c.l.b16 %v5642
        %v5855 = vunpack.c.l.b16 %v5652
        %v5856 = vunpack.c.l.b16 %v5666
        %v5857 = vunpack.c.l.b16 %v5676
        %v5858 = vunpack.c.l.b16 %v5690
        %v5859 = vunpack.c.l.b16 %v5700
        %v5860 = vunpack.c.l.b16 %v5714
        %v5861 = vunpack.c.l.b16 %v5724
        %v5862 = vunpack.c.l.b16 %v5738
        %v5863 = vunpack.c.l.b16 %v5748
        %v5864 = vunpack.c.l.b16 %v5762
        %v5865 = vunpack.c.l.b16 %v5772
        %v5866 = vunpack.c.l.b16 %v5786
        %v5867 = vunpack.c.l.b16 %v5796
        %v5868 = vunpack.c.l.b16 %v5810
        %v5869 = vunpack.c.l.b16 %v5820
        %v5870 = vpack.c.b16 %v5839, %v5838
        %v5871 = vpack.c.b16 %v5841, %v5840
        %v5872 = vpack.c.b16 %v5843, %v5842
        %v5873 = vpack.c.b16 %v5845, %v5844
        %v5874 = vpack.c.b16 %v5847, %v5846
        %v5875 = vpack.c.b16 %v5849, %v5848
        %v5876 = vpack.c.b16 %v5851, %v5850
        %v5877 = vpack.c.b16 %v5853, %v5852
        %v5878 = vpack.c.b16 %v5855, %v5854
        %v5879 = vpack.c.b16 %v5857, %v5856
        %v5880 = vpack.c.b16 %v5859, %v5858
        %v5881 = vpack.c.b16 %v5861, %v5860
        %v5882 = vpack.c.b16 %v5863, %v5862
        %v5883 = vpack.c.b16 %v5865, %v5864
        %v5884 = vpack.c.b16 %v5867, %v5866
        %v5885 = vpack.c.b16 %v5869, %v5868
        %v5918 = vunpack.c.l.b16 %v5822
        %v5919 = vunpack.c.l.b16 %v5823
        %v5920 = vunpack.c.l.b16 %v5824
        %v5921 = vunpack.c.l.b16 %v5825
        %v5922 = vunpack.c.l.b16 %v5826
        %v5923 = vunpack.c.l.b16 %v5827
        %v5924 = vunpack.c.l.b16 %v5828
        %v5925 = vunpack.c.l.b16 %v5829
        %v5926 = vunpack.c.l.b16 %v5830
        %v5927 = vunpack.c.l.b16 %v5831
        %v5928 = vunpack.c.l.b16 %v5832
        %v5929 = vunpack.c.l.b16 %v5833
        %v5930 = vunpack.c.l.b16 %v5834
        %v5931 = vunpack.c.l.b16 %v5835
        %v5932 = vunpack.c.l.b16 %v5836
        %v5933 = vunpack.c.l.b16 %v5837
        %v5934 = vpack.c.b16 %v5919, %v5918
        %v5935 = vpack.c.b16 %v5921, %v5920
        %v5936 = vpack.c.b16 %v5923, %v5922
        %v5937 = vpack.c.b16 %v5925, %v5924
        %v5938 = vpack.c.b16 %v5927, %v5926
        %v5939 = vpack.c.b16 %v5929, %v5928
        %v5940 = vpack.c.b16 %v5931, %v5930
        %v5941 = vpack.c.b16 %v5933, %v5932
        %5950 = vmatprep.subr.bf16.mxu0 0
        %5951 = vmatpush1.bf16.msra.mxu0 %v5941
        %5952 = vmatprep.subr.bf16.mxu0 0
        %5953 = vmatpush1.bf16.msra.mxu0 %v5940
        %5954 = vmatprep.subr.bf16.mxu0 0
        %5955 = vmatpush1.bf16.msra.mxu0 %v5939
        %5956 = vmatprep.subr.bf16.mxu0 0
        %5957 = vmatpush1.bf16.msra.mxu0 %v5938
        %5958 = vmatprep.subr.bf16.mxu0 0
        %5959 = vmatpush1.bf16.msra.mxu0 %v5937
        %5960 = vmatprep.subr.bf16.mxu0 0
        %5961 = vmatpush1.bf16.msra.mxu0 %v5936
        %5962 = vmatprep.subr.bf16.mxu0 0
        %5963 = vmatpush1.bf16.msra.mxu0 %v5935
        %5964 = vmatprep.subr.bf16.mxu0 0
        %5965 = vmatpush1.bf16.msra.mxu0 %v5934
        %5966 = vmatprep.subr.bf16.mxu0 0
        %5967 = vmatpush2.bf16.msra.mxu0 0
        %5968 = vmatprep.subr.bf16.mxu0 0
        %5969 = vmatpush2.bf16.msra.mxu0 0
        %5970 = vmatprep.subr.bf16.mxu0 0
        %5971 = vmatpush2.bf16.msra.mxu0 0
        %5972 = vmatprep.subr.bf16.mxu0 0
        %5973 = vmatpush2.bf16.msra.mxu0 0
        %5974 = vmatprep.subr.bf16.mxu0 0
        %5975 = vmatpush2.bf16.msra.mxu0 0
        %5976 = vmatprep.subr.bf16.mxu0 0
        %5977 = vmatpush2.bf16.msra.mxu0 0
        %5978 = vmatprep.subr.bf16.mxu0 0
        %5979 = vmatpush2.bf16.msra.mxu0 0
        %5980 = vmatprep.subr.bf16.mxu0 0
        %5981 = vmatpush2.bf16.msra.mxu0 0
        %5982 = vmatprep.mubr.bf16.mxu0 0
        %5983 = vmatmul.mubr.bf16.gmra.mxu0 %v5870
        %v5984 = vpop.f32.mrf.mxu0
        %v5985 = vadd.f32 0.0, %v5984
        %v5986 = vpop.f32.mrf.mxu0
        %v5987 = vpop.f32.mrf.mxu0
        %v5988 = vadd.f32 0.0, %v5987
        %v5989 = vpop.f32.mrf.mxu0
        %5990 = vmatprep.mubr.bf16.mxu0 0
        %5991 = vmatmul.mubr.bf16.gmra.mxu0 %v5871
        %v5992 = vpop.f32.mrf.mxu0
        %v5993 = vadd.f32 0.0, %v5992
        %v5994 = vpop.f32.mrf.mxu0
        %v5995 = vpop.f32.mrf.mxu0
        %v5996 = vadd.f32 0.0, %v5995
        %v5997 = vpop.f32.mrf.mxu0
        %5998 = vmatprep.mubr.bf16.mxu0 0
        %5999 = vmatmul.mubr.bf16.gmra.mxu0 %v5872
        %v6000 = vpop.f32.mrf.mxu0
        %v6001 = vadd.f32 0.0, %v6000
        %v6002 = vpop.f32.mrf.mxu0
        %v6003 = vpop.f32.mrf.mxu0
        %v6004 = vadd.f32 0.0, %v6003
        %v6005 = vpop.f32.mrf.mxu0
        %6006 = vmatprep.mubr.bf16.mxu0 0
        %6007 = vmatmul.mubr.bf16.gmra.mxu0 %v5873
        %v6008 = vpop.f32.mrf.mxu0
        %v6009 = vadd.f32 0.0, %v6008
        %v6010 = vpop.f32.mrf.mxu0
        %v6011 = vpop.f32.mrf.mxu0
        %v6012 = vadd.f32 0.0, %v6011
        %v6013 = vpop.f32.mrf.mxu0
        %6014 = vmatprep.mubr.bf16.mxu0 0
        %6015 = vmatmul.mubr.bf16.gmra.mxu0 %v5874
        %v6016 = vpop.f32.mrf.mxu0
        %v6017 = vadd.f32 0.0, %v6016
        %v6018 = vpop.f32.mrf.mxu0
        %v6019 = vpop.f32.mrf.mxu0
        %v6020 = vadd.f32 0.0, %v6019
        %v6021 = vpop.f32.mrf.mxu0
        %6022 = vmatprep.mubr.bf16.mxu0 0
        %6023 = vmatmul.mubr.bf16.gmra.mxu0 %v5875
        %v6024 = vpop.f32.mrf.mxu0
        %v6025 = vadd.f32 0.0, %v6024
        %v6026 = vpop.f32.mrf.mxu0
        %v6027 = vpop.f32.mrf.mxu0
        %v6028 = vadd.f32 0.0, %v6027
        %v6029 = vpop.f32.mrf.mxu0
        %6030 = vmatprep.mubr.bf16.mxu0 0
        %6031 = vmatmul.mubr.bf16.gmra.mxu0 %v5876
        %v6032 = vpop.f32.mrf.mxu0
        %v6033 = vadd.f32 0.0, %v6032
        %v6034 = vpop.f32.mrf.mxu0
        %v6035 = vpop.f32.mrf.mxu0
        %v6036 = vadd.f32 0.0, %v6035
        %v6037 = vpop.f32.mrf.mxu0
        %6038 = vmatprep.mubr.bf16.mxu0 0
        %6039 = vmatmul.mubr.bf16.gmra.mxu0 %v5877
        %v6040 = vpop.f32.mrf.mxu0
        %v6041 = vadd.f32 0.0, %v6040
        %v6042 = vpop.f32.mrf.mxu0
        %v6043 = vpop.f32.mrf.mxu0
        %v6044 = vadd.f32 0.0, %v6043
        %v6045 = vpop.f32.mrf.mxu0
        %6046 = vmatprep.mubr.bf16.mxu0 0
        %6047 = vmatmul.mubr.bf16.gmra.mxu0 %v5878
        %v6048 = vpop.f32.mrf.mxu0
        %v6049 = vadd.f32 0.0, %v6048
        %v6050 = vpop.f32.mrf.mxu0
        %v6051 = vpop.f32.mrf.mxu0
        %v6052 = vadd.f32 0.0, %v6051
        %v6053 = vpop.f32.mrf.mxu0
        %6054 = vmatprep.mubr.bf16.mxu0 0
        %6055 = vmatmul.mubr.bf16.gmra.mxu0 %v5879
        %v6056 = vpop.f32.mrf.mxu0
        %v6057 = vadd.f32 0.0, %v6056
        %v6058 = vpop.f32.mrf.mxu0
        %v6059 = vpop.f32.mrf.mxu0
        %v6060 = vadd.f32 0.0, %v6059
        %v6061 = vpop.f32.mrf.mxu0
        %6062 = vmatprep.mubr.bf16.mxu0 0
        %6063 = vmatmul.mubr.bf16.gmra.mxu0 %v5880
        %v6064 = vpop.f32.mrf.mxu0
        %v6065 = vadd.f32 0.0, %v6064
        %v6066 = vpop.f32.mrf.mxu0
        %v6067 = vpop.f32.mrf.mxu0
        %v6068 = vadd.f32 0.0, %v6067
        %v6069 = vpop.f32.mrf.mxu0
        %6070 = vmatprep.mubr.bf16.mxu0 0
        %6071 = vmatmul.mubr.bf16.gmra.mxu0 %v5881
        %v6072 = vpop.f32.mrf.mxu0
        %v6073 = vadd.f32 0.0, %v6072
        %v6074 = vpop.f32.mrf.mxu0
        %v6075 = vpop.f32.mrf.mxu0
        %v6076 = vadd.f32 0.0, %v6075
        %v6077 = vpop.f32.mrf.mxu0
        %6078 = vmatprep.mubr.bf16.mxu0 0
        %6079 = vmatmul.mubr.bf16.gmra.mxu0 %v5882
        %v6080 = vpop.f32.mrf.mxu0
        %v6081 = vadd.f32 0.0, %v6080
        %v6082 = vpop.f32.mrf.mxu0
        %v6083 = vpop.f32.mrf.mxu0
        %v6084 = vadd.f32 0.0, %v6083
        %v6085 = vpop.f32.mrf.mxu0
        %6086 = vmatprep.mubr.bf16.mxu0 0
        %6087 = vmatmul.mubr.bf16.gmra.mxu0 %v5883
        %v6088 = vpop.f32.mrf.mxu0
        %v6089 = vadd.f32 0.0, %v6088
        %v6090 = vpop.f32.mrf.mxu0
        %v6091 = vpop.f32.mrf.mxu0
        %v6092 = vadd.f32 0.0, %v6091
        %v6093 = vpop.f32.mrf.mxu0
        %6094 = vmatprep.mubr.bf16.mxu0 0
        %6095 = vmatmul.mubr.bf16.gmra.mxu0 %v5884
        %v6096 = vpop.f32.mrf.mxu0
        %v6097 = vadd.f32 0.0, %v6096
        %v6098 = vpop.f32.mrf.mxu0
        %v6099 = vpop.f32.mrf.mxu0
        %v6100 = vadd.f32 0.0, %v6099
        %v6101 = vpop.f32.mrf.mxu0
        %6102 = vmatprep.mubr.bf16.mxu0 0
        %6103 = vmatmul.mubr.bf16.gmra.mxu0 %v5885
        %v6104 = vpop.f32.mrf.mxu0
        %v6105 = vadd.f32 0.0, %v6104
        %v6106 = vpop.f32.mrf.mxu0
        %v6107 = vpop.f32.mrf.mxu0
        %v6108 = vadd.f32 0.0, %v6107
        %v6109 = vpop.f32.mrf.mxu0
        %6110 = vdwg.mxu0
        %v6111 = vadd.f32 %v5357, %v5985
        %v6112 = vadd.f32 %v5358, %v5988
        %v6113 = vadd.f32 %v5359, %v5993
        %v6114 = vadd.f32 %v5360, %v5996
        %v6115 = vadd.f32 %v5361, %v6001
        %v6116 = vadd.f32 %v5362, %v6004
        %v6117 = vadd.f32 %v5363, %v6009
        %v6118 = vadd.f32 %v5364, %v6012
        %v6119 = vadd.f32 %v5365, %v6017
        %v6120 = vadd.f32 %v5366, %v6020
        %v6121 = vadd.f32 %v5367, %v6025
        %v6122 = vadd.f32 %v5368, %v6028
        %v6123 = vadd.f32 %v5369, %v6033
        %v6124 = vadd.f32 %v5370, %v6036
        %v6125 = vadd.f32 %v5371, %v6041
        %v6126 = vadd.f32 %v5372, %v6044
        %v6127 = vadd.f32 %v5373, %v6049
        %v6128 = vadd.f32 %v5374, %v6052
        %v6129 = vadd.f32 %v5375, %v6057
        %v6130 = vadd.f32 %v5376, %v6060
        %v6131 = vadd.f32 %v5377, %v6065
        %v6132 = vadd.f32 %v5378, %v6068
        %v6133 = vadd.f32 %v5379, %v6073
        %v6134 = vadd.f32 %v5380, %v6076
        %v6135 = vadd.f32 %v5381, %v6081
        %v6136 = vadd.f32 %v5382, %v6084
        %v6137 = vadd.f32 %v5383, %v6089
        %v6138 = vadd.f32 %v5384, %v6092
        %v6139 = vadd.f32 %v5385, %v6097
        %v6140 = vadd.f32 %v5386, %v6100
        %v6141 = vadd.f32 %v5387, %v6105
        %v6142 = vadd.f32 %v5388, %v6108
        %v6143 = vld [vmem:[%s5002] sm:$0xe]
        %v6144 = vld [vmem:[%s5002 + $0xc] sm:$0xe]
        %v6145 = vld [vmem:[%s5002 + $0x18] sm:$0xe]
        %v6146 = vld [vmem:[%s5002 + $0x24] sm:$0xe]
        %v6147 = vld [vmem:[%s5002 + $0x30] sm:$0xe]
        %v6148 = vld [vmem:[%s5002 + $0x3c] sm:$0xe]
        %v6149 = vld [vmem:[%s5002 + $0x48] sm:$0xe]
        %v6150 = vld [vmem:[%s5002 + $0x54] sm:$0xe]
        %v6151 = vld [vmem:[%s5002 + $0x60] sm:$0xe]
        %v6152 = vld [vmem:[%s5002 + $0x6c] sm:$0xe]
        %v6153 = vld [vmem:[%s5002 + $0x78] sm:$0xe]
        %v6154 = vld [vmem:[%s5002 + $0x84] sm:$0xe]
        %v6155 = vld [vmem:[%s5002 + $0x90] sm:$0xe]
        %v6156 = vld [vmem:[%s5002 + $0x9c] sm:$0xe]
        %v6157 = vld [vmem:[%s5002 + $0xa8] sm:$0xe]
        %v6158 = vld [vmem:[%s5002 + $0xb4] sm:$0xe]
        %v6207 = vrot.slane %v6143, 5
        %v6208 = vrot.slane %v6207, 4
        %v6209 = vrot.slane %v5390, 5
        %v6210 = vsel %vm2928, %v6208, %v6209
        %v6211 = vrot.slane %v6209, 4
        %v6212 = vrot.slane %v5391, 5
        %v6213 = vsel %vm2928, %v6211, %v6212
        %v6214 = vrot.slane %v6144, 5
        %v6215 = vrot.slane %v6214, 4
        %v6216 = vrot.slane %v5393, 5
        %v6217 = vsel %vm2928, %v6215, %v6216
        %v6218 = vrot.slane %v6216, 4
        %v6219 = vrot.slane %v5394, 5
        %v6220 = vsel %vm2928, %v6218, %v6219
        %v6221 = vrot.slane %v6145, 5
        %v6222 = vrot.slane %v6221, 4
        %v6223 = vrot.slane %v5396, 5
        %v6224 = vsel %vm2928, %v6222, %v6223
        %v6225 = vrot.slane %v6223, 4
        %v6226 = vrot.slane %v5397, 5
        %v6227 = vsel %vm2928, %v6225, %v6226
        %v6228 = vrot.slane %v6146, 5
        %v6229 = vrot.slane %v6228, 4
        %v6230 = vrot.slane %v5399, 5
        %v6231 = vsel %vm2928, %v6229, %v6230
        %v6232 = vrot.slane %v6230, 4
        %v6233 = vrot.slane %v5400, 5
        %v6234 = vsel %vm2928, %v6232, %v6233
        %v6235 = vrot.slane %v6147, 5
        %v6236 = vrot.slane %v6235, 4
        %v6237 = vrot.slane %v5402, 5
        %v6238 = vsel %vm2928, %v6236, %v6237
        %v6239 = vrot.slane %v6237, 4
        %v6240 = vrot.slane %v5403, 5
        %v6241 = vsel %vm2928, %v6239, %v6240
        %v6242 = vrot.slane %v6148, 5
        %v6243 = vrot.slane %v6242, 4
        %v6244 = vrot.slane %v5405, 5
        %v6245 = vsel %vm2928, %v6243, %v6244
        %v6246 = vrot.slane %v6244, 4
        %v6247 = vrot.slane %v5406, 5
        %v6248 = vsel %vm2928, %v6246, %v6247
        %v6249 = vrot.slane %v6149, 5
        %v6250 = vrot.slane %v6249, 4
        %v6251 = vrot.slane %v5408, 5
        %v6252 = vsel %vm2928, %v6250, %v6251
        %v6253 = vrot.slane %v6251, 4
        %v6254 = vrot.slane %v5409, 5
        %v6255 = vsel %vm2928, %v6253, %v6254
        %v6256 = vrot.slane %v6150, 5
        %v6257 = vrot.slane %v6256, 4
        %v6258 = vrot.slane %v5411, 5
        %v6259 = vsel %vm2928, %v6257, %v6258
        %v6260 = vrot.slane %v6258, 4
        %v6261 = vrot.slane %v5412, 5
        %v6262 = vsel %vm2928, %v6260, %v6261
        %v6263 = vrot.slane %v6151, 5
        %v6264 = vrot.slane %v6263, 4
        %v6265 = vrot.slane %v5414, 5
        %v6266 = vsel %vm2928, %v6264, %v6265
        %v6267 = vrot.slane %v6265, 4
        %v6268 = vrot.slane %v5415, 5
        %v6269 = vsel %vm2928, %v6267, %v6268
        %v6270 = vrot.slane %v6152, 5
        %v6271 = vrot.slane %v6270, 4
        %v6272 = vrot.slane %v5417, 5
        %v6273 = vsel %vm2928, %v6271, %v6272
        %v6274 = vrot.slane %v6272, 4
        %v6275 = vrot.slane %v5418, 5
        %v6276 = vsel %vm2928, %v6274, %v6275
        %v6277 = vrot.slane %v6153, 5
        %v6278 = vrot.slane %v6277, 4
        %v6279 = vrot.slane %v5420, 5
        %v6280 = vsel %vm2928, %v6278, %v6279
        %v6281 = vrot.slane %v6279, 4
        %v6282 = vrot.slane %v5421, 5
        %v6283 = vsel %vm2928, %v6281, %v6282
        %v6284 = vrot.slane %v6154, 5
        %v6285 = vrot.slane %v6284, 4
        %v6286 = vrot.slane %v5423, 5
        %v6287 = vsel %vm2928, %v6285, %v6286
        %v6288 = vrot.slane %v6286, 4
        %v6289 = vrot.slane %v5424, 5
        %v6290 = vsel %vm2928, %v6288, %v6289
        %v6291 = vrot.slane %v6155, 5
        %v6292 = vrot.slane %v6291, 4
        %v6293 = vrot.slane %v5426, 5
        %v6294 = vsel %vm2928, %v6292, %v6293
        %v6295 = vrot.slane %v6293, 4
        %v6296 = vrot.slane %v5427, 5
        %v6297 = vsel %vm2928, %v6295, %v6296
        %v6298 = vrot.slane %v6156, 5
        %v6299 = vrot.slane %v6298, 4
        %v6300 = vrot.slane %v5429, 5
        %v6301 = vsel %vm2928, %v6299, %v6300
        %v6302 = vrot.slane %v6300, 4
        %v6303 = vrot.slane %v5430, 5
        %v6304 = vsel %vm2928, %v6302, %v6303
        %v6305 = vrot.slane %v6157, 5
        %v6306 = vrot.slane %v6305, 4
        %v6307 = vrot.slane %v5432, 5
        %v6308 = vsel %vm2928, %v6306, %v6307
        %v6309 = vrot.slane %v6307, 4
        %v6310 = vrot.slane %v5433, 5
        %v6311 = vsel %vm2928, %v6309, %v6310
        %v6312 = vrot.slane %v6158, 5
        %v6313 = vrot.slane %v6312, 4
        %v6314 = vrot.slane %v5435, 5
        %v6315 = vsel %vm2928, %v6313, %v6314
        %v6316 = vrot.slane %v6314, 4
        %v6317 = vrot.slane %v5436, 5
        %v6318 = vsel %vm2928, %v6316, %v6317
        %s6319 = scalar_lea.vmem [#allocation8], 512
        %v6320 = vld [vmem:[%s6319] sm:$0xf]
        %v6321 = vld [vmem:[%s6319 + $0x4] sm:$0xf]
        %v6322 = vld [vmem:[%s6319 + $0x8] sm:$0xf]
        %v6323 = vld [vmem:[%s6319 + $0xc] sm:$0xf]
        %v6324 = vld [vmem:[%s6319 + $0x10] sm:$0xf]
        %v6325 = vld [vmem:[%s6319 + $0x14] sm:$0xf]
        %v6326 = vld [vmem:[%s6319 + $0x18] sm:$0xf]
        %v6327 = vld [vmem:[%s6319 + $0x1c] sm:$0xf]
        %v6328 = vld [vmem:[%s6319 + $0x20] sm:$0xf]
        %v6329 = vld [vmem:[%s6319 + $0x24] sm:$0xf]
        %v6330 = vld [vmem:[%s6319 + $0x28] sm:$0xf]
        %v6331 = vld [vmem:[%s6319 + $0x2c] sm:$0xf]
        %v6332 = vld [vmem:[%s6319 + $0x30] sm:$0xf]
        %v6333 = vld [vmem:[%s6319 + $0x34] sm:$0xf]
        %v6334 = vld [vmem:[%s6319 + $0x38] sm:$0xf]
        %v6335 = vld [vmem:[%s6319 + $0x3c] sm:$0xf]
        %v6336 = vunpack.c.l.b16 %v6210
        %v6337 = vunpack.c.l.b16 %v6213
        %v6338 = vunpack.c.l.b16 %v6217
        %v6339 = vunpack.c.l.b16 %v6220
        %v6340 = vunpack.c.l.b16 %v6224
        %v6341 = vunpack.c.l.b16 %v6227
        %v6342 = vunpack.c.l.b16 %v6231
        %v6343 = vunpack.c.l.b16 %v6234
        %v6344 = vunpack.c.l.b16 %v6238
        %v6345 = vunpack.c.l.b16 %v6241
        %v6346 = vunpack.c.l.b16 %v6245
        %v6347 = vunpack.c.l.b16 %v6248
        %v6348 = vunpack.c.l.b16 %v6252
        %v6349 = vunpack.c.l.b16 %v6255
        %v6350 = vunpack.c.l.b16 %v6259
        %v6351 = vunpack.c.l.b16 %v6262
        %v6352 = vunpack.c.l.b16 %v6266
        %v6353 = vunpack.c.l.b16 %v6269
        %v6354 = vunpack.c.l.b16 %v6273
        %v6355 = vunpack.c.l.b16 %v6276
        %v6356 = vunpack.c.l.b16 %v6280
        %v6357 = vunpack.c.l.b16 %v6283
        %v6358 = vunpack.c.l.b16 %v6287
        %v6359 = vunpack.c.l.b16 %v6290
        %v6360 = vunpack.c.l.b16 %v6294
        %v6361 = vunpack.c.l.b16 %v6297
        %v6362 = vunpack.c.l.b16 %v6301
        %v6363 = vunpack.c.l.b16 %v6304
        %v6364 = vunpack.c.l.b16 %v6308
        %v6365 = vunpack.c.l.b16 %v6311
        %v6366 = vunpack.c.l.b16 %v6315
        %v6367 = vunpack.c.l.b16 %v6318
        %v6368 = vpack.c.b16 %v6337, %v6336
        %v6369 = vpack.c.b16 %v6339, %v6338
        %v6370 = vpack.c.b16 %v6341, %v6340
        %v6371 = vpack.c.b16 %v6343, %v6342
        %v6372 = vpack.c.b16 %v6345, %v6344
        %v6373 = vpack.c.b16 %v6347, %v6346
        %v6374 = vpack.c.b16 %v6349, %v6348
        %v6375 = vpack.c.b16 %v6351, %v6350
        %v6376 = vpack.c.b16 %v6353, %v6352
        %v6377 = vpack.c.b16 %v6355, %v6354
        %v6378 = vpack.c.b16 %v6357, %v6356
        %v6379 = vpack.c.b16 %v6359, %v6358
        %v6380 = vpack.c.b16 %v6361, %v6360
        %v6381 = vpack.c.b16 %v6363, %v6362
        %v6382 = vpack.c.b16 %v6365, %v6364
        %v6383 = vpack.c.b16 %v6367, %v6366
        %v6416 = vunpack.c.l.b16 %v6320
        %v6417 = vunpack.c.l.b16 %v6321
        %v6418 = vunpack.c.l.b16 %v6322
        %v6419 = vunpack.c.l.b16 %v6323
        %v6420 = vunpack.c.l.b16 %v6324
        %v6421 = vunpack.c.l.b16 %v6325
        %v6422 = vunpack.c.l.b16 %v6326
        %v6423 = vunpack.c.l.b16 %v6327
        %v6424 = vunpack.c.l.b16 %v6328
        %v6425 = vunpack.c.l.b16 %v6329
        %v6426 = vunpack.c.l.b16 %v6330
        %v6427 = vunpack.c.l.b16 %v6331
        %v6428 = vunpack.c.l.b16 %v6332
        %v6429 = vunpack.c.l.b16 %v6333
        %v6430 = vunpack.c.l.b16 %v6334
        %v6431 = vunpack.c.l.b16 %v6335
        %v6432 = vpack.c.b16 %v6417, %v6416
        %v6433 = vpack.c.b16 %v6419, %v6418
        %v6434 = vpack.c.b16 %v6421, %v6420
        %v6435 = vpack.c.b16 %v6423, %v6422
        %v6436 = vpack.c.b16 %v6425, %v6424
        %v6437 = vpack.c.b16 %v6427, %v6426
        %v6438 = vpack.c.b16 %v6429, %v6428
        %v6439 = vpack.c.b16 %v6431, %v6430
        %6448 = vmatprep.subr.bf16.mxu0 0
        %6449 = vmatpush1.bf16.msra.mxu0 %v6439
        %6450 = vmatprep.subr.bf16.mxu0 0
        %6451 = vmatpush1.bf16.msra.mxu0 %v6438
        %6452 = vmatprep.subr.bf16.mxu0 0
        %6453 = vmatpush1.bf16.msra.mxu0 %v6437
        %6454 = vmatprep.subr.bf16.mxu0 0
        %6455 = vmatpush1.bf16.msra.mxu0 %v6436
        %6456 = vmatprep.subr.bf16.mxu0 0
        %6457 = vmatpush1.bf16.msra.mxu0 %v6435
        %6458 = vmatprep.subr.bf16.mxu0 0
        %6459 = vmatpush1.bf16.msra.mxu0 %v6434
        %6460 = vmatprep.subr.bf16.mxu0 0
        %6461 = vmatpush1.bf16.msra.mxu0 %v6433
        %6462 = vmatprep.subr.bf16.mxu0 0
        %6463 = vmatpush1.bf16.msra.mxu0 %v6432
        %6464 = vmatprep.subr.bf16.mxu0 0
        %6465 = vmatpush2.bf16.msra.mxu0 0
        %6466 = vmatprep.subr.bf16.mxu0 0
        %6467 = vmatpush2.bf16.msra.mxu0 0
        %6468 = vmatprep.subr.bf16.mxu0 0
        %6469 = vmatpush2.bf16.msra.mxu0 0
        %6470 = vmatprep.subr.bf16.mxu0 0
        %6471 = vmatpush2.bf16.msra.mxu0 0
        %6472 = vmatprep.subr.bf16.mxu0 0
        %6473 = vmatpush2.bf16.msra.mxu0 0
        %6474 = vmatprep.subr.bf16.mxu0 0
        %6475 = vmatpush2.bf16.msra.mxu0 0
        %6476 = vmatprep.subr.bf16.mxu0 0
        %6477 = vmatpush2.bf16.msra.mxu0 0
        %6478 = vmatprep.subr.bf16.mxu0 0
        %6479 = vmatpush2.bf16.msra.mxu0 0
        %6480 = vmatprep.mubr.bf16.mxu0 0
        %6481 = vmatmul.mubr.bf16.gmra.mxu0 %v6368
        %v6482 = vpop.f32.mrf.mxu0
        %v6483 = vadd.f32 0.0, %v6482
        %v6484 = vpop.f32.mrf.mxu0
        %v6485 = vpop.f32.mrf.mxu0
        %v6486 = vadd.f32 0.0, %v6485
        %v6487 = vpop.f32.mrf.mxu0
        %6488 = vmatprep.mubr.bf16.mxu0 0
        %6489 = vmatmul.mubr.bf16.gmra.mxu0 %v6369
        %v6490 = vpop.f32.mrf.mxu0
        %v6491 = vadd.f32 0.0, %v6490
        %v6492 = vpop.f32.mrf.mxu0
        %v6493 = vpop.f32.mrf.mxu0
        %v6494 = vadd.f32 0.0, %v6493
        %v6495 = vpop.f32.mrf.mxu0
        %6496 = vmatprep.mubr.bf16.mxu0 0
        %6497 = vmatmul.mubr.bf16.gmra.mxu0 %v6370
        %v6498 = vpop.f32.mrf.mxu0
        %v6499 = vadd.f32 0.0, %v6498
        %v6500 = vpop.f32.mrf.mxu0
        %v6501 = vpop.f32.mrf.mxu0
        %v6502 = vadd.f32 0.0, %v6501
        %v6503 = vpop.f32.mrf.mxu0
        %6504 = vmatprep.mubr.bf16.mxu0 0
        %6505 = vmatmul.mubr.bf16.gmra.mxu0 %v6371
        %v6506 = vpop.f32.mrf.mxu0
        %v6507 = vadd.f32 0.0, %v6506
        %v6508 = vpop.f32.mrf.mxu0
        %v6509 = vpop.f32.mrf.mxu0
        %v6510 = vadd.f32 0.0, %v6509
        %v6511 = vpop.f32.mrf.mxu0
        %6512 = vmatprep.mubr.bf16.mxu0 0
        %6513 = vmatmul.mubr.bf16.gmra.mxu0 %v6372
        %v6514 = vpop.f32.mrf.mxu0
        %v6515 = vadd.f32 0.0, %v6514
        %v6516 = vpop.f32.mrf.mxu0
        %v6517 = vpop.f32.mrf.mxu0
        %v6518 = vadd.f32 0.0, %v6517
        %v6519 = vpop.f32.mrf.mxu0
        %6520 = vmatprep.mubr.bf16.mxu0 0
        %6521 = vmatmul.mubr.bf16.gmra.mxu0 %v6373
        %v6522 = vpop.f32.mrf.mxu0
        %v6523 = vadd.f32 0.0, %v6522
        %v6524 = vpop.f32.mrf.mxu0
        %v6525 = vpop.f32.mrf.mxu0
        %v6526 = vadd.f32 0.0, %v6525
        %v6527 = vpop.f32.mrf.mxu0
        %6528 = vmatprep.mubr.bf16.mxu0 0
        %6529 = vmatmul.mubr.bf16.gmra.mxu0 %v6374
        %v6530 = vpop.f32.mrf.mxu0
        %v6531 = vadd.f32 0.0, %v6530
        %v6532 = vpop.f32.mrf.mxu0
        %v6533 = vpop.f32.mrf.mxu0
        %v6534 = vadd.f32 0.0, %v6533
        %v6535 = vpop.f32.mrf.mxu0
        %6536 = vmatprep.mubr.bf16.mxu0 0
        %6537 = vmatmul.mubr.bf16.gmra.mxu0 %v6375
        %v6538 = vpop.f32.mrf.mxu0
        %v6539 = vadd.f32 0.0, %v6538
        %v6540 = vpop.f32.mrf.mxu0
        %v6541 = vpop.f32.mrf.mxu0
        %v6542 = vadd.f32 0.0, %v6541
        %v6543 = vpop.f32.mrf.mxu0
        %6544 = vmatprep.mubr.bf16.mxu0 0
        %6545 = vmatmul.mubr.bf16.gmra.mxu0 %v6376
        %v6546 = vpop.f32.mrf.mxu0
        %v6547 = vadd.f32 0.0, %v6546
        %v6548 = vpop.f32.mrf.mxu0
        %v6549 = vpop.f32.mrf.mxu0
        %v6550 = vadd.f32 0.0, %v6549
        %v6551 = vpop.f32.mrf.mxu0
        %6552 = vmatprep.mubr.bf16.mxu0 0
        %6553 = vmatmul.mubr.bf16.gmra.mxu0 %v6377
        %v6554 = vpop.f32.mrf.mxu0
        %v6555 = vadd.f32 0.0, %v6554
        %v6556 = vpop.f32.mrf.mxu0
        %v6557 = vpop.f32.mrf.mxu0
        %v6558 = vadd.f32 0.0, %v6557
        %v6559 = vpop.f32.mrf.mxu0
        %6560 = vmatprep.mubr.bf16.mxu0 0
        %6561 = vmatmul.mubr.bf16.gmra.mxu0 %v6378
        %v6562 = vpop.f32.mrf.mxu0
        %v6563 = vadd.f32 0.0, %v6562
        %v6564 = vpop.f32.mrf.mxu0
        %v6565 = vpop.f32.mrf.mxu0
        %v6566 = vadd.f32 0.0, %v6565
        %v6567 = vpop.f32.mrf.mxu0
        %6568 = vmatprep.mubr.bf16.mxu0 0
        %6569 = vmatmul.mubr.bf16.gmra.mxu0 %v6379
        %v6570 = vpop.f32.mrf.mxu0
        %v6571 = vadd.f32 0.0, %v6570
        %v6572 = vpop.f32.mrf.mxu0
        %v6573 = vpop.f32.mrf.mxu0
        %v6574 = vadd.f32 0.0, %v6573
        %v6575 = vpop.f32.mrf.mxu0
        %6576 = vmatprep.mubr.bf16.mxu0 0
        %6577 = vmatmul.mubr.bf16.gmra.mxu0 %v6380
        %v6578 = vpop.f32.mrf.mxu0
        %v6579 = vadd.f32 0.0, %v6578
        %v6580 = vpop.f32.mrf.mxu0
        %v6581 = vpop.f32.mrf.mxu0
        %v6582 = vadd.f32 0.0, %v6581
        %v6583 = vpop.f32.mrf.mxu0
        %6584 = vmatprep.mubr.bf16.mxu0 0
        %6585 = vmatmul.mubr.bf16.gmra.mxu0 %v6381
        %v6586 = vpop.f32.mrf.mxu0
        %v6587 = vadd.f32 0.0, %v6586
        %v6588 = vpop.f32.mrf.mxu0
        %v6589 = vpop.f32.mrf.mxu0
        %v6590 = vadd.f32 0.0, %v6589
        %v6591 = vpop.f32.mrf.mxu0
        %6592 = vmatprep.mubr.bf16.mxu0 0
        %6593 = vmatmul.mubr.bf16.gmra.mxu0 %v6382
        %v6594 = vpop.f32.mrf.mxu0
        %v6595 = vadd.f32 0.0, %v6594
        %v6596 = vpop.f32.mrf.mxu0
        %v6597 = vpop.f32.mrf.mxu0
        %v6598 = vadd.f32 0.0, %v6597
        %v6599 = vpop.f32.mrf.mxu0
        %6600 = vmatprep.mubr.bf16.mxu0 0
        %6601 = vmatmul.mubr.bf16.gmra.mxu0 %v6383
        %v6602 = vpop.f32.mrf.mxu0
        %v6603 = vadd.f32 0.0, %v6602
        %v6604 = vpop.f32.mrf.mxu0
        %v6605 = vpop.f32.mrf.mxu0
        %v6606 = vadd.f32 0.0, %v6605
        %v6607 = vpop.f32.mrf.mxu0
        %6608 = vdwg.mxu0
        %v6609 = vadd.f32 %v6111, %v6483
        %v6610 = vadd.f32 %v6112, %v6486
        %v6611 = vadd.f32 %v6113, %v6491
        %v6612 = vadd.f32 %v6114, %v6494
        %v6613 = vadd.f32 %v6115, %v6499
        %v6614 = vadd.f32 %v6116, %v6502
        %v6615 = vadd.f32 %v6117, %v6507
        %v6616 = vadd.f32 %v6118, %v6510
        %v6617 = vadd.f32 %v6119, %v6515
        %v6618 = vadd.f32 %v6120, %v6518
        %v6619 = vadd.f32 %v6121, %v6523
        %v6620 = vadd.f32 %v6122, %v6526
        %v6621 = vadd.f32 %v6123, %v6531
        %v6622 = vadd.f32 %v6124, %v6534
        %v6623 = vadd.f32 %v6125, %v6539
        %v6624 = vadd.f32 %v6126, %v6542
        %v6625 = vadd.f32 %v6127, %v6547
        %v6626 = vadd.f32 %v6128, %v6550
        %v6627 = vadd.f32 %v6129, %v6555
        %v6628 = vadd.f32 %v6130, %v6558
        %v6629 = vadd.f32 %v6131, %v6563
        %v6630 = vadd.f32 %v6132, %v6566
        %v6631 = vadd.f32 %v6133, %v6571
        %v6632 = vadd.f32 %v6134, %v6574
        %v6633 = vadd.f32 %v6135, %v6579
        %v6634 = vadd.f32 %v6136, %v6582
        %v6635 = vadd.f32 %v6137, %v6587
        %v6636 = vadd.f32 %v6138, %v6590
        %v6637 = vadd.f32 %v6139, %v6595
        %v6638 = vadd.f32 %v6140, %v6598
        %v6639 = vadd.f32 %v6141, %v6603
        %v6640 = vadd.f32 %v6142, %v6606
        %v6641 = vmul.f32 %v1085, %v1085
        %v6642 = vmul.f32 %v1086, %v1086
        %v6643 = vmul.f32 %v1087, %v1087
        %v6644 = vmul.f32 %v1088, %v1088
        %v6645 = vmul.f32 %v1089, %v1089
        %v6646 = vmul.f32 %v1090, %v1090
        %v6647 = vmul.f32 %v1091, %v1091
        %v6648 = vmul.f32 %v1092, %v1092
        %v6649 = vmul.f32 %v1093, %v1093
        %v6650 = vmul.f32 %v1094, %v1094
        %v6651 = vmul.f32 %v1095, %v1095
        %v6652 = vmul.f32 %v1096, %v1096
        %v6653 = vmul.f32 %v1097, %v1097
        %v6654 = vmul.f32 %v1098, %v1098
        %v6655 = vmul.f32 %v1099, %v1099
        %v6656 = vmul.f32 %v1100, %v1100
        %v6657 = vmul.f32 %v1101, %v1101
        %v6658 = vmul.f32 %v1102, %v1102
        %v6659 = vmul.f32 %v1103, %v1103
        %v6660 = vmul.f32 %v1104, %v1104
        %v6661 = vmul.f32 %v1105, %v1105
        %v6662 = vmul.f32 %v1106, %v1106
        %v6663 = vmul.f32 %v1107, %v1107
        %v6664 = vmul.f32 %v1108, %v1108
        %v6665 = vmul.f32 %v1109, %v1109
        %v6666 = vmul.f32 %v1110, %v1110
        %v6667 = vmul.f32 %v1111, %v1111
        %v6668 = vmul.f32 %v1112, %v1112
        %v6669 = vmul.f32 %v1113, %v1113
        %v6670 = vmul.f32 %v1114, %v1114
        %v6671 = vmul.f32 %v1115, %v1115
        %v6672 = vmul.f32 %v1116, %v1116
        %v6673 = vmul.f32 %v1117, %v1117
        %v6674 = vmul.f32 %v1118, %v1118
        %v6675 = vmul.f32 %v1119, %v1119
        %v6676 = vmul.f32 %v1120, %v1120
        %6677 = vadd.xlane.f32.xlu0 %v6641
        %v6678 = vpop.xlane.xlu0 %6677
        %6679 = vadd.xlane.f32.xlu0 %v6642
        %v6680 = vpop.xlane.xlu0 %6679
        %6681 = vadd.xlane.f32.xlu0 %v6643
        %v6682 = vpop.xlane.xlu0 %6681
        %6683 = vadd.xlane.f32.xlu0 %v6644
        %v6684 = vpop.xlane.xlu0 %6683
        %6685 = vadd.xlane.f32.xlu0 %v6645
        %v6686 = vpop.xlane.xlu0 %6685
        %6687 = vadd.xlane.f32.xlu0 %v6646
        %v6688 = vpop.xlane.xlu0 %6687
        %6689 = vadd.xlane.f32.xlu0 %v6647
        %v6690 = vpop.xlane.xlu0 %6689
        %6691 = vadd.xlane.f32.xlu0 %v6648
        %v6692 = vpop.xlane.xlu0 %6691
        %6693 = vadd.xlane.f32.xlu0 %v6649
        %v6694 = vpop.xlane.xlu0 %6693
        %6695 = vadd.xlane.f32.xlu0 %v6650
        %v6696 = vpop.xlane.xlu0 %6695
        %6697 = vadd.xlane.f32.xlu0 %v6651
        %v6698 = vpop.xlane.xlu0 %6697
        %6699 = vadd.xlane.f32.xlu0 %v6652
        %v6700 = vpop.xlane.xlu0 %6699
        %6701 = vadd.xlane.f32.xlu0 %v6653
        %v6702 = vpop.xlane.xlu0 %6701
        %6703 = vadd.xlane.f32.xlu0 %v6654
        %v6704 = vpop.xlane.xlu0 %6703
        %6705 = vadd.xlane.f32.xlu0 %v6655
        %v6706 = vpop.xlane.xlu0 %6705
        %6707 = vadd.xlane.f32.xlu0 %v6656
        %v6708 = vpop.xlane.xlu0 %6707
        %6709 = vadd.xlane.f32.xlu0 %v6657
        %v6710 = vpop.xlane.xlu0 %6709
        %6711 = vadd.xlane.f32.xlu0 %v6658
        %v6712 = vpop.xlane.xlu0 %6711
        %6713 = vadd.xlane.f32.xlu0 %v6659
        %v6714 = vpop.xlane.xlu0 %6713
        %6715 = vadd.xlane.f32.xlu0 %v6660
        %v6716 = vpop.xlane.xlu0 %6715
        %6717 = vadd.xlane.f32.xlu0 %v6661
        %v6718 = vpop.xlane.xlu0 %6717
        %6719 = vadd.xlane.f32.xlu0 %v6662
        %v6720 = vpop.xlane.xlu0 %6719
        %6721 = vadd.xlane.f32.xlu0 %v6663
        %v6722 = vpop.xlane.xlu0 %6721
        %6723 = vadd.xlane.f32.xlu0 %v6664
        %v6724 = vpop.xlane.xlu0 %6723
        %6725 = vadd.xlane.f32.xlu0 %v6665
        %v6726 = vpop.xlane.xlu0 %6725
        %6727 = vadd.xlane.f32.xlu0 %v6666
        %v6728 = vpop.xlane.xlu0 %6727
        %6729 = vadd.xlane.f32.xlu0 %v6667
        %v6730 = vpop.xlane.xlu0 %6729
        %6731 = vadd.xlane.f32.xlu0 %v6668
        %v6732 = vpop.xlane.xlu0 %6731
        %6733 = vadd.xlane.f32.xlu0 %v6669
        %v6734 = vpop.xlane.xlu0 %6733
        %6735 = vadd.xlane.f32.xlu0 %v6670
        %v6736 = vpop.xlane.xlu0 %6735
        %6737 = vadd.xlane.f32.xlu0 %v6671
        %v6738 = vpop.xlane.xlu0 %6737
        %6739 = vadd.xlane.f32.xlu0 %v6672
        %v6740 = vpop.xlane.xlu0 %6739
        %6741 = vadd.xlane.f32.xlu0 %v6673
        %v6742 = vpop.xlane.xlu0 %6741
        %6743 = vadd.xlane.f32.xlu0 %v6674
        %v6744 = vpop.xlane.xlu0 %6743
        %6745 = vadd.xlane.f32.xlu0 %v6675
        %v6746 = vpop.xlane.xlu0 %6745
        %6747 = vadd.xlane.f32.xlu0 %v6676
        %v6748 = vpop.xlane.xlu0 %6747
        %v6749 = vadd.f32 %v6678, %v6682
        %v6750 = vadd.f32 %v6680, %v6684
        %v6751 = vadd.f32 %v6682, %v6686
        %v6752 = vadd.f32 %v6684, %v6688
        %v6753 = vadd.f32 %v6686, %v6690
        %v6754 = vadd.f32 %v6688, %v6692
        %v6755 = vadd.f32 %v6690, %v6694
        %v6756 = vadd.f32 %v6692, %v6696
        %v6757 = vadd.f32 %v6694, %v6698
        %v6758 = vadd.f32 %v6696, %v6700
        %v6759 = vadd.f32 %v6698, %v6702
        %v6760 = vadd.f32 %v6700, %v6704
        %v6761 = vadd.f32 %v6702, %v6706
        %v6762 = vadd.f32 %v6704, %v6708
        %v6763 = vadd.f32 %v6706, %v6710
        %v6764 = vadd.f32 %v6708, %v6712
        %v6765 = vadd.f32 %v6710, %v6714
        %v6766 = vadd.f32 %v6712, %v6716
        %v6767 = vadd.f32 %v6714, %v6718
        %v6768 = vadd.f32 %v6716, %v6720
        %v6769 = vadd.f32 %v6718, %v6722
        %v6770 = vadd.f32 %v6720, %v6724
        %v6771 = vadd.f32 %v6722, %v6726
        %v6772 = vadd.f32 %v6724, %v6728
        %v6773 = vadd.f32 %v6726, %v6730
        %v6774 = vadd.f32 %v6728, %v6732
        %v6775 = vadd.f32 %v6730, %v6734
        %v6776 = vadd.f32 %v6732, %v6736
        %v6777 = vadd.f32 %v6734, %v6738
        %v6778 = vadd.f32 %v6736, %v6740
        %v6779 = vadd.f32 %v6738, %v6742
        %v6780 = vadd.f32 %v6740, %v6744
        %v6781 = vadd.f32 %v6749, %v6686
        %v6782 = vadd.f32 %v6750, %v6688
        %v6783 = vadd.f32 %v6751, %v6690
        %v6784 = vadd.f32 %v6752, %v6692
        %v6785 = vadd.f32 %v6753, %v6694
        %v6786 = vadd.f32 %v6754, %v6696
        %v6787 = vadd.f32 %v6755, %v6698
        %v6788 = vadd.f32 %v6756, %v6700
        %v6789 = vadd.f32 %v6757, %v6702
        %v6790 = vadd.f32 %v6758, %v6704
        %v6791 = vadd.f32 %v6759, %v6706
        %v6792 = vadd.f32 %v6760, %v6708
        %v6793 = vadd.f32 %v6761, %v6710
        %v6794 = vadd.f32 %v6762, %v6712
        %v6795 = vadd.f32 %v6763, %v6714
        %v6796 = vadd.f32 %v6764, %v6716
        %v6797 = vadd.f32 %v6765, %v6718
        %v6798 = vadd.f32 %v6766, %v6720
        %v6799 = vadd.f32 %v6767, %v6722
        %v6800 = vadd.f32 %v6768, %v6724
        %v6801 = vadd.f32 %v6769, %v6726
        %v6802 = vadd.f32 %v6770, %v6728
        %v6803 = vadd.f32 %v6771, %v6730
        %v6804 = vadd.f32 %v6772, %v6732
        %v6805 = vadd.f32 %v6773, %v6734
        %v6806 = vadd.f32 %v6774, %v6736
        %v6807 = vadd.f32 %v6775, %v6738
        %v6808 = vadd.f32 %v6776, %v6740
        %v6809 = vadd.f32 %v6777, %v6742
        %v6810 = vadd.f32 %v6778, %v6744
        %v6811 = vadd.f32 %v6779, %v6746
        %v6812 = vadd.f32 %v6780, %v6748
        %vm6845 = vcmask 1040384
        %v6846 = vrot.slane %v6781, 7
        %v6847 = vrot.slane %v6782, 7
        %v6848 = vsel %vm6845, %v6846, %v6847
        %v6849 = vrot.slane %v6783, 7
        %v6850 = vrot.slane %v6784, 7
        %v6851 = vsel %vm6845, %v6849, %v6850
        %v6852 = vrot.slane %v6785, 7
        %v6853 = vrot.slane %v6786, 7
        %v6854 = vsel %vm6845, %v6852, %v6853
        %v6855 = vrot.slane %v6787, 7
        %v6856 = vrot.slane %v6788, 7
        %v6857 = vsel %vm6845, %v6855, %v6856
        %v6858 = vrot.slane %v6789, 7
        %v6859 = vrot.slane %v6790, 7
        %v6860 = vsel %vm6845, %v6858, %v6859
        %v6861 = vrot.slane %v6791, 7
        %v6862 = vrot.slane %v6792, 7
        %v6863 = vsel %vm6845, %v6861, %v6862
        %v6864 = vrot.slane %v6793, 7
        %v6865 = vrot.slane %v6794, 7
        %v6866 = vsel %vm6845, %v6864, %v6865
        %v6867 = vrot.slane %v6795, 7
        %v6868 = vrot.slane %v6796, 7
        %v6869 = vsel %vm6845, %v6867, %v6868
        %v6870 = vrot.slane %v6797, 7
        %v6871 = vrot.slane %v6798, 7
        %v6872 = vsel %vm6845, %v6870, %v6871
        %v6873 = vrot.slane %v6799, 7
        %v6874 = vrot.slane %v6800, 7
        %v6875 = vsel %vm6845, %v6873, %v6874
        %v6876 = vrot.slane %v6801, 7
        %v6877 = vrot.slane %v6802, 7
        %v6878 = vsel %vm6845, %v6876, %v6877
        %v6879 = vrot.slane %v6803, 7
        %v6880 = vrot.slane %v6804, 7
        %v6881 = vsel %vm6845, %v6879, %v6880
        %v6882 = vrot.slane %v6805, 7
        %v6883 = vrot.slane %v6806, 7
        %v6884 = vsel %vm6845, %v6882, %v6883
        %v6885 = vrot.slane %v6807, 7
        %v6886 = vrot.slane %v6808, 7
        %v6887 = vsel %vm6845, %v6885, %v6886
        %v6888 = vrot.slane %v6809, 7
        %v6889 = vrot.slane %v6810, 7
        %v6890 = vsel %vm6845, %v6888, %v6889
        %v6891 = vrot.slane %v6811, 7
        %v6892 = vrot.slane %v6812, 7
        %v6893 = vsel %vm6845, %v6891, %v6892
        %v6942 = vsel %vm6845, 0.0, %v6846
        %v6943 = vsel %vm6845, 0.0, %v6849
        %v6944 = vsel %vm6845, 0.0, %v6852
        %v6945 = vsel %vm6845, 0.0, %v6855
        %v6946 = vsel %vm6845, 0.0, %v6858
        %v6947 = vsel %vm6845, 0.0, %v6861
        %v6948 = vsel %vm6845, 0.0, %v6864
        %v6949 = vsel %vm6845, 0.0, %v6867
        %v6950 = vsel %vm6845, 0.0, %v6870
        %v6951 = vsel %vm6845, 0.0, %v6873
        %v6952 = vsel %vm6845, 0.0, %v6876
        %v6953 = vsel %vm6845, 0.0, %v6879
        %v6954 = vsel %vm6845, 0.0, %v6882
        %v6955 = vsel %vm6845, 0.0, %v6885
        %v6956 = vsel %vm6845, 0.0, %v6888
        %v6957 = vsel %vm6845, 0.0, %v6891
        %v6958 = vsel %vm6845, %v6847, 0.0
        %v6959 = vsel %vm6845, %v6850, 0.0
        %v6960 = vsel %vm6845, %v6853, 0.0
        %v6961 = vsel %vm6845, %v6856, 0.0
        %v6962 = vsel %vm6845, %v6859, 0.0
        %v6963 = vsel %vm6845, %v6862, 0.0
        %v6964 = vsel %vm6845, %v6865, 0.0
        %v6965 = vsel %vm6845, %v6868, 0.0
        %v6966 = vsel %vm6845, %v6871, 0.0
        %v6967 = vsel %vm6845, %v6874, 0.0
        %v6968 = vsel %vm6845, %v6877, 0.0
        %v6969 = vsel %vm6845, %v6880, 0.0
        %v6970 = vsel %vm6845, %v6883, 0.0
        %v6971 = vsel %vm6845, %v6886, 0.0
        %v6972 = vsel %vm6845, %v6889, 0.0
        %v6973 = vsel %vm6845, %v6892, 0.0
        %vm7006 = vcmask 1046528
        %v7007 = vrot.slane %v6942, 1
        %v7008 = vrot.slane %v6848, 1
        %v7009 = vsel %vm7006, %v7007, %v7008
        %v7010 = vrot.slane %v6958, 1
        %v7011 = vsel %vm7006, %v7008, %v7010
        %v7012 = vrot.slane %v6943, 1
        %v7013 = vrot.slane %v6851, 1
        %v7014 = vsel %vm7006, %v7012, %v7013
        %v7015 = vrot.slane %v6959, 1
        %v7016 = vsel %vm7006, %v7013, %v7015
        %v7017 = vrot.slane %v6944, 1
        %v7018 = vrot.slane %v6854, 1
        %v7019 = vsel %vm7006, %v7017, %v7018
        %v7020 = vrot.slane %v6960, 1
        %v7021 = vsel %vm7006, %v7018, %v7020
        %v7022 = vrot.slane %v6945, 1
        %v7023 = vrot.slane %v6857, 1
        %v7024 = vsel %vm7006, %v7022, %v7023
        %v7025 = vrot.slane %v6961, 1
        %v7026 = vsel %vm7006, %v7023, %v7025
        %v7027 = vrot.slane %v6946, 1
        %v7028 = vrot.slane %v6860, 1
        %v7029 = vsel %vm7006, %v7027, %v7028
        %v7030 = vrot.slane %v6962, 1
        %v7031 = vsel %vm7006, %v7028, %v7030
        %v7032 = vrot.slane %v6947, 1
        %v7033 = vrot.slane %v6863, 1
        %v7034 = vsel %vm7006, %v7032, %v7033
        %v7035 = vrot.slane %v6963, 1
        %v7036 = vsel %vm7006, %v7033, %v7035
        %v7037 = vrot.slane %v6948, 1
        %v7038 = vrot.slane %v6866, 1
        %v7039 = vsel %vm7006, %v7037, %v7038
        %v7040 = vrot.slane %v6964, 1
        %v7041 = vsel %vm7006, %v7038, %v7040
        %v7042 = vrot.slane %v6949, 1
        %v7043 = vrot.slane %v6869, 1
        %v7044 = vsel %vm7006, %v7042, %v7043
        %v7045 = vrot.slane %v6965, 1
        %v7046 = vsel %vm7006, %v7043, %v7045
        %v7047 = vrot.slane %v6950, 1
        %v7048 = vrot.slane %v6872, 1
        %v7049 = vsel %vm7006, %v7047, %v7048
        %v7050 = vrot.slane %v6966, 1
        %v7051 = vsel %vm7006, %v7048, %v7050
        %v7052 = vrot.slane %v6951, 1
        %v7053 = vrot.slane %v6875, 1
        %v7054 = vsel %vm7006, %v7052, %v7053
        %v7055 = vrot.slane %v6967, 1
        %v7056 = vsel %vm7006, %v7053, %v7055
        %v7057 = vrot.slane %v6952, 1
        %v7058 = vrot.slane %v6878, 1
        %v7059 = vsel %vm7006, %v7057, %v7058
        %v7060 = vrot.slane %v6968, 1
        %v7061 = vsel %vm7006, %v7058, %v7060
        %v7062 = vrot.slane %v6953, 1
        %v7063 = vrot.slane %v6881, 1
        %v7064 = vsel %vm7006, %v7062, %v7063
        %v7065 = vrot.slane %v6969, 1
        %v7066 = vsel %vm7006, %v7063, %v7065
        %v7067 = vrot.slane %v6954, 1
        %v7068 = vrot.slane %v6884, 1
        %v7069 = vsel %vm7006, %v7067, %v7068
        %v7070 = vrot.slane %v6970, 1
        %v7071 = vsel %vm7006, %v7068, %v7070
        %v7072 = vrot.slane %v6955, 1
        %v7073 = vrot.slane %v6887, 1
        %v7074 = vsel %vm7006, %v7072, %v7073
        %v7075 = vrot.slane %v6971, 1
        %v7076 = vsel %vm7006, %v7073, %v7075
        %v7077 = vrot.slane %v6956, 1
        %v7078 = vrot.slane %v6890, 1
        %v7079 = vsel %vm7006, %v7077, %v7078
        %v7080 = vrot.slane %v6972, 1
        %v7081 = vsel %vm7006, %v7078, %v7080
        %v7082 = vrot.slane %v6957, 1
        %v7083 = vrot.slane %v6893, 1
        %v7084 = vsel %vm7006, %v7082, %v7083
        %v7085 = vrot.slane %v6973, 1
        %v7086 = vsel %vm7006, %v7083, %v7085
        %v7119 = vadd.f32 %v6942, %v7009
        %v7120 = vadd.f32 %v6848, %v7011
        %v7121 = vadd.f32 %v6943, %v7014
        %v7122 = vadd.f32 %v6851, %v7016
        %v7123 = vadd.f32 %v6944, %v7019
        %v7124 = vadd.f32 %v6854, %v7021
        %v7125 = vadd.f32 %v6945, %v7024
        %v7126 = vadd.f32 %v6857, %v7026
        %v7127 = vadd.f32 %v6946, %v7029
        %v7128 = vadd.f32 %v6860, %v7031
        %v7129 = vadd.f32 %v6947, %v7034
        %v7130 = vadd.f32 %v6863, %v7036
        %v7131 = vadd.f32 %v6948, %v7039
        %v7132 = vadd.f32 %v6866, %v7041
        %v7133 = vadd.f32 %v6949, %v7044
        %v7134 = vadd.f32 %v6869, %v7046
        %v7135 = vadd.f32 %v6950, %v7049
        %v7136 = vadd.f32 %v6872, %v7051
        %v7137 = vadd.f32 %v6951, %v7054
        %v7138 = vadd.f32 %v6875, %v7056
        %v7139 = vadd.f32 %v6952, %v7059
        %v7140 = vadd.f32 %v6878, %v7061
        %v7141 = vadd.f32 %v6953, %v7064
        %v7142 = vadd.f32 %v6881, %v7066
        %v7143 = vadd.f32 %v6954, %v7069
        %v7144 = vadd.f32 %v6884, %v7071
        %v7145 = vadd.f32 %v6955, %v7074
        %v7146 = vadd.f32 %v6887, %v7076
        %v7147 = vadd.f32 %v6956, %v7079
        %v7148 = vadd.f32 %v6890, %v7081
        %v7149 = vadd.f32 %v6957, %v7084
        %v7150 = vadd.f32 %v6893, %v7086
        %vm7151 = vcmask 1045504
        %v7152 = vrot.slane %v6942, 2
        %v7153 = vrot.slane %v6848, 2
        %v7154 = vsel %vm7151, %v7152, %v7153
        %v7155 = vrot.slane %v6958, 2
        %v7156 = vsel %vm7151, %v7153, %v7155
        %v7157 = vrot.slane %v6943, 2
        %v7158 = vrot.slane %v6851, 2
        %v7159 = vsel %vm7151, %v7157, %v7158
        %v7160 = vrot.slane %v6959, 2
        %v7161 = vsel %vm7151, %v7158, %v7160
        %v7162 = vrot.slane %v6944, 2
        %v7163 = vrot.slane %v6854, 2
        %v7164 = vsel %vm7151, %v7162, %v7163
        %v7165 = vrot.slane %v6960, 2
        %v7166 = vsel %vm7151, %v7163, %v7165
        %v7167 = vrot.slane %v6945, 2
        %v7168 = vrot.slane %v6857, 2
        %v7169 = vsel %vm7151, %v7167, %v7168
        %v7170 = vrot.slane %v6961, 2
        %v7171 = vsel %vm7151, %v7168, %v7170
        %v7172 = vrot.slane %v6946, 2
        %v7173 = vrot.slane %v6860, 2
        %v7174 = vsel %vm7151, %v7172, %v7173
        %v7175 = vrot.slane %v6962, 2
        %v7176 = vsel %vm7151, %v7173, %v7175
        %v7177 = vrot.slane %v6947, 2
        %v7178 = vrot.slane %v6863, 2
        %v7179 = vsel %vm7151, %v7177, %v7178
        %v7180 = vrot.slane %v6963, 2
        %v7181 = vsel %vm7151, %v7178, %v7180
        %v7182 = vrot.slane %v6948, 2
        %v7183 = vrot.slane %v6866, 2
        %v7184 = vsel %vm7151, %v7182, %v7183
        %v7185 = vrot.slane %v6964, 2
        %v7186 = vsel %vm7151, %v7183, %v7185
        %v7187 = vrot.slane %v6949, 2
        %v7188 = vrot.slane %v6869, 2
        %v7189 = vsel %vm7151, %v7187, %v7188
        %v7190 = vrot.slane %v6965, 2
        %v7191 = vsel %vm7151, %v7188, %v7190
        %v7192 = vrot.slane %v6950, 2
        %v7193 = vrot.slane %v6872, 2
        %v7194 = vsel %vm7151, %v7192, %v7193
        %v7195 = vrot.slane %v6966, 2
        %v7196 = vsel %vm7151, %v7193, %v7195
        %v7197 = vrot.slane %v6951, 2
        %v7198 = vrot.slane %v6875, 2
        %v7199 = vsel %vm7151, %v7197, %v7198
        %v7200 = vrot.slane %v6967, 2
        %v7201 = vsel %vm7151, %v7198, %v7200
        %v7202 = vrot.slane %v6952, 2
        %v7203 = vrot.slane %v6878, 2
        %v7204 = vsel %vm7151, %v7202, %v7203
        %v7205 = vrot.slane %v6968, 2
        %v7206 = vsel %vm7151, %v7203, %v7205
        %v7207 = vrot.slane %v6953, 2
        %v7208 = vrot.slane %v6881, 2
        %v7209 = vsel %vm7151, %v7207, %v7208
        %v7210 = vrot.slane %v6969, 2
        %v7211 = vsel %vm7151, %v7208, %v7210
        %v7212 = vrot.slane %v6954, 2
        %v7213 = vrot.slane %v6884, 2
        %v7214 = vsel %vm7151, %v7212, %v7213
        %v7215 = vrot.slane %v6970, 2
        %v7216 = vsel %vm7151, %v7213, %v7215
        %v7217 = vrot.slane %v6955, 2
        %v7218 = vrot.slane %v6887, 2
        %v7219 = vsel %vm7151, %v7217, %v7218
        %v7220 = vrot.slane %v6971, 2
        %v7221 = vsel %vm7151, %v7218, %v7220
        %v7222 = vrot.slane %v6956, 2
        %v7223 = vrot.slane %v6890, 2
        %v7224 = vsel %vm7151, %v7222, %v7223
        %v7225 = vrot.slane %v6972, 2
        %v7226 = vsel %vm7151, %v7223, %v7225
        %v7227 = vrot.slane %v6957, 2
        %v7228 = vrot.slane %v6893, 2
        %v7229 = vsel %vm7151, %v7227, %v7228
        %v7230 = vrot.slane %v6973, 2
        %v7231 = vsel %vm7151, %v7228, %v7230
        %v7264 = vadd.f32 %v7119, %v7154
        %v7265 = vadd.f32 %v7120, %v7156
        %v7266 = vadd.f32 %v7121, %v7159
        %v7267 = vadd.f32 %v7122, %v7161
        %v7268 = vadd.f32 %v7123, %v7164
        %v7269 = vadd.f32 %v7124, %v7166
        %v7270 = vadd.f32 %v7125, %v7169
        %v7271 = vadd.f32 %v7126, %v7171
        %v7272 = vadd.f32 %v7127, %v7174
        %v7273 = vadd.f32 %v7128, %v7176
        %v7274 = vadd.f32 %v7129, %v7179
        %v7275 = vadd.f32 %v7130, %v7181
        %v7276 = vadd.f32 %v7131, %v7184
        %v7277 = vadd.f32 %v7132, %v7186
        %v7278 = vadd.f32 %v7133, %v7189
        %v7279 = vadd.f32 %v7134, %v7191
        %v7280 = vadd.f32 %v7135, %v7194
        %v7281 = vadd.f32 %v7136, %v7196
        %v7282 = vadd.f32 %v7137, %v7199
        %v7283 = vadd.f32 %v7138, %v7201
        %v7284 = vadd.f32 %v7139, %v7204
        %v7285 = vadd.f32 %v7140, %v7206
        %v7286 = vadd.f32 %v7141, %v7209
        %v7287 = vadd.f32 %v7142, %v7211
        %v7288 = vadd.f32 %v7143, %v7214
        %v7289 = vadd.f32 %v7144, %v7216
        %v7290 = vadd.f32 %v7145, %v7219
        %v7291 = vadd.f32 %v7146, %v7221
        %v7292 = vadd.f32 %v7147, %v7224
        %v7293 = vadd.f32 %v7148, %v7226
        %v7294 = vadd.f32 %v7149, %v7229
        %v7295 = vadd.f32 %v7150, %v7231
        %v7296 = vadd.f32 %v7264, 1e-12
        %v7297 = vadd.f32 %v7265, 1e-12
        %v7298 = vadd.f32 %v7266, 1e-12
        %v7299 = vadd.f32 %v7267, 1e-12
        %v7300 = vadd.f32 %v7268, 1e-12
        %v7301 = vadd.f32 %v7269, 1e-12
        %v7302 = vadd.f32 %v7270, 1e-12
        %v7303 = vadd.f32 %v7271, 1e-12
        %v7304 = vadd.f32 %v7272, 1e-12
        %v7305 = vadd.f32 %v7273, 1e-12
        %v7306 = vadd.f32 %v7274, 1e-12
        %v7307 = vadd.f32 %v7275, 1e-12
        %v7308 = vadd.f32 %v7276, 1e-12
        %v7309 = vadd.f32 %v7277, 1e-12
        %v7310 = vadd.f32 %v7278, 1e-12
        %v7311 = vadd.f32 %v7279, 1e-12
        %v7312 = vadd.f32 %v7280, 1e-12
        %v7313 = vadd.f32 %v7281, 1e-12
        %v7314 = vadd.f32 %v7282, 1e-12
        %v7315 = vadd.f32 %v7283, 1e-12
        %v7316 = vadd.f32 %v7284, 1e-12
        %v7317 = vadd.f32 %v7285, 1e-12
        %v7318 = vadd.f32 %v7286, 1e-12
        %v7319 = vadd.f32 %v7287, 1e-12
        %v7320 = vadd.f32 %v7288, 1e-12
        %v7321 = vadd.f32 %v7289, 1e-12
        %v7322 = vadd.f32 %v7290, 1e-12
        %v7323 = vadd.f32 %v7291, 1e-12
        %v7324 = vadd.f32 %v7292, 1e-12
        %v7325 = vadd.f32 %v7293, 1e-12
        %v7326 = vadd.f32 %v7294, 1e-12
        %v7327 = vadd.f32 %v7295, 1e-12
        %v7328 = vrsqrt.pop %v7296
        %v7329 = vrsqrt.pop %v7297
        %v7330 = vrsqrt.pop %v7298
        %v7331 = vrsqrt.pop %v7299
        %v7332 = vrsqrt.pop %v7300
        %v7333 = vrsqrt.pop %v7301
        %v7334 = vrsqrt.pop %v7302
        %v7335 = vrsqrt.pop %v7303
        %v7336 = vrsqrt.pop %v7304
        %v7337 = vrsqrt.pop %v7305
        %v7338 = vrsqrt.pop %v7306
        %v7339 = vrsqrt.pop %v7307
        %v7340 = vrsqrt.pop %v7308
        %v7341 = vrsqrt.pop %v7309
        %v7342 = vrsqrt.pop %v7310
        %v7343 = vrsqrt.pop %v7311
        %v7344 = vrsqrt.pop %v7312
        %v7345 = vrsqrt.pop %v7313
        %v7346 = vrsqrt.pop %v7314
        %v7347 = vrsqrt.pop %v7315
        %v7348 = vrsqrt.pop %v7316
        %v7349 = vrsqrt.pop %v7317
        %v7350 = vrsqrt.pop %v7318
        %v7351 = vrsqrt.pop %v7319
        %v7352 = vrsqrt.pop %v7320
        %v7353 = vrsqrt.pop %v7321
        %v7354 = vrsqrt.pop %v7322
        %v7355 = vrsqrt.pop %v7323
        %v7356 = vrsqrt.pop %v7324
        %v7357 = vrsqrt.pop %v7325
        %v7358 = vrsqrt.pop %v7326
        %v7359 = vrsqrt.pop %v7327
        %7361 = vset.pattern.permute.xlu0 0
        %7362 = vperm.xlu0 %7361, %v7328
        %v7363 = vpop.permute.xlu0 %7362
        %7366 = vset.pattern.permute.xlu0 0
        %7367 = vperm.xlu0 %7366, %v7329
        %v7368 = vpop.permute.xlu0 %7367
        %7371 = vset.pattern.permute.xlu0 0
        %7372 = vperm.xlu0 %7371, %v7330
        %v7373 = vpop.permute.xlu0 %7372
        %7376 = vset.pattern.permute.xlu0 0
        %7377 = vperm.xlu0 %7376, %v7331
        %v7378 = vpop.permute.xlu0 %7377
        %7381 = vset.pattern.permute.xlu0 0
        %7382 = vperm.xlu0 %7381, %v7332
        %v7383 = vpop.permute.xlu0 %7382
        %7386 = vset.pattern.permute.xlu0 0
        %7387 = vperm.xlu0 %7386, %v7333
        %v7388 = vpop.permute.xlu0 %7387
        %7391 = vset.pattern.permute.xlu0 0
        %7392 = vperm.xlu0 %7391, %v7334
        %v7393 = vpop.permute.xlu0 %7392
        %7396 = vset.pattern.permute.xlu0 0
        %7397 = vperm.xlu0 %7396, %v7335
        %v7398 = vpop.permute.xlu0 %7397
        %7401 = vset.pattern.permute.xlu0 0
        %7402 = vperm.xlu0 %7401, %v7336
        %v7403 = vpop.permute.xlu0 %7402
        %7406 = vset.pattern.permute.xlu0 0
        %7407 = vperm.xlu0 %7406, %v7337
        %v7408 = vpop.permute.xlu0 %7407
        %7411 = vset.pattern.permute.xlu0 0
        %7412 = vperm.xlu0 %7411, %v7338
        %v7413 = vpop.permute.xlu0 %7412
        %7416 = vset.pattern.permute.xlu0 0
        %7417 = vperm.xlu0 %7416, %v7339
        %v7418 = vpop.permute.xlu0 %7417
        %7421 = vset.pattern.permute.xlu0 0
        %7422 = vperm.xlu0 %7421, %v7340
        %v7423 = vpop.permute.xlu0 %7422
        %7426 = vset.pattern.permute.xlu0 0
        %7427 = vperm.xlu0 %7426, %v7341
        %v7428 = vpop.permute.xlu0 %7427
        %7431 = vset.pattern.permute.xlu0 0
        %7432 = vperm.xlu0 %7431, %v7342
        %v7433 = vpop.permute.xlu0 %7432
        %7436 = vset.pattern.permute.xlu0 0
        %7437 = vperm.xlu0 %7436, %v7343
        %v7438 = vpop.permute.xlu0 %7437
        %7441 = vset.pattern.permute.xlu0 0
        %7442 = vperm.xlu0 %7441, %v7344
        %v7443 = vpop.permute.xlu0 %7442
        %7446 = vset.pattern.permute.xlu0 0
        %7447 = vperm.xlu0 %7446, %v7345
        %v7448 = vpop.permute.xlu0 %7447
        %7451 = vset.pattern.permute.xlu0 0
        %7452 = vperm.xlu0 %7451, %v7346
        %v7453 = vpop.permute.xlu0 %7452
        %7456 = vset.pattern.permute.xlu0 0
        %7457 = vperm.xlu0 %7456, %v7347
        %v7458 = vpop.permute.xlu0 %7457
        %7461 = vset.pattern.permute.xlu0 0
        %7462 = vperm.xlu0 %7461, %v7348
        %v7463 = vpop.permute.xlu0 %7462
        %7466 = vset.pattern.permute.xlu0 0
        %7467 = vperm.xlu0 %7466, %v7349
        %v7468 = vpop.permute.xlu0 %7467
        %7471 = vset.pattern.permute.xlu0 0
        %7472 = vperm.xlu0 %7471, %v7350
        %v7473 = vpop.permute.xlu0 %7472
        %7476 = vset.pattern.permute.xlu0 0
        %7477 = vperm.xlu0 %7476, %v7351
        %v7478 = vpop.permute.xlu0 %7477
        %7481 = vset.pattern.permute.xlu0 0
        %7482 = vperm.xlu0 %7481, %v7352
        %v7483 = vpop.permute.xlu0 %7482
        %7486 = vset.pattern.permute.xlu0 0
        %7487 = vperm.xlu0 %7486, %v7353
        %v7488 = vpop.permute.xlu0 %7487
        %7491 = vset.pattern.permute.xlu0 0
        %7492 = vperm.xlu0 %7491, %v7354
        %v7493 = vpop.permute.xlu0 %7492
        %7496 = vset.pattern.permute.xlu0 0
        %7497 = vperm.xlu0 %7496, %v7355
        %v7498 = vpop.permute.xlu0 %7497
        %7501 = vset.pattern.permute.xlu0 0
        %7502 = vperm.xlu0 %7501, %v7356
        %v7503 = vpop.permute.xlu0 %7502
        %7506 = vset.pattern.permute.xlu0 0
        %7507 = vperm.xlu0 %7506, %v7357
        %v7508 = vpop.permute.xlu0 %7507
        %7511 = vset.pattern.permute.xlu0 0
        %7512 = vperm.xlu0 %7511, %v7358
        %v7513 = vpop.permute.xlu0 %7512
        %7516 = vset.pattern.permute.xlu0 0
        %7517 = vperm.xlu0 %7516, %v7359
        %v7518 = vpop.permute.xlu0 %7517
        %v7520 = vmul.f32 %v6609, %v7363
        %v7521 = vmul.f32 %v6610, %v7368
        %v7522 = vmul.f32 %v6611, %v7373
        %v7523 = vmul.f32 %v6612, %v7378
        %v7524 = vmul.f32 %v6613, %v7383
        %v7525 = vmul.f32 %v6614, %v7388
        %v7526 = vmul.f32 %v6615, %v7393
        %v7527 = vmul.f32 %v6616, %v7398
        %v7528 = vmul.f32 %v6617, %v7403
        %v7529 = vmul.f32 %v6618, %v7408
        %v7530 = vmul.f32 %v6619, %v7413
        %v7531 = vmul.f32 %v6620, %v7418
        %v7532 = vmul.f32 %v6621, %v7423
        %v7533 = vmul.f32 %v6622, %v7428
        %v7534 = vmul.f32 %v6623, %v7433
        %v7535 = vmul.f32 %v6624, %v7438
        %v7536 = vmul.f32 %v6625, %v7443
        %v7537 = vmul.f32 %v6626, %v7448
        %v7538 = vmul.f32 %v6627, %v7453
        %v7539 = vmul.f32 %v6628, %v7458
        %v7540 = vmul.f32 %v6629, %v7463
        %v7541 = vmul.f32 %v6630, %v7468
        %v7542 = vmul.f32 %v6631, %v7473
        %v7543 = vmul.f32 %v6632, %v7478
        %v7544 = vmul.f32 %v6633, %v7483
        %v7545 = vmul.f32 %v6634, %v7488
        %v7546 = vmul.f32 %v6635, %v7493
        %v7547 = vmul.f32 %v6636, %v7498
        %v7548 = vmul.f32 %v6637, %v7503
        %v7549 = vmul.f32 %v6638, %v7508
        %v7550 = vmul.f32 %v6639, %v7513
        %v7551 = vmul.f32 %v6640, %v7518
        %v7552 = vld [vmem:[%s5] sm:$0x1]
        %v7554 = vlaneseq
        %v7555 = vshrl.u32 %v7554, 7
        %v7556 = vsub.s32 0, %v7555
        %v7557 = vrot.slane %v7552, %v7556
        %v7559 = vadd.f32 %v7520, %v7557
        %v7560 = vadd.f32 %v7521, %v7557
        %v7561 = vadd.f32 %v7522, %v7557
        %v7562 = vadd.f32 %v7523, %v7557
        %v7563 = vadd.f32 %v7524, %v7557
        %v7564 = vadd.f32 %v7525, %v7557
        %v7565 = vadd.f32 %v7526, %v7557
        %v7566 = vadd.f32 %v7527, %v7557
        %v7567 = vadd.f32 %v7528, %v7557
        %v7568 = vadd.f32 %v7529, %v7557
        %v7569 = vadd.f32 %v7530, %v7557
        %v7570 = vadd.f32 %v7531, %v7557
        %v7571 = vadd.f32 %v7532, %v7557
        %v7572 = vadd.f32 %v7533, %v7557
        %v7573 = vadd.f32 %v7534, %v7557
        %v7574 = vadd.f32 %v7535, %v7557
        %v7575 = vadd.f32 %v7536, %v7557
        %v7576 = vadd.f32 %v7537, %v7557
        %v7577 = vadd.f32 %v7538, %v7557
        %v7578 = vadd.f32 %v7539, %v7557
        %v7579 = vadd.f32 %v7540, %v7557
        %v7580 = vadd.f32 %v7541, %v7557
        %v7581 = vadd.f32 %v7542, %v7557
        %v7582 = vadd.f32 %v7543, %v7557
        %v7583 = vadd.f32 %v7544, %v7557
        %v7584 = vadd.f32 %v7545, %v7557
        %v7585 = vadd.f32 %v7546, %v7557
        %v7586 = vadd.f32 %v7547, %v7557
        %v7587 = vadd.f32 %v7548, %v7557
        %v7588 = vadd.f32 %v7549, %v7557
        %v7589 = vadd.f32 %v7550, %v7557
        %v7590 = vadd.f32 %v7551, %v7557
        %v7591 = vmax.f32 %v7559, 0.0
        %v7592 = vmax.f32 %v7560, 0.0
        %v7593 = vmax.f32 %v7561, 0.0
        %v7594 = vmax.f32 %v7562, 0.0
        %v7595 = vmax.f32 %v7563, 0.0
        %v7596 = vmax.f32 %v7564, 0.0
        %v7597 = vmax.f32 %v7565, 0.0
        %v7598 = vmax.f32 %v7566, 0.0
        %v7599 = vmax.f32 %v7567, 0.0
        %v7600 = vmax.f32 %v7568, 0.0
        %v7601 = vmax.f32 %v7569, 0.0
        %v7602 = vmax.f32 %v7570, 0.0
        %v7603 = vmax.f32 %v7571, 0.0
        %v7604 = vmax.f32 %v7572, 0.0
        %v7605 = vmax.f32 %v7573, 0.0
        %v7606 = vmax.f32 %v7574, 0.0
        %v7607 = vmax.f32 %v7575, 0.0
        %v7608 = vmax.f32 %v7576, 0.0
        %v7609 = vmax.f32 %v7577, 0.0
        %v7610 = vmax.f32 %v7578, 0.0
        %v7611 = vmax.f32 %v7579, 0.0
        %v7612 = vmax.f32 %v7580, 0.0
        %v7613 = vmax.f32 %v7581, 0.0
        %v7614 = vmax.f32 %v7582, 0.0
        %v7615 = vmax.f32 %v7583, 0.0
        %v7616 = vmax.f32 %v7584, 0.0
        %v7617 = vmax.f32 %v7585, 0.0
        %v7618 = vmax.f32 %v7586, 0.0
        %v7619 = vmax.f32 %v7587, 0.0
        %v7620 = vmax.f32 %v7588, 0.0
        %v7621 = vmax.f32 %v7589, 0.0
        %v7622 = vmax.f32 %v7590, 0.0
        %v7623 = vmul.f32 %v7591, %v7591
        %v7624 = vmul.f32 %v7592, %v7592
        %v7625 = vmul.f32 %v7593, %v7593
        %v7626 = vmul.f32 %v7594, %v7594
        %v7627 = vmul.f32 %v7595, %v7595
        %v7628 = vmul.f32 %v7596, %v7596
        %v7629 = vmul.f32 %v7597, %v7597
        %v7630 = vmul.f32 %v7598, %v7598
        %v7631 = vmul.f32 %v7599, %v7599
        %v7632 = vmul.f32 %v7600, %v7600
        %v7633 = vmul.f32 %v7601, %v7601
        %v7634 = vmul.f32 %v7602, %v7602
        %v7635 = vmul.f32 %v7603, %v7603
        %v7636 = vmul.f32 %v7604, %v7604
        %v7637 = vmul.f32 %v7605, %v7605
        %v7638 = vmul.f32 %v7606, %v7606
        %v7639 = vmul.f32 %v7607, %v7607
        %v7640 = vmul.f32 %v7608, %v7608
        %v7641 = vmul.f32 %v7609, %v7609
        %v7642 = vmul.f32 %v7610, %v7610
        %v7643 = vmul.f32 %v7611, %v7611
        %v7644 = vmul.f32 %v7612, %v7612
        %v7645 = vmul.f32 %v7613, %v7613
        %v7646 = vmul.f32 %v7614, %v7614
        %v7647 = vmul.f32 %v7615, %v7615
        %v7648 = vmul.f32 %v7616, %v7616
        %v7649 = vmul.f32 %v7617, %v7617
        %v7650 = vmul.f32 %v7618, %v7618
        %v7651 = vmul.f32 %v7619, %v7619
        %v7652 = vmul.f32 %v7620, %v7620
        %v7653 = vmul.f32 %v7621, %v7621
        %v7654 = vmul.f32 %v7622, %v7622
        %7655 = vadd.xlane.f32.xlu0 %v7623
        %v7656 = vpop.xlane.xlu0 %7655
        %7657 = vadd.xlane.f32.xlu0 %v7624
        %v7658 = vpop.xlane.xlu0 %7657
        %7659 = vadd.xlane.f32.xlu0 %v7625
        %v7660 = vpop.xlane.xlu0 %7659
        %7661 = vadd.xlane.f32.xlu0 %v7626
        %v7662 = vpop.xlane.xlu0 %7661
        %7663 = vadd.xlane.f32.xlu0 %v7627
        %v7664 = vpop.xlane.xlu0 %7663
        %7665 = vadd.xlane.f32.xlu0 %v7628
        %v7666 = vpop.xlane.xlu0 %7665
        %7667 = vadd.xlane.f32.xlu0 %v7629
        %v7668 = vpop.xlane.xlu0 %7667
        %7669 = vadd.xlane.f32.xlu0 %v7630
        %v7670 = vpop.xlane.xlu0 %7669
        %7671 = vadd.xlane.f32.xlu0 %v7631
        %v7672 = vpop.xlane.xlu0 %7671
        %7673 = vadd.xlane.f32.xlu0 %v7632
        %v7674 = vpop.xlane.xlu0 %7673
        %7675 = vadd.xlane.f32.xlu0 %v7633
        %v7676 = vpop.xlane.xlu0 %7675
        %7677 = vadd.xlane.f32.xlu0 %v7634
        %v7678 = vpop.xlane.xlu0 %7677
        %7679 = vadd.xlane.f32.xlu0 %v7635
        %v7680 = vpop.xlane.xlu0 %7679
        %7681 = vadd.xlane.f32.xlu0 %v7636
        %v7682 = vpop.xlane.xlu0 %7681
        %7683 = vadd.xlane.f32.xlu0 %v7637
        %v7684 = vpop.xlane.xlu0 %7683
        %7685 = vadd.xlane.f32.xlu0 %v7638
        %v7686 = vpop.xlane.xlu0 %7685
        %7687 = vadd.xlane.f32.xlu0 %v7639
        %v7688 = vpop.xlane.xlu0 %7687
        %7689 = vadd.xlane.f32.xlu0 %v7640
        %v7690 = vpop.xlane.xlu0 %7689
        %7691 = vadd.xlane.f32.xlu0 %v7641
        %v7692 = vpop.xlane.xlu0 %7691
        %7693 = vadd.xlane.f32.xlu0 %v7642
        %v7694 = vpop.xlane.xlu0 %7693
        %7695 = vadd.xlane.f32.xlu0 %v7643
        %v7696 = vpop.xlane.xlu0 %7695
        %7697 = vadd.xlane.f32.xlu0 %v7644
        %v7698 = vpop.xlane.xlu0 %7697
        %7699 = vadd.xlane.f32.xlu0 %v7645
        %v7700 = vpop.xlane.xlu0 %7699
        %7701 = vadd.xlane.f32.xlu0 %v7646
        %v7702 = vpop.xlane.xlu0 %7701
        %7703 = vadd.xlane.f32.xlu0 %v7647
        %v7704 = vpop.xlane.xlu0 %7703
        %7705 = vadd.xlane.f32.xlu0 %v7648
        %v7706 = vpop.xlane.xlu0 %7705
        %7707 = vadd.xlane.f32.xlu0 %v7649
        %v7708 = vpop.xlane.xlu0 %7707
        %7709 = vadd.xlane.f32.xlu0 %v7650
        %v7710 = vpop.xlane.xlu0 %7709
        %7711 = vadd.xlane.f32.xlu0 %v7651
        %v7712 = vpop.xlane.xlu0 %7711
        %7713 = vadd.xlane.f32.xlu0 %v7652
        %v7714 = vpop.xlane.xlu0 %7713
        %7715 = vadd.xlane.f32.xlu0 %v7653
        %v7716 = vpop.xlane.xlu0 %7715
        %7717 = vadd.xlane.f32.xlu0 %v7654
        %v7718 = vpop.xlane.xlu0 %7717
        %v7719 = vadd.f32 %v7656, 1e-12
        %v7720 = vadd.f32 %v7658, 1e-12
        %v7721 = vadd.f32 %v7660, 1e-12
        %v7722 = vadd.f32 %v7662, 1e-12
        %v7723 = vadd.f32 %v7664, 1e-12
        %v7724 = vadd.f32 %v7666, 1e-12
        %v7725 = vadd.f32 %v7668, 1e-12
        %v7726 = vadd.f32 %v7670, 1e-12
        %v7727 = vadd.f32 %v7672, 1e-12
        %v7728 = vadd.f32 %v7674, 1e-12
        %v7729 = vadd.f32 %v7676, 1e-12
        %v7730 = vadd.f32 %v7678, 1e-12
        %v7731 = vadd.f32 %v7680, 1e-12
        %v7732 = vadd.f32 %v7682, 1e-12
        %v7733 = vadd.f32 %v7684, 1e-12
        %v7734 = vadd.f32 %v7686, 1e-12
        %v7735 = vadd.f32 %v7688, 1e-12
        %v7736 = vadd.f32 %v7690, 1e-12
        %v7737 = vadd.f32 %v7692, 1e-12
        %v7738 = vadd.f32 %v7694, 1e-12
        %v7739 = vadd.f32 %v7696, 1e-12
        %v7740 = vadd.f32 %v7698, 1e-12
        %v7741 = vadd.f32 %v7700, 1e-12
        %v7742 = vadd.f32 %v7702, 1e-12
        %v7743 = vadd.f32 %v7704, 1e-12
        %v7744 = vadd.f32 %v7706, 1e-12
        %v7745 = vadd.f32 %v7708, 1e-12
        %v7746 = vadd.f32 %v7710, 1e-12
        %v7747 = vadd.f32 %v7712, 1e-12
        %v7748 = vadd.f32 %v7714, 1e-12
        %v7749 = vadd.f32 %v7716, 1e-12
        %v7750 = vadd.f32 %v7718, 1e-12
        %v7751 = vrsqrt.pop %v7719
        %v7752 = vrsqrt.pop %v7720
        %v7753 = vrsqrt.pop %v7721
        %v7754 = vrsqrt.pop %v7722
        %v7755 = vrsqrt.pop %v7723
        %v7756 = vrsqrt.pop %v7724
        %v7757 = vrsqrt.pop %v7725
        %v7758 = vrsqrt.pop %v7726
        %v7759 = vrsqrt.pop %v7727
        %v7760 = vrsqrt.pop %v7728
        %v7761 = vrsqrt.pop %v7729
        %v7762 = vrsqrt.pop %v7730
        %v7763 = vrsqrt.pop %v7731
        %v7764 = vrsqrt.pop %v7732
        %v7765 = vrsqrt.pop %v7733
        %v7766 = vrsqrt.pop %v7734
        %v7767 = vrsqrt.pop %v7735
        %v7768 = vrsqrt.pop %v7736
        %v7769 = vrsqrt.pop %v7737
        %v7770 = vrsqrt.pop %v7738
        %v7771 = vrsqrt.pop %v7739
        %v7772 = vrsqrt.pop %v7740
        %v7773 = vrsqrt.pop %v7741
        %v7774 = vrsqrt.pop %v7742
        %v7775 = vrsqrt.pop %v7743
        %v7776 = vrsqrt.pop %v7744
        %v7777 = vrsqrt.pop %v7745
        %v7778 = vrsqrt.pop %v7746
        %v7779 = vrsqrt.pop %v7747
        %v7780 = vrsqrt.pop %v7748
        %v7781 = vrsqrt.pop %v7749
        %v7782 = vrsqrt.pop %v7750
        %v7783 = vmul.f32 %v7591, %v7751
        %v7784 = vmul.f32 %v7592, %v7752
        %v7785 = vmul.f32 %v7593, %v7753
        %v7786 = vmul.f32 %v7594, %v7754
        %v7787 = vmul.f32 %v7595, %v7755
        %v7788 = vmul.f32 %v7596, %v7756
        %v7789 = vmul.f32 %v7597, %v7757
        %v7790 = vmul.f32 %v7598, %v7758
        %v7791 = vmul.f32 %v7599, %v7759
        %v7792 = vmul.f32 %v7600, %v7760
        %v7793 = vmul.f32 %v7601, %v7761
        %v7794 = vmul.f32 %v7602, %v7762
        %v7795 = vmul.f32 %v7603, %v7763
        %v7796 = vmul.f32 %v7604, %v7764
        %v7797 = vmul.f32 %v7605, %v7765
        %v7798 = vmul.f32 %v7606, %v7766
        %v7799 = vmul.f32 %v7607, %v7767
        %v7800 = vmul.f32 %v7608, %v7768
        %v7801 = vmul.f32 %v7609, %v7769
        %v7802 = vmul.f32 %v7610, %v7770
        %v7803 = vmul.f32 %v7611, %v7771
        %v7804 = vmul.f32 %v7612, %v7772
        %v7805 = vmul.f32 %v7613, %v7773
        %v7806 = vmul.f32 %v7614, %v7774
        %v7807 = vmul.f32 %v7615, %v7775
        %v7808 = vmul.f32 %v7616, %v7776
        %v7809 = vmul.f32 %v7617, %v7777
        %v7810 = vmul.f32 %v7618, %v7778
        %v7811 = vmul.f32 %v7619, %v7779
        %v7812 = vmul.f32 %v7620, %v7780
        %v7813 = vmul.f32 %v7621, %v7781
        %v7814 = vmul.f32 %v7622, %v7782
        %v7815 = vpack.c.bf16 %v7784, %v7783
        %v7816 = vpack.c.bf16 %v7786, %v7785
        %v7817 = vpack.c.bf16 %v7788, %v7787
        %v7818 = vpack.c.bf16 %v7790, %v7789
        %v7819 = vpack.c.bf16 %v7792, %v7791
        %v7820 = vpack.c.bf16 %v7794, %v7793
        %v7821 = vpack.c.bf16 %v7796, %v7795
        %v7822 = vpack.c.bf16 %v7798, %v7797
        %v7823 = vpack.c.bf16 %v7800, %v7799
        %v7824 = vpack.c.bf16 %v7802, %v7801
        %v7825 = vpack.c.bf16 %v7804, %v7803
        %v7826 = vpack.c.bf16 %v7806, %v7805
        %v7827 = vpack.c.bf16 %v7808, %v7807
        %v7828 = vpack.c.bf16 %v7810, %v7809
        %v7829 = vpack.c.bf16 %v7812, %v7811
        %v7830 = vpack.c.bf16 %v7814, %v7813
        %v7831 = vld [vmem:[#allocation9] sm:$0xf]
        %v7832 = vld [vmem:[#allocation9 + $0x4] sm:$0xf]
        %v7833 = vld [vmem:[#allocation9 + $0x8] sm:$0xf]
        %v7834 = vld [vmem:[#allocation9 + $0xc] sm:$0xf]
        %v7835 = vld [vmem:[#allocation9 + $0x10] sm:$0xf]
        %v7836 = vld [vmem:[#allocation9 + $0x14] sm:$0xf]
        %v7837 = vld [vmem:[#allocation9 + $0x18] sm:$0xf]
        %v7838 = vld [vmem:[#allocation9 + $0x1c] sm:$0xf]
        %v7839 = vld [vmem:[#allocation9 + $0x20] sm:$0xf]
        %v7840 = vld [vmem:[#allocation9 + $0x24] sm:$0xf]
        %v7841 = vld [vmem:[#allocation9 + $0x28] sm:$0xf]
        %v7842 = vld [vmem:[#allocation9 + $0x2c] sm:$0xf]
        %v7843 = vld [vmem:[#allocation9 + $0x30] sm:$0xf]
        %v7844 = vld [vmem:[#allocation9 + $0x34] sm:$0xf]
        %v7845 = vld [vmem:[#allocation9 + $0x38] sm:$0xf]
        %v7846 = vld [vmem:[#allocation9 + $0x3c] sm:$0xf]
        %v7847 = vld [vmem:[%s6] sm:$0x1]
        %v7849 = vlaneseq
        %v7850 = vshrl.u32 %v7849, 7
        %v7851 = vsub.s32 0, %v7850
        %v7852 = vrot.slane %v7847, %v7851
        %v7870 = vunpack.c.l.b16 %v7831
        %v7871 = vunpack.c.l.b16 %v7832
        %v7872 = vunpack.c.l.b16 %v7833
        %v7873 = vunpack.c.l.b16 %v7834
        %v7874 = vunpack.c.l.b16 %v7835
        %v7875 = vunpack.c.l.b16 %v7836
        %v7876 = vunpack.c.l.b16 %v7837
        %v7877 = vunpack.c.l.b16 %v7838
        %v7878 = vunpack.c.l.b16 %v7839
        %v7879 = vunpack.c.l.b16 %v7840
        %v7880 = vunpack.c.l.b16 %v7841
        %v7881 = vunpack.c.l.b16 %v7842
        %v7882 = vunpack.c.l.b16 %v7843
        %v7883 = vunpack.c.l.b16 %v7844
        %v7884 = vunpack.c.l.b16 %v7845
        %v7885 = vunpack.c.l.b16 %v7846
        %v7886 = vpack.c.b16 %v7871, %v7870
        %v7887 = vpack.c.b16 %v7873, %v7872
        %v7888 = vpack.c.b16 %v7875, %v7874
        %v7889 = vpack.c.b16 %v7877, %v7876
        %v7890 = vpack.c.b16 %v7879, %v7878
        %v7891 = vpack.c.b16 %v7881, %v7880
        %v7892 = vpack.c.b16 %v7883, %v7882
        %v7893 = vpack.c.b16 %v7885, %v7884
        %7902 = vmatprep.subr.bf16.mxu0 0
        %7903 = vmatpush1.bf16.msra.mxu0 %v7893
        %7904 = vmatprep.subr.bf16.mxu0 0
        %7905 = vmatpush1.bf16.msra.mxu0 %v7892
        %7906 = vmatprep.subr.bf16.mxu0 0
        %7907 = vmatpush1.bf16.msra.mxu0 %v7891
        %7908 = vmatprep.subr.bf16.mxu0 0
        %7909 = vmatpush1.bf16.msra.mxu0 %v7890
        %7910 = vmatprep.subr.bf16.mxu0 0
        %7911 = vmatpush1.bf16.msra.mxu0 %v7889
        %7912 = vmatprep.subr.bf16.mxu0 0
        %7913 = vmatpush1.bf16.msra.mxu0 %v7888
        %7914 = vmatprep.subr.bf16.mxu0 0
        %7915 = vmatpush1.bf16.msra.mxu0 %v7887
        %7916 = vmatprep.subr.bf16.mxu0 0
        %7917 = vmatpush1.bf16.msra.mxu0 %v7886
        %7918 = vmatprep.subr.bf16.mxu0 0
        %7919 = vmatpush2.bf16.msra.mxu0 0
        %7920 = vmatprep.subr.bf16.mxu0 0
        %7921 = vmatpush2.bf16.msra.mxu0 0
        %7922 = vmatprep.subr.bf16.mxu0 0
        %7923 = vmatpush2.bf16.msra.mxu0 0
        %7924 = vmatprep.subr.bf16.mxu0 0
        %7925 = vmatpush2.bf16.msra.mxu0 0
        %7926 = vmatprep.subr.bf16.mxu0 0
        %7927 = vmatpush2.bf16.msra.mxu0 0
        %7928 = vmatprep.subr.bf16.mxu0 0
        %7929 = vmatpush2.bf16.msra.mxu0 0
        %7930 = vmatprep.subr.bf16.mxu0 0
        %7931 = vmatpush2.bf16.msra.mxu0 0
        %7932 = vmatprep.subr.bf16.mxu0 0
        %7933 = vmatpush2.bf16.msra.mxu0 0
        %7934 = vmatprep.mubr.bf16.mxu0 0
        %7935 = vmatmul.mubr.bf16.gmra.mxu0 %v7815
        %v7936 = vpop.f32.mrf.mxu0
        %v7937 = vadd.f32 %v7852, %v7936
        %v7938 = vpop.f32.mrf.mxu0
        %v7939 = vpop.f32.mrf.mxu0
        %v7940 = vadd.f32 %v7852, %v7939
        %v7941 = vpop.f32.mrf.mxu0
        %7942 = vmatprep.mubr.bf16.mxu0 0
        %7943 = vmatmul.mubr.bf16.gmra.mxu0 %v7816
        %v7944 = vpop.f32.mrf.mxu0
        %v7945 = vadd.f32 %v7852, %v7944
        %v7946 = vpop.f32.mrf.mxu0
        %v7947 = vpop.f32.mrf.mxu0
        %v7948 = vadd.f32 %v7852, %v7947
        %v7949 = vpop.f32.mrf.mxu0
        %7950 = vmatprep.mubr.bf16.mxu0 0
        %7951 = vmatmul.mubr.bf16.gmra.mxu0 %v7817
        %v7952 = vpop.f32.mrf.mxu0
        %v7953 = vadd.f32 %v7852, %v7952
        %v7954 = vpop.f32.mrf.mxu0
        %v7955 = vpop.f32.mrf.mxu0
        %v7956 = vadd.f32 %v7852, %v7955
        %v7957 = vpop.f32.mrf.mxu0
        %7958 = vmatprep.mubr.bf16.mxu0 0
        %7959 = vmatmul.mubr.bf16.gmra.mxu0 %v7818
        %v7960 = vpop.f32.mrf.mxu0
        %v7961 = vadd.f32 %v7852, %v7960
        %v7962 = vpop.f32.mrf.mxu0
        %v7963 = vpop.f32.mrf.mxu0
        %v7964 = vadd.f32 %v7852, %v7963
        %v7965 = vpop.f32.mrf.mxu0
        %7966 = vmatprep.mubr.bf16.mxu0 0
        %7967 = vmatmul.mubr.bf16.gmra.mxu0 %v7819
        %v7968 = vpop.f32.mrf.mxu0
        %v7969 = vadd.f32 %v7852, %v7968
        %v7970 = vpop.f32.mrf.mxu0
        %v7971 = vpop.f32.mrf.mxu0
        %v7972 = vadd.f32 %v7852, %v7971
        %v7973 = vpop.f32.mrf.mxu0
        %7974 = vmatprep.mubr.bf16.mxu0 0
        %7975 = vmatmul.mubr.bf16.gmra.mxu0 %v7820
        %v7976 = vpop.f32.mrf.mxu0
        %v7977 = vadd.f32 %v7852, %v7976
        %v7978 = vpop.f32.mrf.mxu0
        %v7979 = vpop.f32.mrf.mxu0
        %v7980 = vadd.f32 %v7852, %v7979
        %v7981 = vpop.f32.mrf.mxu0
        %7982 = vmatprep.mubr.bf16.mxu0 0
        %7983 = vmatmul.mubr.bf16.gmra.mxu0 %v7821
        %v7984 = vpop.f32.mrf.mxu0
        %v7985 = vadd.f32 %v7852, %v7984
        %v7986 = vpop.f32.mrf.mxu0
        %v7987 = vpop.f32.mrf.mxu0
        %v7988 = vadd.f32 %v7852, %v7987
        %v7989 = vpop.f32.mrf.mxu0
        %7990 = vmatprep.mubr.bf16.mxu0 0
        %7991 = vmatmul.mubr.bf16.gmra.mxu0 %v7822
        %v7992 = vpop.f32.mrf.mxu0
        %v7993 = vadd.f32 %v7852, %v7992
        %v7994 = vpop.f32.mrf.mxu0
        %v7995 = vpop.f32.mrf.mxu0
        %v7996 = vadd.f32 %v7852, %v7995
        %v7997 = vpop.f32.mrf.mxu0
        %7998 = vmatprep.mubr.bf16.mxu0 0
        %7999 = vmatmul.mubr.bf16.gmra.mxu0 %v7823
        %v8000 = vpop.f32.mrf.mxu0
        %v8001 = vadd.f32 %v7852, %v8000
        %v8002 = vpop.f32.mrf.mxu0
        %v8003 = vpop.f32.mrf.mxu0
        %v8004 = vadd.f32 %v7852, %v8003
        %v8005 = vpop.f32.mrf.mxu0
        %8006 = vmatprep.mubr.bf16.mxu0 0
        %8007 = vmatmul.mubr.bf16.gmra.mxu0 %v7824
        %v8008 = vpop.f32.mrf.mxu0
        %v8009 = vadd.f32 %v7852, %v8008
        %v8010 = vpop.f32.mrf.mxu0
        %v8011 = vpop.f32.mrf.mxu0
        %v8012 = vadd.f32 %v7852, %v8011
        %v8013 = vpop.f32.mrf.mxu0
        %8014 = vmatprep.mubr.bf16.mxu0 0
        %8015 = vmatmul.mubr.bf16.gmra.mxu0 %v7825
        %v8016 = vpop.f32.mrf.mxu0
        %v8017 = vadd.f32 %v7852, %v8016
        %v8018 = vpop.f32.mrf.mxu0
        %v8019 = vpop.f32.mrf.mxu0
        %v8020 = vadd.f32 %v7852, %v8019
        %v8021 = vpop.f32.mrf.mxu0
        %8022 = vmatprep.mubr.bf16.mxu0 0
        %8023 = vmatmul.mubr.bf16.gmra.mxu0 %v7826
        %v8024 = vpop.f32.mrf.mxu0
        %v8025 = vadd.f32 %v7852, %v8024
        %v8026 = vpop.f32.mrf.mxu0
        %v8027 = vpop.f32.mrf.mxu0
        %v8028 = vadd.f32 %v7852, %v8027
        %v8029 = vpop.f32.mrf.mxu0
        %8030 = vmatprep.mubr.bf16.mxu0 0
        %8031 = vmatmul.mubr.bf16.gmra.mxu0 %v7827
        %v8032 = vpop.f32.mrf.mxu0
        %v8033 = vadd.f32 %v7852, %v8032
        %v8034 = vpop.f32.mrf.mxu0
        %v8035 = vpop.f32.mrf.mxu0
        %v8036 = vadd.f32 %v7852, %v8035
        %v8037 = vpop.f32.mrf.mxu0
        %8038 = vmatprep.mubr.bf16.mxu0 0
        %8039 = vmatmul.mubr.bf16.gmra.mxu0 %v7828
        %v8040 = vpop.f32.mrf.mxu0
        %v8041 = vadd.f32 %v7852, %v8040
        %v8042 = vpop.f32.mrf.mxu0
        %v8043 = vpop.f32.mrf.mxu0
        %v8044 = vadd.f32 %v7852, %v8043
        %v8045 = vpop.f32.mrf.mxu0
        %8046 = vmatprep.mubr.bf16.mxu0 0
        %8047 = vmatmul.mubr.bf16.gmra.mxu0 %v7829
        %v8048 = vpop.f32.mrf.mxu0
        %v8049 = vadd.f32 %v7852, %v8048
        %v8050 = vpop.f32.mrf.mxu0
        %v8051 = vpop.f32.mrf.mxu0
        %v8052 = vadd.f32 %v7852, %v8051
        %v8053 = vpop.f32.mrf.mxu0
        %8054 = vmatprep.mubr.bf16.mxu0 0
        %8055 = vmatmul.mubr.bf16.gmra.mxu0 %v7830
        %v8056 = vpop.f32.mrf.mxu0
        %v8057 = vadd.f32 %v7852, %v8056
        %v8058 = vpop.f32.mrf.mxu0
        %v8059 = vpop.f32.mrf.mxu0
        %v8060 = vadd.f32 %v7852, %v8059
        %v8061 = vpop.f32.mrf.mxu0
        %8062 = vdwg.mxu0
        %s8063 = scalar_lea.vmem %s312, 8 [#allocation3]
        %v8064 = vld [vmem:[%s8063] sm:$0xf]
        %v8065 = vld [vmem:[%s8063 + $0x4] sm:$0xf]
        %v8066 = vld [vmem:[%s8063 + $0x8] sm:$0xf]
        %v8067 = vld [vmem:[%s8063 + $0xc] sm:$0xf]
        %v8068 = vld [vmem:[%s8063 + $0x10] sm:$0xf]
        %v8069 = vld [vmem:[%s8063 + $0x14] sm:$0xf]
        %v8070 = vld [vmem:[%s8063 + $0x18] sm:$0xf]
        %v8071 = vld [vmem:[%s8063 + $0x1c] sm:$0xf]
        %v8072 = vld [vmem:[%s8063 + $0x20] sm:$0xf]
        %v8073 = vld [vmem:[%s8063 + $0x24] sm:$0xf]
        %v8074 = vld [vmem:[%s8063 + $0x28] sm:$0xf]
        %v8075 = vld [vmem:[%s8063 + $0x2c] sm:$0xf]
        %v8076 = vld [vmem:[%s8063 + $0x30] sm:$0xf]
        %v8077 = vld [vmem:[%s8063 + $0x34] sm:$0xf]
        %v8078 = vld [vmem:[%s8063 + $0x38] sm:$0xf]
        %v8079 = vld [vmem:[%s8063 + $0x3c] sm:$0xf]
        %v8080 = vld [vmem:[%s8063 + $0x40] sm:$0xf]
        %v8081 = vld [vmem:[%s8063 + $0x44] sm:$0xf]
        %v8082 = vld [vmem:[%s8063 + $0x48] sm:$0xf]
        %v8083 = vld [vmem:[%s8063 + $0x4c] sm:$0xf]
        %v8084 = vld [vmem:[%s8063 + $0x50] sm:$0xf]
        %v8085 = vld [vmem:[%s8063 + $0x54] sm:$0xf]
        %v8086 = vld [vmem:[%s8063 + $0x58] sm:$0xf]
        %v8087 = vld [vmem:[%s8063 + $0x5c] sm:$0xf]
        %v8088 = vld [vmem:[%s8063 + $0x60] sm:$0xf]
        %v8089 = vld [vmem:[%s8063 + $0x64] sm:$0xf]
        %v8090 = vld [vmem:[%s8063 + $0x68] sm:$0xf]
        %v8091 = vld [vmem:[%s8063 + $0x6c] sm:$0xf]
        %v8092 = vld [vmem:[%s8063 + $0x70] sm:$0xf]
        %v8093 = vld [vmem:[%s8063 + $0x74] sm:$0xf]
        %v8094 = vld [vmem:[%s8063 + $0x78] sm:$0xf]
        %v8095 = vld [vmem:[%s8063 + $0x7c] sm:$0xf]
        %v8096 = vunpack.c.l.bf16 %v8064
        %v8097 = vunpack.c.l.bf16 %v8065
        %v8098 = vunpack.c.l.bf16 %v8066
        %v8099 = vunpack.c.l.bf16 %v8067
        %v8100 = vunpack.c.l.bf16 %v8068
        %v8101 = vunpack.c.l.bf16 %v8069
        %v8102 = vunpack.c.l.bf16 %v8070
        %v8103 = vunpack.c.l.bf16 %v8071
        %v8104 = vunpack.c.l.bf16 %v8072
        %v8105 = vunpack.c.l.bf16 %v8073
        %v8106 = vunpack.c.l.bf16 %v8074
        %v8107 = vunpack.c.l.bf16 %v8075
        %v8108 = vunpack.c.l.bf16 %v8076
        %v8109 = vunpack.c.l.bf16 %v8077
        %v8110 = vunpack.c.l.bf16 %v8078
        %v8111 = vunpack.c.l.bf16 %v8079
        %v8112 = vunpack.c.l.bf16 %v8080
        %v8113 = vunpack.c.l.bf16 %v8081
        %v8114 = vunpack.c.l.bf16 %v8082
        %v8115 = vunpack.c.l.bf16 %v8083
        %v8116 = vunpack.c.l.bf16 %v8084
        %v8117 = vunpack.c.l.bf16 %v8085
        %v8118 = vunpack.c.l.bf16 %v8086
        %v8119 = vunpack.c.l.bf16 %v8087
        %v8120 = vunpack.c.l.bf16 %v8088
        %v8121 = vunpack.c.l.bf16 %v8089
        %v8122 = vunpack.c.l.bf16 %v8090
        %v8123 = vunpack.c.l.bf16 %v8091
        %v8124 = vunpack.c.l.bf16 %v8092
        %v8125 = vunpack.c.l.bf16 %v8093
        %v8126 = vunpack.c.l.bf16 %v8094
        %v8127 = vunpack.c.l.bf16 %v8095
        %v8128 = vadd.f32 %v7937, %v8096
        %v8129 = vadd.f32 %v7940, %v8097
        %v8130 = vadd.f32 %v7945, %v8098
        %v8131 = vadd.f32 %v7948, %v8099
        %v8132 = vadd.f32 %v7953, %v8100
        %v8133 = vadd.f32 %v7956, %v8101
        %v8134 = vadd.f32 %v7961, %v8102
        %v8135 = vadd.f32 %v7964, %v8103
        %v8136 = vadd.f32 %v7969, %v8104
        %v8137 = vadd.f32 %v7972, %v8105
        %v8138 = vadd.f32 %v7977, %v8106
        %v8139 = vadd.f32 %v7980, %v8107
        %v8140 = vadd.f32 %v7985, %v8108
        %v8141 = vadd.f32 %v7988, %v8109
        %v8142 = vadd.f32 %v7993, %v8110
        %v8143 = vadd.f32 %v7996, %v8111
        %v8144 = vadd.f32 %v8001, %v8112
        %v8145 = vadd.f32 %v8004, %v8113
        %v8146 = vadd.f32 %v8009, %v8114
        %v8147 = vadd.f32 %v8012, %v8115
        %v8148 = vadd.f32 %v8017, %v8116
        %v8149 = vadd.f32 %v8020, %v8117
        %v8150 = vadd.f32 %v8025, %v8118
        %v8151 = vadd.f32 %v8028, %v8119
        %v8152 = vadd.f32 %v8033, %v8120
        %v8153 = vadd.f32 %v8036, %v8121
        %v8154 = vadd.f32 %v8041, %v8122
        %v8155 = vadd.f32 %v8044, %v8123
        %v8156 = vadd.f32 %v8049, %v8124
        %v8157 = vadd.f32 %v8052, %v8125
        %v8158 = vadd.f32 %v8057, %v8126
        %v8159 = vadd.f32 %v8060, %v8127
        %v8160 = vmax.f32 %v8128, 0.0
        %v8161 = vmax.f32 %v8129, 0.0
        %v8162 = vmax.f32 %v8130, 0.0
        %v8163 = vmax.f32 %v8131, 0.0
        %v8164 = vmax.f32 %v8132, 0.0
        %v8165 = vmax.f32 %v8133, 0.0
        %v8166 = vmax.f32 %v8134, 0.0
        %v8167 = vmax.f32 %v8135, 0.0
        %v8168 = vmax.f32 %v8136, 0.0
        %v8169 = vmax.f32 %v8137, 0.0
        %v8170 = vmax.f32 %v8138, 0.0
        %v8171 = vmax.f32 %v8139, 0.0
        %v8172 = vmax.f32 %v8140, 0.0
        %v8173 = vmax.f32 %v8141, 0.0
        %v8174 = vmax.f32 %v8142, 0.0
        %v8175 = vmax.f32 %v8143, 0.0
        %v8176 = vmax.f32 %v8144, 0.0
        %v8177 = vmax.f32 %v8145, 0.0
        %v8178 = vmax.f32 %v8146, 0.0
        %v8179 = vmax.f32 %v8147, 0.0
        %v8180 = vmax.f32 %v8148, 0.0
        %v8181 = vmax.f32 %v8149, 0.0
        %v8182 = vmax.f32 %v8150, 0.0
        %v8183 = vmax.f32 %v8151, 0.0
        %v8184 = vmax.f32 %v8152, 0.0
        %v8185 = vmax.f32 %v8153, 0.0
        %v8186 = vmax.f32 %v8154, 0.0
        %v8187 = vmax.f32 %v8155, 0.0
        %v8188 = vmax.f32 %v8156, 0.0
        %v8189 = vmax.f32 %v8157, 0.0
        %v8190 = vmax.f32 %v8158, 0.0
        %v8191 = vmax.f32 %v8159, 0.0
        %v8192 = vpack.c.bf16 %v8161, %v8160
        %v8193 = vpack.c.bf16 %v8163, %v8162
        %v8194 = vpack.c.bf16 %v8165, %v8164
        %v8195 = vpack.c.bf16 %v8167, %v8166
        %v8196 = vpack.c.bf16 %v8169, %v8168
        %v8197 = vpack.c.bf16 %v8171, %v8170
        %v8198 = vpack.c.bf16 %v8173, %v8172
        %v8199 = vpack.c.bf16 %v8175, %v8174
        %v8200 = vpack.c.bf16 %v8177, %v8176
        %v8201 = vpack.c.bf16 %v8179, %v8178
        %v8202 = vpack.c.bf16 %v8181, %v8180
        %v8203 = vpack.c.bf16 %v8183, %v8182
        %v8204 = vpack.c.bf16 %v8185, %v8184
        %v8205 = vpack.c.bf16 %v8187, %v8186
        %v8206 = vpack.c.bf16 %v8189, %v8188
        %v8207 = vpack.c.bf16 %v8191, %v8190
        %v8224 = vunpack.c.l.b16 %v8192
        %v8225 = vunpack.c.h.b16 %v8192
        %v8226 = vunpack.c.l.b16 %v8193
        %v8227 = vunpack.c.h.b16 %v8193
        %v8228 = vunpack.c.l.b16 %v8194
        %v8229 = vunpack.c.h.b16 %v8194
        %v8230 = vunpack.c.l.b16 %v8195
        %v8231 = vunpack.c.h.b16 %v8195
        %v8232 = vunpack.c.l.b16 %v8196
        %v8233 = vunpack.c.h.b16 %v8196
        %v8234 = vunpack.c.l.b16 %v8197
        %v8235 = vunpack.c.h.b16 %v8197
        %v8236 = vunpack.c.l.b16 %v8198
        %v8237 = vunpack.c.h.b16 %v8198
        %v8238 = vunpack.c.l.b16 %v8199
        %v8239 = vunpack.c.h.b16 %v8199
        %v8240 = vunpack.c.l.b16 %v8200
        %v8241 = vunpack.c.h.b16 %v8200
        %v8242 = vunpack.c.l.b16 %v8201
        %v8243 = vunpack.c.h.b16 %v8201
        %v8244 = vunpack.c.l.b16 %v8202
        %v8245 = vunpack.c.h.b16 %v8202
        %v8246 = vunpack.c.l.b16 %v8203
        %v8247 = vunpack.c.h.b16 %v8203
        %v8248 = vunpack.c.l.b16 %v8204
        %v8249 = vunpack.c.h.b16 %v8204
        %v8250 = vunpack.c.l.b16 %v8205
        %v8251 = vunpack.c.h.b16 %v8205
        %v8252 = vunpack.c.l.b16 %v8206
        %v8253 = vunpack.c.h.b16 %v8206
        %v8254 = vunpack.c.l.b16 %v8207
        %v8255 = vunpack.c.h.b16 %v8207
        %v8256 = vpack.c.b16 %v8224, %v8224
        %v8257 = vpack.c.b16 %v8225, %v8225
        %v8258 = vpack.c.b16 %v8226, %v8226
        %v8259 = vpack.c.b16 %v8227, %v8227
        %v8260 = vpack.c.b16 %v8228, %v8228
        %v8261 = vpack.c.b16 %v8229, %v8229
        %v8262 = vpack.c.b16 %v8230, %v8230
        %v8263 = vpack.c.b16 %v8231, %v8231
        %v8264 = vpack.c.b16 %v8232, %v8232
        %v8265 = vpack.c.b16 %v8233, %v8233
        %v8266 = vpack.c.b16 %v8234, %v8234
        %v8267 = vpack.c.b16 %v8235, %v8235
        %v8268 = vpack.c.b16 %v8236, %v8236
        %v8269 = vpack.c.b16 %v8237, %v8237
        %v8270 = vpack.c.b16 %v8238, %v8238
        %v8271 = vpack.c.b16 %v8239, %v8239
        %v8272 = vpack.c.b16 %v8240, %v8240
        %v8273 = vpack.c.b16 %v8241, %v8241
        %v8274 = vpack.c.b16 %v8242, %v8242
        %v8275 = vpack.c.b16 %v8243, %v8243
        %v8276 = vpack.c.b16 %v8244, %v8244
        %v8277 = vpack.c.b16 %v8245, %v8245
        %v8278 = vpack.c.b16 %v8246, %v8246
        %v8279 = vpack.c.b16 %v8247, %v8247
        %v8280 = vpack.c.b16 %v8248, %v8248
        %v8281 = vpack.c.b16 %v8249, %v8249
        %v8282 = vpack.c.b16 %v8250, %v8250
        %v8283 = vpack.c.b16 %v8251, %v8251
        %v8284 = vpack.c.b16 %v8252, %v8252
        %v8285 = vpack.c.b16 %v8253, %v8253
        %v8286 = vpack.c.b16 %v8254, %v8254
        %v8287 = vpack.c.b16 %v8255, %v8255
        %8320 = vst [vmem:[%s354] sm:$0xf] %v8256
        %8321 = vst [vmem:[%s354 + $0x4] sm:$0xf] %v8257
        %8322 = vst [vmem:[%s354 + $0x8] sm:$0xf] %v8258
        %8323 = vst [vmem:[%s354 + $0xc] sm:$0xf] %v8259
        %8324 = vst [vmem:[%s354 + $0x10] sm:$0xf] %v8260
        %8325 = vst [vmem:[%s354 + $0x14] sm:$0xf] %v8261
        %8326 = vst [vmem:[%s354 + $0x18] sm:$0xf] %v8262
        %8327 = vst [vmem:[%s354 + $0x1c] sm:$0xf] %v8263
        %8328 = vst [vmem:[%s354 + $0x20] sm:$0xf] %v8264
        %8329 = vst [vmem:[%s354 + $0x24] sm:$0xf] %v8265
        %8330 = vst [vmem:[%s354 + $0x28] sm:$0xf] %v8266
        %8331 = vst [vmem:[%s354 + $0x2c] sm:$0xf] %v8267
        %8332 = vst [vmem:[%s354 + $0x30] sm:$0xf] %v8268
        %8333 = vst [vmem:[%s354 + $0x34] sm:$0xf] %v8269
        %8334 = vst [vmem:[%s354 + $0x38] sm:$0xf] %v8270
        %8335 = vst [vmem:[%s354 + $0x3c] sm:$0xf] %v8271
        %8336 = vst [vmem:[%s354 + $0x40] sm:$0xf] %v8272
        %8337 = vst [vmem:[%s354 + $0x44] sm:$0xf] %v8273
        %8338 = vst [vmem:[%s354 + $0x48] sm:$0xf] %v8274
        %8339 = vst [vmem:[%s354 + $0x4c] sm:$0xf] %v8275
        %8340 = vst [vmem:[%s354 + $0x50] sm:$0xf] %v8276
        %8341 = vst [vmem:[%s354 + $0x54] sm:$0xf] %v8277
        %8342 = vst [vmem:[%s354 + $0x58] sm:$0xf] %v8278
        %8343 = vst [vmem:[%s354 + $0x5c] sm:$0xf] %v8279
        %8344 = vst [vmem:[%s354 + $0x60] sm:$0xf] %v8280
        %8345 = vst [vmem:[%s354 + $0x64] sm:$0xf] %v8281
        %8346 = vst [vmem:[%s354 + $0x68] sm:$0xf] %v8282
        %8347 = vst [vmem:[%s354 + $0x6c] sm:$0xf] %v8283
        %8348 = vst [vmem:[%s354 + $0x70] sm:$0xf] %v8284
        %8349 = vst [vmem:[%s354 + $0x74] sm:$0xf] %v8285
        %8350 = vst [vmem:[%s354 + $0x78] sm:$0xf] %v8286
        %8351 = vst [vmem:[%s354 + $0x7c] sm:$0xf] %v8287
        %s8352 = sand.u32 %s200, 1
        %s8353 = scalar_lea.sflag [#allocation5], %s8352
        %s8354 = sand.u32 %s200, 1
        %s8355 = smul.addr %s8354, 128
        %s8356 = scalar_lea.vmem [#allocation11], %s8355
        // Predicated region
        $region65: #{tpu_custom_call.1} parent=47 // pred_check
          %p8357 = pneg %p210
        $region66: #{tpu_custom_call.1} parent=47 // pred_check_branch
          %8359 = sbr.rel (%p8357) target = $region68
        $region67: #{tpu_custom_call.1} parent=47 // pred_region
          %s8360 = smul.u32 16, %s31
          %s8362 = ssub.s32 2048, 2048
          %8363 = vsyncadd %s8353, %s8362
          %s8364 = smul.addr %s8360, 2
          %s8365 = smul.addr %s30, 32
          %s8366 = sadd.s32 %s8364, %s8365
          %s8367 = smul.addr %s8366, 64
          %s8368 = scalar_lea.hbm %s7, %s8367
          %s8369 = sshll.u32 %s8356, 4
          %s8370 = int_to_ptr.vmem [resolvable:$true] %s8369
          %8375 = dma.vmem_to_hbm [thread:$0]  %s8370, 2048, %s8368, %s8353, 64, 64, 4
        $region68: #{tpu_custom_call.1} parent=47 // pred_fallthru
          _
      $region48: #{tpu_custom_call.1} parent=5 // pred_fallthru
        _
      %p8376 = scmp.le.s32.totalorder 2, %s21
      // Predicated region
      $region69: #{tpu_custom_call.1} parent=5 // pred_check
        %p8377 = pneg %p8376
      $region70: #{tpu_custom_call.1} parent=5 // pred_check_branch
        %8379 = sbr.rel (%p8377) target = $region72
      $region71: #{tpu_custom_call.1} parent=5 // pred_region
        %s8380 = ssub.s32 %s21, 2
        // Predicated region
        $region73: #{tpu_custom_call.1} parent=71 // pred_check
          %p8381 = pneg %p216
        $region74: #{tpu_custom_call.1} parent=71 // pred_check_branch
          %8383 = sbr.rel (%p8381) target = $region76
        $region75: #{tpu_custom_call.1} parent=71 // pred_region
          %s8384 = sand.u32 %s201, 1
          %s8385 = scalar_lea.sflag [#allocation5], %s8384
          %s8386 = sand.u32 %s201, 1
          %s8387 = smul.addr %s8386, 128
          %s8388 = scalar_lea.vmem [#allocation11], %s8387
          %8389 = dma.done %s8385, 2048
        $region76: #{tpu_custom_call.1} parent=71 // pred_fallthru
          _
      $region72: #{tpu_custom_call.1} parent=5 // pred_fallthru
        _
    $region6: #{tpu_custom_call.1} parent=1 // loop_footer
      %s25 = sadd.s32 1, %s21
    $region7: #{tpu_custom_call.1} parent=1 // loop_footer_branch
      %20 = sbr.rel target = $region3
    $region8: #{tpu_custom_call.1} parent=1 // loop_exit
      _
    %8390 = vsyncpa [#allocation4], 1
    %s8391 = scalar_lea.sflag [#allocation4], 1
    %8392 = vsyncpa %s8391, 1
    %8393 = vsyncpa [#allocation7], 1
    %8394 = vsyncpa [#allocation10], 1
    %8395 = vsyncpa [#allocation5], 1
    %s8396 = scalar_lea.sflag [#allocation5], 1
    %8397 = vsyncpa %s8396, 1

</llo_original>
